<compile_context>
chip_gen: v7x
topology: tpu7x:2x2x1
jax: 0.10.0
libtpu: 0.0.40
codegen_flags: <defaults>
</compile_context>

<pallas_src>
import functools

import jax
import jax.numpy as jnp
from jax import lax
from jax.experimental import pallas as pl
from jax.experimental.pallas import tpu as pltpu

NEG_SLOPE = 0.01          # F.leaky_relu default negative_slope
MASK_SCALE = 1.0e8
BN_EPS = 1e-5             # nn.BatchNorm2d default eps
NUM_LAYERS = 5


def _round_up(v, m):
    return (v + m - 1) // m * m


def _batched_matmul(w_b, h):
    """[i, o, c] @ [i, c, j] -> [i, o, j] on the MXU with f32 accumulation."""
    return lax.dot_general(
        w_b, h,
        dimension_numbers=(((2,), (1,)), ((0,), (0,))),
        preferred_element_type=jnp.float32)


def _matgen_kernel(x_i_ref, x_j_ref, mask_ref, w_ref, out_ref, *,
                   tile_i, c_pad, n_pad, matmul_dtype):
    """One grid step = one (batch, row-block) tile.

    x_i_ref  : (1, TILE_I, c_pad, 1)  node features of the TILE_I rows i
    x_j_ref  : (1, c_pad, N_pad)      node features of all columns j
                                      (row `ones_ch` == 1.0 -> carries the biases)
    mask_ref : (1, TILE_I, N_pad)     matrix_id (1.0 in padded j lanes / i rows)
    w_ref    : (5, c_pad, c_pad)      conv+BN folded weights, bias in the ones
                                      column, zero padded
    out_ref  : (1, TILE_I, N_pad)     row-softmaxed matrix
    """
    x_i = x_i_ref[0]                                        # [TILE_I, c_pad, 1]
    x_j = x_j_ref[0][None, :, :]                            # [1, c_pad, N_pad]
    xi_b = jnp.broadcast_to(x_i, (tile_i, c_pad, n_pad))
    xj_b = jnp.broadcast_to(x_j, (tile_i, c_pad, n_pad))
    h = jnp.abs(xi_b - xj_b).astype(matmul_dtype)           # [TILE_I, c_pad, N_pad]

    # Four (conv1x1 + BN + leaky_relu) layers as batched MXU matmuls.  Zero
    # padding keeps unused channel rows exactly zero through every layer; the
    # constant "ones" channel carries the folded biases and survives the
    # activation because leaky_relu(1) == 1.
    for l in range(NUM_LAYERS - 1):
        w_l = jnp.broadcast_to(w_ref[l][None, :, :], (tile_i, c_pad, c_pad))
        h = _batched_matmul(w_l, h)                         # f32
        h = jnp.maximum(h, NEG_SLOPE * h).astype(matmul_dtype)   # leaky_relu

    # Last conv: only output channel 0 is needed -> compute just an
    # 8-row, sublane-aligned slice of it.
    w_last = w_ref[NUM_LAYERS - 1][0:8, :]                  # [8, c_pad]
    w_last = jnp.broadcast_to(w_last[None, :, :], (tile_i, 8, c_pad))
    h_last = _batched_matmul(w_last, h)                     # f32 [TILE_I, 8, N_pad]

    # Diagonal / padding mask and per-row softmax over j -- all in f32.
    logits = h_last[:, 0, :] - mask_ref[0] * MASK_SCALE     # [TILE_I, N_pad]
    m = jnp.max(logits, axis=-1, keepdims=True)
    e = jnp.exp(logits - m)                                 # exactly 0 on masked lanes
    s = jnp.sum(e, axis=-1, keepdims=True)
    inv = pl.reciprocal(s, approx=True)                     # EUP reciprocal ...
    inv = inv * (2.0 - s * inv)                             # ... + 1 Newton step
    out_ref[0] = e * inv                                    # lane-dense store


def _fold_conv_bn(w, b, gamma, beta, mean, var):
    """Fold eval-mode BatchNorm into a 1x1 conv; returns ([C_out, C_in], [C_out])."""
    scale = gamma / jnp.sqrt(var + BN_EPS)
    w_f = (w * scale[None, :]).T
    b_f = (b - mean) * scale + beta
    return w_f, b_f


def _pick_tile_i(n, batch, c_pad, n_pad, vmem_budget_bytes=12 << 20):
    """Row-block size sized against a conservative VMEM budget (v7x has the
    smallest VMEM: 64 MiB physical / 32 MiB default scoped), capped at 128."""
    per_row = c_pad * n_pad * 4 * 6      # ~6 live [TILE_I, c_pad, N_pad] f32 temps
    cap = max(8, (vmem_budget_bytes // per_row) // 8 * 8)
    tile = int(min(_round_up(n, 8), 128, cap))
    if batch == 1 and tile >= n and n > 8:
        tile = _round_up((n + 1) // 2, 8)   # >=2 parallel steps for v7x's 2 TCs
    return tile


def matrix_generator_forward(x, matrix_id, params, *, matmul_dtype=jnp.float32,
                             tile_i=None):
    """x: [B, N, F] node features; matrix_id: [B, N, N, 1]. Returns [B, N, N, 2].

    matmul_dtype=jnp.bfloat16 gives ~3x MXU throughput at large N (softmax stays
    f32) at the cost of ~1e-3-level absolute error vs. the f32 reference.
    """
    B, N, F = x.shape

    # Fold eval-mode BN into the convs; pack everything into one zero-padded
    # weight slab with the bias in an extra constant-"ones" channel column.
    folded = []
    for li in range(NUM_LAYERS - 1):
        w, b, gamma, beta, mean, var = params[li]
        folded.append(_fold_conv_bn(w, b, gamma, beta, mean, var))
    w5, b5 = params[NUM_LAYERS - 1]
    folded.append((w5.T, b5))

    max_ch = max([F] + [wf.shape[0] for wf, _ in folded])
    c_pad = _round_up(max_ch + 1, 8)      # +1: constant "ones" channel for biases
    ones_ch = c_pad - 1

    w_slab = jnp.zeros((NUM_LAYERS, c_pad, c_pad), jnp.float32)
    for l, (wf, bf) in enumerate(folded):
        co, ci = wf.shape
        w_slab = w_slab.at[l, :co, :ci].set(wf)
        w_slab = w_slab.at[l, :co, ones_ch].set(bf)        # bias column
        w_slab = w_slab.at[l, ones_ch, ones_ch].set(1.0)   # keep ones channel alive
    w_slab = w_slab.astype(matmul_dtype)

    n_pad = _round_up(N, 128)
    if tile_i is None:
        tile_i = _pick_tile_i(N, B, c_pad, n_pad)
    n_i_pad = _round_up(N, tile_i)

    xf = x.astype(jnp.float32)
    # Row view (i side): nodes on sublanes, channels on lanes, trailing unit lane.
    x_i_pad = jnp.zeros((B, n_i_pad, c_pad), jnp.float32).at[:, :N, :F].set(xf)
    x_i_pad = x_i_pad[..., None]                            # [B, n_i_pad, c_pad, 1]
    # Column view (j side): channels on sublanes, nodes on lanes; the ones-channel
    # row is 1.0 so |x_i[ones] - x_j[ones]| == 1 everywhere (bias input).
    x_j_pad = jnp.zeros((B, c_pad, n_pad), jnp.float32)
    x_j_pad = x_j_pad.at[:, :F, :N].set(jnp.transpose(xf, (0, 2, 1)))
    x_j_pad = x_j_pad.at[:, ones_ch, :].set(1.0)
    # matrix_id padded with 1.0 so padded j lanes (and padded i rows) get the same
    # -1e8 treatment as the diagonal and contribute exactly 0 to the softmax.
    mask_pad = jnp.ones((B, n_i_pad, n_pad), jnp.float32)
    mask_pad = mask_pad.at[:, :N, :N].set(matrix_id[..., 0].astype(jnp.float32))

    kernel = functools.partial(_matgen_kernel, tile_i=tile_i, c_pad=c_pad,
                               n_pad=n_pad, matmul_dtype=matmul_dtype)
    soft_pad = pl.pallas_call(
        kernel,
        out_shape=jax.ShapeDtypeStruct((B, n_i_pad, n_pad), jnp.float32),
        grid_spec=pltpu.PrefetchScalarGridSpec(
            num_scalar_prefetch=0,
            grid=(B, n_i_pad // tile_i),
            in_specs=[
                pl.BlockSpec((1, tile_i, c_pad, 1), lambda b, t: (b, t, 0, 0)),
                pl.BlockSpec((1, c_pad, n_pad), lambda b, t: (b, 0, 0)),
                pl.BlockSpec((1, tile_i, n_pad), lambda b, t: (b, t, 0)),
                # Constant index_map -> Pallas re-uses the resident VMEM block
                # across steps (pl.Buffered(1) would only reclaim ~5*c_pad^2 words,
                # left at the default for robustness).
                pl.BlockSpec((NUM_LAYERS, c_pad, c_pad), lambda b, t: (0, 0, 0)),
            ],
            out_specs=pl.BlockSpec((1, tile_i, n_pad), lambda b, t: (b, t, 0)),
        ),
        compiler_params=pltpu.CompilerParams(
            dimension_semantics=("parallel", "parallel")),
    )(x_i_pad, x_j_pad, mask_pad, w_slab)

    soft = soft_pad[:, :N, :N].reshape(B, N, N, 1)
    return jnp.concatenate([matrix_id, soft], axis=-1)      # operator='J2'


def reference_forward(x, matrix_id, params):
    """Pure-JAX reference matching the PyTorch forward (eval-mode BN)."""
    h = jnp.abs(x[:, :, None, :] - x[:, None, :, :])        # [B, N, N, F]
    for li in range(NUM_LAYERS - 1):
        w, b, gamma, beta, mean, var = params[li]
        h = jnp.einsum('bijf,fc->bijc', h, w) + b
        h = gamma * (h - mean) / jnp.sqrt(var + BN_EPS) + beta
        h = jnp.where(h > 0, h, NEG_SLOPE * h)
    w5, b5 = params[NUM_LAYERS - 1]
    h = jnp.einsum('bijf,fc->bijc', h, w5) + b5              # [B, N, N, 1]
    m = h - matrix_id * MASK_SCALE
    soft = jax.nn.softmax(m[..., 0], axis=-1)[..., None]
    return jnp.concatenate([matrix_id, soft], axis=-1)


def init_params(key, in_features, hid_features, ratio):
    """Deterministic synthetic parameters (conv [C_in, C_out], bias [C_out], BN stats)."""
    chans = [in_features] + [int(hid_features * r) for r in ratio] + [1]
    params = []
    for li in range(NUM_LAYERS):
        cin, cout = chans[li], chans[li + 1]
        key, kw, kb = jax.random.split(key, 3)
        w = jax.random.normal(kw, (cin, cout), jnp.float32) / jnp.sqrt(cin)
        b = 0.1 * jax.random.normal(kb, (cout,), jnp.float32)
        if li < NUM_LAYERS - 1:
            key, kg, kbe, km, kv = jax.random.split(key, 5)
            gamma = 1.0 + 0.1 * jax.random.normal(kg, (cout,), jnp.float32)
            beta = 0.1 * jax.random.normal(kbe, (cout,), jnp.float32)
            mean = 0.1 * jax.random.normal(km, (cout,), jnp.float32)
            var = 1.0 + 0.1 * jax.random.uniform(kv, (cout,), jnp.float32)
            params.append((w, b, gamma, beta, mean, var))
        else:
            params.append((w, b))
    return params


if __name__ == "__main__":
    key = jax.random.PRNGKey(0)
    B, N, F_IN, HID = 2, 16, 8, 16
    RATIO = [2, 2, 1, 1]

    kp, kx = jax.random.split(key)
    params = init_params(kp, F_IN, HID, RATIO)
    x = jax.random.normal(kx, (B, N, F_IN), jnp.float32)
    matrix_id = jnp.broadcast_to(
        jnp.eye(N, dtype=jnp.float32)[None, :, :, None], (B, N, N, 1))

    out = jax.block_until_ready(matrix_generator_forward(x, matrix_id, params))
    ref = reference_forward(x, matrix_id, params)

    assert out.shape == (B, N, N, 2), out.shape
    max_err = float(jnp.max(jnp.abs(out - ref)))
    assert jnp.allclose(out, ref, atol=1e-4, rtol=1e-4), max_err
    print("KERNEL_OK")
</pallas_src>

<mosaic_0001>
module attributes {stable_mosaic.version = 11 : i64} {
  func.func @_matgen_kernel(%arg0: i32, %arg1: i32, %arg2: memref<1x16x40x1xf32, #tpu.memory_space<vmem>>, %arg3: memref<1x40x128xf32, #tpu.memory_space<vmem>>, %arg4: memref<1x16x128xf32, #tpu.memory_space<vmem>>, %arg5: memref<5x40x40xf32, #tpu.memory_space<vmem>>, %arg6: memref<1x16x128xf32, #tpu.memory_space<vmem>>) attributes {dimension_semantics = [#tpu.dimension_semantics<parallel>, #tpu.dimension_semantics<parallel>], iteration_bounds = array<i64: 2, 1>, scalar_prefetch = 0 : i64, scratch_operands = 0 : i64, tpu.core_type = #tpu.core_type<tc>, window_params = [{transform_indices = @transform_0, window_bounds = array<i64: 1, 16, 40, 1>}, {transform_indices = @transform_1, window_bounds = array<i64: 1, 40, 128>}, {transform_indices = @transform_2, window_bounds = array<i64: 1, 16, 128>}, {pipeline_mode = #tpu.pipeline_mode<synchronous>, transform_indices = @transform_3, window_bounds = array<i64: 5, 40, 40>}, {transform_indices = @transform_4, window_bounds = array<i64: 1, 16, 128>}]} {
    %c0 = arith.constant 0 : index
    %c0_0 = arith.constant 0 : index
    %c0_1 = arith.constant 0 : index
    %c0_2 = arith.constant 0 : index
    %0 = vector.load %arg2[%c0, %c0_0, %c0_1, %c0_2] : memref<1x16x40x1xf32, #tpu.memory_space<vmem>>, vector<1x16x40x1xf32>
    %1 = vector.shape_cast %0 : vector<1x16x40x1xf32> to vector<16x40x1xf32>
    %c0_3 = arith.constant 0 : index
    %c0_4 = arith.constant 0 : index
    %c0_5 = arith.constant 0 : index
    %2 = vector.load %arg3[%c0_3, %c0_4, %c0_5] : memref<1x40x128xf32, #tpu.memory_space<vmem>>, vector<1x40x128xf32>
    %3 = vector.shape_cast %2 : vector<1x40x128xf32> to vector<40x128xf32>
    %4 = vector.shape_cast %3 : vector<40x128xf32> to vector<1x40x128xf32>
    %5 = vector.shape_cast %1 : vector<16x40x1xf32> to vector<16x40x1xf32>
    %6 = vector.broadcast %5 : vector<16x40x1xf32> to vector<16x40x128xf32>
    %7 = vector.shape_cast %4 : vector<1x40x128xf32> to vector<1x40x128xf32>
    %8 = vector.broadcast %7 : vector<1x40x128xf32> to vector<16x40x128xf32>
    %9 = arith.subf %6, %8 : vector<16x40x128xf32>
    %10 = math.absf %9 : vector<16x40x128xf32>
    %c0_6 = arith.constant 0 : index
    %c0_7 = arith.constant 0 : index
    %c0_8 = arith.constant 0 : index
    %11 = vector.load %arg5[%c0_6, %c0_7, %c0_8] : memref<5x40x40xf32, #tpu.memory_space<vmem>>, vector<1x40x40xf32>
    %12 = vector.shape_cast %11 : vector<1x40x40xf32> to vector<40x40xf32>
    %13 = vector.shape_cast %12 : vector<40x40xf32> to vector<1x40x40xf32>
    %14 = vector.shape_cast %13 : vector<1x40x40xf32> to vector<1x40x40xf32>
    %15 = vector.broadcast %14 : vector<1x40x40xf32> to vector<16x40x40xf32>
    %cst = arith.constant dense<0.000000e+00> : vector<16x40x128xf32>
    %16 = tpu.matmul %15, %10, %cst {dimension_numbers = #tpu.dot_dimension_numbers<[2], [1], [1], [2], [0, 0, 0, 1, 1, 2], [0], [0]>} : vector<16x40x40xf32>, vector<16x40x128xf32>, vector<16x40x128xf32> -> vector<16x40x128xf32>
    %cst_9 = arith.constant 0.00999999977 : f32
    %17 = vector.broadcast %cst_9 : f32 to vector<16x40x128xf32>
    %18 = arith.mulf %17, %16 : vector<16x40x128xf32>
    %19 = arith.maximumf %16, %18 : vector<16x40x128xf32>
    %c1 = arith.constant 1 : index
    %c0_10 = arith.constant 0 : index
    %c0_11 = arith.constant 0 : index
    %20 = vector.load %arg5[%c1, %c0_10, %c0_11] : memref<5x40x40xf32, #tpu.memory_space<vmem>>, vector<1x40x40xf32>
    %21 = vector.shape_cast %20 : vector<1x40x40xf32> to vector<40x40xf32>
    %22 = vector.shape_cast %21 : vector<40x40xf32> to vector<1x40x40xf32>
    %23 = vector.shape_cast %22 : vector<1x40x40xf32> to vector<1x40x40xf32>
    %24 = vector.broadcast %23 : vector<1x40x40xf32> to vector<16x40x40xf32>
    %cst_12 = arith.constant dense<0.000000e+00> : vector<16x40x128xf32>
    %25 = tpu.matmul %24, %19, %cst_12 {dimension_numbers = #tpu.dot_dimension_numbers<[2], [1], [1], [2], [0, 0, 0, 1, 1, 2], [0], [0]>} : vector<16x40x40xf32>, vector<16x40x128xf32>, vector<16x40x128xf32> -> vector<16x40x128xf32>
    %cst_13 = arith.constant 0.00999999977 : f32
    %26 = vector.broadcast %cst_13 : f32 to vector<16x40x128xf32>
    %27 = arith.mulf %26, %25 : vector<16x40x128xf32>
    %28 = arith.maximumf %25, %27 : vector<16x40x128xf32>
    %c2 = arith.constant 2 : index
    %c0_14 = arith.constant 0 : index
    %c0_15 = arith.constant 0 : index
    %29 = vector.load %arg5[%c2, %c0_14, %c0_15] : memref<5x40x40xf32, #tpu.memory_space<vmem>>, vector<1x40x40xf32>
    %30 = vector.shape_cast %29 : vector<1x40x40xf32> to vector<40x40xf32>
    %31 = vector.shape_cast %30 : vector<40x40xf32> to vector<1x40x40xf32>
    %32 = vector.shape_cast %31 : vector<1x40x40xf32> to vector<1x40x40xf32>
    %33 = vector.broadcast %32 : vector<1x40x40xf32> to vector<16x40x40xf32>
    %cst_16 = arith.constant dense<0.000000e+00> : vector<16x40x128xf32>
    %34 = tpu.matmul %33, %28, %cst_16 {dimension_numbers = #tpu.dot_dimension_numbers<[2], [1], [1], [2], [0, 0, 0, 1, 1, 2], [0], [0]>} : vector<16x40x40xf32>, vector<16x40x128xf32>, vector<16x40x128xf32> -> vector<16x40x128xf32>
    %cst_17 = arith.constant 0.00999999977 : f32
    %35 = vector.broadcast %cst_17 : f32 to vector<16x40x128xf32>
    %36 = arith.mulf %35, %34 : vector<16x40x128xf32>
    %37 = arith.maximumf %34, %36 : vector<16x40x128xf32>
    %c3 = arith.constant 3 : index
    %c0_18 = arith.constant 0 : index
    %c0_19 = arith.constant 0 : index
    %38 = vector.load %arg5[%c3, %c0_18, %c0_19] : memref<5x40x40xf32, #tpu.memory_space<vmem>>, vector<1x40x40xf32>
    %39 = vector.shape_cast %38 : vector<1x40x40xf32> to vector<40x40xf32>
    %40 = vector.shape_cast %39 : vector<40x40xf32> to vector<1x40x40xf32>
    %41 = vector.shape_cast %40 : vector<1x40x40xf32> to vector<1x40x40xf32>
    %42 = vector.broadcast %41 : vector<1x40x40xf32> to vector<16x40x40xf32>
    %cst_20 = arith.constant dense<0.000000e+00> : vector<16x40x128xf32>
    %43 = tpu.matmul %42, %37, %cst_20 {dimension_numbers = #tpu.dot_dimension_numbers<[2], [1], [1], [2], [0, 0, 0, 1, 1, 2], [0], [0]>} : vector<16x40x40xf32>, vector<16x40x128xf32>, vector<16x40x128xf32> -> vector<16x40x128xf32>
    %cst_21 = arith.constant 0.00999999977 : f32
    %44 = vector.broadcast %cst_21 : f32 to vector<16x40x128xf32>
    %45 = arith.mulf %44, %43 : vector<16x40x128xf32>
    %46 = arith.maximumf %43, %45 : vector<16x40x128xf32>
    %c4 = arith.constant 4 : index
    %c0_22 = arith.constant 0 : index
    %c0_23 = arith.constant 0 : index
    %47 = vector.load %arg5[%c4, %c0_22, %c0_23] : memref<5x40x40xf32, #tpu.memory_space<vmem>>, vector<1x40x40xf32>
    %48 = vector.shape_cast %47 : vector<1x40x40xf32> to vector<40x40xf32>
    %49 = vector.extract_strided_slice %48 {offsets = [0, 0], sizes = [8, 40], strides = [1, 1]} : vector<40x40xf32> to vector<8x40xf32>
    %50 = vector.shape_cast %49 : vector<8x40xf32> to vector<1x8x40xf32>
    %51 = vector.shape_cast %50 : vector<1x8x40xf32> to vector<1x8x40xf32>
    %52 = vector.broadcast %51 : vector<1x8x40xf32> to vector<16x8x40xf32>
    %cst_24 = arith.constant dense<0.000000e+00> : vector<16x8x128xf32>
    %53 = tpu.matmul %52, %46, %cst_24 {dimension_numbers = #tpu.dot_dimension_numbers<[2], [1], [1], [2], [0, 0, 0, 1, 1, 2], [0], [0]>} : vector<16x8x40xf32>, vector<16x40x128xf32>, vector<16x8x128xf32> -> vector<16x8x128xf32>
    %54 = vector.extract_strided_slice %53 {offsets = [0, 0, 0], sizes = [16, 1, 128], strides = [1, 1, 1]} : vector<16x8x128xf32> to vector<16x1x128xf32>
    %55 = vector.shape_cast %54 : vector<16x1x128xf32> to vector<16x128xf32>
    %c0_25 = arith.constant 0 : index
    %c0_26 = arith.constant 0 : index
    %c0_27 = arith.constant 0 : index
    %56 = vector.load %arg4[%c0_25, %c0_26, %c0_27] : memref<1x16x128xf32, #tpu.memory_space<vmem>>, vector<1x16x128xf32>
    %57 = vector.shape_cast %56 : vector<1x16x128xf32> to vector<16x128xf32>
    %cst_28 = arith.constant 1.000000e+08 : f32
    %58 = vector.broadcast %cst_28 : f32 to vector<16x128xf32>
    %59 = arith.mulf %57, %58 : vector<16x128xf32>
    %60 = arith.subf %55, %59 : vector<16x128xf32>
    %cst_29 = arith.constant dense<0xFF800000> : vector<16xf32>
    %61 = vector.multi_reduction <maximumf>, %60, %cst_29 [1] : vector<16x128xf32> to vector<16xf32>
    %62 = vector.shape_cast %61 : vector<16xf32> to vector<16x1xf32>
    %63 = vector.broadcast %62 : vector<16x1xf32> to vector<16x128xf32>
    %64 = arith.subf %60, %63 : vector<16x128xf32>
    %65 = math.exp %64 : vector<16x128xf32>
    %cst_30 = arith.constant dense<0.000000e+00> : vector<16xf32>
    %66 = vector.multi_reduction <add>, %65, %cst_30 [1] : vector<16x128xf32> to vector<16xf32>
    %67 = vector.shape_cast %66 : vector<16xf32> to vector<16x1xf32>
    %68 = tpu.reciprocal %67 {approx = true} : vector<16x1xf32> -> vector<16x1xf32>
    %69 = arith.mulf %67, %68 : vector<16x1xf32>
    %cst_31 = arith.constant 2.000000e+00 : f32
    %70 = vector.broadcast %cst_31 : f32 to vector<16x1xf32>
    %71 = arith.subf %70, %69 : vector<16x1xf32>
    %72 = arith.mulf %68, %71 : vector<16x1xf32>
    %73 = vector.broadcast %72 : vector<16x1xf32> to vector<16x128xf32>
    %74 = arith.mulf %65, %73 : vector<16x128xf32>
    %c0_32 = arith.constant 0 : index
    %c0_33 = arith.constant 0 : index
    %c0_34 = arith.constant 0 : index
    %75 = vector.load %arg6[%c0_32, %c0_33, %c0_34] : memref<1x16x128xf32, #tpu.memory_space<vmem>>, vector<1x16x128xf32>
    %76 = vector.shape_cast %75 : vector<1x16x128xf32> to vector<16x128xf32>
    %77 = vector.shape_cast %74 : vector<16x128xf32> to vector<1x16x128xf32>
    tpu.vector_store %arg6[%c0_32, %c0_33, %c0_34], %77 {strides = array<i32>} : memref<1x16x128xf32, #tpu.memory_space<vmem>>, vector<1x16x128xf32>,
    return
  }
  func.func @transform_0(%arg0: i32, %arg1: i32) -> (i32, i32, i32, i32) {
    %c0_i32 = arith.constant 0 : i32
    %c0_i32_0 = arith.constant 0 : i32
    %c0_i32_1 = arith.constant 0 : i32
    return %arg0, %arg1, %c0_i32, %c0_i32_0 : i32, i32, i32, i32
  }
  func.func @transform_1(%arg0: i32, %arg1: i32) -> (i32, i32, i32) {
    %c0_i32 = arith.constant 0 : i32
    %c0_i32_0 = arith.constant 0 : i32
    %c0_i32_1 = arith.constant 0 : i32
    return %arg0, %c0_i32, %c0_i32_0 : i32, i32, i32
  }
  func.func @transform_2(%arg0: i32, %arg1: i32) -> (i32, i32, i32) {
    %c0_i32 = arith.constant 0 : i32
    %c0_i32_0 = arith.constant 0 : i32
    return %arg0, %arg1, %c0_i32 : i32, i32, i32
  }
  func.func @transform_3(%arg0: i32, %arg1: i32) -> (i32, i32, i32) {
    %c0_i32 = arith.constant 0 : i32
    %c0_i32_0 = arith.constant 0 : i32
    %c0_i32_1 = arith.constant 0 : i32
    %c0_i32_2 = arith.constant 0 : i32
    return %c0_i32, %c0_i32_0, %c0_i32_1 : i32, i32, i32
  }
  func.func @transform_4(%arg0: i32, %arg1: i32) -> (i32, i32, i32) {
    %c0_i32 = arith.constant 0 : i32
    %c0_i32_0 = arith.constant 0 : i32
    return %arg0, %arg1, %c0_i32 : i32, i32, i32
  }
}

</mosaic_0001>

<llo_original>
// kernel: tpu_custom_call.1
$region0: #{tpu_custom_call.1}
  #allocation0 [shape = 'u32[]', space=smem, size = 0x4, offset = 0x4, fixed_abs, tag = 'smem constant byte address 0x4 - core index']
  #allocation1 [shape = 'u32[144,128]{1,0:T(1,128)}', space=vmem, size = 0x12000, scoped, tag = 'internal scratch']
  %s0 = inlined_call_operand.vmem [shape: f32[2,16,40,1], index: 0, kind: input, shape index: {}]
  %s1 = inlined_call_operand.vmem [shape: f32[2,40,128], index: 1, kind: input, shape index: {}]
  %s2 = inlined_call_operand.vmem [shape: f32[2,16,128], index: 2, kind: input, shape index: {}]
  %s3 = inlined_call_operand.vmem [shape: f32[5,40,40], index: 3, kind: input, shape index: {}]
  %s4 = inlined_call_operand.hbm [shape: f32[2,16,128], index: 4, kind: output, shape index: {}]
  %s5 = sld [smem:[#allocation0]]
  $region49: #{tpu_custom_call.1} parent=0
    _
  %s7 = ssub.s32 1, %s5
  %s8 = scalar_select 0, %s7, %s5
  $region1: #{tpu_custom_call.1} parent=0
    #allocation2 [shape = 'u8[16384]{0}', space=vmem, size = 0x4000, scoped, tag = 'output window, operand 0']
    #allocation3 [shape = 's32[2]{0}', space=sflag, size = 0x8, scoped, tag = 'scoped memory for tpu_custom_call.1']
    %9 = vsyncpa [#allocation3], 0
    %s10 = scalar_lea.sflag [#allocation3], 1
    %11 = vsyncpa %s10, 0
    loop: start=0, step=1, limit=4
    $region2: #{tpu_custom_call.1} parent=1 // loop_pre_header
      _
    $region3: #{tpu_custom_call.1} parent=1 // loop_header
      %s13 = sphi 0, %s17
      %p14 = scmp.ge.s32.totalorder %s13, 4
      %s20 = sphi 0, %s32
      %s21 = sphi 0, %s28
      %s22 = sphi 0, %s20
      %s23 = sphi 0, %s21
      %s24 = sphi 0, %s22
      %s25 = sphi 0, %s23
      %s37 = sphi 0, %s39
      %s40 = sphi 0, %s37
      %s41 = sphi 0, %s40
      %s57 = sphi 0, %s41
      %s63 = sphi 0, %s65
      %s66 = sphi 0, %s63
      %s67 = sphi 0, %s66
      %s83 = sphi 0, %s67
      %s91 = sphi 0, %s93
      %s94 = sphi 0, %s91
      %s95 = sphi 0, %s94
      %s111 = sphi 0, %s95
      %s115 = sphi 0, %s115
      %s117 = sphi 0, %s115
      %s118 = sphi 0, %s117
      %s132 = sphi 0, %s118
      %s140 = sphi 0, %s142
      %s143 = sphi 0, %s140
      %s144 = sphi 0, %s143
      %s160 = sphi 0, %s144
    $region4: #{tpu_custom_call.1} parent=1 // loop_header_branch
      %16 = sbr.rel (%p14) target = $region8
    $region5: #{tpu_custom_call.1} parent=1 // loop_body
      %s18 = ssub.s32 %s13, 1
      %s19 = ssub.s32 %s13, 2
      %s26 = sadd.s32 1, %s21
      %p27 = scmp.ge.s32.totalorder %s26, 1
      %s28 = scalar_select %p27, 0, %s26
      %s29 = sadd.s32 1, %s20
      %s30 = scalar_select %p27, %s29, %s20
      %p31 = scmp.ge.s32.totalorder %s30, 2
      %s32 = scalar_select %p31, 0, %s30
      %s33 = ssub.s32 %s20, %s32
      %s34 = ssub.s32 %s21, %s28
      %s35 = sor.u32 %s33, %s34
      %p36 = scmp.eq.s32.totalorder %s35, 0
      %s38 = sadd.s32 %s37, 1
      %s39 = scalar_select %p36, %s37, %s38
      %p42 = pneg %p36
      %p43 = scmp.eq.s32.totalorder %s13, 1
      %p44 = por %p42, %p43
      %p45 = scmp.ne.s32.totalorder %s37, %s40
      %p46 = scmp.eq.s32.totalorder %s13, 0
      %p47 = por %p45, %p46
      %p48 = scmp.ne.s32.totalorder %s37, %s40
      %p49 = scmp.eq.s32.totalorder %s18, 1
      %p50 = por %p48, %p49
      %p51 = scmp.ne.s32.totalorder %s40, %s41
      %p52 = scmp.eq.s32.totalorder %s18, 0
      %p53 = por %p51, %p52
      %p54 = scmp.ne.s32.totalorder %s40, %s41
      %p55 = scmp.eq.s32.totalorder %s19, 1
      %p56 = por %p54, %p55
      %p58 = scmp.ne.s32.totalorder %s41, %s57
      %p59 = scmp.eq.s32.totalorder %s19, 0
      %p60 = por %p58, %p59
      %s61 = ssub.s32 %s20, %s32
      %p62 = scmp.eq.s32.totalorder %s61, 0
      %s64 = sadd.s32 %s63, 1
      %s65 = scalar_select %p62, %s63, %s64
      %p68 = pneg %p62
      %p69 = scmp.eq.s32.totalorder %s13, 1
      %p70 = por %p68, %p69
      %p71 = scmp.ne.s32.totalorder %s63, %s66
      %p72 = scmp.eq.s32.totalorder %s13, 0
      %p73 = por %p71, %p72
      %p74 = scmp.ne.s32.totalorder %s63, %s66
      %p75 = scmp.eq.s32.totalorder %s18, 1
      %p76 = por %p74, %p75
      %p77 = scmp.ne.s32.totalorder %s66, %s67
      %p78 = scmp.eq.s32.totalorder %s18, 0
      %p79 = por %p77, %p78
      %p80 = scmp.ne.s32.totalorder %s66, %s67
      %p81 = scmp.eq.s32.totalorder %s19, 1
      %p82 = por %p80, %p81
      %p84 = scmp.ne.s32.totalorder %s67, %s83
      %p85 = scmp.eq.s32.totalorder %s19, 0
      %p86 = por %p84, %p85
      %s87 = ssub.s32 %s20, %s32
      %s88 = ssub.s32 %s21, %s28
      %s89 = sor.u32 %s87, %s88
      %p90 = scmp.eq.s32.totalorder %s89, 0
      %s92 = sadd.s32 %s91, 1
      %s93 = scalar_select %p90, %s91, %s92
      %p96 = pneg %p90
      %p97 = scmp.eq.s32.totalorder %s13, 1
      %p98 = por %p96, %p97
      %p99 = scmp.ne.s32.totalorder %s91, %s94
      %p100 = scmp.eq.s32.totalorder %s13, 0
      %p101 = por %p99, %p100
      %p102 = scmp.ne.s32.totalorder %s91, %s94
      %p103 = scmp.eq.s32.totalorder %s18, 1
      %p104 = por %p102, %p103
      %p105 = scmp.ne.s32.totalorder %s94, %s95
      %p106 = scmp.eq.s32.totalorder %s18, 0
      %p107 = por %p105, %p106
      %p108 = scmp.ne.s32.totalorder %s94, %s95
      %p109 = scmp.eq.s32.totalorder %s19, 1
      %p110 = por %p108, %p109
      %p112 = scmp.ne.s32.totalorder %s95, %s111
      %p113 = scmp.eq.s32.totalorder %s19, 0
      %p114 = por %p112, %p113
      %s116 = sadd.s32 %s115, 1
      %p119 = scmp.eq.s32.totalorder %s13, 1
      %p120 = scmp.ne.s32.totalorder %s115, %s117
      %p121 = scmp.eq.s32.totalorder %s13, 0
      %p122 = por %p120, %p121
      %p123 = scmp.ne.s32.totalorder %s115, %s117
      %p124 = scmp.eq.s32.totalorder %s18, 1
      %p125 = por %p123, %p124
      %p126 = scmp.ne.s32.totalorder %s117, %s118
      %p127 = scmp.eq.s32.totalorder %s18, 0
      %p128 = por %p126, %p127
      %p129 = scmp.ne.s32.totalorder %s117, %s118
      %p130 = scmp.eq.s32.totalorder %s19, 1
      %p131 = por %p129, %p130
      %p133 = scmp.ne.s32.totalorder %s118, %s132
      %p134 = scmp.eq.s32.totalorder %s19, 0
      %p135 = por %p133, %p134
      %s136 = ssub.s32 %s20, %s32
      %s137 = ssub.s32 %s21, %s28
      %s138 = sor.u32 %s136, %s137
      %p139 = scmp.eq.s32.totalorder %s138, 0
      %s141 = sadd.s32 %s140, 1
      %s142 = scalar_select %p139, %s140, %s141
      %p145 = pneg %p139
      %p146 = scmp.eq.s32.totalorder %s13, 1
      %p147 = por %p145, %p146
      %p148 = scmp.ne.s32.totalorder %s140, %s143
      %p149 = scmp.eq.s32.totalorder %s13, 0
      %p150 = por %p148, %p149
      %p151 = scmp.ne.s32.totalorder %s140, %s143
      %p152 = scmp.eq.s32.totalorder %s18, 1
      %p153 = por %p151, %p152
      %p154 = scmp.ne.s32.totalorder %s143, %s144
      %p155 = scmp.eq.s32.totalorder %s18, 0
      %p156 = por %p154, %p155
      %p157 = scmp.ne.s32.totalorder %s143, %s144
      %p158 = scmp.eq.s32.totalorder %s19, 1
      %p159 = por %p157, %p158
      %p161 = scmp.ne.s32.totalorder %s144, %s160
      %p162 = scmp.eq.s32.totalorder %s19, 0
      %p163 = por %p161, %p162
      %p164 = scmp.le.s32.totalorder 1, %s13
      %p165 = scmp.lt.s32.totalorder %s13, 3
      %p166 = pnand %p164, %p165
      %p167 = pneg %p166
      // Predicated region
      $region9: #{tpu_custom_call.1} parent=5 // pred_check
        _
      $region10: #{tpu_custom_call.1} parent=5 // pred_check_branch
        %169 = sbr.rel (%p166) target = $region12
      $region11: #{tpu_custom_call.1} parent=5 // pred_region
        %s170 = ssub.s32 %s13, 1
        // Predicated region
        $region13: #{tpu_custom_call.1} parent=11 // pred_check
          %p171 = pneg %p128
        $region14: #{tpu_custom_call.1} parent=11 // pred_check_branch
          %173 = sbr.rel (%p171) target = $region16
        $region15: #{tpu_custom_call.1} parent=11 // pred_region
          _
        $region16: #{tpu_custom_call.1} parent=11 // pred_fallthru
          _
      $region12: #{tpu_custom_call.1} parent=5 // pred_fallthru
        _
      %p174 = scmp.lt.s32.totalorder %s13, 2
      // Predicated region
      $region17: #{tpu_custom_call.1} parent=5 // pred_check
        %p175 = pneg %p174
      $region18: #{tpu_custom_call.1} parent=5 // pred_check_branch
        %177 = sbr.rel (%p175) target = $region20
      $region19: #{tpu_custom_call.1} parent=5 // pred_region
        // Predicated region
        $region21: #{tpu_custom_call.1} parent=19 // pred_check
          %p178 = pneg %p47
        $region22: #{tpu_custom_call.1} parent=19 // pred_check_branch
          %180 = sbr.rel (%p178) target = $region24
        $region23: #{tpu_custom_call.1} parent=19 // pred_region
          %s181 = smul.u32 16, %s21
          %p182 = scmp.lt.s32.totalorder %s20, 1
          %s183 = scalar_select %p182, %s20, 1
          %p184 = scmp.lt.s32.totalorder %s181, 15
          %s185 = scalar_select %p184, %s181, 15
          %s186 = smul.addr %s185, 5
          %s187 = smul.addr %s183, 80
          %s188 = sadd.s32 %s186, %s187
          %s189 = smul.addr %s188, 8
          %s190 = scalar_lea.vmem %s0, %s189
          %s191 = smul.u32 16, %s21
        $region24: #{tpu_custom_call.1} parent=19 // pred_fallthru
          _
        // Predicated region
        $region25: #{tpu_custom_call.1} parent=19 // pred_check
          %p192 = pneg %p73
        $region26: #{tpu_custom_call.1} parent=19 // pred_check_branch
          %194 = sbr.rel (%p192) target = $region28
        $region27: #{tpu_custom_call.1} parent=19 // pred_region
          %p195 = scmp.lt.s32.totalorder %s20, 1
          %s196 = scalar_select %p195, %s20, 1
          %s197 = smul.addr %s196, 5
          %s198 = smul.addr %s197, 8
          %s199 = scalar_lea.vmem %s1, %s198
        $region28: #{tpu_custom_call.1} parent=19 // pred_fallthru
          _
        // Predicated region
        $region29: #{tpu_custom_call.1} parent=19 // pred_check
          %p200 = pneg %p101
        $region30: #{tpu_custom_call.1} parent=19 // pred_check_branch
          %202 = sbr.rel (%p200) target = $region32
        $region31: #{tpu_custom_call.1} parent=19 // pred_region
          %s203 = smul.u32 2, %s21
          %p204 = scmp.lt.s32.totalorder %s20, 1
          %s205 = scalar_select %p204, %s20, 1
          %p206 = scmp.lt.s32.totalorder %s203, 1
          %s207 = scalar_select %p206, %s203, 1
          %s208 = smul.addr %s205, 2
          %s209 = sadd.s32 %s207, %s208
          %s210 = smul.addr %s209, 8
          %s211 = scalar_lea.vmem %s2, %s210
          %s212 = smul.u32 2, %s21
        $region32: #{tpu_custom_call.1} parent=19 // pred_fallthru
          _
      $region20: #{tpu_custom_call.1} parent=5 // pred_fallthru
        _
      %p213 = scmp.le.s32.totalorder 1, %s13
      %p214 = scmp.lt.s32.totalorder %s13, 3
      %p215 = pnand %p213, %p214
      %p216 = pneg %p215
      // Predicated region
      $region33: #{tpu_custom_call.1} parent=5 // pred_check
        _
      $region34: #{tpu_custom_call.1} parent=5 // pred_check_branch
        %218 = sbr.rel (%p215) target = $region36
      $region35: #{tpu_custom_call.1} parent=5 // pred_region
        %s219 = ssub.s32 %s13, 1
        %s220 = smul.u32 16, %s23
        %p221 = scmp.lt.s32.totalorder %s22, 1
        %s222 = scalar_select %p221, %s22, 1
        %p223 = scmp.lt.s32.totalorder %s220, 15
        %s224 = scalar_select %p223, %s220, 15
        %s225 = smul.addr %s224, 5
        %s226 = smul.addr %s222, 80
        %s227 = sadd.s32 %s225, %s226
        %s228 = smul.addr %s227, 8
        %s229 = scalar_lea.vmem %s0, %s228
        %p230 = pneg %p53
        %p231 = pneg %p50
        %p232 = scmp.lt.s32.totalorder %s22, 1
        %s233 = scalar_select %p232, %s22, 1
        %s234 = smul.addr %s233, 5
        %s235 = smul.addr %s234, 8
        %s236 = scalar_lea.vmem %s1, %s235
        %p237 = pneg %p79
        %p238 = pneg %p76
        %s239 = smul.u32 2, %s23
        %p240 = scmp.lt.s32.totalorder %s22, 1
        %s241 = scalar_select %p240, %s22, 1
        %p242 = scmp.lt.s32.totalorder %s239, 1
        %s243 = scalar_select %p242, %s239, 1
        %s244 = smul.addr %s241, 2
        %s245 = sadd.s32 %s243, %s244
        %s246 = smul.addr %s245, 8
        %s247 = scalar_lea.vmem %s2, %s246
        %p248 = pneg %p107
        %p249 = pneg %p104
        %p250 = pneg %p128
        %p251 = pneg %p125
        %p252 = pneg %p156
        %p253 = pneg %p153
        %s254 = sand.u32 %s143, 1
        %s255 = scalar_lea.sflag [#allocation3], %s254
        %s256 = sand.u32 %s143, 1
        %s257 = smul.addr %s256, 16
        %s258 = scalar_lea.vmem [#allocation2], %s257
        %s259 = smul.u32 16, %s23
        %p260 = scmp.lt.s32.totalorder %s22, 1
        %s261 = scalar_select %p260, %s22, 1
        %p262 = scmp.lt.s32.totalorder %s259, 15
        %s263 = scalar_select %p262, %s259, 15
        %s264 = smul.addr %s263, 5
        %s265 = smul.addr %s261, 80
        %s266 = sadd.s32 %s264, %s265
        %s267 = smul.addr %s266, 8
        %s268 = scalar_lea.vmem %s0, %s267
        %s269 = smul.u32 16, %s23
        %p270 = scmp.lt.s32.totalorder %s22, 1
        %s271 = scalar_select %p270, %s22, 1
        %s272 = smul.addr %s271, 5
        %s273 = smul.addr %s272, 8
        %s274 = scalar_lea.vmem %s1, %s273
        %s275 = smul.u32 2, %s23
        %p276 = scmp.lt.s32.totalorder %s22, 1
        %s277 = scalar_select %p276, %s22, 1
        %p278 = scmp.lt.s32.totalorder %s275, 1
        %s279 = scalar_select %p278, %s275, 1
        %s280 = smul.addr %s277, 2
        %s281 = sadd.s32 %s279, %s280
        %s282 = smul.addr %s281, 8
        %s283 = scalar_lea.vmem %s2, %s282
        %s284 = smul.u32 2, %s23
        %s285 = smul.u32 2, %s23
        %v286 = vld [vmem:[%s268] sm:$0xff]
        %v287 = vld [vmem:[%s268 + $0x8] sm:$0xff]
        %v288 = vld [vmem:[%s268 + $0x10] sm:$0xff]
        %v289 = vld [vmem:[%s268 + $0x18] sm:$0xff]
        %v290 = vld [vmem:[%s268 + $0x20] sm:$0xff]
        %v291 = vld [vmem:[%s268 + $0x28] sm:$0xff]
        %v292 = vld [vmem:[%s268 + $0x30] sm:$0xff]
        %v293 = vld [vmem:[%s268 + $0x38] sm:$0xff]
        %v294 = vld [vmem:[%s268 + $0x40] sm:$0xff]
        %v295 = vld [vmem:[%s268 + $0x48] sm:$0xff]
        %v296 = vld [vmem:[%s268 + $0x50] sm:$0xff]
        %v297 = vld [vmem:[%s268 + $0x58] sm:$0xff]
        %v298 = vld [vmem:[%s268 + $0x60] sm:$0xff]
        %v299 = vld [vmem:[%s268 + $0x68] sm:$0xff]
        %v300 = vld [vmem:[%s268 + $0x70] sm:$0xff]
        %v301 = vld [vmem:[%s268 + $0x78] sm:$0xff]
        %v302 = vld [vmem:[%s268 + $0x80] sm:$0xff]
        %v303 = vld [vmem:[%s268 + $0x88] sm:$0xff]
        %v304 = vld [vmem:[%s268 + $0x90] sm:$0xff]
        %v305 = vld [vmem:[%s268 + $0x98] sm:$0xff]
        %v306 = vld [vmem:[%s268 + $0xa0] sm:$0xff]
        %v307 = vld [vmem:[%s268 + $0xa8] sm:$0xff]
        %v308 = vld [vmem:[%s268 + $0xb0] sm:$0xff]
        %v309 = vld [vmem:[%s268 + $0xb8] sm:$0xff]
        %v310 = vld [vmem:[%s268 + $0xc0] sm:$0xff]
        %v311 = vld [vmem:[%s268 + $0xc8] sm:$0xff]
        %v312 = vld [vmem:[%s268 + $0xd0] sm:$0xff]
        %v313 = vld [vmem:[%s268 + $0xd8] sm:$0xff]
        %v314 = vld [vmem:[%s268 + $0xe0] sm:$0xff]
        %v315 = vld [vmem:[%s268 + $0xe8] sm:$0xff]
        %v316 = vld [vmem:[%s268 + $0xf0] sm:$0xff]
        %v317 = vld [vmem:[%s268 + $0xf8] sm:$0xff]
        %v318 = vld [vmem:[%s268 + $0x100] sm:$0xff]
        %v319 = vld [vmem:[%s268 + $0x108] sm:$0xff]
        %v320 = vld [vmem:[%s268 + $0x110] sm:$0xff]
        %v321 = vld [vmem:[%s268 + $0x118] sm:$0xff]
        %v322 = vld [vmem:[%s268 + $0x120] sm:$0xff]
        %v323 = vld [vmem:[%s268 + $0x128] sm:$0xff]
        %v324 = vld [vmem:[%s268 + $0x130] sm:$0xff]
        %v325 = vld [vmem:[%s268 + $0x138] sm:$0xff]
        %v326 = vld [vmem:[%s268 + $0x140] sm:$0xff]
        %v327 = vld [vmem:[%s268 + $0x148] sm:$0xff]
        %v328 = vld [vmem:[%s268 + $0x150] sm:$0xff]
        %v329 = vld [vmem:[%s268 + $0x158] sm:$0xff]
        %v330 = vld [vmem:[%s268 + $0x160] sm:$0xff]
        %v331 = vld [vmem:[%s268 + $0x168] sm:$0xff]
        %v332 = vld [vmem:[%s268 + $0x170] sm:$0xff]
        %v333 = vld [vmem:[%s268 + $0x178] sm:$0xff]
        %v334 = vld [vmem:[%s268 + $0x180] sm:$0xff]
        %v335 = vld [vmem:[%s268 + $0x188] sm:$0xff]
        %v336 = vld [vmem:[%s268 + $0x190] sm:$0xff]
        %v337 = vld [vmem:[%s268 + $0x198] sm:$0xff]
        %v338 = vld [vmem:[%s268 + $0x1a0] sm:$0xff]
        %v339 = vld [vmem:[%s268 + $0x1a8] sm:$0xff]
        %v340 = vld [vmem:[%s268 + $0x1b0] sm:$0xff]
        %v341 = vld [vmem:[%s268 + $0x1b8] sm:$0xff]
        %v342 = vld [vmem:[%s268 + $0x1c0] sm:$0xff]
        %v343 = vld [vmem:[%s268 + $0x1c8] sm:$0xff]
        %v344 = vld [vmem:[%s268 + $0x1d0] sm:$0xff]
        %v345 = vld [vmem:[%s268 + $0x1d8] sm:$0xff]
        %v346 = vld [vmem:[%s268 + $0x1e0] sm:$0xff]
        %v347 = vld [vmem:[%s268 + $0x1e8] sm:$0xff]
        %v348 = vld [vmem:[%s268 + $0x1f0] sm:$0xff]
        %v349 = vld [vmem:[%s268 + $0x1f8] sm:$0xff]
        %v350 = vld [vmem:[%s268 + $0x200] sm:$0xff]
        %v351 = vld [vmem:[%s268 + $0x208] sm:$0xff]
        %v352 = vld [vmem:[%s268 + $0x210] sm:$0xff]
        %v353 = vld [vmem:[%s268 + $0x218] sm:$0xff]
        %v354 = vld [vmem:[%s268 + $0x220] sm:$0xff]
        %v355 = vld [vmem:[%s268 + $0x228] sm:$0xff]
        %v356 = vld [vmem:[%s268 + $0x230] sm:$0xff]
        %v357 = vld [vmem:[%s268 + $0x238] sm:$0xff]
        %v358 = vld [vmem:[%s268 + $0x240] sm:$0xff]
        %v359 = vld [vmem:[%s268 + $0x248] sm:$0xff]
        %v360 = vld [vmem:[%s268 + $0x250] sm:$0xff]
        %v361 = vld [vmem:[%s268 + $0x258] sm:$0xff]
        %v362 = vld [vmem:[%s268 + $0x260] sm:$0xff]
        %v363 = vld [vmem:[%s268 + $0x268] sm:$0xff]
        %v364 = vld [vmem:[%s268 + $0x270] sm:$0xff]
        %v365 = vld [vmem:[%s268 + $0x278] sm:$0xff]
        %v366 = vld [vmem:[%s274] sm:$0xff]
        %v367 = vld [vmem:[%s274 + $0x8] sm:$0xff]
        %v368 = vld [vmem:[%s274 + $0x10] sm:$0xff]
        %v369 = vld [vmem:[%s274 + $0x18] sm:$0xff]
        %v370 = vld [vmem:[%s274 + $0x20] sm:$0xff]
        %372 = vset.pattern.permute.xlu0 0
        %373 = vperm.xlu0 %372, %v286
        %v374 = vpop.permute.xlu0 %373
        %377 = vset.pattern.permute.xlu0 0
        %378 = vperm.xlu0 %377, %v287
        %v379 = vpop.permute.xlu0 %378
        %382 = vset.pattern.permute.xlu0 0
        %383 = vperm.xlu0 %382, %v288
        %v384 = vpop.permute.xlu0 %383
        %387 = vset.pattern.permute.xlu0 0
        %388 = vperm.xlu0 %387, %v289
        %v389 = vpop.permute.xlu0 %388
        %392 = vset.pattern.permute.xlu0 0
        %393 = vperm.xlu0 %392, %v290
        %v394 = vpop.permute.xlu0 %393
        %397 = vset.pattern.permute.xlu0 0
        %398 = vperm.xlu0 %397, %v291
        %v399 = vpop.permute.xlu0 %398
        %402 = vset.pattern.permute.xlu0 0
        %403 = vperm.xlu0 %402, %v292
        %v404 = vpop.permute.xlu0 %403
        %407 = vset.pattern.permute.xlu0 0
        %408 = vperm.xlu0 %407, %v293
        %v409 = vpop.permute.xlu0 %408
        %412 = vset.pattern.permute.xlu0 0
        %413 = vperm.xlu0 %412, %v294
        %v414 = vpop.permute.xlu0 %413
        %417 = vset.pattern.permute.xlu0 0
        %418 = vperm.xlu0 %417, %v295
        %v419 = vpop.permute.xlu0 %418
        %422 = vset.pattern.permute.xlu0 0
        %423 = vperm.xlu0 %422, %v296
        %v424 = vpop.permute.xlu0 %423
        %427 = vset.pattern.permute.xlu0 0
        %428 = vperm.xlu0 %427, %v297
        %v429 = vpop.permute.xlu0 %428
        %432 = vset.pattern.permute.xlu0 0
        %433 = vperm.xlu0 %432, %v298
        %v434 = vpop.permute.xlu0 %433
        %437 = vset.pattern.permute.xlu0 0
        %438 = vperm.xlu0 %437, %v299
        %v439 = vpop.permute.xlu0 %438
        %442 = vset.pattern.permute.xlu0 0
        %443 = vperm.xlu0 %442, %v300
        %v444 = vpop.permute.xlu0 %443
        %447 = vset.pattern.permute.xlu0 0
        %448 = vperm.xlu0 %447, %v301
        %v449 = vpop.permute.xlu0 %448
        %452 = vset.pattern.permute.xlu0 0
        %453 = vperm.xlu0 %452, %v302
        %v454 = vpop.permute.xlu0 %453
        %457 = vset.pattern.permute.xlu0 0
        %458 = vperm.xlu0 %457, %v303
        %v459 = vpop.permute.xlu0 %458
        %462 = vset.pattern.permute.xlu0 0
        %463 = vperm.xlu0 %462, %v304
        %v464 = vpop.permute.xlu0 %463
        %467 = vset.pattern.permute.xlu0 0
        %468 = vperm.xlu0 %467, %v305
        %v469 = vpop.permute.xlu0 %468
        %472 = vset.pattern.permute.xlu0 0
        %473 = vperm.xlu0 %472, %v306
        %v474 = vpop.permute.xlu0 %473
        %477 = vset.pattern.permute.xlu0 0
        %478 = vperm.xlu0 %477, %v307
        %v479 = vpop.permute.xlu0 %478
        %482 = vset.pattern.permute.xlu0 0
        %483 = vperm.xlu0 %482, %v308
        %v484 = vpop.permute.xlu0 %483
        %487 = vset.pattern.permute.xlu0 0
        %488 = vperm.xlu0 %487, %v309
        %v489 = vpop.permute.xlu0 %488
        %492 = vset.pattern.permute.xlu0 0
        %493 = vperm.xlu0 %492, %v310
        %v494 = vpop.permute.xlu0 %493
        %497 = vset.pattern.permute.xlu0 0
        %498 = vperm.xlu0 %497, %v311
        %v499 = vpop.permute.xlu0 %498
        %502 = vset.pattern.permute.xlu0 0
        %503 = vperm.xlu0 %502, %v312
        %v504 = vpop.permute.xlu0 %503
        %507 = vset.pattern.permute.xlu0 0
        %508 = vperm.xlu0 %507, %v313
        %v509 = vpop.permute.xlu0 %508
        %512 = vset.pattern.permute.xlu0 0
        %513 = vperm.xlu0 %512, %v314
        %v514 = vpop.permute.xlu0 %513
        %517 = vset.pattern.permute.xlu0 0
        %518 = vperm.xlu0 %517, %v315
        %v519 = vpop.permute.xlu0 %518
        %522 = vset.pattern.permute.xlu0 0
        %523 = vperm.xlu0 %522, %v316
        %v524 = vpop.permute.xlu0 %523
        %527 = vset.pattern.permute.xlu0 0
        %528 = vperm.xlu0 %527, %v317
        %v529 = vpop.permute.xlu0 %528
        %532 = vset.pattern.permute.xlu0 0
        %533 = vperm.xlu0 %532, %v318
        %v534 = vpop.permute.xlu0 %533
        %537 = vset.pattern.permute.xlu0 0
        %538 = vperm.xlu0 %537, %v319
        %v539 = vpop.permute.xlu0 %538
        %542 = vset.pattern.permute.xlu0 0
        %543 = vperm.xlu0 %542, %v320
        %v544 = vpop.permute.xlu0 %543
        %547 = vset.pattern.permute.xlu0 0
        %548 = vperm.xlu0 %547, %v321
        %v549 = vpop.permute.xlu0 %548
        %552 = vset.pattern.permute.xlu0 0
        %553 = vperm.xlu0 %552, %v322
        %v554 = vpop.permute.xlu0 %553
        %557 = vset.pattern.permute.xlu0 0
        %558 = vperm.xlu0 %557, %v323
        %v559 = vpop.permute.xlu0 %558
        %562 = vset.pattern.permute.xlu0 0
        %563 = vperm.xlu0 %562, %v324
        %v564 = vpop.permute.xlu0 %563
        %567 = vset.pattern.permute.xlu0 0
        %568 = vperm.xlu0 %567, %v325
        %v569 = vpop.permute.xlu0 %568
        %572 = vset.pattern.permute.xlu0 0
        %573 = vperm.xlu0 %572, %v326
        %v574 = vpop.permute.xlu0 %573
        %577 = vset.pattern.permute.xlu0 0
        %578 = vperm.xlu0 %577, %v327
        %v579 = vpop.permute.xlu0 %578
        %582 = vset.pattern.permute.xlu0 0
        %583 = vperm.xlu0 %582, %v328
        %v584 = vpop.permute.xlu0 %583
        %587 = vset.pattern.permute.xlu0 0
        %588 = vperm.xlu0 %587, %v329
        %v589 = vpop.permute.xlu0 %588
        %592 = vset.pattern.permute.xlu0 0
        %593 = vperm.xlu0 %592, %v330
        %v594 = vpop.permute.xlu0 %593
        %597 = vset.pattern.permute.xlu0 0
        %598 = vperm.xlu0 %597, %v331
        %v599 = vpop.permute.xlu0 %598
        %602 = vset.pattern.permute.xlu0 0
        %603 = vperm.xlu0 %602, %v332
        %v604 = vpop.permute.xlu0 %603
        %607 = vset.pattern.permute.xlu0 0
        %608 = vperm.xlu0 %607, %v333
        %v609 = vpop.permute.xlu0 %608
        %612 = vset.pattern.permute.xlu0 0
        %613 = vperm.xlu0 %612, %v334
        %v614 = vpop.permute.xlu0 %613
        %617 = vset.pattern.permute.xlu0 0
        %618 = vperm.xlu0 %617, %v335
        %v619 = vpop.permute.xlu0 %618
        %622 = vset.pattern.permute.xlu0 0
        %623 = vperm.xlu0 %622, %v336
        %v624 = vpop.permute.xlu0 %623
        %627 = vset.pattern.permute.xlu0 0
        %628 = vperm.xlu0 %627, %v337
        %v629 = vpop.permute.xlu0 %628
        %632 = vset.pattern.permute.xlu0 0
        %633 = vperm.xlu0 %632, %v338
        %v634 = vpop.permute.xlu0 %633
        %637 = vset.pattern.permute.xlu0 0
        %638 = vperm.xlu0 %637, %v339
        %v639 = vpop.permute.xlu0 %638
        %642 = vset.pattern.permute.xlu0 0
        %643 = vperm.xlu0 %642, %v340
        %v644 = vpop.permute.xlu0 %643
        %647 = vset.pattern.permute.xlu0 0
        %648 = vperm.xlu0 %647, %v341
        %v649 = vpop.permute.xlu0 %648
        %652 = vset.pattern.permute.xlu0 0
        %653 = vperm.xlu0 %652, %v342
        %v654 = vpop.permute.xlu0 %653
        %657 = vset.pattern.permute.xlu0 0
        %658 = vperm.xlu0 %657, %v343
        %v659 = vpop.permute.xlu0 %658
        %662 = vset.pattern.permute.xlu0 0
        %663 = vperm.xlu0 %662, %v344
        %v664 = vpop.permute.xlu0 %663
        %667 = vset.pattern.permute.xlu0 0
        %668 = vperm.xlu0 %667, %v345
        %v669 = vpop.permute.xlu0 %668
        %672 = vset.pattern.permute.xlu0 0
        %673 = vperm.xlu0 %672, %v346
        %v674 = vpop.permute.xlu0 %673
        %677 = vset.pattern.permute.xlu0 0
        %678 = vperm.xlu0 %677, %v347
        %v679 = vpop.permute.xlu0 %678
        %682 = vset.pattern.permute.xlu0 0
        %683 = vperm.xlu0 %682, %v348
        %v684 = vpop.permute.xlu0 %683
        %687 = vset.pattern.permute.xlu0 0
        %688 = vperm.xlu0 %687, %v349
        %v689 = vpop.permute.xlu0 %688
        %692 = vset.pattern.permute.xlu0 0
        %693 = vperm.xlu0 %692, %v350
        %v694 = vpop.permute.xlu0 %693
        %697 = vset.pattern.permute.xlu0 0
        %698 = vperm.xlu0 %697, %v351
        %v699 = vpop.permute.xlu0 %698
        %702 = vset.pattern.permute.xlu0 0
        %703 = vperm.xlu0 %702, %v352
        %v704 = vpop.permute.xlu0 %703
        %707 = vset.pattern.permute.xlu0 0
        %708 = vperm.xlu0 %707, %v353
        %v709 = vpop.permute.xlu0 %708
        %712 = vset.pattern.permute.xlu0 0
        %713 = vperm.xlu0 %712, %v354
        %v714 = vpop.permute.xlu0 %713
        %717 = vset.pattern.permute.xlu0 0
        %718 = vperm.xlu0 %717, %v355
        %v719 = vpop.permute.xlu0 %718
        %722 = vset.pattern.permute.xlu0 0
        %723 = vperm.xlu0 %722, %v356
        %v724 = vpop.permute.xlu0 %723
        %727 = vset.pattern.permute.xlu0 0
        %728 = vperm.xlu0 %727, %v357
        %v729 = vpop.permute.xlu0 %728
        %732 = vset.pattern.permute.xlu0 0
        %733 = vperm.xlu0 %732, %v358
        %v734 = vpop.permute.xlu0 %733
        %737 = vset.pattern.permute.xlu0 0
        %738 = vperm.xlu0 %737, %v359
        %v739 = vpop.permute.xlu0 %738
        %742 = vset.pattern.permute.xlu0 0
        %743 = vperm.xlu0 %742, %v360
        %v744 = vpop.permute.xlu0 %743
        %747 = vset.pattern.permute.xlu0 0
        %748 = vperm.xlu0 %747, %v361
        %v749 = vpop.permute.xlu0 %748
        %752 = vset.pattern.permute.xlu0 0
        %753 = vperm.xlu0 %752, %v362
        %v754 = vpop.permute.xlu0 %753
        %757 = vset.pattern.permute.xlu0 0
        %758 = vperm.xlu0 %757, %v363
        %v759 = vpop.permute.xlu0 %758
        %762 = vset.pattern.permute.xlu0 0
        %763 = vperm.xlu0 %762, %v364
        %v764 = vpop.permute.xlu0 %763
        %767 = vset.pattern.permute.xlu0 0
        %768 = vperm.xlu0 %767, %v365
        %v769 = vpop.permute.xlu0 %768
        %v771 = vsub.f32 %v374, %v366
        %v772 = vsub.f32 %v379, %v367
        %v773 = vsub.f32 %v384, %v368
        %v774 = vsub.f32 %v389, %v369
        %v775 = vsub.f32 %v394, %v370
        %v776 = vsub.f32 %v399, %v366
        %v777 = vsub.f32 %v404, %v367
        %v778 = vsub.f32 %v409, %v368
        %v779 = vsub.f32 %v414, %v369
        %v780 = vsub.f32 %v419, %v370
        %v781 = vsub.f32 %v424, %v366
        %v782 = vsub.f32 %v429, %v367
        %v783 = vsub.f32 %v434, %v368
        %v784 = vsub.f32 %v439, %v369
        %v785 = vsub.f32 %v444, %v370
        %v786 = vsub.f32 %v449, %v366
        %v787 = vsub.f32 %v454, %v367
        %v788 = vsub.f32 %v459, %v368
        %v789 = vsub.f32 %v464, %v369
        %v790 = vsub.f32 %v469, %v370
        %v791 = vsub.f32 %v474, %v366
        %v792 = vsub.f32 %v479, %v367
        %v793 = vsub.f32 %v484, %v368
        %v794 = vsub.f32 %v489, %v369
        %v795 = vsub.f32 %v494, %v370
        %v796 = vsub.f32 %v499, %v366
        %v797 = vsub.f32 %v504, %v367
        %v798 = vsub.f32 %v509, %v368
        %v799 = vsub.f32 %v514, %v369
        %v800 = vsub.f32 %v519, %v370
        %v801 = vsub.f32 %v524, %v366
        %v802 = vsub.f32 %v529, %v367
        %v803 = vsub.f32 %v534, %v368
        %v804 = vsub.f32 %v539, %v369
        %v805 = vsub.f32 %v544, %v370
        %v806 = vsub.f32 %v549, %v366
        %v807 = vsub.f32 %v554, %v367
        %v808 = vsub.f32 %v559, %v368
        %v809 = vsub.f32 %v564, %v369
        %v810 = vsub.f32 %v569, %v370
        %v811 = vsub.f32 %v574, %v366
        %v812 = vsub.f32 %v579, %v367
        %v813 = vsub.f32 %v584, %v368
        %v814 = vsub.f32 %v589, %v369
        %v815 = vsub.f32 %v594, %v370
        %v816 = vsub.f32 %v599, %v366
        %v817 = vsub.f32 %v604, %v367
        %v818 = vsub.f32 %v609, %v368
        %v819 = vsub.f32 %v614, %v369
        %v820 = vsub.f32 %v619, %v370
        %v821 = vsub.f32 %v624, %v366
        %v822 = vsub.f32 %v629, %v367
        %v823 = vsub.f32 %v634, %v368
        %v824 = vsub.f32 %v639, %v369
        %v825 = vsub.f32 %v644, %v370
        %v826 = vsub.f32 %v649, %v366
        %v827 = vsub.f32 %v654, %v367
        %v828 = vsub.f32 %v659, %v368
        %v829 = vsub.f32 %v664, %v369
        %v830 = vsub.f32 %v669, %v370
        %v831 = vsub.f32 %v674, %v366
        %v832 = vsub.f32 %v679, %v367
        %v833 = vsub.f32 %v684, %v368
        %v834 = vsub.f32 %v689, %v369
        %v835 = vsub.f32 %v694, %v370
        %v836 = vsub.f32 %v699, %v366
        %v837 = vsub.f32 %v704, %v367
        %v838 = vsub.f32 %v709, %v368
        %v839 = vsub.f32 %v714, %v369
        %v840 = vsub.f32 %v719, %v370
        %v841 = vsub.f32 %v724, %v366
        %v842 = vsub.f32 %v729, %v367
        %v843 = vsub.f32 %v734, %v368
        %v844 = vsub.f32 %v739, %v369
        %v845 = vsub.f32 %v744, %v370
        %v846 = vsub.f32 %v749, %v366
        %v847 = vsub.f32 %v754, %v367
        %v848 = vsub.f32 %v759, %v368
        %v849 = vsub.f32 %v764, %v369
        %v850 = vsub.f32 %v769, %v370
        %v851 = vand.u32 2147483647, %v771
        %v852 = vand.u32 2147483647, %v772
        %v853 = vand.u32 2147483647, %v773
        %v854 = vand.u32 2147483647, %v774
        %v855 = vand.u32 2147483647, %v775
        %v856 = vand.u32 2147483647, %v776
        %v857 = vand.u32 2147483647, %v777
        %v858 = vand.u32 2147483647, %v778
        %v859 = vand.u32 2147483647, %v779
        %v860 = vand.u32 2147483647, %v780
        %v861 = vand.u32 2147483647, %v781
        %v862 = vand.u32 2147483647, %v782
        %v863 = vand.u32 2147483647, %v783
        %v864 = vand.u32 2147483647, %v784
        %v865 = vand.u32 2147483647, %v785
        %v866 = vand.u32 2147483647, %v786
        %v867 = vand.u32 2147483647, %v787
        %v868 = vand.u32 2147483647, %v788
        %v869 = vand.u32 2147483647, %v789
        %v870 = vand.u32 2147483647, %v790
        %v871 = vand.u32 2147483647, %v791
        %v872 = vand.u32 2147483647, %v792
        %v873 = vand.u32 2147483647, %v793
        %v874 = vand.u32 2147483647, %v794
        %v875 = vand.u32 2147483647, %v795
        %v876 = vand.u32 2147483647, %v796
        %v877 = vand.u32 2147483647, %v797
        %v878 = vand.u32 2147483647, %v798
        %v879 = vand.u32 2147483647, %v799
        %v880 = vand.u32 2147483647, %v800
        %v881 = vand.u32 2147483647, %v801
        %v882 = vand.u32 2147483647, %v802
        %v883 = vand.u32 2147483647, %v803
        %v884 = vand.u32 2147483647, %v804
        %v885 = vand.u32 2147483647, %v805
        %v886 = vand.u32 2147483647, %v806
        %v887 = vand.u32 2147483647, %v807
        %v888 = vand.u32 2147483647, %v808
        %v889 = vand.u32 2147483647, %v809
        %v890 = vand.u32 2147483647, %v810
        %v891 = vand.u32 2147483647, %v811
        %v892 = vand.u32 2147483647, %v812
        %v893 = vand.u32 2147483647, %v813
        %v894 = vand.u32 2147483647, %v814
        %v895 = vand.u32 2147483647, %v815
        %v896 = vand.u32 2147483647, %v816
        %v897 = vand.u32 2147483647, %v817
        %v898 = vand.u32 2147483647, %v818
        %v899 = vand.u32 2147483647, %v819
        %v900 = vand.u32 2147483647, %v820
        %v901 = vand.u32 2147483647, %v821
        %v902 = vand.u32 2147483647, %v822
        %v903 = vand.u32 2147483647, %v823
        %v904 = vand.u32 2147483647, %v824
        %v905 = vand.u32 2147483647, %v825
        %v906 = vand.u32 2147483647, %v826
        %v907 = vand.u32 2147483647, %v827
        %v908 = vand.u32 2147483647, %v828
        %v909 = vand.u32 2147483647, %v829
        %v910 = vand.u32 2147483647, %v830
        %v911 = vand.u32 2147483647, %v831
        %v912 = vand.u32 2147483647, %v832
        %v913 = vand.u32 2147483647, %v833
        %v914 = vand.u32 2147483647, %v834
        %v915 = vand.u32 2147483647, %v835
        %v916 = vand.u32 2147483647, %v836
        %v917 = vand.u32 2147483647, %v837
        %v918 = vand.u32 2147483647, %v838
        %v919 = vand.u32 2147483647, %v839
        %v920 = vand.u32 2147483647, %v840
        %v921 = vand.u32 2147483647, %v841
        %v922 = vand.u32 2147483647, %v842
        %v923 = vand.u32 2147483647, %v843
        %v924 = vand.u32 2147483647, %v844
        %v925 = vand.u32 2147483647, %v845
        %v926 = vand.u32 2147483647, %v846
        %v927 = vand.u32 2147483647, %v847
        %v928 = vand.u32 2147483647, %v848
        %v929 = vand.u32 2147483647, %v849
        %v930 = vand.u32 2147483647, %v850
        %v931 = vld [vmem:[%s3] sm:$0xff]
        %v932 = vld [vmem:[%s3 + $0x8] sm:$0xff]
        %v933 = vld [vmem:[%s3 + $0x10] sm:$0xff]
        %v934 = vld [vmem:[%s3 + $0x18] sm:$0xff]
        %v935 = vld [vmem:[%s3 + $0x20] sm:$0xff]
        %vm936 = vcmask 326656
        %v938 = vsel %vm936, %v931, 0
        %v941 = vsel %vm936, %v932, 0
        %v944 = vsel %vm936, %v933, 0
        %v947 = vsel %vm936, %v934, 0
        %v950 = vsel %vm936, %v935, 0
        %952 = vmatprep.subr.mxu0 0.0
        %953 = vmatpush1.msra.mxu0 %v851
        %954 = vmatprep.subr.mxu0 0.0
        %955 = vmatpush1.msra.mxu0 %v852
        %956 = vmatprep.subr.mxu0 0.0
        %957 = vmatpush1.msra.mxu0 %v853
        %958 = vmatprep.subr.mxu0 0.0
        %959 = vmatpush1.msra.mxu0 %v854
        %960 = vmatprep.subr.mxu0 0.0
        %961 = vmatpush1.msra.mxu0 %v855
        %962 = vmatprep.subr.mxu0 0.0
        %963 = vmatpush1.msra.mxu0 0.0
        %964 = vmatprep.subr.mxu0 0.0
        %965 = vmatpush1.msra.mxu0 0.0
        %966 = vmatprep.subr.mxu0 0.0
        %967 = vmatpush1.msra.mxu0 0.0
        %968 = vmatprep.subr.mxu0 0.0
        %969 = vmatpush1.msra.mxu0 0.0
        %970 = vmatprep.subr.mxu0 0.0
        %971 = vmatpush1.msra.mxu0 0.0
        %972 = vmatprep.subr.mxu0 0.0
        %973 = vmatpush1.msra.mxu0 0.0
        %974 = vmatprep.subr.mxu0 0.0
        %975 = vmatpush1.msra.mxu0 0.0
        %976 = vmatprep.subr.mxu0 0.0
        %977 = vmatpush1.msra.mxu0 0.0
        %978 = vmatprep.subr.mxu0 0.0
        %979 = vmatpush1.msra.mxu0 0.0
        %980 = vmatprep.subr.mxu0 0.0
        %981 = vmatpush1.msra.mxu0 0.0
        %982 = vmatprep.subr.mxu0 0.0
        %983 = vmatpush1.msra.mxu0 0.0
        %984 = vmatprep.subr.mxu0 0.0
        %985 = vmatpush1.msra.mxu0 0.0
        %986 = vmatprep.subr.mxu0 0.0
        %987 = vmatpush1.msra.mxu0 0.0
        %988 = vmatprep.subr.mxu0 0.0
        %989 = vmatpush1.msra.mxu0 0.0
        %990 = vmatprep.subr.mxu0 0.0
        %991 = vmatpush1.msra.mxu0 0.0
        %992 = vmatprep.subr.mxu0 0.0
        %993 = vmatpush1.msra.mxu0 0.0
        %994 = vmatprep.subr.mxu0 0.0
        %995 = vmatpush1.msra.mxu0 0.0
        %996 = vmatprep.subr.mxu0 0.0
        %997 = vmatpush1.msra.mxu0 0.0
        %998 = vmatprep.subr.mxu0 0.0
        %999 = vmatpush1.msra.mxu0 0.0
        %1000 = vmatprep.subr.mxu0 0.0
        %1001 = vmatpush1.msra.mxu0 0.0
        %1002 = vmatprep.subr.mxu0 0.0
        %1003 = vmatpush1.msra.mxu0 0.0
        %1004 = vmatprep.subr.mxu0 0.0
        %1005 = vmatpush1.msra.mxu0 0.0
        %1006 = vmatprep.subr.mxu0 0.0
        %1007 = vmatpush1.msra.mxu0 0.0
        %1008 = vmatprep.subr.mxu0 0.0
        %1009 = vmatpush1.msra.mxu0 0.0
        %1010 = vmatprep.subr.mxu0 0.0
        %1011 = vmatpush1.msra.mxu0 0.0
        %1012 = vmatprep.subr.mxu0 0.0
        %1013 = vmatpush1.msra.mxu0 0.0
        %1014 = vmatprep.subr.mxu0 0.0
        %1015 = vmatpush1.msra.mxu0 0.0
        %1016 = vmatprep.mubr.f32.mxu0 0.0
        %1017 = vmatmul.mubr.f32.gmra.mrb[0].mxu0 %v938
        %v1018 = vpop.f32.mrb[0].mxu0
        %v1019 = vadd.f32 0.0, %v1018
        %v1020 = vpop.f32.mrb[0].mxu0
        %1021 = vmatprep.mubr.f32.mxu0 0.0
        %1022 = vmatmul.mubr.f32.gmra.mrb[0].mxu0 %v941
        %v1023 = vpop.f32.mrb[0].mxu0
        %v1024 = vadd.f32 0.0, %v1023
        %v1025 = vpop.f32.mrb[0].mxu0
        %1026 = vmatprep.mubr.f32.mxu0 0.0
        %1027 = vmatmul.mubr.f32.gmra.mrb[0].mxu0 %v944
        %v1028 = vpop.f32.mrb[0].mxu0
        %v1029 = vadd.f32 0.0, %v1028
        %v1030 = vpop.f32.mrb[0].mxu0
        %1031 = vmatprep.mubr.f32.mxu0 0.0
        %1032 = vmatmul.mubr.f32.gmra.mrb[0].mxu0 %v947
        %v1033 = vpop.f32.mrb[0].mxu0
        %v1034 = vadd.f32 0.0, %v1033
        %v1035 = vpop.f32.mrb[0].mxu0
        %1036 = vmatprep.mubr.f32.mxu0 0.0
        %1037 = vmatmul.mubr.f32.gmra.mrb[0].mxu0 %v950
        %v1038 = vpop.f32.mrb[0].mxu0
        %v1039 = vadd.f32 0.0, %v1038
        %v1040 = vpop.f32.mrb[0].mxu0
        %1041 = vdwg.mxu0
        %1042 = vmatprep.subr.mxu0 0.0
        %1043 = vmatpush1.msra.mxu0 %v856
        %1044 = vmatprep.subr.mxu0 0.0
        %1045 = vmatpush1.msra.mxu0 %v857
        %1046 = vmatprep.subr.mxu0 0.0
        %1047 = vmatpush1.msra.mxu0 %v858
        %1048 = vmatprep.subr.mxu0 0.0
        %1049 = vmatpush1.msra.mxu0 %v859
        %1050 = vmatprep.subr.mxu0 0.0
        %1051 = vmatpush1.msra.mxu0 %v860
        %1052 = vmatprep.subr.mxu0 0.0
        %1053 = vmatpush1.msra.mxu0 0.0
        %1054 = vmatprep.subr.mxu0 0.0
        %1055 = vmatpush1.msra.mxu0 0.0
        %1056 = vmatprep.subr.mxu0 0.0
        %1057 = vmatpush1.msra.mxu0 0.0
        %1058 = vmatprep.subr.mxu0 0.0
        %1059 = vmatpush1.msra.mxu0 0.0
        %1060 = vmatprep.subr.mxu0 0.0
        %1061 = vmatpush1.msra.mxu0 0.0
        %1062 = vmatprep.subr.mxu0 0.0
        %1063 = vmatpush1.msra.mxu0 0.0
        %1064 = vmatprep.subr.mxu0 0.0
        %1065 = vmatpush1.msra.mxu0 0.0
        %1066 = vmatprep.subr.mxu0 0.0
        %1067 = vmatpush1.msra.mxu0 0.0
        %1068 = vmatprep.subr.mxu0 0.0
        %1069 = vmatpush1.msra.mxu0 0.0
        %1070 = vmatprep.subr.mxu0 0.0
        %1071 = vmatpush1.msra.mxu0 0.0
        %1072 = vmatprep.subr.mxu0 0.0
        %1073 = vmatpush1.msra.mxu0 0.0
        %1074 = vmatprep.subr.mxu0 0.0
        %1075 = vmatpush1.msra.mxu0 0.0
        %1076 = vmatprep.subr.mxu0 0.0
        %1077 = vmatpush1.msra.mxu0 0.0
        %1078 = vmatprep.subr.mxu0 0.0
        %1079 = vmatpush1.msra.mxu0 0.0
        %1080 = vmatprep.subr.mxu0 0.0
        %1081 = vmatpush1.msra.mxu0 0.0
        %1082 = vmatprep.subr.mxu0 0.0
        %1083 = vmatpush1.msra.mxu0 0.0
        %1084 = vmatprep.subr.mxu0 0.0
        %1085 = vmatpush1.msra.mxu0 0.0
        %1086 = vmatprep.subr.mxu0 0.0
        %1087 = vmatpush1.msra.mxu0 0.0
        %1088 = vmatprep.subr.mxu0 0.0
        %1089 = vmatpush1.msra.mxu0 0.0
        %1090 = vmatprep.subr.mxu0 0.0
        %1091 = vmatpush1.msra.mxu0 0.0
        %1092 = vmatprep.subr.mxu0 0.0
        %1093 = vmatpush1.msra.mxu0 0.0
        %1094 = vmatprep.subr.mxu0 0.0
        %1095 = vmatpush1.msra.mxu0 0.0
        %1096 = vmatprep.subr.mxu0 0.0
        %1097 = vmatpush1.msra.mxu0 0.0
        %1098 = vmatprep.subr.mxu0 0.0
        %1099 = vmatpush1.msra.mxu0 0.0
        %1100 = vmatprep.subr.mxu0 0.0
        %1101 = vmatpush1.msra.mxu0 0.0
        %1102 = vmatprep.subr.mxu0 0.0
        %1103 = vmatpush1.msra.mxu0 0.0
        %1104 = vmatprep.subr.mxu0 0.0
        %1105 = vmatpush1.msra.mxu0 0.0
        %1106 = vmatprep.mubr.f32.mxu0 0.0
        %1107 = vmatmul.mubr.f32.gmra.mrb[0].mxu0 %v938
        %v1108 = vpop.f32.mrb[0].mxu0
        %v1109 = vadd.f32 0.0, %v1108
        %v1110 = vpop.f32.mrb[0].mxu0
        %1111 = vmatprep.mubr.f32.mxu0 0.0
        %1112 = vmatmul.mubr.f32.gmra.mrb[0].mxu0 %v941
        %v1113 = vpop.f32.mrb[0].mxu0
        %v1114 = vadd.f32 0.0, %v1113
        %v1115 = vpop.f32.mrb[0].mxu0
        %1116 = vmatprep.mubr.f32.mxu0 0.0
        %1117 = vmatmul.mubr.f32.gmra.mrb[0].mxu0 %v944
        %v1118 = vpop.f32.mrb[0].mxu0
        %v1119 = vadd.f32 0.0, %v1118
        %v1120 = vpop.f32.mrb[0].mxu0
        %1121 = vmatprep.mubr.f32.mxu0 0.0
        %1122 = vmatmul.mubr.f32.gmra.mrb[0].mxu0 %v947
        %v1123 = vpop.f32.mrb[0].mxu0
        %v1124 = vadd.f32 0.0, %v1123
        %v1125 = vpop.f32.mrb[0].mxu0
        %1126 = vmatprep.mubr.f32.mxu0 0.0
        %1127 = vmatmul.mubr.f32.gmra.mrb[0].mxu0 %v950
        %v1128 = vpop.f32.mrb[0].mxu0
        %v1129 = vadd.f32 0.0, %v1128
        %v1130 = vpop.f32.mrb[0].mxu0
        %1131 = vdwg.mxu0
        %1132 = vmatprep.subr.mxu0 0.0
        %1133 = vmatpush1.msra.mxu0 %v861
        %1134 = vmatprep.subr.mxu0 0.0
        %1135 = vmatpush1.msra.mxu0 %v862
        %1136 = vmatprep.subr.mxu0 0.0
        %1137 = vmatpush1.msra.mxu0 %v863
        %1138 = vmatprep.subr.mxu0 0.0
        %1139 = vmatpush1.msra.mxu0 %v864
        %1140 = vmatprep.subr.mxu0 0.0
        %1141 = vmatpush1.msra.mxu0 %v865
        %1142 = vmatprep.subr.mxu0 0.0
        %1143 = vmatpush1.msra.mxu0 0.0
        %1144 = vmatprep.subr.mxu0 0.0
        %1145 = vmatpush1.msra.mxu0 0.0
        %1146 = vmatprep.subr.mxu0 0.0
        %1147 = vmatpush1.msra.mxu0 0.0
        %1148 = vmatprep.subr.mxu0 0.0
        %1149 = vmatpush1.msra.mxu0 0.0
        %1150 = vmatprep.subr.mxu0 0.0
        %1151 = vmatpush1.msra.mxu0 0.0
        %1152 = vmatprep.subr.mxu0 0.0
        %1153 = vmatpush1.msra.mxu0 0.0
        %1154 = vmatprep.subr.mxu0 0.0
        %1155 = vmatpush1.msra.mxu0 0.0
        %1156 = vmatprep.subr.mxu0 0.0
        %1157 = vmatpush1.msra.mxu0 0.0
        %1158 = vmatprep.subr.mxu0 0.0
        %1159 = vmatpush1.msra.mxu0 0.0
        %1160 = vmatprep.subr.mxu0 0.0
        %1161 = vmatpush1.msra.mxu0 0.0
        %1162 = vmatprep.subr.mxu0 0.0
        %1163 = vmatpush1.msra.mxu0 0.0
        %1164 = vmatprep.subr.mxu0 0.0
        %1165 = vmatpush1.msra.mxu0 0.0
        %1166 = vmatprep.subr.mxu0 0.0
        %1167 = vmatpush1.msra.mxu0 0.0
        %1168 = vmatprep.subr.mxu0 0.0
        %1169 = vmatpush1.msra.mxu0 0.0
        %1170 = vmatprep.subr.mxu0 0.0
        %1171 = vmatpush1.msra.mxu0 0.0
        %1172 = vmatprep.subr.mxu0 0.0
        %1173 = vmatpush1.msra.mxu0 0.0
        %1174 = vmatprep.subr.mxu0 0.0
        %1175 = vmatpush1.msra.mxu0 0.0
        %1176 = vmatprep.subr.mxu0 0.0
        %1177 = vmatpush1.msra.mxu0 0.0
        %1178 = vmatprep.subr.mxu0 0.0
        %1179 = vmatpush1.msra.mxu0 0.0
        %1180 = vmatprep.subr.mxu0 0.0
        %1181 = vmatpush1.msra.mxu0 0.0
        %1182 = vmatprep.subr.mxu0 0.0
        %1183 = vmatpush1.msra.mxu0 0.0
        %1184 = vmatprep.subr.mxu0 0.0
        %1185 = vmatpush1.msra.mxu0 0.0
        %1186 = vmatprep.subr.mxu0 0.0
        %1187 = vmatpush1.msra.mxu0 0.0
        %1188 = vmatprep.subr.mxu0 0.0
        %1189 = vmatpush1.msra.mxu0 0.0
        %1190 = vmatprep.subr.mxu0 0.0
        %1191 = vmatpush1.msra.mxu0 0.0
        %1192 = vmatprep.subr.mxu0 0.0
        %1193 = vmatpush1.msra.mxu0 0.0
        %1194 = vmatprep.subr.mxu0 0.0
        %1195 = vmatpush1.msra.mxu0 0.0
        %1196 = vmatprep.mubr.f32.mxu0 0.0
        %1197 = vmatmul.mubr.f32.gmra.mrb[0].mxu0 %v938
        %v1198 = vpop.f32.mrb[0].mxu0
        %v1199 = vadd.f32 0.0, %v1198
        %v1200 = vpop.f32.mrb[0].mxu0
        %1201 = vmatprep.mubr.f32.mxu0 0.0
        %1202 = vmatmul.mubr.f32.gmra.mrb[0].mxu0 %v941
        %v1203 = vpop.f32.mrb[0].mxu0
        %v1204 = vadd.f32 0.0, %v1203
        %v1205 = vpop.f32.mrb[0].mxu0
        %1206 = vmatprep.mubr.f32.mxu0 0.0
        %1207 = vmatmul.mubr.f32.gmra.mrb[0].mxu0 %v944
        %v1208 = vpop.f32.mrb[0].mxu0
        %v1209 = vadd.f32 0.0, %v1208
        %v1210 = vpop.f32.mrb[0].mxu0
        %1211 = vmatprep.mubr.f32.mxu0 0.0
        %1212 = vmatmul.mubr.f32.gmra.mrb[0].mxu0 %v947
        %v1213 = vpop.f32.mrb[0].mxu0
        %v1214 = vadd.f32 0.0, %v1213
        %v1215 = vpop.f32.mrb[0].mxu0
        %1216 = vmatprep.mubr.f32.mxu0 0.0
        %1217 = vmatmul.mubr.f32.gmra.mrb[0].mxu0 %v950
        %v1218 = vpop.f32.mrb[0].mxu0
        %v1219 = vadd.f32 0.0, %v1218
        %v1220 = vpop.f32.mrb[0].mxu0
        %1221 = vdwg.mxu0
        %1222 = vmatprep.subr.mxu0 0.0
        %1223 = vmatpush1.msra.mxu0 %v866
        %1224 = vmatprep.subr.mxu0 0.0
        %1225 = vmatpush1.msra.mxu0 %v867
        %1226 = vmatprep.subr.mxu0 0.0
        %1227 = vmatpush1.msra.mxu0 %v868
        %1228 = vmatprep.subr.mxu0 0.0
        %1229 = vmatpush1.msra.mxu0 %v869
        %1230 = vmatprep.subr.mxu0 0.0
        %1231 = vmatpush1.msra.mxu0 %v870
        %1232 = vmatprep.subr.mxu0 0.0
        %1233 = vmatpush1.msra.mxu0 0.0
        %1234 = vmatprep.subr.mxu0 0.0
        %1235 = vmatpush1.msra.mxu0 0.0
        %1236 = vmatprep.subr.mxu0 0.0
        %1237 = vmatpush1.msra.mxu0 0.0
        %1238 = vmatprep.subr.mxu0 0.0
        %1239 = vmatpush1.msra.mxu0 0.0
        %1240 = vmatprep.subr.mxu0 0.0
        %1241 = vmatpush1.msra.mxu0 0.0
        %1242 = vmatprep.subr.mxu0 0.0
        %1243 = vmatpush1.msra.mxu0 0.0
        %1244 = vmatprep.subr.mxu0 0.0
        %1245 = vmatpush1.msra.mxu0 0.0
        %1246 = vmatprep.subr.mxu0 0.0
        %1247 = vmatpush1.msra.mxu0 0.0
        %1248 = vmatprep.subr.mxu0 0.0
        %1249 = vmatpush1.msra.mxu0 0.0
        %1250 = vmatprep.subr.mxu0 0.0
        %1251 = vmatpush1.msra.mxu0 0.0
        %1252 = vmatprep.subr.mxu0 0.0
        %1253 = vmatpush1.msra.mxu0 0.0
        %1254 = vmatprep.subr.mxu0 0.0
        %1255 = vmatpush1.msra.mxu0 0.0
        %1256 = vmatprep.subr.mxu0 0.0
        %1257 = vmatpush1.msra.mxu0 0.0
        %1258 = vmatprep.subr.mxu0 0.0
        %1259 = vmatpush1.msra.mxu0 0.0
        %1260 = vmatprep.subr.mxu0 0.0
        %1261 = vmatpush1.msra.mxu0 0.0
        %1262 = vmatprep.subr.mxu0 0.0
        %1263 = vmatpush1.msra.mxu0 0.0
        %1264 = vmatprep.subr.mxu0 0.0
        %1265 = vmatpush1.msra.mxu0 0.0
        %1266 = vmatprep.subr.mxu0 0.0
        %1267 = vmatpush1.msra.mxu0 0.0
        %1268 = vmatprep.subr.mxu0 0.0
        %1269 = vmatpush1.msra.mxu0 0.0
        %1270 = vmatprep.subr.mxu0 0.0
        %1271 = vmatpush1.msra.mxu0 0.0
        %1272 = vmatprep.subr.mxu0 0.0
        %1273 = vmatpush1.msra.mxu0 0.0
        %1274 = vmatprep.subr.mxu0 0.0
        %1275 = vmatpush1.msra.mxu0 0.0
        %1276 = vmatprep.subr.mxu0 0.0
        %1277 = vmatpush1.msra.mxu0 0.0
        %1278 = vmatprep.subr.mxu0 0.0
        %1279 = vmatpush1.msra.mxu0 0.0
        %1280 = vmatprep.subr.mxu0 0.0
        %1281 = vmatpush1.msra.mxu0 0.0
        %1282 = vmatprep.subr.mxu0 0.0
        %1283 = vmatpush1.msra.mxu0 0.0
        %1284 = vmatprep.subr.mxu0 0.0
        %1285 = vmatpush1.msra.mxu0 0.0
        %1286 = vmatprep.mubr.f32.mxu0 0.0
        %1287 = vmatmul.mubr.f32.gmra.mrb[0].mxu0 %v938
        %v1288 = vpop.f32.mrb[0].mxu0
        %v1289 = vadd.f32 0.0, %v1288
        %v1290 = vpop.f32.mrb[0].mxu0
        %1291 = vmatprep.mubr.f32.mxu0 0.0
        %1292 = vmatmul.mubr.f32.gmra.mrb[0].mxu0 %v941
        %v1293 = vpop.f32.mrb[0].mxu0
        %v1294 = vadd.f32 0.0, %v1293
        %v1295 = vpop.f32.mrb[0].mxu0
        %1296 = vmatprep.mubr.f32.mxu0 0.0
        %1297 = vmatmul.mubr.f32.gmra.mrb[0].mxu0 %v944
        %v1298 = vpop.f32.mrb[0].mxu0
        %v1299 = vadd.f32 0.0, %v1298
        %v1300 = vpop.f32.mrb[0].mxu0
        %1301 = vmatprep.mubr.f32.mxu0 0.0
        %1302 = vmatmul.mubr.f32.gmra.mrb[0].mxu0 %v947
        %v1303 = vpop.f32.mrb[0].mxu0
        %v1304 = vadd.f32 0.0, %v1303
        %v1305 = vpop.f32.mrb[0].mxu0
        %1306 = vmatprep.mubr.f32.mxu0 0.0
        %1307 = vmatmul.mubr.f32.gmra.mrb[0].mxu0 %v950
        %v1308 = vpop.f32.mrb[0].mxu0
        %v1309 = vadd.f32 0.0, %v1308
        %v1310 = vpop.f32.mrb[0].mxu0
        %1311 = vdwg.mxu0
        %1312 = vmatprep.subr.mxu0 0.0
        %1313 = vmatpush1.msra.mxu0 %v871
        %1314 = vmatprep.subr.mxu0 0.0
        %1315 = vmatpush1.msra.mxu0 %v872
        %1316 = vmatprep.subr.mxu0 0.0
        %1317 = vmatpush1.msra.mxu0 %v873
        %1318 = vmatprep.subr.mxu0 0.0
        %1319 = vmatpush1.msra.mxu0 %v874
        %1320 = vmatprep.subr.mxu0 0.0
        %1321 = vmatpush1.msra.mxu0 %v875
        %1322 = vmatprep.subr.mxu0 0.0
        %1323 = vmatpush1.msra.mxu0 0.0
        %1324 = vmatprep.subr.mxu0 0.0
        %1325 = vmatpush1.msra.mxu0 0.0
        %1326 = vmatprep.subr.mxu0 0.0
        %1327 = vmatpush1.msra.mxu0 0.0
        %1328 = vmatprep.subr.mxu0 0.0
        %1329 = vmatpush1.msra.mxu0 0.0
        %1330 = vmatprep.subr.mxu0 0.0
        %1331 = vmatpush1.msra.mxu0 0.0
        %1332 = vmatprep.subr.mxu0 0.0
        %1333 = vmatpush1.msra.mxu0 0.0
        %1334 = vmatprep.subr.mxu0 0.0
        %1335 = vmatpush1.msra.mxu0 0.0
        %1336 = vmatprep.subr.mxu0 0.0
        %1337 = vmatpush1.msra.mxu0 0.0
        %1338 = vmatprep.subr.mxu0 0.0
        %1339 = vmatpush1.msra.mxu0 0.0
        %1340 = vmatprep.subr.mxu0 0.0
        %1341 = vmatpush1.msra.mxu0 0.0
        %1342 = vmatprep.subr.mxu0 0.0
        %1343 = vmatpush1.msra.mxu0 0.0
        %1344 = vmatprep.subr.mxu0 0.0
        %1345 = vmatpush1.msra.mxu0 0.0
        %1346 = vmatprep.subr.mxu0 0.0
        %1347 = vmatpush1.msra.mxu0 0.0
        %1348 = vmatprep.subr.mxu0 0.0
        %1349 = vmatpush1.msra.mxu0 0.0
        %1350 = vmatprep.subr.mxu0 0.0
        %1351 = vmatpush1.msra.mxu0 0.0
        %1352 = vmatprep.subr.mxu0 0.0
        %1353 = vmatpush1.msra.mxu0 0.0
        %1354 = vmatprep.subr.mxu0 0.0
        %1355 = vmatpush1.msra.mxu0 0.0
        %1356 = vmatprep.subr.mxu0 0.0
        %1357 = vmatpush1.msra.mxu0 0.0
        %1358 = vmatprep.subr.mxu0 0.0
        %1359 = vmatpush1.msra.mxu0 0.0
        %1360 = vmatprep.subr.mxu0 0.0
        %1361 = vmatpush1.msra.mxu0 0.0
        %1362 = vmatprep.subr.mxu0 0.0
        %1363 = vmatpush1.msra.mxu0 0.0
        %1364 = vmatprep.subr.mxu0 0.0
        %1365 = vmatpush1.msra.mxu0 0.0
        %1366 = vmatprep.subr.mxu0 0.0
        %1367 = vmatpush1.msra.mxu0 0.0
        %1368 = vmatprep.subr.mxu0 0.0
        %1369 = vmatpush1.msra.mxu0 0.0
        %1370 = vmatprep.subr.mxu0 0.0
        %1371 = vmatpush1.msra.mxu0 0.0
        %1372 = vmatprep.subr.mxu0 0.0
        %1373 = vmatpush1.msra.mxu0 0.0
        %1374 = vmatprep.subr.mxu0 0.0
        %1375 = vmatpush1.msra.mxu0 0.0
        %1376 = vmatprep.mubr.f32.mxu0 0.0
        %1377 = vmatmul.mubr.f32.gmra.mrb[0].mxu0 %v938
        %v1378 = vpop.f32.mrb[0].mxu0
        %v1379 = vadd.f32 0.0, %v1378
        %v1380 = vpop.f32.mrb[0].mxu0
        %1381 = vmatprep.mubr.f32.mxu0 0.0
        %1382 = vmatmul.mubr.f32.gmra.mrb[0].mxu0 %v941
        %v1383 = vpop.f32.mrb[0].mxu0
        %v1384 = vadd.f32 0.0, %v1383
        %v1385 = vpop.f32.mrb[0].mxu0
        %1386 = vmatprep.mubr.f32.mxu0 0.0
        %1387 = vmatmul.mubr.f32.gmra.mrb[0].mxu0 %v944
        %v1388 = vpop.f32.mrb[0].mxu0
        %v1389 = vadd.f32 0.0, %v1388
        %v1390 = vpop.f32.mrb[0].mxu0
        %1391 = vmatprep.mubr.f32.mxu0 0.0
        %1392 = vmatmul.mubr.f32.gmra.mrb[0].mxu0 %v947
        %v1393 = vpop.f32.mrb[0].mxu0
        %v1394 = vadd.f32 0.0, %v1393
        %v1395 = vpop.f32.mrb[0].mxu0
        %1396 = vmatprep.mubr.f32.mxu0 0.0
        %1397 = vmatmul.mubr.f32.gmra.mrb[0].mxu0 %v950
        %v1398 = vpop.f32.mrb[0].mxu0
        %v1399 = vadd.f32 0.0, %v1398
        %v1400 = vpop.f32.mrb[0].mxu0
        %1401 = vdwg.mxu0
        %1402 = vmatprep.subr.mxu0 0.0
        %1403 = vmatpush1.msra.mxu0 %v876
        %1404 = vmatprep.subr.mxu0 0.0
        %1405 = vmatpush1.msra.mxu0 %v877
        %1406 = vmatprep.subr.mxu0 0.0
        %1407 = vmatpush1.msra.mxu0 %v878
        %1408 = vmatprep.subr.mxu0 0.0
        %1409 = vmatpush1.msra.mxu0 %v879
        %1410 = vmatprep.subr.mxu0 0.0
        %1411 = vmatpush1.msra.mxu0 %v880
        %1412 = vmatprep.subr.mxu0 0.0
        %1413 = vmatpush1.msra.mxu0 0.0
        %1414 = vmatprep.subr.mxu0 0.0
        %1415 = vmatpush1.msra.mxu0 0.0
        %1416 = vmatprep.subr.mxu0 0.0
        %1417 = vmatpush1.msra.mxu0 0.0
        %1418 = vmatprep.subr.mxu0 0.0
        %1419 = vmatpush1.msra.mxu0 0.0
        %1420 = vmatprep.subr.mxu0 0.0
        %1421 = vmatpush1.msra.mxu0 0.0
        %1422 = vmatprep.subr.mxu0 0.0
        %1423 = vmatpush1.msra.mxu0 0.0
        %1424 = vmatprep.subr.mxu0 0.0
        %1425 = vmatpush1.msra.mxu0 0.0
        %1426 = vmatprep.subr.mxu0 0.0
        %1427 = vmatpush1.msra.mxu0 0.0
        %1428 = vmatprep.subr.mxu0 0.0
        %1429 = vmatpush1.msra.mxu0 0.0
        %1430 = vmatprep.subr.mxu0 0.0
        %1431 = vmatpush1.msra.mxu0 0.0
        %1432 = vmatprep.subr.mxu0 0.0
        %1433 = vmatpush1.msra.mxu0 0.0
        %1434 = vmatprep.subr.mxu0 0.0
        %1435 = vmatpush1.msra.mxu0 0.0
        %1436 = vmatprep.subr.mxu0 0.0
        %1437 = vmatpush1.msra.mxu0 0.0
        %1438 = vmatprep.subr.mxu0 0.0
        %1439 = vmatpush1.msra.mxu0 0.0
        %1440 = vmatprep.subr.mxu0 0.0
        %1441 = vmatpush1.msra.mxu0 0.0
        %1442 = vmatprep.subr.mxu0 0.0
        %1443 = vmatpush1.msra.mxu0 0.0
        %1444 = vmatprep.subr.mxu0 0.0
        %1445 = vmatpush1.msra.mxu0 0.0
        %1446 = vmatprep.subr.mxu0 0.0
        %1447 = vmatpush1.msra.mxu0 0.0
        %1448 = vmatprep.subr.mxu0 0.0
        %1449 = vmatpush1.msra.mxu0 0.0
        %1450 = vmatprep.subr.mxu0 0.0
        %1451 = vmatpush1.msra.mxu0 0.0
        %1452 = vmatprep.subr.mxu0 0.0
        %1453 = vmatpush1.msra.mxu0 0.0
        %1454 = vmatprep.subr.mxu0 0.0
        %1455 = vmatpush1.msra.mxu0 0.0
        %1456 = vmatprep.subr.mxu0 0.0
        %1457 = vmatpush1.msra.mxu0 0.0
        %1458 = vmatprep.subr.mxu0 0.0
        %1459 = vmatpush1.msra.mxu0 0.0
        %1460 = vmatprep.subr.mxu0 0.0
        %1461 = vmatpush1.msra.mxu0 0.0
        %1462 = vmatprep.subr.mxu0 0.0
        %1463 = vmatpush1.msra.mxu0 0.0
        %1464 = vmatprep.subr.mxu0 0.0
        %1465 = vmatpush1.msra.mxu0 0.0
        %1466 = vmatprep.mubr.f32.mxu0 0.0
        %1467 = vmatmul.mubr.f32.gmra.mrb[0].mxu0 %v938
        %v1468 = vpop.f32.mrb[0].mxu0
        %v1469 = vadd.f32 0.0, %v1468
        %v1470 = vpop.f32.mrb[0].mxu0
        %1471 = vmatprep.mubr.f32.mxu0 0.0
        %1472 = vmatmul.mubr.f32.gmra.mrb[0].mxu0 %v941
        %v1473 = vpop.f32.mrb[0].mxu0
        %v1474 = vadd.f32 0.0, %v1473
        %v1475 = vpop.f32.mrb[0].mxu0
        %1476 = vmatprep.mubr.f32.mxu0 0.0
        %1477 = vmatmul.mubr.f32.gmra.mrb[0].mxu0 %v944
        %v1478 = vpop.f32.mrb[0].mxu0
        %v1479 = vadd.f32 0.0, %v1478
        %v1480 = vpop.f32.mrb[0].mxu0
        %1481 = vmatprep.mubr.f32.mxu0 0.0
        %1482 = vmatmul.mubr.f32.gmra.mrb[0].mxu0 %v947
        %v1483 = vpop.f32.mrb[0].mxu0
        %v1484 = vadd.f32 0.0, %v1483
        %v1485 = vpop.f32.mrb[0].mxu0
        %1486 = vmatprep.mubr.f32.mxu0 0.0
        %1487 = vmatmul.mubr.f32.gmra.mrb[0].mxu0 %v950
        %v1488 = vpop.f32.mrb[0].mxu0
        %v1489 = vadd.f32 0.0, %v1488
        %v1490 = vpop.f32.mrb[0].mxu0
        %1491 = vdwg.mxu0
        %1492 = vmatprep.subr.mxu0 0.0
        %1493 = vmatpush1.msra.mxu0 %v881
        %1494 = vmatprep.subr.mxu0 0.0
        %1495 = vmatpush1.msra.mxu0 %v882
        %1496 = vmatprep.subr.mxu0 0.0
        %1497 = vmatpush1.msra.mxu0 %v883
        %1498 = vmatprep.subr.mxu0 0.0
        %1499 = vmatpush1.msra.mxu0 %v884
        %1500 = vmatprep.subr.mxu0 0.0
        %1501 = vmatpush1.msra.mxu0 %v885
        %1502 = vmatprep.subr.mxu0 0.0
        %1503 = vmatpush1.msra.mxu0 0.0
        %1504 = vmatprep.subr.mxu0 0.0
        %1505 = vmatpush1.msra.mxu0 0.0
        %1506 = vmatprep.subr.mxu0 0.0
        %1507 = vmatpush1.msra.mxu0 0.0
        %1508 = vmatprep.subr.mxu0 0.0
        %1509 = vmatpush1.msra.mxu0 0.0
        %1510 = vmatprep.subr.mxu0 0.0
        %1511 = vmatpush1.msra.mxu0 0.0
        %1512 = vmatprep.subr.mxu0 0.0
        %1513 = vmatpush1.msra.mxu0 0.0
        %1514 = vmatprep.subr.mxu0 0.0
        %1515 = vmatpush1.msra.mxu0 0.0
        %1516 = vmatprep.subr.mxu0 0.0
        %1517 = vmatpush1.msra.mxu0 0.0
        %1518 = vmatprep.subr.mxu0 0.0
        %1519 = vmatpush1.msra.mxu0 0.0
        %1520 = vmatprep.subr.mxu0 0.0
        %1521 = vmatpush1.msra.mxu0 0.0
        %1522 = vmatprep.subr.mxu0 0.0
        %1523 = vmatpush1.msra.mxu0 0.0
        %1524 = vmatprep.subr.mxu0 0.0
        %1525 = vmatpush1.msra.mxu0 0.0
        %1526 = vmatprep.subr.mxu0 0.0
        %1527 = vmatpush1.msra.mxu0 0.0
        %1528 = vmatprep.subr.mxu0 0.0
        %1529 = vmatpush1.msra.mxu0 0.0
        %1530 = vmatprep.subr.mxu0 0.0
        %1531 = vmatpush1.msra.mxu0 0.0
        %1532 = vmatprep.subr.mxu0 0.0
        %1533 = vmatpush1.msra.mxu0 0.0
        %1534 = vmatprep.subr.mxu0 0.0
        %1535 = vmatpush1.msra.mxu0 0.0
        %1536 = vmatprep.subr.mxu0 0.0
        %1537 = vmatpush1.msra.mxu0 0.0
        %1538 = vmatprep.subr.mxu0 0.0
        %1539 = vmatpush1.msra.mxu0 0.0
        %1540 = vmatprep.subr.mxu0 0.0
        %1541 = vmatpush1.msra.mxu0 0.0
        %1542 = vmatprep.subr.mxu0 0.0
        %1543 = vmatpush1.msra.mxu0 0.0
        %1544 = vmatprep.subr.mxu0 0.0
        %1545 = vmatpush1.msra.mxu0 0.0
        %1546 = vmatprep.subr.mxu0 0.0
        %1547 = vmatpush1.msra.mxu0 0.0
        %1548 = vmatprep.subr.mxu0 0.0
        %1549 = vmatpush1.msra.mxu0 0.0
        %1550 = vmatprep.subr.mxu0 0.0
        %1551 = vmatpush1.msra.mxu0 0.0
        %1552 = vmatprep.subr.mxu0 0.0
        %1553 = vmatpush1.msra.mxu0 0.0
        %1554 = vmatprep.subr.mxu0 0.0
        %1555 = vmatpush1.msra.mxu0 0.0
        %1556 = vmatprep.mubr.f32.mxu0 0.0
        %1557 = vmatmul.mubr.f32.gmra.mrb[0].mxu0 %v938
        %v1558 = vpop.f32.mrb[0].mxu0
        %v1559 = vadd.f32 0.0, %v1558
        %v1560 = vpop.f32.mrb[0].mxu0
        %1561 = vmatprep.mubr.f32.mxu0 0.0
        %1562 = vmatmul.mubr.f32.gmra.mrb[0].mxu0 %v941
        %v1563 = vpop.f32.mrb[0].mxu0
        %v1564 = vadd.f32 0.0, %v1563
        %v1565 = vpop.f32.mrb[0].mxu0
        %1566 = vmatprep.mubr.f32.mxu0 0.0
        %1567 = vmatmul.mubr.f32.gmra.mrb[0].mxu0 %v944
        %v1568 = vpop.f32.mrb[0].mxu0
        %v1569 = vadd.f32 0.0, %v1568
        %v1570 = vpop.f32.mrb[0].mxu0
        %1571 = vmatprep.mubr.f32.mxu0 0.0
        %1572 = vmatmul.mubr.f32.gmra.mrb[0].mxu0 %v947
        %v1573 = vpop.f32.mrb[0].mxu0
        %v1574 = vadd.f32 0.0, %v1573
        %v1575 = vpop.f32.mrb[0].mxu0
        %1576 = vmatprep.mubr.f32.mxu0 0.0
        %1577 = vmatmul.mubr.f32.gmra.mrb[0].mxu0 %v950
        %v1578 = vpop.f32.mrb[0].mxu0
        %v1579 = vadd.f32 0.0, %v1578
        %v1580 = vpop.f32.mrb[0].mxu0
        %1581 = vdwg.mxu0
        %1582 = vmatprep.subr.mxu0 0.0
        %1583 = vmatpush1.msra.mxu0 %v886
        %1584 = vmatprep.subr.mxu0 0.0
        %1585 = vmatpush1.msra.mxu0 %v887
        %1586 = vmatprep.subr.mxu0 0.0
        %1587 = vmatpush1.msra.mxu0 %v888
        %1588 = vmatprep.subr.mxu0 0.0
        %1589 = vmatpush1.msra.mxu0 %v889
        %1590 = vmatprep.subr.mxu0 0.0
        %1591 = vmatpush1.msra.mxu0 %v890
        %1592 = vmatprep.subr.mxu0 0.0
        %1593 = vmatpush1.msra.mxu0 0.0
        %1594 = vmatprep.subr.mxu0 0.0
        %1595 = vmatpush1.msra.mxu0 0.0
        %1596 = vmatprep.subr.mxu0 0.0
        %1597 = vmatpush1.msra.mxu0 0.0
        %1598 = vmatprep.subr.mxu0 0.0
        %1599 = vmatpush1.msra.mxu0 0.0
        %1600 = vmatprep.subr.mxu0 0.0
        %1601 = vmatpush1.msra.mxu0 0.0
        %1602 = vmatprep.subr.mxu0 0.0
        %1603 = vmatpush1.msra.mxu0 0.0
        %1604 = vmatprep.subr.mxu0 0.0
        %1605 = vmatpush1.msra.mxu0 0.0
        %1606 = vmatprep.subr.mxu0 0.0
        %1607 = vmatpush1.msra.mxu0 0.0
        %1608 = vmatprep.subr.mxu0 0.0
        %1609 = vmatpush1.msra.mxu0 0.0
        %1610 = vmatprep.subr.mxu0 0.0
        %1611 = vmatpush1.msra.mxu0 0.0
        %1612 = vmatprep.subr.mxu0 0.0
        %1613 = vmatpush1.msra.mxu0 0.0
        %1614 = vmatprep.subr.mxu0 0.0
        %1615 = vmatpush1.msra.mxu0 0.0
        %1616 = vmatprep.subr.mxu0 0.0
        %1617 = vmatpush1.msra.mxu0 0.0
        %1618 = vmatprep.subr.mxu0 0.0
        %1619 = vmatpush1.msra.mxu0 0.0
        %1620 = vmatprep.subr.mxu0 0.0
        %1621 = vmatpush1.msra.mxu0 0.0
        %1622 = vmatprep.subr.mxu0 0.0
        %1623 = vmatpush1.msra.mxu0 0.0
        %1624 = vmatprep.subr.mxu0 0.0
        %1625 = vmatpush1.msra.mxu0 0.0
        %1626 = vmatprep.subr.mxu0 0.0
        %1627 = vmatpush1.msra.mxu0 0.0
        %1628 = vmatprep.subr.mxu0 0.0
        %1629 = vmatpush1.msra.mxu0 0.0
        %1630 = vmatprep.subr.mxu0 0.0
        %1631 = vmatpush1.msra.mxu0 0.0
        %1632 = vmatprep.subr.mxu0 0.0
        %1633 = vmatpush1.msra.mxu0 0.0
        %1634 = vmatprep.subr.mxu0 0.0
        %1635 = vmatpush1.msra.mxu0 0.0
        %1636 = vmatprep.subr.mxu0 0.0
        %1637 = vmatpush1.msra.mxu0 0.0
        %1638 = vmatprep.subr.mxu0 0.0
        %1639 = vmatpush1.msra.mxu0 0.0
        %1640 = vmatprep.subr.mxu0 0.0
        %1641 = vmatpush1.msra.mxu0 0.0
        %1642 = vmatprep.subr.mxu0 0.0
        %1643 = vmatpush1.msra.mxu0 0.0
        %1644 = vmatprep.subr.mxu0 0.0
        %1645 = vmatpush1.msra.mxu0 0.0
        %1646 = vmatprep.mubr.f32.mxu0 0.0
        %1647 = vmatmul.mubr.f32.gmra.mrb[0].mxu0 %v938
        %v1648 = vpop.f32.mrb[0].mxu0
        %v1649 = vadd.f32 0.0, %v1648
        %v1650 = vpop.f32.mrb[0].mxu0
        %1651 = vmatprep.mubr.f32.mxu0 0.0
        %1652 = vmatmul.mubr.f32.gmra.mrb[0].mxu0 %v941
        %v1653 = vpop.f32.mrb[0].mxu0
        %v1654 = vadd.f32 0.0, %v1653
        %v1655 = vpop.f32.mrb[0].mxu0
        %1656 = vmatprep.mubr.f32.mxu0 0.0
        %1657 = vmatmul.mubr.f32.gmra.mrb[0].mxu0 %v944
        %v1658 = vpop.f32.mrb[0].mxu0
        %v1659 = vadd.f32 0.0, %v1658
        %v1660 = vpop.f32.mrb[0].mxu0
        %1661 = vmatprep.mubr.f32.mxu0 0.0
        %1662 = vmatmul.mubr.f32.gmra.mrb[0].mxu0 %v947
        %v1663 = vpop.f32.mrb[0].mxu0
        %v1664 = vadd.f32 0.0, %v1663
        %v1665 = vpop.f32.mrb[0].mxu0
        %1666 = vmatprep.mubr.f32.mxu0 0.0
        %1667 = vmatmul.mubr.f32.gmra.mrb[0].mxu0 %v950
        %v1668 = vpop.f32.mrb[0].mxu0
        %v1669 = vadd.f32 0.0, %v1668
        %v1670 = vpop.f32.mrb[0].mxu0
        %1671 = vdwg.mxu0
        %1672 = vmatprep.subr.mxu0 0.0
        %1673 = vmatpush1.msra.mxu0 %v891
        %1674 = vmatprep.subr.mxu0 0.0
        %1675 = vmatpush1.msra.mxu0 %v892
        %1676 = vmatprep.subr.mxu0 0.0
        %1677 = vmatpush1.msra.mxu0 %v893
        %1678 = vmatprep.subr.mxu0 0.0
        %1679 = vmatpush1.msra.mxu0 %v894
        %1680 = vmatprep.subr.mxu0 0.0
        %1681 = vmatpush1.msra.mxu0 %v895
        %1682 = vmatprep.subr.mxu0 0.0
        %1683 = vmatpush1.msra.mxu0 0.0
        %1684 = vmatprep.subr.mxu0 0.0
        %1685 = vmatpush1.msra.mxu0 0.0
        %1686 = vmatprep.subr.mxu0 0.0
        %1687 = vmatpush1.msra.mxu0 0.0
        %1688 = vmatprep.subr.mxu0 0.0
        %1689 = vmatpush1.msra.mxu0 0.0
        %1690 = vmatprep.subr.mxu0 0.0
        %1691 = vmatpush1.msra.mxu0 0.0
        %1692 = vmatprep.subr.mxu0 0.0
        %1693 = vmatpush1.msra.mxu0 0.0
        %1694 = vmatprep.subr.mxu0 0.0
        %1695 = vmatpush1.msra.mxu0 0.0
        %1696 = vmatprep.subr.mxu0 0.0
        %1697 = vmatpush1.msra.mxu0 0.0
        %1698 = vmatprep.subr.mxu0 0.0
        %1699 = vmatpush1.msra.mxu0 0.0
        %1700 = vmatprep.subr.mxu0 0.0
        %1701 = vmatpush1.msra.mxu0 0.0
        %1702 = vmatprep.subr.mxu0 0.0
        %1703 = vmatpush1.msra.mxu0 0.0
        %1704 = vmatprep.subr.mxu0 0.0
        %1705 = vmatpush1.msra.mxu0 0.0
        %1706 = vmatprep.subr.mxu0 0.0
        %1707 = vmatpush1.msra.mxu0 0.0
        %1708 = vmatprep.subr.mxu0 0.0
        %1709 = vmatpush1.msra.mxu0 0.0
        %1710 = vmatprep.subr.mxu0 0.0
        %1711 = vmatpush1.msra.mxu0 0.0
        %1712 = vmatprep.subr.mxu0 0.0
        %1713 = vmatpush1.msra.mxu0 0.0
        %1714 = vmatprep.subr.mxu0 0.0
        %1715 = vmatpush1.msra.mxu0 0.0
        %1716 = vmatprep.subr.mxu0 0.0
        %1717 = vmatpush1.msra.mxu0 0.0
        %1718 = vmatprep.subr.mxu0 0.0
        %1719 = vmatpush1.msra.mxu0 0.0
        %1720 = vmatprep.subr.mxu0 0.0
        %1721 = vmatpush1.msra.mxu0 0.0
        %1722 = vmatprep.subr.mxu0 0.0
        %1723 = vmatpush1.msra.mxu0 0.0
        %1724 = vmatprep.subr.mxu0 0.0
        %1725 = vmatpush1.msra.mxu0 0.0
        %1726 = vmatprep.subr.mxu0 0.0
        %1727 = vmatpush1.msra.mxu0 0.0
        %1728 = vmatprep.subr.mxu0 0.0
        %1729 = vmatpush1.msra.mxu0 0.0
        %1730 = vmatprep.subr.mxu0 0.0
        %1731 = vmatpush1.msra.mxu0 0.0
        %1732 = vmatprep.subr.mxu0 0.0
        %1733 = vmatpush1.msra.mxu0 0.0
        %1734 = vmatprep.subr.mxu0 0.0
        %1735 = vmatpush1.msra.mxu0 0.0
        %1736 = vmatprep.mubr.f32.mxu0 0.0
        %1737 = vmatmul.mubr.f32.gmra.mrb[0].mxu0 %v938
        %v1738 = vpop.f32.mrb[0].mxu0
        %v1739 = vadd.f32 0.0, %v1738
        %v1740 = vpop.f32.mrb[0].mxu0
        %1741 = vmatprep.mubr.f32.mxu0 0.0
        %1742 = vmatmul.mubr.f32.gmra.mrb[0].mxu0 %v941
        %v1743 = vpop.f32.mrb[0].mxu0
        %v1744 = vadd.f32 0.0, %v1743
        %v1745 = vpop.f32.mrb[0].mxu0
        %1746 = vmatprep.mubr.f32.mxu0 0.0
        %1747 = vmatmul.mubr.f32.gmra.mrb[0].mxu0 %v944
        %v1748 = vpop.f32.mrb[0].mxu0
        %v1749 = vadd.f32 0.0, %v1748
        %v1750 = vpop.f32.mrb[0].mxu0
        %1751 = vmatprep.mubr.f32.mxu0 0.0
        %1752 = vmatmul.mubr.f32.gmra.mrb[0].mxu0 %v947
        %v1753 = vpop.f32.mrb[0].mxu0
        %v1754 = vadd.f32 0.0, %v1753
        %v1755 = vpop.f32.mrb[0].mxu0
        %1756 = vmatprep.mubr.f32.mxu0 0.0
        %1757 = vmatmul.mubr.f32.gmra.mrb[0].mxu0 %v950
        %v1758 = vpop.f32.mrb[0].mxu0
        %v1759 = vadd.f32 0.0, %v1758
        %v1760 = vpop.f32.mrb[0].mxu0
        %1761 = vdwg.mxu0
        %1762 = vmatprep.subr.mxu0 0.0
        %1763 = vmatpush1.msra.mxu0 %v896
        %1764 = vmatprep.subr.mxu0 0.0
        %1765 = vmatpush1.msra.mxu0 %v897
        %1766 = vmatprep.subr.mxu0 0.0
        %1767 = vmatpush1.msra.mxu0 %v898
        %1768 = vmatprep.subr.mxu0 0.0
        %1769 = vmatpush1.msra.mxu0 %v899
        %1770 = vmatprep.subr.mxu0 0.0
        %1771 = vmatpush1.msra.mxu0 %v900
        %1772 = vmatprep.subr.mxu0 0.0
        %1773 = vmatpush1.msra.mxu0 0.0
        %1774 = vmatprep.subr.mxu0 0.0
        %1775 = vmatpush1.msra.mxu0 0.0
        %1776 = vmatprep.subr.mxu0 0.0
        %1777 = vmatpush1.msra.mxu0 0.0
        %1778 = vmatprep.subr.mxu0 0.0
        %1779 = vmatpush1.msra.mxu0 0.0
        %1780 = vmatprep.subr.mxu0 0.0
        %1781 = vmatpush1.msra.mxu0 0.0
        %1782 = vmatprep.subr.mxu0 0.0
        %1783 = vmatpush1.msra.mxu0 0.0
        %1784 = vmatprep.subr.mxu0 0.0
        %1785 = vmatpush1.msra.mxu0 0.0
        %1786 = vmatprep.subr.mxu0 0.0
        %1787 = vmatpush1.msra.mxu0 0.0
        %1788 = vmatprep.subr.mxu0 0.0
        %1789 = vmatpush1.msra.mxu0 0.0
        %1790 = vmatprep.subr.mxu0 0.0
        %1791 = vmatpush1.msra.mxu0 0.0
        %1792 = vmatprep.subr.mxu0 0.0
        %1793 = vmatpush1.msra.mxu0 0.0
        %1794 = vmatprep.subr.mxu0 0.0
        %1795 = vmatpush1.msra.mxu0 0.0
        %1796 = vmatprep.subr.mxu0 0.0
        %1797 = vmatpush1.msra.mxu0 0.0
        %1798 = vmatprep.subr.mxu0 0.0
        %1799 = vmatpush1.msra.mxu0 0.0
        %1800 = vmatprep.subr.mxu0 0.0
        %1801 = vmatpush1.msra.mxu0 0.0
        %1802 = vmatprep.subr.mxu0 0.0
        %1803 = vmatpush1.msra.mxu0 0.0
        %1804 = vmatprep.subr.mxu0 0.0
        %1805 = vmatpush1.msra.mxu0 0.0
        %1806 = vmatprep.subr.mxu0 0.0
        %1807 = vmatpush1.msra.mxu0 0.0
        %1808 = vmatprep.subr.mxu0 0.0
        %1809 = vmatpush1.msra.mxu0 0.0
        %1810 = vmatprep.subr.mxu0 0.0
        %1811 = vmatpush1.msra.mxu0 0.0
        %1812 = vmatprep.subr.mxu0 0.0
        %1813 = vmatpush1.msra.mxu0 0.0
        %1814 = vmatprep.subr.mxu0 0.0
        %1815 = vmatpush1.msra.mxu0 0.0
        %1816 = vmatprep.subr.mxu0 0.0
        %1817 = vmatpush1.msra.mxu0 0.0
        %1818 = vmatprep.subr.mxu0 0.0
        %1819 = vmatpush1.msra.mxu0 0.0
        %1820 = vmatprep.subr.mxu0 0.0
        %1821 = vmatpush1.msra.mxu0 0.0
        %1822 = vmatprep.subr.mxu0 0.0
        %1823 = vmatpush1.msra.mxu0 0.0
        %1824 = vmatprep.subr.mxu0 0.0
        %1825 = vmatpush1.msra.mxu0 0.0
        %1826 = vmatprep.mubr.f32.mxu0 0.0
        %1827 = vmatmul.mubr.f32.gmra.mrb[0].mxu0 %v938
        %v1828 = vpop.f32.mrb[0].mxu0
        %v1829 = vadd.f32 0.0, %v1828
        %v1830 = vpop.f32.mrb[0].mxu0
        %1831 = vmatprep.mubr.f32.mxu0 0.0
        %1832 = vmatmul.mubr.f32.gmra.mrb[0].mxu0 %v941
        %v1833 = vpop.f32.mrb[0].mxu0
        %v1834 = vadd.f32 0.0, %v1833
        %v1835 = vpop.f32.mrb[0].mxu0
        %1836 = vmatprep.mubr.f32.mxu0 0.0
        %1837 = vmatmul.mubr.f32.gmra.mrb[0].mxu0 %v944
        %v1838 = vpop.f32.mrb[0].mxu0
        %v1839 = vadd.f32 0.0, %v1838
        %v1840 = vpop.f32.mrb[0].mxu0
        %1841 = vmatprep.mubr.f32.mxu0 0.0
        %1842 = vmatmul.mubr.f32.gmra.mrb[0].mxu0 %v947
        %v1843 = vpop.f32.mrb[0].mxu0
        %v1844 = vadd.f32 0.0, %v1843
        %v1845 = vpop.f32.mrb[0].mxu0
        %1846 = vmatprep.mubr.f32.mxu0 0.0
        %1847 = vmatmul.mubr.f32.gmra.mrb[0].mxu0 %v950
        %v1848 = vpop.f32.mrb[0].mxu0
        %v1849 = vadd.f32 0.0, %v1848
        %v1850 = vpop.f32.mrb[0].mxu0
        %1851 = vdwg.mxu0
        %1852 = vmatprep.subr.mxu0 0.0
        %1853 = vmatpush1.msra.mxu0 %v901
        %1854 = vmatprep.subr.mxu0 0.0
        %1855 = vmatpush1.msra.mxu0 %v902
        %1856 = vmatprep.subr.mxu0 0.0
        %1857 = vmatpush1.msra.mxu0 %v903
        %1858 = vmatprep.subr.mxu0 0.0
        %1859 = vmatpush1.msra.mxu0 %v904
        %1860 = vmatprep.subr.mxu0 0.0
        %1861 = vmatpush1.msra.mxu0 %v905
        %1862 = vmatprep.subr.mxu0 0.0
        %1863 = vmatpush1.msra.mxu0 0.0
        %1864 = vmatprep.subr.mxu0 0.0
        %1865 = vmatpush1.msra.mxu0 0.0
        %1866 = vmatprep.subr.mxu0 0.0
        %1867 = vmatpush1.msra.mxu0 0.0
        %1868 = vmatprep.subr.mxu0 0.0
        %1869 = vmatpush1.msra.mxu0 0.0
        %1870 = vmatprep.subr.mxu0 0.0
        %1871 = vmatpush1.msra.mxu0 0.0
        %1872 = vmatprep.subr.mxu0 0.0
        %1873 = vmatpush1.msra.mxu0 0.0
        %1874 = vmatprep.subr.mxu0 0.0
        %1875 = vmatpush1.msra.mxu0 0.0
        %1876 = vmatprep.subr.mxu0 0.0
        %1877 = vmatpush1.msra.mxu0 0.0
        %1878 = vmatprep.subr.mxu0 0.0
        %1879 = vmatpush1.msra.mxu0 0.0
        %1880 = vmatprep.subr.mxu0 0.0
        %1881 = vmatpush1.msra.mxu0 0.0
        %1882 = vmatprep.subr.mxu0 0.0
        %1883 = vmatpush1.msra.mxu0 0.0
        %1884 = vmatprep.subr.mxu0 0.0
        %1885 = vmatpush1.msra.mxu0 0.0
        %1886 = vmatprep.subr.mxu0 0.0
        %1887 = vmatpush1.msra.mxu0 0.0
        %1888 = vmatprep.subr.mxu0 0.0
        %1889 = vmatpush1.msra.mxu0 0.0
        %1890 = vmatprep.subr.mxu0 0.0
        %1891 = vmatpush1.msra.mxu0 0.0
        %1892 = vmatprep.subr.mxu0 0.0
        %1893 = vmatpush1.msra.mxu0 0.0
        %1894 = vmatprep.subr.mxu0 0.0
        %1895 = vmatpush1.msra.mxu0 0.0
        %1896 = vmatprep.subr.mxu0 0.0
        %1897 = vmatpush1.msra.mxu0 0.0
        %1898 = vmatprep.subr.mxu0 0.0
        %1899 = vmatpush1.msra.mxu0 0.0
        %1900 = vmatprep.subr.mxu0 0.0
        %1901 = vmatpush1.msra.mxu0 0.0
        %1902 = vmatprep.subr.mxu0 0.0
        %1903 = vmatpush1.msra.mxu0 0.0
        %1904 = vmatprep.subr.mxu0 0.0
        %1905 = vmatpush1.msra.mxu0 0.0
        %1906 = vmatprep.subr.mxu0 0.0
        %1907 = vmatpush1.msra.mxu0 0.0
        %1908 = vmatprep.subr.mxu0 0.0
        %1909 = vmatpush1.msra.mxu0 0.0
        %1910 = vmatprep.subr.mxu0 0.0
        %1911 = vmatpush1.msra.mxu0 0.0
        %1912 = vmatprep.subr.mxu0 0.0
        %1913 = vmatpush1.msra.mxu0 0.0
        %1914 = vmatprep.subr.mxu0 0.0
        %1915 = vmatpush1.msra.mxu0 0.0
        %1916 = vmatprep.mubr.f32.mxu0 0.0
        %1917 = vmatmul.mubr.f32.gmra.mrb[0].mxu0 %v938
        %v1918 = vpop.f32.mrb[0].mxu0
        %v1919 = vadd.f32 0.0, %v1918
        %v1920 = vpop.f32.mrb[0].mxu0
        %1921 = vmatprep.mubr.f32.mxu0 0.0
        %1922 = vmatmul.mubr.f32.gmra.mrb[0].mxu0 %v941
        %v1923 = vpop.f32.mrb[0].mxu0
        %v1924 = vadd.f32 0.0, %v1923
        %v1925 = vpop.f32.mrb[0].mxu0
        %1926 = vmatprep.mubr.f32.mxu0 0.0
        %1927 = vmatmul.mubr.f32.gmra.mrb[0].mxu0 %v944
        %v1928 = vpop.f32.mrb[0].mxu0
        %v1929 = vadd.f32 0.0, %v1928
        %v1930 = vpop.f32.mrb[0].mxu0
        %1931 = vmatprep.mubr.f32.mxu0 0.0
        %1932 = vmatmul.mubr.f32.gmra.mrb[0].mxu0 %v947
        %v1933 = vpop.f32.mrb[0].mxu0
        %v1934 = vadd.f32 0.0, %v1933
        %v1935 = vpop.f32.mrb[0].mxu0
        %1936 = vmatprep.mubr.f32.mxu0 0.0
        %1937 = vmatmul.mubr.f32.gmra.mrb[0].mxu0 %v950
        %v1938 = vpop.f32.mrb[0].mxu0
        %v1939 = vadd.f32 0.0, %v1938
        %v1940 = vpop.f32.mrb[0].mxu0
        %1941 = vdwg.mxu0
        %1942 = vmatprep.subr.mxu0 0.0
        %1943 = vmatpush1.msra.mxu0 %v906
        %1944 = vmatprep.subr.mxu0 0.0
        %1945 = vmatpush1.msra.mxu0 %v907
        %1946 = vmatprep.subr.mxu0 0.0
        %1947 = vmatpush1.msra.mxu0 %v908
        %1948 = vmatprep.subr.mxu0 0.0
        %1949 = vmatpush1.msra.mxu0 %v909
        %1950 = vmatprep.subr.mxu0 0.0
        %1951 = vmatpush1.msra.mxu0 %v910
        %1952 = vmatprep.subr.mxu0 0.0
        %1953 = vmatpush1.msra.mxu0 0.0
        %1954 = vmatprep.subr.mxu0 0.0
        %1955 = vmatpush1.msra.mxu0 0.0
        %1956 = vmatprep.subr.mxu0 0.0
        %1957 = vmatpush1.msra.mxu0 0.0
        %1958 = vmatprep.subr.mxu0 0.0
        %1959 = vmatpush1.msra.mxu0 0.0
        %1960 = vmatprep.subr.mxu0 0.0
        %1961 = vmatpush1.msra.mxu0 0.0
        %1962 = vmatprep.subr.mxu0 0.0
        %1963 = vmatpush1.msra.mxu0 0.0
        %1964 = vmatprep.subr.mxu0 0.0
        %1965 = vmatpush1.msra.mxu0 0.0
        %1966 = vmatprep.subr.mxu0 0.0
        %1967 = vmatpush1.msra.mxu0 0.0
        %1968 = vmatprep.subr.mxu0 0.0
        %1969 = vmatpush1.msra.mxu0 0.0
        %1970 = vmatprep.subr.mxu0 0.0
        %1971 = vmatpush1.msra.mxu0 0.0
        %1972 = vmatprep.subr.mxu0 0.0
        %1973 = vmatpush1.msra.mxu0 0.0
        %1974 = vmatprep.subr.mxu0 0.0
        %1975 = vmatpush1.msra.mxu0 0.0
        %1976 = vmatprep.subr.mxu0 0.0
        %1977 = vmatpush1.msra.mxu0 0.0
        %1978 = vmatprep.subr.mxu0 0.0
        %1979 = vmatpush1.msra.mxu0 0.0
        %1980 = vmatprep.subr.mxu0 0.0
        %1981 = vmatpush1.msra.mxu0 0.0
        %1982 = vmatprep.subr.mxu0 0.0
        %1983 = vmatpush1.msra.mxu0 0.0
        %1984 = vmatprep.subr.mxu0 0.0
        %1985 = vmatpush1.msra.mxu0 0.0
        %1986 = vmatprep.subr.mxu0 0.0
        %1987 = vmatpush1.msra.mxu0 0.0
        %1988 = vmatprep.subr.mxu0 0.0
        %1989 = vmatpush1.msra.mxu0 0.0
        %1990 = vmatprep.subr.mxu0 0.0
        %1991 = vmatpush1.msra.mxu0 0.0
        %1992 = vmatprep.subr.mxu0 0.0
        %1993 = vmatpush1.msra.mxu0 0.0
        %1994 = vmatprep.subr.mxu0 0.0
        %1995 = vmatpush1.msra.mxu0 0.0
        %1996 = vmatprep.subr.mxu0 0.0
        %1997 = vmatpush1.msra.mxu0 0.0
        %1998 = vmatprep.subr.mxu0 0.0
        %1999 = vmatpush1.msra.mxu0 0.0
        %2000 = vmatprep.subr.mxu0 0.0
        %2001 = vmatpush1.msra.mxu0 0.0
        %2002 = vmatprep.subr.mxu0 0.0
        %2003 = vmatpush1.msra.mxu0 0.0
        %2004 = vmatprep.subr.mxu0 0.0
        %2005 = vmatpush1.msra.mxu0 0.0
        %2006 = vmatprep.mubr.f32.mxu0 0.0
        %2007 = vmatmul.mubr.f32.gmra.mrb[0].mxu0 %v938
        %v2008 = vpop.f32.mrb[0].mxu0
        %v2009 = vadd.f32 0.0, %v2008
        %v2010 = vpop.f32.mrb[0].mxu0
        %2011 = vmatprep.mubr.f32.mxu0 0.0
        %2012 = vmatmul.mubr.f32.gmra.mrb[0].mxu0 %v941
        %v2013 = vpop.f32.mrb[0].mxu0
        %v2014 = vadd.f32 0.0, %v2013
        %v2015 = vpop.f32.mrb[0].mxu0
        %2016 = vmatprep.mubr.f32.mxu0 0.0
        %2017 = vmatmul.mubr.f32.gmra.mrb[0].mxu0 %v944
        %v2018 = vpop.f32.mrb[0].mxu0
        %v2019 = vadd.f32 0.0, %v2018
        %v2020 = vpop.f32.mrb[0].mxu0
        %2021 = vmatprep.mubr.f32.mxu0 0.0
        %2022 = vmatmul.mubr.f32.gmra.mrb[0].mxu0 %v947
        %v2023 = vpop.f32.mrb[0].mxu0
        %v2024 = vadd.f32 0.0, %v2023
        %v2025 = vpop.f32.mrb[0].mxu0
        %2026 = vmatprep.mubr.f32.mxu0 0.0
        %2027 = vmatmul.mubr.f32.gmra.mrb[0].mxu0 %v950
        %v2028 = vpop.f32.mrb[0].mxu0
        %v2029 = vadd.f32 0.0, %v2028
        %v2030 = vpop.f32.mrb[0].mxu0
        %2031 = vdwg.mxu0
        %2032 = vmatprep.subr.mxu0 0.0
        %2033 = vmatpush1.msra.mxu0 %v911
        %2034 = vmatprep.subr.mxu0 0.0
        %2035 = vmatpush1.msra.mxu0 %v912
        %2036 = vmatprep.subr.mxu0 0.0
        %2037 = vmatpush1.msra.mxu0 %v913
        %2038 = vmatprep.subr.mxu0 0.0
        %2039 = vmatpush1.msra.mxu0 %v914
        %2040 = vmatprep.subr.mxu0 0.0
        %2041 = vmatpush1.msra.mxu0 %v915
        %2042 = vmatprep.subr.mxu0 0.0
        %2043 = vmatpush1.msra.mxu0 0.0
        %2044 = vmatprep.subr.mxu0 0.0
        %2045 = vmatpush1.msra.mxu0 0.0
        %2046 = vmatprep.subr.mxu0 0.0
        %2047 = vmatpush1.msra.mxu0 0.0
        %2048 = vmatprep.subr.mxu0 0.0
        %2049 = vmatpush1.msra.mxu0 0.0
        %2050 = vmatprep.subr.mxu0 0.0
        %2051 = vmatpush1.msra.mxu0 0.0
        %2052 = vmatprep.subr.mxu0 0.0
        %2053 = vmatpush1.msra.mxu0 0.0
        %2054 = vmatprep.subr.mxu0 0.0
        %2055 = vmatpush1.msra.mxu0 0.0
        %2056 = vmatprep.subr.mxu0 0.0
        %2057 = vmatpush1.msra.mxu0 0.0
        %2058 = vmatprep.subr.mxu0 0.0
        %2059 = vmatpush1.msra.mxu0 0.0
        %2060 = vmatprep.subr.mxu0 0.0
        %2061 = vmatpush1.msra.mxu0 0.0
        %2062 = vmatprep.subr.mxu0 0.0
        %2063 = vmatpush1.msra.mxu0 0.0
        %2064 = vmatprep.subr.mxu0 0.0
        %2065 = vmatpush1.msra.mxu0 0.0
        %2066 = vmatprep.subr.mxu0 0.0
        %2067 = vmatpush1.msra.mxu0 0.0
        %2068 = vmatprep.subr.mxu0 0.0
        %2069 = vmatpush1.msra.mxu0 0.0
        %2070 = vmatprep.subr.mxu0 0.0
        %2071 = vmatpush1.msra.mxu0 0.0
        %2072 = vmatprep.subr.mxu0 0.0
        %2073 = vmatpush1.msra.mxu0 0.0
        %2074 = vmatprep.subr.mxu0 0.0
        %2075 = vmatpush1.msra.mxu0 0.0
        %2076 = vmatprep.subr.mxu0 0.0
        %2077 = vmatpush1.msra.mxu0 0.0
        %2078 = vmatprep.subr.mxu0 0.0
        %2079 = vmatpush1.msra.mxu0 0.0
        %2080 = vmatprep.subr.mxu0 0.0
        %2081 = vmatpush1.msra.mxu0 0.0
        %2082 = vmatprep.subr.mxu0 0.0
        %2083 = vmatpush1.msra.mxu0 0.0
        %2084 = vmatprep.subr.mxu0 0.0
        %2085 = vmatpush1.msra.mxu0 0.0
        %2086 = vmatprep.subr.mxu0 0.0
        %2087 = vmatpush1.msra.mxu0 0.0
        %2088 = vmatprep.subr.mxu0 0.0
        %2089 = vmatpush1.msra.mxu0 0.0
        %2090 = vmatprep.subr.mxu0 0.0
        %2091 = vmatpush1.msra.mxu0 0.0
        %2092 = vmatprep.subr.mxu0 0.0
        %2093 = vmatpush1.msra.mxu0 0.0
        %2094 = vmatprep.subr.mxu0 0.0
        %2095 = vmatpush1.msra.mxu0 0.0
        %2096 = vmatprep.mubr.f32.mxu0 0.0
        %2097 = vmatmul.mubr.f32.gmra.mrb[0].mxu0 %v938
        %v2098 = vpop.f32.mrb[0].mxu0
        %v2099 = vadd.f32 0.0, %v2098
        %v2100 = vpop.f32.mrb[0].mxu0
        %2101 = vmatprep.mubr.f32.mxu0 0.0
        %2102 = vmatmul.mubr.f32.gmra.mrb[0].mxu0 %v941
        %v2103 = vpop.f32.mrb[0].mxu0
        %v2104 = vadd.f32 0.0, %v2103
        %v2105 = vpop.f32.mrb[0].mxu0
        %2106 = vmatprep.mubr.f32.mxu0 0.0
        %2107 = vmatmul.mubr.f32.gmra.mrb[0].mxu0 %v944
        %v2108 = vpop.f32.mrb[0].mxu0
        %v2109 = vadd.f32 0.0, %v2108
        %v2110 = vpop.f32.mrb[0].mxu0
        %2111 = vmatprep.mubr.f32.mxu0 0.0
        %2112 = vmatmul.mubr.f32.gmra.mrb[0].mxu0 %v947
        %v2113 = vpop.f32.mrb[0].mxu0
        %v2114 = vadd.f32 0.0, %v2113
        %v2115 = vpop.f32.mrb[0].mxu0
        %2116 = vmatprep.mubr.f32.mxu0 0.0
        %2117 = vmatmul.mubr.f32.gmra.mrb[0].mxu0 %v950
        %v2118 = vpop.f32.mrb[0].mxu0
        %v2119 = vadd.f32 0.0, %v2118
        %v2120 = vpop.f32.mrb[0].mxu0
        %2121 = vdwg.mxu0
        %2122 = vmatprep.subr.mxu0 0.0
        %2123 = vmatpush1.msra.mxu0 %v916
        %2124 = vmatprep.subr.mxu0 0.0
        %2125 = vmatpush1.msra.mxu0 %v917
        %2126 = vmatprep.subr.mxu0 0.0
        %2127 = vmatpush1.msra.mxu0 %v918
        %2128 = vmatprep.subr.mxu0 0.0
        %2129 = vmatpush1.msra.mxu0 %v919
        %2130 = vmatprep.subr.mxu0 0.0
        %2131 = vmatpush1.msra.mxu0 %v920
        %2132 = vmatprep.subr.mxu0 0.0
        %2133 = vmatpush1.msra.mxu0 0.0
        %2134 = vmatprep.subr.mxu0 0.0
        %2135 = vmatpush1.msra.mxu0 0.0
        %2136 = vmatprep.subr.mxu0 0.0
        %2137 = vmatpush1.msra.mxu0 0.0
        %2138 = vmatprep.subr.mxu0 0.0
        %2139 = vmatpush1.msra.mxu0 0.0
        %2140 = vmatprep.subr.mxu0 0.0
        %2141 = vmatpush1.msra.mxu0 0.0
        %2142 = vmatprep.subr.mxu0 0.0
        %2143 = vmatpush1.msra.mxu0 0.0
        %2144 = vmatprep.subr.mxu0 0.0
        %2145 = vmatpush1.msra.mxu0 0.0
        %2146 = vmatprep.subr.mxu0 0.0
        %2147 = vmatpush1.msra.mxu0 0.0
        %2148 = vmatprep.subr.mxu0 0.0
        %2149 = vmatpush1.msra.mxu0 0.0
        %2150 = vmatprep.subr.mxu0 0.0
        %2151 = vmatpush1.msra.mxu0 0.0
        %2152 = vmatprep.subr.mxu0 0.0
        %2153 = vmatpush1.msra.mxu0 0.0
        %2154 = vmatprep.subr.mxu0 0.0
        %2155 = vmatpush1.msra.mxu0 0.0
        %2156 = vmatprep.subr.mxu0 0.0
        %2157 = vmatpush1.msra.mxu0 0.0
        %2158 = vmatprep.subr.mxu0 0.0
        %2159 = vmatpush1.msra.mxu0 0.0
        %2160 = vmatprep.subr.mxu0 0.0
        %2161 = vmatpush1.msra.mxu0 0.0
        %2162 = vmatprep.subr.mxu0 0.0
        %2163 = vmatpush1.msra.mxu0 0.0
        %2164 = vmatprep.subr.mxu0 0.0
        %2165 = vmatpush1.msra.mxu0 0.0
        %2166 = vmatprep.subr.mxu0 0.0
        %2167 = vmatpush1.msra.mxu0 0.0
        %2168 = vmatprep.subr.mxu0 0.0
        %2169 = vmatpush1.msra.mxu0 0.0
        %2170 = vmatprep.subr.mxu0 0.0
        %2171 = vmatpush1.msra.mxu0 0.0
        %2172 = vmatprep.subr.mxu0 0.0
        %2173 = vmatpush1.msra.mxu0 0.0
        %2174 = vmatprep.subr.mxu0 0.0
        %2175 = vmatpush1.msra.mxu0 0.0
        %2176 = vmatprep.subr.mxu0 0.0
        %2177 = vmatpush1.msra.mxu0 0.0
        %2178 = vmatprep.subr.mxu0 0.0
        %2179 = vmatpush1.msra.mxu0 0.0
        %2180 = vmatprep.subr.mxu0 0.0
        %2181 = vmatpush1.msra.mxu0 0.0
        %2182 = vmatprep.subr.mxu0 0.0
        %2183 = vmatpush1.msra.mxu0 0.0
        %2184 = vmatprep.subr.mxu0 0.0
        %2185 = vmatpush1.msra.mxu0 0.0
        %2186 = vmatprep.mubr.f32.mxu0 0.0
        %2187 = vmatmul.mubr.f32.gmra.mrb[0].mxu0 %v938
        %v2188 = vpop.f32.mrb[0].mxu0
        %v2189 = vadd.f32 0.0, %v2188
        %v2190 = vpop.f32.mrb[0].mxu0
        %2191 = vmatprep.mubr.f32.mxu0 0.0
        %2192 = vmatmul.mubr.f32.gmra.mrb[0].mxu0 %v941
        %v2193 = vpop.f32.mrb[0].mxu0
        %v2194 = vadd.f32 0.0, %v2193
        %v2195 = vpop.f32.mrb[0].mxu0
        %2196 = vmatprep.mubr.f32.mxu0 0.0
        %2197 = vmatmul.mubr.f32.gmra.mrb[0].mxu0 %v944
        %v2198 = vpop.f32.mrb[0].mxu0
        %v2199 = vadd.f32 0.0, %v2198
        %v2200 = vpop.f32.mrb[0].mxu0
        %2201 = vmatprep.mubr.f32.mxu0 0.0
        %2202 = vmatmul.mubr.f32.gmra.mrb[0].mxu0 %v947
        %v2203 = vpop.f32.mrb[0].mxu0
        %v2204 = vadd.f32 0.0, %v2203
        %v2205 = vpop.f32.mrb[0].mxu0
        %2206 = vmatprep.mubr.f32.mxu0 0.0
        %2207 = vmatmul.mubr.f32.gmra.mrb[0].mxu0 %v950
        %v2208 = vpop.f32.mrb[0].mxu0
        %v2209 = vadd.f32 0.0, %v2208
        %v2210 = vpop.f32.mrb[0].mxu0
        %2211 = vdwg.mxu0
        %2212 = vmatprep.subr.mxu0 0.0
        %2213 = vmatpush1.msra.mxu0 %v921
        %2214 = vmatprep.subr.mxu0 0.0
        %2215 = vmatpush1.msra.mxu0 %v922
        %2216 = vmatprep.subr.mxu0 0.0
        %2217 = vmatpush1.msra.mxu0 %v923
        %2218 = vmatprep.subr.mxu0 0.0
        %2219 = vmatpush1.msra.mxu0 %v924
        %2220 = vmatprep.subr.mxu0 0.0
        %2221 = vmatpush1.msra.mxu0 %v925
        %2222 = vmatprep.subr.mxu0 0.0
        %2223 = vmatpush1.msra.mxu0 0.0
        %2224 = vmatprep.subr.mxu0 0.0
        %2225 = vmatpush1.msra.mxu0 0.0
        %2226 = vmatprep.subr.mxu0 0.0
        %2227 = vmatpush1.msra.mxu0 0.0
        %2228 = vmatprep.subr.mxu0 0.0
        %2229 = vmatpush1.msra.mxu0 0.0
        %2230 = vmatprep.subr.mxu0 0.0
        %2231 = vmatpush1.msra.mxu0 0.0
        %2232 = vmatprep.subr.mxu0 0.0
        %2233 = vmatpush1.msra.mxu0 0.0
        %2234 = vmatprep.subr.mxu0 0.0
        %2235 = vmatpush1.msra.mxu0 0.0
        %2236 = vmatprep.subr.mxu0 0.0
        %2237 = vmatpush1.msra.mxu0 0.0
        %2238 = vmatprep.subr.mxu0 0.0
        %2239 = vmatpush1.msra.mxu0 0.0
        %2240 = vmatprep.subr.mxu0 0.0
        %2241 = vmatpush1.msra.mxu0 0.0
        %2242 = vmatprep.subr.mxu0 0.0
        %2243 = vmatpush1.msra.mxu0 0.0
        %2244 = vmatprep.subr.mxu0 0.0
        %2245 = vmatpush1.msra.mxu0 0.0
        %2246 = vmatprep.subr.mxu0 0.0
        %2247 = vmatpush1.msra.mxu0 0.0
        %2248 = vmatprep.subr.mxu0 0.0
        %2249 = vmatpush1.msra.mxu0 0.0
        %2250 = vmatprep.subr.mxu0 0.0
        %2251 = vmatpush1.msra.mxu0 0.0
        %2252 = vmatprep.subr.mxu0 0.0
        %2253 = vmatpush1.msra.mxu0 0.0
        %2254 = vmatprep.subr.mxu0 0.0
        %2255 = vmatpush1.msra.mxu0 0.0
        %2256 = vmatprep.subr.mxu0 0.0
        %2257 = vmatpush1.msra.mxu0 0.0
        %2258 = vmatprep.subr.mxu0 0.0
        %2259 = vmatpush1.msra.mxu0 0.0
        %2260 = vmatprep.subr.mxu0 0.0
        %2261 = vmatpush1.msra.mxu0 0.0
        %2262 = vmatprep.subr.mxu0 0.0
        %2263 = vmatpush1.msra.mxu0 0.0
        %2264 = vmatprep.subr.mxu0 0.0
        %2265 = vmatpush1.msra.mxu0 0.0
        %2266 = vmatprep.subr.mxu0 0.0
        %2267 = vmatpush1.msra.mxu0 0.0
        %2268 = vmatprep.subr.mxu0 0.0
        %2269 = vmatpush1.msra.mxu0 0.0
        %2270 = vmatprep.subr.mxu0 0.0
        %2271 = vmatpush1.msra.mxu0 0.0
        %2272 = vmatprep.subr.mxu0 0.0
        %2273 = vmatpush1.msra.mxu0 0.0
        %2274 = vmatprep.subr.mxu0 0.0
        %2275 = vmatpush1.msra.mxu0 0.0
        %2276 = vmatprep.mubr.f32.mxu0 0.0
        %2277 = vmatmul.mubr.f32.gmra.mrb[0].mxu0 %v938
        %v2278 = vpop.f32.mrb[0].mxu0
        %v2279 = vadd.f32 0.0, %v2278
        %v2280 = vpop.f32.mrb[0].mxu0
        %2281 = vmatprep.mubr.f32.mxu0 0.0
        %2282 = vmatmul.mubr.f32.gmra.mrb[0].mxu0 %v941
        %v2283 = vpop.f32.mrb[0].mxu0
        %v2284 = vadd.f32 0.0, %v2283
        %v2285 = vpop.f32.mrb[0].mxu0
        %2286 = vmatprep.mubr.f32.mxu0 0.0
        %2287 = vmatmul.mubr.f32.gmra.mrb[0].mxu0 %v944
        %v2288 = vpop.f32.mrb[0].mxu0
        %v2289 = vadd.f32 0.0, %v2288
        %v2290 = vpop.f32.mrb[0].mxu0
        %2291 = vmatprep.mubr.f32.mxu0 0.0
        %2292 = vmatmul.mubr.f32.gmra.mrb[0].mxu0 %v947
        %v2293 = vpop.f32.mrb[0].mxu0
        %v2294 = vadd.f32 0.0, %v2293
        %v2295 = vpop.f32.mrb[0].mxu0
        %2296 = vmatprep.mubr.f32.mxu0 0.0
        %2297 = vmatmul.mubr.f32.gmra.mrb[0].mxu0 %v950
        %v2298 = vpop.f32.mrb[0].mxu0
        %v2299 = vadd.f32 0.0, %v2298
        %v2300 = vpop.f32.mrb[0].mxu0
        %2301 = vdwg.mxu0
        %2302 = vmatprep.subr.mxu0 0.0
        %2303 = vmatpush1.msra.mxu0 %v926
        %2304 = vmatprep.subr.mxu0 0.0
        %2305 = vmatpush1.msra.mxu0 %v927
        %2306 = vmatprep.subr.mxu0 0.0
        %2307 = vmatpush1.msra.mxu0 %v928
        %2308 = vmatprep.subr.mxu0 0.0
        %2309 = vmatpush1.msra.mxu0 %v929
        %2310 = vmatprep.subr.mxu0 0.0
        %2311 = vmatpush1.msra.mxu0 %v930
        %2312 = vmatprep.subr.mxu0 0.0
        %2313 = vmatpush1.msra.mxu0 0.0
        %2314 = vmatprep.subr.mxu0 0.0
        %2315 = vmatpush1.msra.mxu0 0.0
        %2316 = vmatprep.subr.mxu0 0.0
        %2317 = vmatpush1.msra.mxu0 0.0
        %2318 = vmatprep.subr.mxu0 0.0
        %2319 = vmatpush1.msra.mxu0 0.0
        %2320 = vmatprep.subr.mxu0 0.0
        %2321 = vmatpush1.msra.mxu0 0.0
        %2322 = vmatprep.subr.mxu0 0.0
        %2323 = vmatpush1.msra.mxu0 0.0
        %2324 = vmatprep.subr.mxu0 0.0
        %2325 = vmatpush1.msra.mxu0 0.0
        %2326 = vmatprep.subr.mxu0 0.0
        %2327 = vmatpush1.msra.mxu0 0.0
        %2328 = vmatprep.subr.mxu0 0.0
        %2329 = vmatpush1.msra.mxu0 0.0
        %2330 = vmatprep.subr.mxu0 0.0
        %2331 = vmatpush1.msra.mxu0 0.0
        %2332 = vmatprep.subr.mxu0 0.0
        %2333 = vmatpush1.msra.mxu0 0.0
        %2334 = vmatprep.subr.mxu0 0.0
        %2335 = vmatpush1.msra.mxu0 0.0
        %2336 = vmatprep.subr.mxu0 0.0
        %2337 = vmatpush1.msra.mxu0 0.0
        %2338 = vmatprep.subr.mxu0 0.0
        %2339 = vmatpush1.msra.mxu0 0.0
        %2340 = vmatprep.subr.mxu0 0.0
        %2341 = vmatpush1.msra.mxu0 0.0
        %2342 = vmatprep.subr.mxu0 0.0
        %2343 = vmatpush1.msra.mxu0 0.0
        %2344 = vmatprep.subr.mxu0 0.0
        %2345 = vmatpush1.msra.mxu0 0.0
        %2346 = vmatprep.subr.mxu0 0.0
        %2347 = vmatpush1.msra.mxu0 0.0
        %2348 = vmatprep.subr.mxu0 0.0
        %2349 = vmatpush1.msra.mxu0 0.0
        %2350 = vmatprep.subr.mxu0 0.0
        %2351 = vmatpush1.msra.mxu0 0.0
        %2352 = vmatprep.subr.mxu0 0.0
        %2353 = vmatpush1.msra.mxu0 0.0
        %2354 = vmatprep.subr.mxu0 0.0
        %2355 = vmatpush1.msra.mxu0 0.0
        %2356 = vmatprep.subr.mxu0 0.0
        %2357 = vmatpush1.msra.mxu0 0.0
        %2358 = vmatprep.subr.mxu0 0.0
        %2359 = vmatpush1.msra.mxu0 0.0
        %2360 = vmatprep.subr.mxu0 0.0
        %2361 = vmatpush1.msra.mxu0 0.0
        %2362 = vmatprep.subr.mxu0 0.0
        %2363 = vmatpush1.msra.mxu0 0.0
        %2364 = vmatprep.subr.mxu0 0.0
        %2365 = vmatpush1.msra.mxu0 0.0
        %2366 = vmatprep.mubr.f32.mxu0 0.0
        %2367 = vmatmul.mubr.f32.gmra.mrb[0].mxu0 %v938
        %v2368 = vpop.f32.mrb[0].mxu0
        %v2369 = vadd.f32 0.0, %v2368
        %v2370 = vpop.f32.mrb[0].mxu0
        %2371 = vmatprep.mubr.f32.mxu0 0.0
        %2372 = vmatmul.mubr.f32.gmra.mrb[0].mxu0 %v941
        %v2373 = vpop.f32.mrb[0].mxu0
        %v2374 = vadd.f32 0.0, %v2373
        %v2375 = vpop.f32.mrb[0].mxu0
        %2376 = vmatprep.mubr.f32.mxu0 0.0
        %2377 = vmatmul.mubr.f32.gmra.mrb[0].mxu0 %v944
        %v2378 = vpop.f32.mrb[0].mxu0
        %v2379 = vadd.f32 0.0, %v2378
        %v2380 = vpop.f32.mrb[0].mxu0
        %2381 = vmatprep.mubr.f32.mxu0 0.0
        %2382 = vmatmul.mubr.f32.gmra.mrb[0].mxu0 %v947
        %v2383 = vpop.f32.mrb[0].mxu0
        %v2384 = vadd.f32 0.0, %v2383
        %v2385 = vpop.f32.mrb[0].mxu0
        %2386 = vmatprep.mubr.f32.mxu0 0.0
        %2387 = vmatmul.mubr.f32.gmra.mrb[0].mxu0 %v950
        %v2388 = vpop.f32.mrb[0].mxu0
        %v2389 = vadd.f32 0.0, %v2388
        %v2390 = vpop.f32.mrb[0].mxu0
        %2391 = vdwg.mxu0
        %v2392 = vmul.f32 %v1019, 0.01
        %v2393 = vmul.f32 %v1024, 0.01
        %v2394 = vmul.f32 %v1029, 0.01
        %v2395 = vmul.f32 %v1034, 0.01
        %v2396 = vmul.f32 %v1039, 0.01
        %v2397 = vmul.f32 %v1109, 0.01
        %v2398 = vmul.f32 %v1114, 0.01
        %v2399 = vmul.f32 %v1119, 0.01
        %v2400 = vmul.f32 %v1124, 0.01
        %v2401 = vmul.f32 %v1129, 0.01
        %v2402 = vmul.f32 %v1199, 0.01
        %v2403 = vmul.f32 %v1204, 0.01
        %v2404 = vmul.f32 %v1209, 0.01
        %v2405 = vmul.f32 %v1214, 0.01
        %v2406 = vmul.f32 %v1219, 0.01
        %v2407 = vmul.f32 %v1289, 0.01
        %v2408 = vmul.f32 %v1294, 0.01
        %v2409 = vmul.f32 %v1299, 0.01
        %v2410 = vmul.f32 %v1304, 0.01
        %v2411 = vmul.f32 %v1309, 0.01
        %v2412 = vmul.f32 %v1379, 0.01
        %v2413 = vmul.f32 %v1384, 0.01
        %v2414 = vmul.f32 %v1389, 0.01
        %v2415 = vmul.f32 %v1394, 0.01
        %v2416 = vmul.f32 %v1399, 0.01
        %v2417 = vmul.f32 %v1469, 0.01
        %v2418 = vmul.f32 %v1474, 0.01
        %v2419 = vmul.f32 %v1479, 0.01
        %v2420 = vmul.f32 %v1484, 0.01
        %v2421 = vmul.f32 %v1489, 0.01
        %v2422 = vmul.f32 %v1559, 0.01
        %v2423 = vmul.f32 %v1564, 0.01
        %v2424 = vmul.f32 %v1569, 0.01
        %v2425 = vmul.f32 %v1574, 0.01
        %v2426 = vmul.f32 %v1579, 0.01
        %v2427 = vmul.f32 %v1649, 0.01
        %v2428 = vmul.f32 %v1654, 0.01
        %v2429 = vmul.f32 %v1659, 0.01
        %v2430 = vmul.f32 %v1664, 0.01
        %v2431 = vmul.f32 %v1669, 0.01
        %v2432 = vmul.f32 %v1739, 0.01
        %v2433 = vmul.f32 %v1744, 0.01
        %v2434 = vmul.f32 %v1749, 0.01
        %v2435 = vmul.f32 %v1754, 0.01
        %v2436 = vmul.f32 %v1759, 0.01
        %v2437 = vmul.f32 %v1829, 0.01
        %v2438 = vmul.f32 %v1834, 0.01
        %v2439 = vmul.f32 %v1839, 0.01
        %v2440 = vmul.f32 %v1844, 0.01
        %v2441 = vmul.f32 %v1849, 0.01
        %v2442 = vmul.f32 %v1919, 0.01
        %v2443 = vmul.f32 %v1924, 0.01
        %v2444 = vmul.f32 %v1929, 0.01
        %v2445 = vmul.f32 %v1934, 0.01
        %v2446 = vmul.f32 %v1939, 0.01
        %v2447 = vmul.f32 %v2009, 0.01
        %v2448 = vmul.f32 %v2014, 0.01
        %v2449 = vmul.f32 %v2019, 0.01
        %v2450 = vmul.f32 %v2024, 0.01
        %v2451 = vmul.f32 %v2029, 0.01
        %v2452 = vmul.f32 %v2099, 0.01
        %v2453 = vmul.f32 %v2104, 0.01
        %v2454 = vmul.f32 %v2109, 0.01
        %v2455 = vmul.f32 %v2114, 0.01
        %v2456 = vmul.f32 %v2119, 0.01
        %v2457 = vmul.f32 %v2189, 0.01
        %v2458 = vmul.f32 %v2194, 0.01
        %v2459 = vmul.f32 %v2199, 0.01
        %v2460 = vmul.f32 %v2204, 0.01
        %v2461 = vmul.f32 %v2209, 0.01
        %v2462 = vmul.f32 %v2279, 0.01
        %v2463 = vmul.f32 %v2284, 0.01
        %v2464 = vmul.f32 %v2289, 0.01
        %v2465 = vmul.f32 %v2294, 0.01
        %v2466 = vmul.f32 %v2299, 0.01
        %v2467 = vmul.f32 %v2369, 0.01
        %v2468 = vmul.f32 %v2374, 0.01
        %v2469 = vmul.f32 %v2379, 0.01
        %v2470 = vmul.f32 %v2384, 0.01
        %v2471 = vmul.f32 %v2389, 0.01
        %v2472 = vmax.f32 %v1019, %v2392
        %v2473 = vmax.f32 %v1024, %v2393
        %v2474 = vmax.f32 %v1029, %v2394
        %v2475 = vmax.f32 %v1034, %v2395
        %v2476 = vmax.f32 %v1039, %v2396
        %v2477 = vmax.f32 %v1109, %v2397
        %v2478 = vmax.f32 %v1114, %v2398
        %v2479 = vmax.f32 %v1119, %v2399
        %v2480 = vmax.f32 %v1124, %v2400
        %v2481 = vmax.f32 %v1129, %v2401
        %v2482 = vmax.f32 %v1199, %v2402
        %v2483 = vmax.f32 %v1204, %v2403
        %v2484 = vmax.f32 %v1209, %v2404
        %v2485 = vmax.f32 %v1214, %v2405
        %v2486 = vmax.f32 %v1219, %v2406
        %v2487 = vmax.f32 %v1289, %v2407
        %v2488 = vmax.f32 %v1294, %v2408
        %v2489 = vmax.f32 %v1299, %v2409
        %v2490 = vmax.f32 %v1304, %v2410
        %v2491 = vmax.f32 %v1309, %v2411
        %v2492 = vmax.f32 %v1379, %v2412
        %v2493 = vmax.f32 %v1384, %v2413
        %v2494 = vmax.f32 %v1389, %v2414
        %v2495 = vmax.f32 %v1394, %v2415
        %v2496 = vmax.f32 %v1399, %v2416
        %v2497 = vmax.f32 %v1469, %v2417
        %v2498 = vmax.f32 %v1474, %v2418
        %v2499 = vmax.f32 %v1479, %v2419
        %v2500 = vmax.f32 %v1484, %v2420
        %v2501 = vmax.f32 %v1489, %v2421
        %v2502 = vmax.f32 %v1559, %v2422
        %v2503 = vmax.f32 %v1564, %v2423
        %v2504 = vmax.f32 %v1569, %v2424
        %v2505 = vmax.f32 %v1574, %v2425
        %v2506 = vmax.f32 %v1579, %v2426
        %v2507 = vmax.f32 %v1649, %v2427
        %v2508 = vmax.f32 %v1654, %v2428
        %v2509 = vmax.f32 %v1659, %v2429
        %v2510 = vmax.f32 %v1664, %v2430
        %v2511 = vmax.f32 %v1669, %v2431
        %v2512 = vmax.f32 %v1739, %v2432
        %v2513 = vmax.f32 %v1744, %v2433
        %v2514 = vmax.f32 %v1749, %v2434
        %v2515 = vmax.f32 %v1754, %v2435
        %v2516 = vmax.f32 %v1759, %v2436
        %v2517 = vmax.f32 %v1829, %v2437
        %v2518 = vmax.f32 %v1834, %v2438
        %v2519 = vmax.f32 %v1839, %v2439
        %v2520 = vmax.f32 %v1844, %v2440
        %v2521 = vmax.f32 %v1849, %v2441
        %v2522 = vmax.f32 %v1919, %v2442
        %v2523 = vmax.f32 %v1924, %v2443
        %v2524 = vmax.f32 %v1929, %v2444
        %v2525 = vmax.f32 %v1934, %v2445
        %v2526 = vmax.f32 %v1939, %v2446
        %v2527 = vmax.f32 %v2009, %v2447
        %v2528 = vmax.f32 %v2014, %v2448
        %v2529 = vmax.f32 %v2019, %v2449
        %v2530 = vmax.f32 %v2024, %v2450
        %v2531 = vmax.f32 %v2029, %v2451
        %v2532 = vmax.f32 %v2099, %v2452
        %v2533 = vmax.f32 %v2104, %v2453
        %v2534 = vmax.f32 %v2109, %v2454
        %v2535 = vmax.f32 %v2114, %v2455
        %v2536 = vmax.f32 %v2119, %v2456
        %v2537 = vmax.f32 %v2189, %v2457
        %v2538 = vmax.f32 %v2194, %v2458
        %v2539 = vmax.f32 %v2199, %v2459
        %v2540 = vmax.f32 %v2204, %v2460
        %v2541 = vmax.f32 %v2209, %v2461
        %v2542 = vmax.f32 %v2279, %v2462
        %v2543 = vmax.f32 %v2284, %v2463
        %v2544 = vmax.f32 %v2289, %v2464
        %v2545 = vmax.f32 %v2294, %v2465
        %v2546 = vmax.f32 %v2299, %v2466
        %v2547 = vmax.f32 %v2369, %v2467
        %v2548 = vmax.f32 %v2374, %v2468
        %v2549 = vmax.f32 %v2379, %v2469
        %v2550 = vmax.f32 %v2384, %v2470
        %v2551 = vmax.f32 %v2389, %v2471
        %s2552 = scalar_lea.vmem %s3, 40
        %v2553 = vld [vmem:[%s2552] sm:$0xff]
        %v2554 = vld [vmem:[%s2552 + $0x8] sm:$0xff]
        %v2555 = vld [vmem:[%s2552 + $0x10] sm:$0xff]
        %v2556 = vld [vmem:[%s2552 + $0x18] sm:$0xff]
        %v2557 = vld [vmem:[%s2552 + $0x20] sm:$0xff]
        %v2559 = vsel %vm936, %v2553, 0
        %v2562 = vsel %vm936, %v2554, 0
        %v2565 = vsel %vm936, %v2555, 0
        %v2568 = vsel %vm936, %v2556, 0
        %v2571 = vsel %vm936, %v2557, 0
        %2573 = vmatprep.subr.mxu0 0.0
        %2574 = vmatpush1.msra.mxu0 %v2472
        %2575 = vmatprep.subr.mxu0 0.0
        %2576 = vmatpush1.msra.mxu0 %v2473
        %2577 = vmatprep.subr.mxu0 0.0
        %2578 = vmatpush1.msra.mxu0 %v2474
        %2579 = vmatprep.subr.mxu0 0.0
        %2580 = vmatpush1.msra.mxu0 %v2475
        %2581 = vmatprep.subr.mxu0 0.0
        %2582 = vmatpush1.msra.mxu0 %v2476
        %2583 = vmatprep.subr.mxu0 0.0
        %2584 = vmatpush1.msra.mxu0 0.0
        %2585 = vmatprep.subr.mxu0 0.0
        %2586 = vmatpush1.msra.mxu0 0.0
        %2587 = vmatprep.subr.mxu0 0.0
        %2588 = vmatpush1.msra.mxu0 0.0
        %2589 = vmatprep.subr.mxu0 0.0
        %2590 = vmatpush1.msra.mxu0 0.0
        %2591 = vmatprep.subr.mxu0 0.0
        %2592 = vmatpush1.msra.mxu0 0.0
        %2593 = vmatprep.subr.mxu0 0.0
        %2594 = vmatpush1.msra.mxu0 0.0
        %2595 = vmatprep.subr.mxu0 0.0
        %2596 = vmatpush1.msra.mxu0 0.0
        %2597 = vmatprep.subr.mxu0 0.0
        %2598 = vmatpush1.msra.mxu0 0.0
        %2599 = vmatprep.subr.mxu0 0.0
        %2600 = vmatpush1.msra.mxu0 0.0
        %2601 = vmatprep.subr.mxu0 0.0
        %2602 = vmatpush1.msra.mxu0 0.0
        %2603 = vmatprep.subr.mxu0 0.0
        %2604 = vmatpush1.msra.mxu0 0.0
        %2605 = vmatprep.subr.mxu0 0.0
        %2606 = vmatpush1.msra.mxu0 0.0
        %2607 = vmatprep.subr.mxu0 0.0
        %2608 = vmatpush1.msra.mxu0 0.0
        %2609 = vmatprep.subr.mxu0 0.0
        %2610 = vmatpush1.msra.mxu0 0.0
        %2611 = vmatprep.subr.mxu0 0.0
        %2612 = vmatpush1.msra.mxu0 0.0
        %2613 = vmatprep.subr.mxu0 0.0
        %2614 = vmatpush1.msra.mxu0 0.0
        %2615 = vmatprep.subr.mxu0 0.0
        %2616 = vmatpush1.msra.mxu0 0.0
        %2617 = vmatprep.subr.mxu0 0.0
        %2618 = vmatpush1.msra.mxu0 0.0
        %2619 = vmatprep.subr.mxu0 0.0
        %2620 = vmatpush1.msra.mxu0 0.0
        %2621 = vmatprep.subr.mxu0 0.0
        %2622 = vmatpush1.msra.mxu0 0.0
        %2623 = vmatprep.subr.mxu0 0.0
        %2624 = vmatpush1.msra.mxu0 0.0
        %2625 = vmatprep.subr.mxu0 0.0
        %2626 = vmatpush1.msra.mxu0 0.0
        %2627 = vmatprep.subr.mxu0 0.0
        %2628 = vmatpush1.msra.mxu0 0.0
        %2629 = vmatprep.subr.mxu0 0.0
        %2630 = vmatpush1.msra.mxu0 0.0
        %2631 = vmatprep.subr.mxu0 0.0
        %2632 = vmatpush1.msra.mxu0 0.0
        %2633 = vmatprep.subr.mxu0 0.0
        %2634 = vmatpush1.msra.mxu0 0.0
        %2635 = vmatprep.subr.mxu0 0.0
        %2636 = vmatpush1.msra.mxu0 0.0
        %2637 = vmatprep.mubr.f32.mxu0 0.0
        %2638 = vmatmul.mubr.f32.gmra.mrb[0].mxu0 %v2559
        %v2639 = vpop.f32.mrb[0].mxu0
        %v2640 = vadd.f32 0.0, %v2639
        %v2641 = vpop.f32.mrb[0].mxu0
        %2642 = vmatprep.mubr.f32.mxu0 0.0
        %2643 = vmatmul.mubr.f32.gmra.mrb[0].mxu0 %v2562
        %v2644 = vpop.f32.mrb[0].mxu0
        %v2645 = vadd.f32 0.0, %v2644
        %v2646 = vpop.f32.mrb[0].mxu0
        %2647 = vmatprep.mubr.f32.mxu0 0.0
        %2648 = vmatmul.mubr.f32.gmra.mrb[0].mxu0 %v2565
        %v2649 = vpop.f32.mrb[0].mxu0
        %v2650 = vadd.f32 0.0, %v2649
        %v2651 = vpop.f32.mrb[0].mxu0
        %2652 = vmatprep.mubr.f32.mxu0 0.0
        %2653 = vmatmul.mubr.f32.gmra.mrb[0].mxu0 %v2568
        %v2654 = vpop.f32.mrb[0].mxu0
        %v2655 = vadd.f32 0.0, %v2654
        %v2656 = vpop.f32.mrb[0].mxu0
        %2657 = vmatprep.mubr.f32.mxu0 0.0
        %2658 = vmatmul.mubr.f32.gmra.mrb[0].mxu0 %v2571
        %v2659 = vpop.f32.mrb[0].mxu0
        %v2660 = vadd.f32 0.0, %v2659
        %v2661 = vpop.f32.mrb[0].mxu0
        %2662 = vdwg.mxu0
        %2663 = vmatprep.subr.mxu0 0.0
        %2664 = vmatpush1.msra.mxu0 %v2477
        %2665 = vmatprep.subr.mxu0 0.0
        %2666 = vmatpush1.msra.mxu0 %v2478
        %2667 = vmatprep.subr.mxu0 0.0
        %2668 = vmatpush1.msra.mxu0 %v2479
        %2669 = vmatprep.subr.mxu0 0.0
        %2670 = vmatpush1.msra.mxu0 %v2480
        %2671 = vmatprep.subr.mxu0 0.0
        %2672 = vmatpush1.msra.mxu0 %v2481
        %2673 = vmatprep.subr.mxu0 0.0
        %2674 = vmatpush1.msra.mxu0 0.0
        %2675 = vmatprep.subr.mxu0 0.0
        %2676 = vmatpush1.msra.mxu0 0.0
        %2677 = vmatprep.subr.mxu0 0.0
        %2678 = vmatpush1.msra.mxu0 0.0
        %2679 = vmatprep.subr.mxu0 0.0
        %2680 = vmatpush1.msra.mxu0 0.0
        %2681 = vmatprep.subr.mxu0 0.0
        %2682 = vmatpush1.msra.mxu0 0.0
        %2683 = vmatprep.subr.mxu0 0.0
        %2684 = vmatpush1.msra.mxu0 0.0
        %2685 = vmatprep.subr.mxu0 0.0
        %2686 = vmatpush1.msra.mxu0 0.0
        %2687 = vmatprep.subr.mxu0 0.0
        %2688 = vmatpush1.msra.mxu0 0.0
        %2689 = vmatprep.subr.mxu0 0.0
        %2690 = vmatpush1.msra.mxu0 0.0
        %2691 = vmatprep.subr.mxu0 0.0
        %2692 = vmatpush1.msra.mxu0 0.0
        %2693 = vmatprep.subr.mxu0 0.0
        %2694 = vmatpush1.msra.mxu0 0.0
        %2695 = vmatprep.subr.mxu0 0.0
        %2696 = vmatpush1.msra.mxu0 0.0
        %2697 = vmatprep.subr.mxu0 0.0
        %2698 = vmatpush1.msra.mxu0 0.0
        %2699 = vmatprep.subr.mxu0 0.0
        %2700 = vmatpush1.msra.mxu0 0.0
        %2701 = vmatprep.subr.mxu0 0.0
        %2702 = vmatpush1.msra.mxu0 0.0
        %2703 = vmatprep.subr.mxu0 0.0
        %2704 = vmatpush1.msra.mxu0 0.0
        %2705 = vmatprep.subr.mxu0 0.0
        %2706 = vmatpush1.msra.mxu0 0.0
        %2707 = vmatprep.subr.mxu0 0.0
        %2708 = vmatpush1.msra.mxu0 0.0
        %2709 = vmatprep.subr.mxu0 0.0
        %2710 = vmatpush1.msra.mxu0 0.0
        %2711 = vmatprep.subr.mxu0 0.0
        %2712 = vmatpush1.msra.mxu0 0.0
        %2713 = vmatprep.subr.mxu0 0.0
        %2714 = vmatpush1.msra.mxu0 0.0
        %2715 = vmatprep.subr.mxu0 0.0
        %2716 = vmatpush1.msra.mxu0 0.0
        %2717 = vmatprep.subr.mxu0 0.0
        %2718 = vmatpush1.msra.mxu0 0.0
        %2719 = vmatprep.subr.mxu0 0.0
        %2720 = vmatpush1.msra.mxu0 0.0
        %2721 = vmatprep.subr.mxu0 0.0
        %2722 = vmatpush1.msra.mxu0 0.0
        %2723 = vmatprep.subr.mxu0 0.0
        %2724 = vmatpush1.msra.mxu0 0.0
        %2725 = vmatprep.subr.mxu0 0.0
        %2726 = vmatpush1.msra.mxu0 0.0
        %2727 = vmatprep.mubr.f32.mxu0 0.0
        %2728 = vmatmul.mubr.f32.gmra.mrb[0].mxu0 %v2559
        %v2729 = vpop.f32.mrb[0].mxu0
        %v2730 = vadd.f32 0.0, %v2729
        %v2731 = vpop.f32.mrb[0].mxu0
        %2732 = vmatprep.mubr.f32.mxu0 0.0
        %2733 = vmatmul.mubr.f32.gmra.mrb[0].mxu0 %v2562
        %v2734 = vpop.f32.mrb[0].mxu0
        %v2735 = vadd.f32 0.0, %v2734
        %v2736 = vpop.f32.mrb[0].mxu0
        %2737 = vmatprep.mubr.f32.mxu0 0.0
        %2738 = vmatmul.mubr.f32.gmra.mrb[0].mxu0 %v2565
        %v2739 = vpop.f32.mrb[0].mxu0
        %v2740 = vadd.f32 0.0, %v2739
        %v2741 = vpop.f32.mrb[0].mxu0
        %2742 = vmatprep.mubr.f32.mxu0 0.0
        %2743 = vmatmul.mubr.f32.gmra.mrb[0].mxu0 %v2568
        %v2744 = vpop.f32.mrb[0].mxu0
        %v2745 = vadd.f32 0.0, %v2744
        %v2746 = vpop.f32.mrb[0].mxu0
        %2747 = vmatprep.mubr.f32.mxu0 0.0
        %2748 = vmatmul.mubr.f32.gmra.mrb[0].mxu0 %v2571
        %v2749 = vpop.f32.mrb[0].mxu0
        %v2750 = vadd.f32 0.0, %v2749
        %v2751 = vpop.f32.mrb[0].mxu0
        %2752 = vdwg.mxu0
        %2753 = vmatprep.subr.mxu0 0.0
        %2754 = vmatpush1.msra.mxu0 %v2482
        %2755 = vmatprep.subr.mxu0 0.0
        %2756 = vmatpush1.msra.mxu0 %v2483
        %2757 = vmatprep.subr.mxu0 0.0
        %2758 = vmatpush1.msra.mxu0 %v2484
        %2759 = vmatprep.subr.mxu0 0.0
        %2760 = vmatpush1.msra.mxu0 %v2485
        %2761 = vmatprep.subr.mxu0 0.0
        %2762 = vmatpush1.msra.mxu0 %v2486
        %2763 = vmatprep.subr.mxu0 0.0
        %2764 = vmatpush1.msra.mxu0 0.0
        %2765 = vmatprep.subr.mxu0 0.0
        %2766 = vmatpush1.msra.mxu0 0.0
        %2767 = vmatprep.subr.mxu0 0.0
        %2768 = vmatpush1.msra.mxu0 0.0
        %2769 = vmatprep.subr.mxu0 0.0
        %2770 = vmatpush1.msra.mxu0 0.0
        %2771 = vmatprep.subr.mxu0 0.0
        %2772 = vmatpush1.msra.mxu0 0.0
        %2773 = vmatprep.subr.mxu0 0.0
        %2774 = vmatpush1.msra.mxu0 0.0
        %2775 = vmatprep.subr.mxu0 0.0
        %2776 = vmatpush1.msra.mxu0 0.0
        %2777 = vmatprep.subr.mxu0 0.0
        %2778 = vmatpush1.msra.mxu0 0.0
        %2779 = vmatprep.subr.mxu0 0.0
        %2780 = vmatpush1.msra.mxu0 0.0
        %2781 = vmatprep.subr.mxu0 0.0
        %2782 = vmatpush1.msra.mxu0 0.0
        %2783 = vmatprep.subr.mxu0 0.0
        %2784 = vmatpush1.msra.mxu0 0.0
        %2785 = vmatprep.subr.mxu0 0.0
        %2786 = vmatpush1.msra.mxu0 0.0
        %2787 = vmatprep.subr.mxu0 0.0
        %2788 = vmatpush1.msra.mxu0 0.0
        %2789 = vmatprep.subr.mxu0 0.0
        %2790 = vmatpush1.msra.mxu0 0.0
        %2791 = vmatprep.subr.mxu0 0.0
        %2792 = vmatpush1.msra.mxu0 0.0
        %2793 = vmatprep.subr.mxu0 0.0
        %2794 = vmatpush1.msra.mxu0 0.0
        %2795 = vmatprep.subr.mxu0 0.0
        %2796 = vmatpush1.msra.mxu0 0.0
        %2797 = vmatprep.subr.mxu0 0.0
        %2798 = vmatpush1.msra.mxu0 0.0
        %2799 = vmatprep.subr.mxu0 0.0
        %2800 = vmatpush1.msra.mxu0 0.0
        %2801 = vmatprep.subr.mxu0 0.0
        %2802 = vmatpush1.msra.mxu0 0.0
        %2803 = vmatprep.subr.mxu0 0.0
        %2804 = vmatpush1.msra.mxu0 0.0
        %2805 = vmatprep.subr.mxu0 0.0
        %2806 = vmatpush1.msra.mxu0 0.0
        %2807 = vmatprep.subr.mxu0 0.0
        %2808 = vmatpush1.msra.mxu0 0.0
        %2809 = vmatprep.subr.mxu0 0.0
        %2810 = vmatpush1.msra.mxu0 0.0
        %2811 = vmatprep.subr.mxu0 0.0
        %2812 = vmatpush1.msra.mxu0 0.0
        %2813 = vmatprep.subr.mxu0 0.0
        %2814 = vmatpush1.msra.mxu0 0.0
        %2815 = vmatprep.subr.mxu0 0.0
        %2816 = vmatpush1.msra.mxu0 0.0
        %2817 = vmatprep.mubr.f32.mxu0 0.0
        %2818 = vmatmul.mubr.f32.gmra.mrb[0].mxu0 %v2559
        %v2819 = vpop.f32.mrb[0].mxu0
        %v2820 = vadd.f32 0.0, %v2819
        %v2821 = vpop.f32.mrb[0].mxu0
        %2822 = vmatprep.mubr.f32.mxu0 0.0
        %2823 = vmatmul.mubr.f32.gmra.mrb[0].mxu0 %v2562
        %v2824 = vpop.f32.mrb[0].mxu0
        %v2825 = vadd.f32 0.0, %v2824
        %v2826 = vpop.f32.mrb[0].mxu0
        %2827 = vmatprep.mubr.f32.mxu0 0.0
        %2828 = vmatmul.mubr.f32.gmra.mrb[0].mxu0 %v2565
        %v2829 = vpop.f32.mrb[0].mxu0
        %v2830 = vadd.f32 0.0, %v2829
        %v2831 = vpop.f32.mrb[0].mxu0
        %2832 = vmatprep.mubr.f32.mxu0 0.0
        %2833 = vmatmul.mubr.f32.gmra.mrb[0].mxu0 %v2568
        %v2834 = vpop.f32.mrb[0].mxu0
        %v2835 = vadd.f32 0.0, %v2834
        %v2836 = vpop.f32.mrb[0].mxu0
        %2837 = vmatprep.mubr.f32.mxu0 0.0
        %2838 = vmatmul.mubr.f32.gmra.mrb[0].mxu0 %v2571
        %v2839 = vpop.f32.mrb[0].mxu0
        %v2840 = vadd.f32 0.0, %v2839
        %v2841 = vpop.f32.mrb[0].mxu0
        %2842 = vdwg.mxu0
        %2843 = vmatprep.subr.mxu0 0.0
        %2844 = vmatpush1.msra.mxu0 %v2487
        %2845 = vmatprep.subr.mxu0 0.0
        %2846 = vmatpush1.msra.mxu0 %v2488
        %2847 = vmatprep.subr.mxu0 0.0
        %2848 = vmatpush1.msra.mxu0 %v2489
        %2849 = vmatprep.subr.mxu0 0.0
        %2850 = vmatpush1.msra.mxu0 %v2490
        %2851 = vmatprep.subr.mxu0 0.0
        %2852 = vmatpush1.msra.mxu0 %v2491
        %2853 = vmatprep.subr.mxu0 0.0
        %2854 = vmatpush1.msra.mxu0 0.0
        %2855 = vmatprep.subr.mxu0 0.0
        %2856 = vmatpush1.msra.mxu0 0.0
        %2857 = vmatprep.subr.mxu0 0.0
        %2858 = vmatpush1.msra.mxu0 0.0
        %2859 = vmatprep.subr.mxu0 0.0
        %2860 = vmatpush1.msra.mxu0 0.0
        %2861 = vmatprep.subr.mxu0 0.0
        %2862 = vmatpush1.msra.mxu0 0.0
        %2863 = vmatprep.subr.mxu0 0.0
        %2864 = vmatpush1.msra.mxu0 0.0
        %2865 = vmatprep.subr.mxu0 0.0
        %2866 = vmatpush1.msra.mxu0 0.0
        %2867 = vmatprep.subr.mxu0 0.0
        %2868 = vmatpush1.msra.mxu0 0.0
        %2869 = vmatprep.subr.mxu0 0.0
        %2870 = vmatpush1.msra.mxu0 0.0
        %2871 = vmatprep.subr.mxu0 0.0
        %2872 = vmatpush1.msra.mxu0 0.0
        %2873 = vmatprep.subr.mxu0 0.0
        %2874 = vmatpush1.msra.mxu0 0.0
        %2875 = vmatprep.subr.mxu0 0.0
        %2876 = vmatpush1.msra.mxu0 0.0
        %2877 = vmatprep.subr.mxu0 0.0
        %2878 = vmatpush1.msra.mxu0 0.0
        %2879 = vmatprep.subr.mxu0 0.0
        %2880 = vmatpush1.msra.mxu0 0.0
        %2881 = vmatprep.subr.mxu0 0.0
        %2882 = vmatpush1.msra.mxu0 0.0
        %2883 = vmatprep.subr.mxu0 0.0
        %2884 = vmatpush1.msra.mxu0 0.0
        %2885 = vmatprep.subr.mxu0 0.0
        %2886 = vmatpush1.msra.mxu0 0.0
        %2887 = vmatprep.subr.mxu0 0.0
        %2888 = vmatpush1.msra.mxu0 0.0
        %2889 = vmatprep.subr.mxu0 0.0
        %2890 = vmatpush1.msra.mxu0 0.0
        %2891 = vmatprep.subr.mxu0 0.0
        %2892 = vmatpush1.msra.mxu0 0.0
        %2893 = vmatprep.subr.mxu0 0.0
        %2894 = vmatpush1.msra.mxu0 0.0
        %2895 = vmatprep.subr.mxu0 0.0
        %2896 = vmatpush1.msra.mxu0 0.0
        %2897 = vmatprep.subr.mxu0 0.0
        %2898 = vmatpush1.msra.mxu0 0.0
        %2899 = vmatprep.subr.mxu0 0.0
        %2900 = vmatpush1.msra.mxu0 0.0
        %2901 = vmatprep.subr.mxu0 0.0
        %2902 = vmatpush1.msra.mxu0 0.0
        %2903 = vmatprep.subr.mxu0 0.0
        %2904 = vmatpush1.msra.mxu0 0.0
        %2905 = vmatprep.subr.mxu0 0.0
        %2906 = vmatpush1.msra.mxu0 0.0
        %2907 = vmatprep.mubr.f32.mxu0 0.0
        %2908 = vmatmul.mubr.f32.gmra.mrb[0].mxu0 %v2559
        %v2909 = vpop.f32.mrb[0].mxu0
        %v2910 = vadd.f32 0.0, %v2909
        %v2911 = vpop.f32.mrb[0].mxu0
        %2912 = vmatprep.mubr.f32.mxu0 0.0
        %2913 = vmatmul.mubr.f32.gmra.mrb[0].mxu0 %v2562
        %v2914 = vpop.f32.mrb[0].mxu0
        %v2915 = vadd.f32 0.0, %v2914
        %v2916 = vpop.f32.mrb[0].mxu0
        %2917 = vmatprep.mubr.f32.mxu0 0.0
        %2918 = vmatmul.mubr.f32.gmra.mrb[0].mxu0 %v2565
        %v2919 = vpop.f32.mrb[0].mxu0
        %v2920 = vadd.f32 0.0, %v2919
        %v2921 = vpop.f32.mrb[0].mxu0
        %2922 = vmatprep.mubr.f32.mxu0 0.0
        %2923 = vmatmul.mubr.f32.gmra.mrb[0].mxu0 %v2568
        %v2924 = vpop.f32.mrb[0].mxu0
        %v2925 = vadd.f32 0.0, %v2924
        %v2926 = vpop.f32.mrb[0].mxu0
        %2927 = vmatprep.mubr.f32.mxu0 0.0
        %2928 = vmatmul.mubr.f32.gmra.mrb[0].mxu0 %v2571
        %v2929 = vpop.f32.mrb[0].mxu0
        %v2930 = vadd.f32 0.0, %v2929
        %v2931 = vpop.f32.mrb[0].mxu0
        %2932 = vdwg.mxu0
        %2933 = vmatprep.subr.mxu0 0.0
        %2934 = vmatpush1.msra.mxu0 %v2492
        %2935 = vmatprep.subr.mxu0 0.0
        %2936 = vmatpush1.msra.mxu0 %v2493
        %2937 = vmatprep.subr.mxu0 0.0
        %2938 = vmatpush1.msra.mxu0 %v2494
        %2939 = vmatprep.subr.mxu0 0.0
        %2940 = vmatpush1.msra.mxu0 %v2495
        %2941 = vmatprep.subr.mxu0 0.0
        %2942 = vmatpush1.msra.mxu0 %v2496
        %2943 = vmatprep.subr.mxu0 0.0
        %2944 = vmatpush1.msra.mxu0 0.0
        %2945 = vmatprep.subr.mxu0 0.0
        %2946 = vmatpush1.msra.mxu0 0.0
        %2947 = vmatprep.subr.mxu0 0.0
        %2948 = vmatpush1.msra.mxu0 0.0
        %2949 = vmatprep.subr.mxu0 0.0
        %2950 = vmatpush1.msra.mxu0 0.0
        %2951 = vmatprep.subr.mxu0 0.0
        %2952 = vmatpush1.msra.mxu0 0.0
        %2953 = vmatprep.subr.mxu0 0.0
        %2954 = vmatpush1.msra.mxu0 0.0
        %2955 = vmatprep.subr.mxu0 0.0
        %2956 = vmatpush1.msra.mxu0 0.0
        %2957 = vmatprep.subr.mxu0 0.0
        %2958 = vmatpush1.msra.mxu0 0.0
        %2959 = vmatprep.subr.mxu0 0.0
        %2960 = vmatpush1.msra.mxu0 0.0
        %2961 = vmatprep.subr.mxu0 0.0
        %2962 = vmatpush1.msra.mxu0 0.0
        %2963 = vmatprep.subr.mxu0 0.0
        %2964 = vmatpush1.msra.mxu0 0.0
        %2965 = vmatprep.subr.mxu0 0.0
        %2966 = vmatpush1.msra.mxu0 0.0
        %2967 = vmatprep.subr.mxu0 0.0
        %2968 = vmatpush1.msra.mxu0 0.0
        %2969 = vmatprep.subr.mxu0 0.0
        %2970 = vmatpush1.msra.mxu0 0.0
        %2971 = vmatprep.subr.mxu0 0.0
        %2972 = vmatpush1.msra.mxu0 0.0
        %2973 = vmatprep.subr.mxu0 0.0
        %2974 = vmatpush1.msra.mxu0 0.0
        %2975 = vmatprep.subr.mxu0 0.0
        %2976 = vmatpush1.msra.mxu0 0.0
        %2977 = vmatprep.subr.mxu0 0.0
        %2978 = vmatpush1.msra.mxu0 0.0
        %2979 = vmatprep.subr.mxu0 0.0
        %2980 = vmatpush1.msra.mxu0 0.0
        %2981 = vmatprep.subr.mxu0 0.0
        %2982 = vmatpush1.msra.mxu0 0.0
        %2983 = vmatprep.subr.mxu0 0.0
        %2984 = vmatpush1.msra.mxu0 0.0
        %2985 = vmatprep.subr.mxu0 0.0
        %2986 = vmatpush1.msra.mxu0 0.0
        %2987 = vmatprep.subr.mxu0 0.0
        %2988 = vmatpush1.msra.mxu0 0.0
        %2989 = vmatprep.subr.mxu0 0.0
        %2990 = vmatpush1.msra.mxu0 0.0
        %2991 = vmatprep.subr.mxu0 0.0
        %2992 = vmatpush1.msra.mxu0 0.0
        %2993 = vmatprep.subr.mxu0 0.0
        %2994 = vmatpush1.msra.mxu0 0.0
        %2995 = vmatprep.subr.mxu0 0.0
        %2996 = vmatpush1.msra.mxu0 0.0
        %2997 = vmatprep.mubr.f32.mxu0 0.0
        %2998 = vmatmul.mubr.f32.gmra.mrb[0].mxu0 %v2559
        %v2999 = vpop.f32.mrb[0].mxu0
        %v3000 = vadd.f32 0.0, %v2999
        %v3001 = vpop.f32.mrb[0].mxu0
        %3002 = vmatprep.mubr.f32.mxu0 0.0
        %3003 = vmatmul.mubr.f32.gmra.mrb[0].mxu0 %v2562
        %v3004 = vpop.f32.mrb[0].mxu0
        %v3005 = vadd.f32 0.0, %v3004
        %v3006 = vpop.f32.mrb[0].mxu0
        %3007 = vmatprep.mubr.f32.mxu0 0.0
        %3008 = vmatmul.mubr.f32.gmra.mrb[0].mxu0 %v2565
        %v3009 = vpop.f32.mrb[0].mxu0
        %v3010 = vadd.f32 0.0, %v3009
        %v3011 = vpop.f32.mrb[0].mxu0
        %3012 = vmatprep.mubr.f32.mxu0 0.0
        %3013 = vmatmul.mubr.f32.gmra.mrb[0].mxu0 %v2568
        %v3014 = vpop.f32.mrb[0].mxu0
        %v3015 = vadd.f32 0.0, %v3014
        %v3016 = vpop.f32.mrb[0].mxu0
        %3017 = vmatprep.mubr.f32.mxu0 0.0
        %3018 = vmatmul.mubr.f32.gmra.mrb[0].mxu0 %v2571
        %v3019 = vpop.f32.mrb[0].mxu0
        %v3020 = vadd.f32 0.0, %v3019
        %v3021 = vpop.f32.mrb[0].mxu0
        %3022 = vdwg.mxu0
        %3023 = vmatprep.subr.mxu0 0.0
        %3024 = vmatpush1.msra.mxu0 %v2497
        %3025 = vmatprep.subr.mxu0 0.0
        %3026 = vmatpush1.msra.mxu0 %v2498
        %3027 = vmatprep.subr.mxu0 0.0
        %3028 = vmatpush1.msra.mxu0 %v2499
        %3029 = vmatprep.subr.mxu0 0.0
        %3030 = vmatpush1.msra.mxu0 %v2500
        %3031 = vmatprep.subr.mxu0 0.0
        %3032 = vmatpush1.msra.mxu0 %v2501
        %3033 = vmatprep.subr.mxu0 0.0
        %3034 = vmatpush1.msra.mxu0 0.0
        %3035 = vmatprep.subr.mxu0 0.0
        %3036 = vmatpush1.msra.mxu0 0.0
        %3037 = vmatprep.subr.mxu0 0.0
        %3038 = vmatpush1.msra.mxu0 0.0
        %3039 = vmatprep.subr.mxu0 0.0
        %3040 = vmatpush1.msra.mxu0 0.0
        %3041 = vmatprep.subr.mxu0 0.0
        %3042 = vmatpush1.msra.mxu0 0.0
        %3043 = vmatprep.subr.mxu0 0.0
        %3044 = vmatpush1.msra.mxu0 0.0
        %3045 = vmatprep.subr.mxu0 0.0
        %3046 = vmatpush1.msra.mxu0 0.0
        %3047 = vmatprep.subr.mxu0 0.0
        %3048 = vmatpush1.msra.mxu0 0.0
        %3049 = vmatprep.subr.mxu0 0.0
        %3050 = vmatpush1.msra.mxu0 0.0
        %3051 = vmatprep.subr.mxu0 0.0
        %3052 = vmatpush1.msra.mxu0 0.0
        %3053 = vmatprep.subr.mxu0 0.0
        %3054 = vmatpush1.msra.mxu0 0.0
        %3055 = vmatprep.subr.mxu0 0.0
        %3056 = vmatpush1.msra.mxu0 0.0
        %3057 = vmatprep.subr.mxu0 0.0
        %3058 = vmatpush1.msra.mxu0 0.0
        %3059 = vmatprep.subr.mxu0 0.0
        %3060 = vmatpush1.msra.mxu0 0.0
        %3061 = vmatprep.subr.mxu0 0.0
        %3062 = vmatpush1.msra.mxu0 0.0
        %3063 = vmatprep.subr.mxu0 0.0
        %3064 = vmatpush1.msra.mxu0 0.0
        %3065 = vmatprep.subr.mxu0 0.0
        %3066 = vmatpush1.msra.mxu0 0.0
        %3067 = vmatprep.subr.mxu0 0.0
        %3068 = vmatpush1.msra.mxu0 0.0
        %3069 = vmatprep.subr.mxu0 0.0
        %3070 = vmatpush1.msra.mxu0 0.0
        %3071 = vmatprep.subr.mxu0 0.0
        %3072 = vmatpush1.msra.mxu0 0.0
        %3073 = vmatprep.subr.mxu0 0.0
        %3074 = vmatpush1.msra.mxu0 0.0
        %3075 = vmatprep.subr.mxu0 0.0
        %3076 = vmatpush1.msra.mxu0 0.0
        %3077 = vmatprep.subr.mxu0 0.0
        %3078 = vmatpush1.msra.mxu0 0.0
        %3079 = vmatprep.subr.mxu0 0.0
        %3080 = vmatpush1.msra.mxu0 0.0
        %3081 = vmatprep.subr.mxu0 0.0
        %3082 = vmatpush1.msra.mxu0 0.0
        %3083 = vmatprep.subr.mxu0 0.0
        %3084 = vmatpush1.msra.mxu0 0.0
        %3085 = vmatprep.subr.mxu0 0.0
        %3086 = vmatpush1.msra.mxu0 0.0
        %3087 = vmatprep.mubr.f32.mxu0 0.0
        %3088 = vmatmul.mubr.f32.gmra.mrb[0].mxu0 %v2559
        %v3089 = vpop.f32.mrb[0].mxu0
        %v3090 = vadd.f32 0.0, %v3089
        %v3091 = vpop.f32.mrb[0].mxu0
        %3092 = vmatprep.mubr.f32.mxu0 0.0
        %3093 = vmatmul.mubr.f32.gmra.mrb[0].mxu0 %v2562
        %v3094 = vpop.f32.mrb[0].mxu0
        %v3095 = vadd.f32 0.0, %v3094
        %v3096 = vpop.f32.mrb[0].mxu0
        %3097 = vmatprep.mubr.f32.mxu0 0.0
        %3098 = vmatmul.mubr.f32.gmra.mrb[0].mxu0 %v2565
        %v3099 = vpop.f32.mrb[0].mxu0
        %v3100 = vadd.f32 0.0, %v3099
        %v3101 = vpop.f32.mrb[0].mxu0
        %3102 = vmatprep.mubr.f32.mxu0 0.0
        %3103 = vmatmul.mubr.f32.gmra.mrb[0].mxu0 %v2568
        %v3104 = vpop.f32.mrb[0].mxu0
        %v3105 = vadd.f32 0.0, %v3104
        %v3106 = vpop.f32.mrb[0].mxu0
        %3107 = vmatprep.mubr.f32.mxu0 0.0
        %3108 = vmatmul.mubr.f32.gmra.mrb[0].mxu0 %v2571
        %v3109 = vpop.f32.mrb[0].mxu0
        %v3110 = vadd.f32 0.0, %v3109
        %v3111 = vpop.f32.mrb[0].mxu0
        %3112 = vdwg.mxu0
        %3113 = vmatprep.subr.mxu0 0.0
        %3114 = vmatpush1.msra.mxu0 %v2502
        %3115 = vmatprep.subr.mxu0 0.0
        %3116 = vmatpush1.msra.mxu0 %v2503
        %3117 = vmatprep.subr.mxu0 0.0
        %3118 = vmatpush1.msra.mxu0 %v2504
        %3119 = vmatprep.subr.mxu0 0.0
        %3120 = vmatpush1.msra.mxu0 %v2505
        %3121 = vmatprep.subr.mxu0 0.0
        %3122 = vmatpush1.msra.mxu0 %v2506
        %3123 = vmatprep.subr.mxu0 0.0
        %3124 = vmatpush1.msra.mxu0 0.0
        %3125 = vmatprep.subr.mxu0 0.0
        %3126 = vmatpush1.msra.mxu0 0.0
        %3127 = vmatprep.subr.mxu0 0.0
        %3128 = vmatpush1.msra.mxu0 0.0
        %3129 = vmatprep.subr.mxu0 0.0
        %3130 = vmatpush1.msra.mxu0 0.0
        %3131 = vmatprep.subr.mxu0 0.0
        %3132 = vmatpush1.msra.mxu0 0.0
        %3133 = vmatprep.subr.mxu0 0.0
        %3134 = vmatpush1.msra.mxu0 0.0
        %3135 = vmatprep.subr.mxu0 0.0
        %3136 = vmatpush1.msra.mxu0 0.0
        %3137 = vmatprep.subr.mxu0 0.0
        %3138 = vmatpush1.msra.mxu0 0.0
        %3139 = vmatprep.subr.mxu0 0.0
        %3140 = vmatpush1.msra.mxu0 0.0
        %3141 = vmatprep.subr.mxu0 0.0
        %3142 = vmatpush1.msra.mxu0 0.0
        %3143 = vmatprep.subr.mxu0 0.0
        %3144 = vmatpush1.msra.mxu0 0.0
        %3145 = vmatprep.subr.mxu0 0.0
        %3146 = vmatpush1.msra.mxu0 0.0
        %3147 = vmatprep.subr.mxu0 0.0
        %3148 = vmatpush1.msra.mxu0 0.0
        %3149 = vmatprep.subr.mxu0 0.0
        %3150 = vmatpush1.msra.mxu0 0.0
        %3151 = vmatprep.subr.mxu0 0.0
        %3152 = vmatpush1.msra.mxu0 0.0
        %3153 = vmatprep.subr.mxu0 0.0
        %3154 = vmatpush1.msra.mxu0 0.0
        %3155 = vmatprep.subr.mxu0 0.0
        %3156 = vmatpush1.msra.mxu0 0.0
        %3157 = vmatprep.subr.mxu0 0.0
        %3158 = vmatpush1.msra.mxu0 0.0
        %3159 = vmatprep.subr.mxu0 0.0
        %3160 = vmatpush1.msra.mxu0 0.0
        %3161 = vmatprep.subr.mxu0 0.0
        %3162 = vmatpush1.msra.mxu0 0.0
        %3163 = vmatprep.subr.mxu0 0.0
        %3164 = vmatpush1.msra.mxu0 0.0
        %3165 = vmatprep.subr.mxu0 0.0
        %3166 = vmatpush1.msra.mxu0 0.0
        %3167 = vmatprep.subr.mxu0 0.0
        %3168 = vmatpush1.msra.mxu0 0.0
        %3169 = vmatprep.subr.mxu0 0.0
        %3170 = vmatpush1.msra.mxu0 0.0
        %3171 = vmatprep.subr.mxu0 0.0
        %3172 = vmatpush1.msra.mxu0 0.0
        %3173 = vmatprep.subr.mxu0 0.0
        %3174 = vmatpush1.msra.mxu0 0.0
        %3175 = vmatprep.subr.mxu0 0.0
        %3176 = vmatpush1.msra.mxu0 0.0
        %3177 = vmatprep.mubr.f32.mxu0 0.0
        %3178 = vmatmul.mubr.f32.gmra.mrb[0].mxu0 %v2559
        %v3179 = vpop.f32.mrb[0].mxu0
        %v3180 = vadd.f32 0.0, %v3179
        %v3181 = vpop.f32.mrb[0].mxu0
        %3182 = vmatprep.mubr.f32.mxu0 0.0
        %3183 = vmatmul.mubr.f32.gmra.mrb[0].mxu0 %v2562
        %v3184 = vpop.f32.mrb[0].mxu0
        %v3185 = vadd.f32 0.0, %v3184
        %v3186 = vpop.f32.mrb[0].mxu0
        %3187 = vmatprep.mubr.f32.mxu0 0.0
        %3188 = vmatmul.mubr.f32.gmra.mrb[0].mxu0 %v2565
        %v3189 = vpop.f32.mrb[0].mxu0
        %v3190 = vadd.f32 0.0, %v3189
        %v3191 = vpop.f32.mrb[0].mxu0
        %3192 = vmatprep.mubr.f32.mxu0 0.0
        %3193 = vmatmul.mubr.f32.gmra.mrb[0].mxu0 %v2568
        %v3194 = vpop.f32.mrb[0].mxu0
        %v3195 = vadd.f32 0.0, %v3194
        %v3196 = vpop.f32.mrb[0].mxu0
        %3197 = vmatprep.mubr.f32.mxu0 0.0
        %3198 = vmatmul.mubr.f32.gmra.mrb[0].mxu0 %v2571
        %v3199 = vpop.f32.mrb[0].mxu0
        %v3200 = vadd.f32 0.0, %v3199
        %v3201 = vpop.f32.mrb[0].mxu0
        %3202 = vdwg.mxu0
        %3203 = vmatprep.subr.mxu0 0.0
        %3204 = vmatpush1.msra.mxu0 %v2507
        %3205 = vmatprep.subr.mxu0 0.0
        %3206 = vmatpush1.msra.mxu0 %v2508
        %3207 = vmatprep.subr.mxu0 0.0
        %3208 = vmatpush1.msra.mxu0 %v2509
        %3209 = vmatprep.subr.mxu0 0.0
        %3210 = vmatpush1.msra.mxu0 %v2510
        %3211 = vmatprep.subr.mxu0 0.0
        %3212 = vmatpush1.msra.mxu0 %v2511
        %3213 = vmatprep.subr.mxu0 0.0
        %3214 = vmatpush1.msra.mxu0 0.0
        %3215 = vmatprep.subr.mxu0 0.0
        %3216 = vmatpush1.msra.mxu0 0.0
        %3217 = vmatprep.subr.mxu0 0.0
        %3218 = vmatpush1.msra.mxu0 0.0
        %3219 = vmatprep.subr.mxu0 0.0
        %3220 = vmatpush1.msra.mxu0 0.0
        %3221 = vmatprep.subr.mxu0 0.0
        %3222 = vmatpush1.msra.mxu0 0.0
        %3223 = vmatprep.subr.mxu0 0.0
        %3224 = vmatpush1.msra.mxu0 0.0
        %3225 = vmatprep.subr.mxu0 0.0
        %3226 = vmatpush1.msra.mxu0 0.0
        %3227 = vmatprep.subr.mxu0 0.0
        %3228 = vmatpush1.msra.mxu0 0.0
        %3229 = vmatprep.subr.mxu0 0.0
        %3230 = vmatpush1.msra.mxu0 0.0
        %3231 = vmatprep.subr.mxu0 0.0
        %3232 = vmatpush1.msra.mxu0 0.0
        %3233 = vmatprep.subr.mxu0 0.0
        %3234 = vmatpush1.msra.mxu0 0.0
        %3235 = vmatprep.subr.mxu0 0.0
        %3236 = vmatpush1.msra.mxu0 0.0
        %3237 = vmatprep.subr.mxu0 0.0
        %3238 = vmatpush1.msra.mxu0 0.0
        %3239 = vmatprep.subr.mxu0 0.0
        %3240 = vmatpush1.msra.mxu0 0.0
        %3241 = vmatprep.subr.mxu0 0.0
        %3242 = vmatpush1.msra.mxu0 0.0
        %3243 = vmatprep.subr.mxu0 0.0
        %3244 = vmatpush1.msra.mxu0 0.0
        %3245 = vmatprep.subr.mxu0 0.0
        %3246 = vmatpush1.msra.mxu0 0.0
        %3247 = vmatprep.subr.mxu0 0.0
        %3248 = vmatpush1.msra.mxu0 0.0
        %3249 = vmatprep.subr.mxu0 0.0
        %3250 = vmatpush1.msra.mxu0 0.0
        %3251 = vmatprep.subr.mxu0 0.0
        %3252 = vmatpush1.msra.mxu0 0.0
        %3253 = vmatprep.subr.mxu0 0.0
        %3254 = vmatpush1.msra.mxu0 0.0
        %3255 = vmatprep.subr.mxu0 0.0
        %3256 = vmatpush1.msra.mxu0 0.0
        %3257 = vmatprep.subr.mxu0 0.0
        %3258 = vmatpush1.msra.mxu0 0.0
        %3259 = vmatprep.subr.mxu0 0.0
        %3260 = vmatpush1.msra.mxu0 0.0
        %3261 = vmatprep.subr.mxu0 0.0
        %3262 = vmatpush1.msra.mxu0 0.0
        %3263 = vmatprep.subr.mxu0 0.0
        %3264 = vmatpush1.msra.mxu0 0.0
        %3265 = vmatprep.subr.mxu0 0.0
        %3266 = vmatpush1.msra.mxu0 0.0
        %3267 = vmatprep.mubr.f32.mxu0 0.0
        %3268 = vmatmul.mubr.f32.gmra.mrb[0].mxu0 %v2559
        %v3269 = vpop.f32.mrb[0].mxu0
        %v3270 = vadd.f32 0.0, %v3269
        %v3271 = vpop.f32.mrb[0].mxu0
        %3272 = vmatprep.mubr.f32.mxu0 0.0
        %3273 = vmatmul.mubr.f32.gmra.mrb[0].mxu0 %v2562
        %v3274 = vpop.f32.mrb[0].mxu0
        %v3275 = vadd.f32 0.0, %v3274
        %v3276 = vpop.f32.mrb[0].mxu0
        %3277 = vmatprep.mubr.f32.mxu0 0.0
        %3278 = vmatmul.mubr.f32.gmra.mrb[0].mxu0 %v2565
        %v3279 = vpop.f32.mrb[0].mxu0
        %v3280 = vadd.f32 0.0, %v3279
        %v3281 = vpop.f32.mrb[0].mxu0
        %3282 = vmatprep.mubr.f32.mxu0 0.0
        %3283 = vmatmul.mubr.f32.gmra.mrb[0].mxu0 %v2568
        %v3284 = vpop.f32.mrb[0].mxu0
        %v3285 = vadd.f32 0.0, %v3284
        %v3286 = vpop.f32.mrb[0].mxu0
        %3287 = vmatprep.mubr.f32.mxu0 0.0
        %3288 = vmatmul.mubr.f32.gmra.mrb[0].mxu0 %v2571
        %v3289 = vpop.f32.mrb[0].mxu0
        %v3290 = vadd.f32 0.0, %v3289
        %v3291 = vpop.f32.mrb[0].mxu0
        %3292 = vdwg.mxu0
        %3293 = vmatprep.subr.mxu0 0.0
        %3294 = vmatpush1.msra.mxu0 %v2512
        %3295 = vmatprep.subr.mxu0 0.0
        %3296 = vmatpush1.msra.mxu0 %v2513
        %3297 = vmatprep.subr.mxu0 0.0
        %3298 = vmatpush1.msra.mxu0 %v2514
        %3299 = vmatprep.subr.mxu0 0.0
        %3300 = vmatpush1.msra.mxu0 %v2515
        %3301 = vmatprep.subr.mxu0 0.0
        %3302 = vmatpush1.msra.mxu0 %v2516
        %3303 = vmatprep.subr.mxu0 0.0
        %3304 = vmatpush1.msra.mxu0 0.0
        %3305 = vmatprep.subr.mxu0 0.0
        %3306 = vmatpush1.msra.mxu0 0.0
        %3307 = vmatprep.subr.mxu0 0.0
        %3308 = vmatpush1.msra.mxu0 0.0
        %3309 = vmatprep.subr.mxu0 0.0
        %3310 = vmatpush1.msra.mxu0 0.0
        %3311 = vmatprep.subr.mxu0 0.0
        %3312 = vmatpush1.msra.mxu0 0.0
        %3313 = vmatprep.subr.mxu0 0.0
        %3314 = vmatpush1.msra.mxu0 0.0
        %3315 = vmatprep.subr.mxu0 0.0
        %3316 = vmatpush1.msra.mxu0 0.0
        %3317 = vmatprep.subr.mxu0 0.0
        %3318 = vmatpush1.msra.mxu0 0.0
        %3319 = vmatprep.subr.mxu0 0.0
        %3320 = vmatpush1.msra.mxu0 0.0
        %3321 = vmatprep.subr.mxu0 0.0
        %3322 = vmatpush1.msra.mxu0 0.0
        %3323 = vmatprep.subr.mxu0 0.0
        %3324 = vmatpush1.msra.mxu0 0.0
        %3325 = vmatprep.subr.mxu0 0.0
        %3326 = vmatpush1.msra.mxu0 0.0
        %3327 = vmatprep.subr.mxu0 0.0
        %3328 = vmatpush1.msra.mxu0 0.0
        %3329 = vmatprep.subr.mxu0 0.0
        %3330 = vmatpush1.msra.mxu0 0.0
        %3331 = vmatprep.subr.mxu0 0.0
        %3332 = vmatpush1.msra.mxu0 0.0
        %3333 = vmatprep.subr.mxu0 0.0
        %3334 = vmatpush1.msra.mxu0 0.0
        %3335 = vmatprep.subr.mxu0 0.0
        %3336 = vmatpush1.msra.mxu0 0.0
        %3337 = vmatprep.subr.mxu0 0.0
        %3338 = vmatpush1.msra.mxu0 0.0
        %3339 = vmatprep.subr.mxu0 0.0
        %3340 = vmatpush1.msra.mxu0 0.0
        %3341 = vmatprep.subr.mxu0 0.0
        %3342 = vmatpush1.msra.mxu0 0.0
        %3343 = vmatprep.subr.mxu0 0.0
        %3344 = vmatpush1.msra.mxu0 0.0
        %3345 = vmatprep.subr.mxu0 0.0
        %3346 = vmatpush1.msra.mxu0 0.0
        %3347 = vmatprep.subr.mxu0 0.0
        %3348 = vmatpush1.msra.mxu0 0.0
        %3349 = vmatprep.subr.mxu0 0.0
        %3350 = vmatpush1.msra.mxu0 0.0
        %3351 = vmatprep.subr.mxu0 0.0
        %3352 = vmatpush1.msra.mxu0 0.0
        %3353 = vmatprep.subr.mxu0 0.0
        %3354 = vmatpush1.msra.mxu0 0.0
        %3355 = vmatprep.subr.mxu0 0.0
        %3356 = vmatpush1.msra.mxu0 0.0
        %3357 = vmatprep.mubr.f32.mxu0 0.0
        %3358 = vmatmul.mubr.f32.gmra.mrb[0].mxu0 %v2559
        %v3359 = vpop.f32.mrb[0].mxu0
        %v3360 = vadd.f32 0.0, %v3359
        %v3361 = vpop.f32.mrb[0].mxu0
        %3362 = vmatprep.mubr.f32.mxu0 0.0
        %3363 = vmatmul.mubr.f32.gmra.mrb[0].mxu0 %v2562
        %v3364 = vpop.f32.mrb[0].mxu0
        %v3365 = vadd.f32 0.0, %v3364
        %v3366 = vpop.f32.mrb[0].mxu0
        %3367 = vmatprep.mubr.f32.mxu0 0.0
        %3368 = vmatmul.mubr.f32.gmra.mrb[0].mxu0 %v2565
        %v3369 = vpop.f32.mrb[0].mxu0
        %v3370 = vadd.f32 0.0, %v3369
        %v3371 = vpop.f32.mrb[0].mxu0
        %3372 = vmatprep.mubr.f32.mxu0 0.0
        %3373 = vmatmul.mubr.f32.gmra.mrb[0].mxu0 %v2568
        %v3374 = vpop.f32.mrb[0].mxu0
        %v3375 = vadd.f32 0.0, %v3374
        %v3376 = vpop.f32.mrb[0].mxu0
        %3377 = vmatprep.mubr.f32.mxu0 0.0
        %3378 = vmatmul.mubr.f32.gmra.mrb[0].mxu0 %v2571
        %v3379 = vpop.f32.mrb[0].mxu0
        %v3380 = vadd.f32 0.0, %v3379
        %v3381 = vpop.f32.mrb[0].mxu0
        %3382 = vdwg.mxu0
        %3383 = vmatprep.subr.mxu0 0.0
        %3384 = vmatpush1.msra.mxu0 %v2517
        %3385 = vmatprep.subr.mxu0 0.0
        %3386 = vmatpush1.msra.mxu0 %v2518
        %3387 = vmatprep.subr.mxu0 0.0
        %3388 = vmatpush1.msra.mxu0 %v2519
        %3389 = vmatprep.subr.mxu0 0.0
        %3390 = vmatpush1.msra.mxu0 %v2520
        %3391 = vmatprep.subr.mxu0 0.0
        %3392 = vmatpush1.msra.mxu0 %v2521
        %3393 = vmatprep.subr.mxu0 0.0
        %3394 = vmatpush1.msra.mxu0 0.0
        %3395 = vmatprep.subr.mxu0 0.0
        %3396 = vmatpush1.msra.mxu0 0.0
        %3397 = vmatprep.subr.mxu0 0.0
        %3398 = vmatpush1.msra.mxu0 0.0
        %3399 = vmatprep.subr.mxu0 0.0
        %3400 = vmatpush1.msra.mxu0 0.0
        %3401 = vmatprep.subr.mxu0 0.0
        %3402 = vmatpush1.msra.mxu0 0.0
        %3403 = vmatprep.subr.mxu0 0.0
        %3404 = vmatpush1.msra.mxu0 0.0
        %3405 = vmatprep.subr.mxu0 0.0
        %3406 = vmatpush1.msra.mxu0 0.0
        %3407 = vmatprep.subr.mxu0 0.0
        %3408 = vmatpush1.msra.mxu0 0.0
        %3409 = vmatprep.subr.mxu0 0.0
        %3410 = vmatpush1.msra.mxu0 0.0
        %3411 = vmatprep.subr.mxu0 0.0
        %3412 = vmatpush1.msra.mxu0 0.0
        %3413 = vmatprep.subr.mxu0 0.0
        %3414 = vmatpush1.msra.mxu0 0.0
        %3415 = vmatprep.subr.mxu0 0.0
        %3416 = vmatpush1.msra.mxu0 0.0
        %3417 = vmatprep.subr.mxu0 0.0
        %3418 = vmatpush1.msra.mxu0 0.0
        %3419 = vmatprep.subr.mxu0 0.0
        %3420 = vmatpush1.msra.mxu0 0.0
        %3421 = vmatprep.subr.mxu0 0.0
        %3422 = vmatpush1.msra.mxu0 0.0
        %3423 = vmatprep.subr.mxu0 0.0
        %3424 = vmatpush1.msra.mxu0 0.0
        %3425 = vmatprep.subr.mxu0 0.0
        %3426 = vmatpush1.msra.mxu0 0.0
        %3427 = vmatprep.subr.mxu0 0.0
        %3428 = vmatpush1.msra.mxu0 0.0
        %3429 = vmatprep.subr.mxu0 0.0
        %3430 = vmatpush1.msra.mxu0 0.0
        %3431 = vmatprep.subr.mxu0 0.0
        %3432 = vmatpush1.msra.mxu0 0.0
        %3433 = vmatprep.subr.mxu0 0.0
        %3434 = vmatpush1.msra.mxu0 0.0
        %3435 = vmatprep.subr.mxu0 0.0
        %3436 = vmatpush1.msra.mxu0 0.0
        %3437 = vmatprep.subr.mxu0 0.0
        %3438 = vmatpush1.msra.mxu0 0.0
        %3439 = vmatprep.subr.mxu0 0.0
        %3440 = vmatpush1.msra.mxu0 0.0
        %3441 = vmatprep.subr.mxu0 0.0
        %3442 = vmatpush1.msra.mxu0 0.0
        %3443 = vmatprep.subr.mxu0 0.0
        %3444 = vmatpush1.msra.mxu0 0.0
        %3445 = vmatprep.subr.mxu0 0.0
        %3446 = vmatpush1.msra.mxu0 0.0
        %3447 = vmatprep.mubr.f32.mxu0 0.0
        %3448 = vmatmul.mubr.f32.gmra.mrb[0].mxu0 %v2559
        %v3449 = vpop.f32.mrb[0].mxu0
        %v3450 = vadd.f32 0.0, %v3449
        %v3451 = vpop.f32.mrb[0].mxu0
        %3452 = vmatprep.mubr.f32.mxu0 0.0
        %3453 = vmatmul.mubr.f32.gmra.mrb[0].mxu0 %v2562
        %v3454 = vpop.f32.mrb[0].mxu0
        %v3455 = vadd.f32 0.0, %v3454
        %v3456 = vpop.f32.mrb[0].mxu0
        %3457 = vmatprep.mubr.f32.mxu0 0.0
        %3458 = vmatmul.mubr.f32.gmra.mrb[0].mxu0 %v2565
        %v3459 = vpop.f32.mrb[0].mxu0
        %v3460 = vadd.f32 0.0, %v3459
        %v3461 = vpop.f32.mrb[0].mxu0
        %3462 = vmatprep.mubr.f32.mxu0 0.0
        %3463 = vmatmul.mubr.f32.gmra.mrb[0].mxu0 %v2568
        %v3464 = vpop.f32.mrb[0].mxu0
        %v3465 = vadd.f32 0.0, %v3464
        %v3466 = vpop.f32.mrb[0].mxu0
        %3467 = vmatprep.mubr.f32.mxu0 0.0
        %3468 = vmatmul.mubr.f32.gmra.mrb[0].mxu0 %v2571
        %v3469 = vpop.f32.mrb[0].mxu0
        %v3470 = vadd.f32 0.0, %v3469
        %v3471 = vpop.f32.mrb[0].mxu0
        %3472 = vdwg.mxu0
        %3473 = vmatprep.subr.mxu0 0.0
        %3474 = vmatpush1.msra.mxu0 %v2522
        %3475 = vmatprep.subr.mxu0 0.0
        %3476 = vmatpush1.msra.mxu0 %v2523
        %3477 = vmatprep.subr.mxu0 0.0
        %3478 = vmatpush1.msra.mxu0 %v2524
        %3479 = vmatprep.subr.mxu0 0.0
        %3480 = vmatpush1.msra.mxu0 %v2525
        %3481 = vmatprep.subr.mxu0 0.0
        %3482 = vmatpush1.msra.mxu0 %v2526
        %3483 = vmatprep.subr.mxu0 0.0
        %3484 = vmatpush1.msra.mxu0 0.0
        %3485 = vmatprep.subr.mxu0 0.0
        %3486 = vmatpush1.msra.mxu0 0.0
        %3487 = vmatprep.subr.mxu0 0.0
        %3488 = vmatpush1.msra.mxu0 0.0
        %3489 = vmatprep.subr.mxu0 0.0
        %3490 = vmatpush1.msra.mxu0 0.0
        %3491 = vmatprep.subr.mxu0 0.0
        %3492 = vmatpush1.msra.mxu0 0.0
        %3493 = vmatprep.subr.mxu0 0.0
        %3494 = vmatpush1.msra.mxu0 0.0
        %3495 = vmatprep.subr.mxu0 0.0
        %3496 = vmatpush1.msra.mxu0 0.0
        %3497 = vmatprep.subr.mxu0 0.0
        %3498 = vmatpush1.msra.mxu0 0.0
        %3499 = vmatprep.subr.mxu0 0.0
        %3500 = vmatpush1.msra.mxu0 0.0
        %3501 = vmatprep.subr.mxu0 0.0
        %3502 = vmatpush1.msra.mxu0 0.0
        %3503 = vmatprep.subr.mxu0 0.0
        %3504 = vmatpush1.msra.mxu0 0.0
        %3505 = vmatprep.subr.mxu0 0.0
        %3506 = vmatpush1.msra.mxu0 0.0
        %3507 = vmatprep.subr.mxu0 0.0
        %3508 = vmatpush1.msra.mxu0 0.0
        %3509 = vmatprep.subr.mxu0 0.0
        %3510 = vmatpush1.msra.mxu0 0.0
        %3511 = vmatprep.subr.mxu0 0.0
        %3512 = vmatpush1.msra.mxu0 0.0
        %3513 = vmatprep.subr.mxu0 0.0
        %3514 = vmatpush1.msra.mxu0 0.0
        %3515 = vmatprep.subr.mxu0 0.0
        %3516 = vmatpush1.msra.mxu0 0.0
        %3517 = vmatprep.subr.mxu0 0.0
        %3518 = vmatpush1.msra.mxu0 0.0
        %3519 = vmatprep.subr.mxu0 0.0
        %3520 = vmatpush1.msra.mxu0 0.0
        %3521 = vmatprep.subr.mxu0 0.0
        %3522 = vmatpush1.msra.mxu0 0.0
        %3523 = vmatprep.subr.mxu0 0.0
        %3524 = vmatpush1.msra.mxu0 0.0
        %3525 = vmatprep.subr.mxu0 0.0
        %3526 = vmatpush1.msra.mxu0 0.0
        %3527 = vmatprep.subr.mxu0 0.0
        %3528 = vmatpush1.msra.mxu0 0.0
        %3529 = vmatprep.subr.mxu0 0.0
        %3530 = vmatpush1.msra.mxu0 0.0
        %3531 = vmatprep.subr.mxu0 0.0
        %3532 = vmatpush1.msra.mxu0 0.0
        %3533 = vmatprep.subr.mxu0 0.0
        %3534 = vmatpush1.msra.mxu0 0.0
        %3535 = vmatprep.subr.mxu0 0.0
        %3536 = vmatpush1.msra.mxu0 0.0
        %3537 = vmatprep.mubr.f32.mxu0 0.0
        %3538 = vmatmul.mubr.f32.gmra.mrb[0].mxu0 %v2559
        %v3539 = vpop.f32.mrb[0].mxu0
        %v3540 = vadd.f32 0.0, %v3539
        %v3541 = vpop.f32.mrb[0].mxu0
        %3542 = vmatprep.mubr.f32.mxu0 0.0
        %3543 = vmatmul.mubr.f32.gmra.mrb[0].mxu0 %v2562
        %v3544 = vpop.f32.mrb[0].mxu0
        %v3545 = vadd.f32 0.0, %v3544
        %v3546 = vpop.f32.mrb[0].mxu0
        %3547 = vmatprep.mubr.f32.mxu0 0.0
        %3548 = vmatmul.mubr.f32.gmra.mrb[0].mxu0 %v2565
        %v3549 = vpop.f32.mrb[0].mxu0
        %v3550 = vadd.f32 0.0, %v3549
        %v3551 = vpop.f32.mrb[0].mxu0
        %3552 = vmatprep.mubr.f32.mxu0 0.0
        %3553 = vmatmul.mubr.f32.gmra.mrb[0].mxu0 %v2568
        %v3554 = vpop.f32.mrb[0].mxu0
        %v3555 = vadd.f32 0.0, %v3554
        %v3556 = vpop.f32.mrb[0].mxu0
        %3557 = vmatprep.mubr.f32.mxu0 0.0
        %3558 = vmatmul.mubr.f32.gmra.mrb[0].mxu0 %v2571
        %v3559 = vpop.f32.mrb[0].mxu0
        %v3560 = vadd.f32 0.0, %v3559
        %v3561 = vpop.f32.mrb[0].mxu0
        %3562 = vdwg.mxu0
        %3563 = vmatprep.subr.mxu0 0.0
        %3564 = vmatpush1.msra.mxu0 %v2527
        %3565 = vmatprep.subr.mxu0 0.0
        %3566 = vmatpush1.msra.mxu0 %v2528
        %3567 = vmatprep.subr.mxu0 0.0
        %3568 = vmatpush1.msra.mxu0 %v2529
        %3569 = vmatprep.subr.mxu0 0.0
        %3570 = vmatpush1.msra.mxu0 %v2530
        %3571 = vmatprep.subr.mxu0 0.0
        %3572 = vmatpush1.msra.mxu0 %v2531
        %3573 = vmatprep.subr.mxu0 0.0
        %3574 = vmatpush1.msra.mxu0 0.0
        %3575 = vmatprep.subr.mxu0 0.0
        %3576 = vmatpush1.msra.mxu0 0.0
        %3577 = vmatprep.subr.mxu0 0.0
        %3578 = vmatpush1.msra.mxu0 0.0
        %3579 = vmatprep.subr.mxu0 0.0
        %3580 = vmatpush1.msra.mxu0 0.0
        %3581 = vmatprep.subr.mxu0 0.0
        %3582 = vmatpush1.msra.mxu0 0.0
        %3583 = vmatprep.subr.mxu0 0.0
        %3584 = vmatpush1.msra.mxu0 0.0
        %3585 = vmatprep.subr.mxu0 0.0
        %3586 = vmatpush1.msra.mxu0 0.0
        %3587 = vmatprep.subr.mxu0 0.0
        %3588 = vmatpush1.msra.mxu0 0.0
        %3589 = vmatprep.subr.mxu0 0.0
        %3590 = vmatpush1.msra.mxu0 0.0
        %3591 = vmatprep.subr.mxu0 0.0
        %3592 = vmatpush1.msra.mxu0 0.0
        %3593 = vmatprep.subr.mxu0 0.0
        %3594 = vmatpush1.msra.mxu0 0.0
        %3595 = vmatprep.subr.mxu0 0.0
        %3596 = vmatpush1.msra.mxu0 0.0
        %3597 = vmatprep.subr.mxu0 0.0
        %3598 = vmatpush1.msra.mxu0 0.0
        %3599 = vmatprep.subr.mxu0 0.0
        %3600 = vmatpush1.msra.mxu0 0.0
        %3601 = vmatprep.subr.mxu0 0.0
        %3602 = vmatpush1.msra.mxu0 0.0
        %3603 = vmatprep.subr.mxu0 0.0
        %3604 = vmatpush1.msra.mxu0 0.0
        %3605 = vmatprep.subr.mxu0 0.0
        %3606 = vmatpush1.msra.mxu0 0.0
        %3607 = vmatprep.subr.mxu0 0.0
        %3608 = vmatpush1.msra.mxu0 0.0
        %3609 = vmatprep.subr.mxu0 0.0
        %3610 = vmatpush1.msra.mxu0 0.0
        %3611 = vmatprep.subr.mxu0 0.0
        %3612 = vmatpush1.msra.mxu0 0.0
        %3613 = vmatprep.subr.mxu0 0.0
        %3614 = vmatpush1.msra.mxu0 0.0
        %3615 = vmatprep.subr.mxu0 0.0
        %3616 = vmatpush1.msra.mxu0 0.0
        %3617 = vmatprep.subr.mxu0 0.0
        %3618 = vmatpush1.msra.mxu0 0.0
        %3619 = vmatprep.subr.mxu0 0.0
        %3620 = vmatpush1.msra.mxu0 0.0
        %3621 = vmatprep.subr.mxu0 0.0
        %3622 = vmatpush1.msra.mxu0 0.0
        %3623 = vmatprep.subr.mxu0 0.0
        %3624 = vmatpush1.msra.mxu0 0.0
        %3625 = vmatprep.subr.mxu0 0.0
        %3626 = vmatpush1.msra.mxu0 0.0
        %3627 = vmatprep.mubr.f32.mxu0 0.0
        %3628 = vmatmul.mubr.f32.gmra.mrb[0].mxu0 %v2559
        %v3629 = vpop.f32.mrb[0].mxu0
        %v3630 = vadd.f32 0.0, %v3629
        %v3631 = vpop.f32.mrb[0].mxu0
        %3632 = vmatprep.mubr.f32.mxu0 0.0
        %3633 = vmatmul.mubr.f32.gmra.mrb[0].mxu0 %v2562
        %v3634 = vpop.f32.mrb[0].mxu0
        %v3635 = vadd.f32 0.0, %v3634
        %v3636 = vpop.f32.mrb[0].mxu0
        %3637 = vmatprep.mubr.f32.mxu0 0.0
        %3638 = vmatmul.mubr.f32.gmra.mrb[0].mxu0 %v2565
        %v3639 = vpop.f32.mrb[0].mxu0
        %v3640 = vadd.f32 0.0, %v3639
        %v3641 = vpop.f32.mrb[0].mxu0
        %3642 = vmatprep.mubr.f32.mxu0 0.0
        %3643 = vmatmul.mubr.f32.gmra.mrb[0].mxu0 %v2568
        %v3644 = vpop.f32.mrb[0].mxu0
        %v3645 = vadd.f32 0.0, %v3644
        %v3646 = vpop.f32.mrb[0].mxu0
        %3647 = vmatprep.mubr.f32.mxu0 0.0
        %3648 = vmatmul.mubr.f32.gmra.mrb[0].mxu0 %v2571
        %v3649 = vpop.f32.mrb[0].mxu0
        %v3650 = vadd.f32 0.0, %v3649
        %v3651 = vpop.f32.mrb[0].mxu0
        %3652 = vdwg.mxu0
        %3653 = vmatprep.subr.mxu0 0.0
        %3654 = vmatpush1.msra.mxu0 %v2532
        %3655 = vmatprep.subr.mxu0 0.0
        %3656 = vmatpush1.msra.mxu0 %v2533
        %3657 = vmatprep.subr.mxu0 0.0
        %3658 = vmatpush1.msra.mxu0 %v2534
        %3659 = vmatprep.subr.mxu0 0.0
        %3660 = vmatpush1.msra.mxu0 %v2535
        %3661 = vmatprep.subr.mxu0 0.0
        %3662 = vmatpush1.msra.mxu0 %v2536
        %3663 = vmatprep.subr.mxu0 0.0
        %3664 = vmatpush1.msra.mxu0 0.0
        %3665 = vmatprep.subr.mxu0 0.0
        %3666 = vmatpush1.msra.mxu0 0.0
        %3667 = vmatprep.subr.mxu0 0.0
        %3668 = vmatpush1.msra.mxu0 0.0
        %3669 = vmatprep.subr.mxu0 0.0
        %3670 = vmatpush1.msra.mxu0 0.0
        %3671 = vmatprep.subr.mxu0 0.0
        %3672 = vmatpush1.msra.mxu0 0.0
        %3673 = vmatprep.subr.mxu0 0.0
        %3674 = vmatpush1.msra.mxu0 0.0
        %3675 = vmatprep.subr.mxu0 0.0
        %3676 = vmatpush1.msra.mxu0 0.0
        %3677 = vmatprep.subr.mxu0 0.0
        %3678 = vmatpush1.msra.mxu0 0.0
        %3679 = vmatprep.subr.mxu0 0.0
        %3680 = vmatpush1.msra.mxu0 0.0
        %3681 = vmatprep.subr.mxu0 0.0
        %3682 = vmatpush1.msra.mxu0 0.0
        %3683 = vmatprep.subr.mxu0 0.0
        %3684 = vmatpush1.msra.mxu0 0.0
        %3685 = vmatprep.subr.mxu0 0.0
        %3686 = vmatpush1.msra.mxu0 0.0
        %3687 = vmatprep.subr.mxu0 0.0
        %3688 = vmatpush1.msra.mxu0 0.0
        %3689 = vmatprep.subr.mxu0 0.0
        %3690 = vmatpush1.msra.mxu0 0.0
        %3691 = vmatprep.subr.mxu0 0.0
        %3692 = vmatpush1.msra.mxu0 0.0
        %3693 = vmatprep.subr.mxu0 0.0
        %3694 = vmatpush1.msra.mxu0 0.0
        %3695 = vmatprep.subr.mxu0 0.0
        %3696 = vmatpush1.msra.mxu0 0.0
        %3697 = vmatprep.subr.mxu0 0.0
        %3698 = vmatpush1.msra.mxu0 0.0
        %3699 = vmatprep.subr.mxu0 0.0
        %3700 = vmatpush1.msra.mxu0 0.0
        %3701 = vmatprep.subr.mxu0 0.0
        %3702 = vmatpush1.msra.mxu0 0.0
        %3703 = vmatprep.subr.mxu0 0.0
        %3704 = vmatpush1.msra.mxu0 0.0
        %3705 = vmatprep.subr.mxu0 0.0
        %3706 = vmatpush1.msra.mxu0 0.0
        %3707 = vmatprep.subr.mxu0 0.0
        %3708 = vmatpush1.msra.mxu0 0.0
        %3709 = vmatprep.subr.mxu0 0.0
        %3710 = vmatpush1.msra.mxu0 0.0
        %3711 = vmatprep.subr.mxu0 0.0
        %3712 = vmatpush1.msra.mxu0 0.0
        %3713 = vmatprep.subr.mxu0 0.0
        %3714 = vmatpush1.msra.mxu0 0.0
        %3715 = vmatprep.subr.mxu0 0.0
        %3716 = vmatpush1.msra.mxu0 0.0
        %3717 = vmatprep.mubr.f32.mxu0 0.0
        %3718 = vmatmul.mubr.f32.gmra.mrb[0].mxu0 %v2559
        %v3719 = vpop.f32.mrb[0].mxu0
        %v3720 = vadd.f32 0.0, %v3719
        %v3721 = vpop.f32.mrb[0].mxu0
        %3722 = vmatprep.mubr.f32.mxu0 0.0
        %3723 = vmatmul.mubr.f32.gmra.mrb[0].mxu0 %v2562
        %v3724 = vpop.f32.mrb[0].mxu0
        %v3725 = vadd.f32 0.0, %v3724
        %v3726 = vpop.f32.mrb[0].mxu0
        %3727 = vmatprep.mubr.f32.mxu0 0.0
        %3728 = vmatmul.mubr.f32.gmra.mrb[0].mxu0 %v2565
        %v3729 = vpop.f32.mrb[0].mxu0
        %v3730 = vadd.f32 0.0, %v3729
        %v3731 = vpop.f32.mrb[0].mxu0
        %3732 = vmatprep.mubr.f32.mxu0 0.0
        %3733 = vmatmul.mubr.f32.gmra.mrb[0].mxu0 %v2568
        %v3734 = vpop.f32.mrb[0].mxu0
        %v3735 = vadd.f32 0.0, %v3734
        %v3736 = vpop.f32.mrb[0].mxu0
        %3737 = vmatprep.mubr.f32.mxu0 0.0
        %3738 = vmatmul.mubr.f32.gmra.mrb[0].mxu0 %v2571
        %v3739 = vpop.f32.mrb[0].mxu0
        %v3740 = vadd.f32 0.0, %v3739
        %v3741 = vpop.f32.mrb[0].mxu0
        %3742 = vdwg.mxu0
        %3743 = vmatprep.subr.mxu0 0.0
        %3744 = vmatpush1.msra.mxu0 %v2537
        %3745 = vmatprep.subr.mxu0 0.0
        %3746 = vmatpush1.msra.mxu0 %v2538
        %3747 = vmatprep.subr.mxu0 0.0
        %3748 = vmatpush1.msra.mxu0 %v2539
        %3749 = vmatprep.subr.mxu0 0.0
        %3750 = vmatpush1.msra.mxu0 %v2540
        %3751 = vmatprep.subr.mxu0 0.0
        %3752 = vmatpush1.msra.mxu0 %v2541
        %3753 = vmatprep.subr.mxu0 0.0
        %3754 = vmatpush1.msra.mxu0 0.0
        %3755 = vmatprep.subr.mxu0 0.0
        %3756 = vmatpush1.msra.mxu0 0.0
        %3757 = vmatprep.subr.mxu0 0.0
        %3758 = vmatpush1.msra.mxu0 0.0
        %3759 = vmatprep.subr.mxu0 0.0
        %3760 = vmatpush1.msra.mxu0 0.0
        %3761 = vmatprep.subr.mxu0 0.0
        %3762 = vmatpush1.msra.mxu0 0.0
        %3763 = vmatprep.subr.mxu0 0.0
        %3764 = vmatpush1.msra.mxu0 0.0
        %3765 = vmatprep.subr.mxu0 0.0
        %3766 = vmatpush1.msra.mxu0 0.0
        %3767 = vmatprep.subr.mxu0 0.0
        %3768 = vmatpush1.msra.mxu0 0.0
        %3769 = vmatprep.subr.mxu0 0.0
        %3770 = vmatpush1.msra.mxu0 0.0
        %3771 = vmatprep.subr.mxu0 0.0
        %3772 = vmatpush1.msra.mxu0 0.0
        %3773 = vmatprep.subr.mxu0 0.0
        %3774 = vmatpush1.msra.mxu0 0.0
        %3775 = vmatprep.subr.mxu0 0.0
        %3776 = vmatpush1.msra.mxu0 0.0
        %3777 = vmatprep.subr.mxu0 0.0
        %3778 = vmatpush1.msra.mxu0 0.0
        %3779 = vmatprep.subr.mxu0 0.0
        %3780 = vmatpush1.msra.mxu0 0.0
        %3781 = vmatprep.subr.mxu0 0.0
        %3782 = vmatpush1.msra.mxu0 0.0
        %3783 = vmatprep.subr.mxu0 0.0
        %3784 = vmatpush1.msra.mxu0 0.0
        %3785 = vmatprep.subr.mxu0 0.0
        %3786 = vmatpush1.msra.mxu0 0.0
        %3787 = vmatprep.subr.mxu0 0.0
        %3788 = vmatpush1.msra.mxu0 0.0
        %3789 = vmatprep.subr.mxu0 0.0
        %3790 = vmatpush1.msra.mxu0 0.0
        %3791 = vmatprep.subr.mxu0 0.0
        %3792 = vmatpush1.msra.mxu0 0.0
        %3793 = vmatprep.subr.mxu0 0.0
        %3794 = vmatpush1.msra.mxu0 0.0
        %3795 = vmatprep.subr.mxu0 0.0
        %3796 = vmatpush1.msra.mxu0 0.0
        %3797 = vmatprep.subr.mxu0 0.0
        %3798 = vmatpush1.msra.mxu0 0.0
        %3799 = vmatprep.subr.mxu0 0.0
        %3800 = vmatpush1.msra.mxu0 0.0
        %3801 = vmatprep.subr.mxu0 0.0
        %3802 = vmatpush1.msra.mxu0 0.0
        %3803 = vmatprep.subr.mxu0 0.0
        %3804 = vmatpush1.msra.mxu0 0.0
        %3805 = vmatprep.subr.mxu0 0.0
        %3806 = vmatpush1.msra.mxu0 0.0
        %3807 = vmatprep.mubr.f32.mxu0 0.0
        %3808 = vmatmul.mubr.f32.gmra.mrb[0].mxu0 %v2559
        %v3809 = vpop.f32.mrb[0].mxu0
        %v3810 = vadd.f32 0.0, %v3809
        %v3811 = vpop.f32.mrb[0].mxu0
        %3812 = vmatprep.mubr.f32.mxu0 0.0
        %3813 = vmatmul.mubr.f32.gmra.mrb[0].mxu0 %v2562
        %v3814 = vpop.f32.mrb[0].mxu0
        %v3815 = vadd.f32 0.0, %v3814
        %v3816 = vpop.f32.mrb[0].mxu0
        %3817 = vmatprep.mubr.f32.mxu0 0.0
        %3818 = vmatmul.mubr.f32.gmra.mrb[0].mxu0 %v2565
        %v3819 = vpop.f32.mrb[0].mxu0
        %v3820 = vadd.f32 0.0, %v3819
        %v3821 = vpop.f32.mrb[0].mxu0
        %3822 = vmatprep.mubr.f32.mxu0 0.0
        %3823 = vmatmul.mubr.f32.gmra.mrb[0].mxu0 %v2568
        %v3824 = vpop.f32.mrb[0].mxu0
        %v3825 = vadd.f32 0.0, %v3824
        %v3826 = vpop.f32.mrb[0].mxu0
        %3827 = vmatprep.mubr.f32.mxu0 0.0
        %3828 = vmatmul.mubr.f32.gmra.mrb[0].mxu0 %v2571
        %v3829 = vpop.f32.mrb[0].mxu0
        %v3830 = vadd.f32 0.0, %v3829
        %v3831 = vpop.f32.mrb[0].mxu0
        %3832 = vdwg.mxu0
        %3833 = vmatprep.subr.mxu0 0.0
        %3834 = vmatpush1.msra.mxu0 %v2542
        %3835 = vmatprep.subr.mxu0 0.0
        %3836 = vmatpush1.msra.mxu0 %v2543
        %3837 = vmatprep.subr.mxu0 0.0
        %3838 = vmatpush1.msra.mxu0 %v2544
        %3839 = vmatprep.subr.mxu0 0.0
        %3840 = vmatpush1.msra.mxu0 %v2545
        %3841 = vmatprep.subr.mxu0 0.0
        %3842 = vmatpush1.msra.mxu0 %v2546
        %3843 = vmatprep.subr.mxu0 0.0
        %3844 = vmatpush1.msra.mxu0 0.0
        %3845 = vmatprep.subr.mxu0 0.0
        %3846 = vmatpush1.msra.mxu0 0.0
        %3847 = vmatprep.subr.mxu0 0.0
        %3848 = vmatpush1.msra.mxu0 0.0
        %3849 = vmatprep.subr.mxu0 0.0
        %3850 = vmatpush1.msra.mxu0 0.0
        %3851 = vmatprep.subr.mxu0 0.0
        %3852 = vmatpush1.msra.mxu0 0.0
        %3853 = vmatprep.subr.mxu0 0.0
        %3854 = vmatpush1.msra.mxu0 0.0
        %3855 = vmatprep.subr.mxu0 0.0
        %3856 = vmatpush1.msra.mxu0 0.0
        %3857 = vmatprep.subr.mxu0 0.0
        %3858 = vmatpush1.msra.mxu0 0.0
        %3859 = vmatprep.subr.mxu0 0.0
        %3860 = vmatpush1.msra.mxu0 0.0
        %3861 = vmatprep.subr.mxu0 0.0
        %3862 = vmatpush1.msra.mxu0 0.0
        %3863 = vmatprep.subr.mxu0 0.0
        %3864 = vmatpush1.msra.mxu0 0.0
        %3865 = vmatprep.subr.mxu0 0.0
        %3866 = vmatpush1.msra.mxu0 0.0
        %3867 = vmatprep.subr.mxu0 0.0
        %3868 = vmatpush1.msra.mxu0 0.0
        %3869 = vmatprep.subr.mxu0 0.0
        %3870 = vmatpush1.msra.mxu0 0.0
        %3871 = vmatprep.subr.mxu0 0.0
        %3872 = vmatpush1.msra.mxu0 0.0
        %3873 = vmatprep.subr.mxu0 0.0
        %3874 = vmatpush1.msra.mxu0 0.0
        %3875 = vmatprep.subr.mxu0 0.0
        %3876 = vmatpush1.msra.mxu0 0.0
        %3877 = vmatprep.subr.mxu0 0.0
        %3878 = vmatpush1.msra.mxu0 0.0
        %3879 = vmatprep.subr.mxu0 0.0
        %3880 = vmatpush1.msra.mxu0 0.0
        %3881 = vmatprep.subr.mxu0 0.0
        %3882 = vmatpush1.msra.mxu0 0.0
        %3883 = vmatprep.subr.mxu0 0.0
        %3884 = vmatpush1.msra.mxu0 0.0
        %3885 = vmatprep.subr.mxu0 0.0
        %3886 = vmatpush1.msra.mxu0 0.0
        %3887 = vmatprep.subr.mxu0 0.0
        %3888 = vmatpush1.msra.mxu0 0.0
        %3889 = vmatprep.subr.mxu0 0.0
        %3890 = vmatpush1.msra.mxu0 0.0
        %3891 = vmatprep.subr.mxu0 0.0
        %3892 = vmatpush1.msra.mxu0 0.0
        %3893 = vmatprep.subr.mxu0 0.0
        %3894 = vmatpush1.msra.mxu0 0.0
        %3895 = vmatprep.subr.mxu0 0.0
        %3896 = vmatpush1.msra.mxu0 0.0
        %3897 = vmatprep.mubr.f32.mxu0 0.0
        %3898 = vmatmul.mubr.f32.gmra.mrb[0].mxu0 %v2559
        %v3899 = vpop.f32.mrb[0].mxu0
        %v3900 = vadd.f32 0.0, %v3899
        %v3901 = vpop.f32.mrb[0].mxu0
        %3902 = vmatprep.mubr.f32.mxu0 0.0
        %3903 = vmatmul.mubr.f32.gmra.mrb[0].mxu0 %v2562
        %v3904 = vpop.f32.mrb[0].mxu0
        %v3905 = vadd.f32 0.0, %v3904
        %v3906 = vpop.f32.mrb[0].mxu0
        %3907 = vmatprep.mubr.f32.mxu0 0.0
        %3908 = vmatmul.mubr.f32.gmra.mrb[0].mxu0 %v2565
        %v3909 = vpop.f32.mrb[0].mxu0
        %v3910 = vadd.f32 0.0, %v3909
        %v3911 = vpop.f32.mrb[0].mxu0
        %3912 = vmatprep.mubr.f32.mxu0 0.0
        %3913 = vmatmul.mubr.f32.gmra.mrb[0].mxu0 %v2568
        %v3914 = vpop.f32.mrb[0].mxu0
        %v3915 = vadd.f32 0.0, %v3914
        %v3916 = vpop.f32.mrb[0].mxu0
        %3917 = vmatprep.mubr.f32.mxu0 0.0
        %3918 = vmatmul.mubr.f32.gmra.mrb[0].mxu0 %v2571
        %v3919 = vpop.f32.mrb[0].mxu0
        %v3920 = vadd.f32 0.0, %v3919
        %v3921 = vpop.f32.mrb[0].mxu0
        %3922 = vdwg.mxu0
        %3923 = vmatprep.subr.mxu0 0.0
        %3924 = vmatpush1.msra.mxu0 %v2547
        %3925 = vmatprep.subr.mxu0 0.0
        %3926 = vmatpush1.msra.mxu0 %v2548
        %3927 = vmatprep.subr.mxu0 0.0
        %3928 = vmatpush1.msra.mxu0 %v2549
        %3929 = vmatprep.subr.mxu0 0.0
        %3930 = vmatpush1.msra.mxu0 %v2550
        %3931 = vmatprep.subr.mxu0 0.0
        %3932 = vmatpush1.msra.mxu0 %v2551
        %3933 = vmatprep.subr.mxu0 0.0
        %3934 = vmatpush1.msra.mxu0 0.0
        %3935 = vmatprep.subr.mxu0 0.0
        %3936 = vmatpush1.msra.mxu0 0.0
        %3937 = vmatprep.subr.mxu0 0.0
        %3938 = vmatpush1.msra.mxu0 0.0
        %3939 = vmatprep.subr.mxu0 0.0
        %3940 = vmatpush1.msra.mxu0 0.0
        %3941 = vmatprep.subr.mxu0 0.0
        %3942 = vmatpush1.msra.mxu0 0.0
        %3943 = vmatprep.subr.mxu0 0.0
        %3944 = vmatpush1.msra.mxu0 0.0
        %3945 = vmatprep.subr.mxu0 0.0
        %3946 = vmatpush1.msra.mxu0 0.0
        %3947 = vmatprep.subr.mxu0 0.0
        %3948 = vmatpush1.msra.mxu0 0.0
        %3949 = vmatprep.subr.mxu0 0.0
        %3950 = vmatpush1.msra.mxu0 0.0
        %3951 = vmatprep.subr.mxu0 0.0
        %3952 = vmatpush1.msra.mxu0 0.0
        %3953 = vmatprep.subr.mxu0 0.0
        %3954 = vmatpush1.msra.mxu0 0.0
        %3955 = vmatprep.subr.mxu0 0.0
        %3956 = vmatpush1.msra.mxu0 0.0
        %3957 = vmatprep.subr.mxu0 0.0
        %3958 = vmatpush1.msra.mxu0 0.0
        %3959 = vmatprep.subr.mxu0 0.0
        %3960 = vmatpush1.msra.mxu0 0.0
        %3961 = vmatprep.subr.mxu0 0.0
        %3962 = vmatpush1.msra.mxu0 0.0
        %3963 = vmatprep.subr.mxu0 0.0
        %3964 = vmatpush1.msra.mxu0 0.0
        %3965 = vmatprep.subr.mxu0 0.0
        %3966 = vmatpush1.msra.mxu0 0.0
        %3967 = vmatprep.subr.mxu0 0.0
        %3968 = vmatpush1.msra.mxu0 0.0
        %3969 = vmatprep.subr.mxu0 0.0
        %3970 = vmatpush1.msra.mxu0 0.0
        %3971 = vmatprep.subr.mxu0 0.0
        %3972 = vmatpush1.msra.mxu0 0.0
        %3973 = vmatprep.subr.mxu0 0.0
        %3974 = vmatpush1.msra.mxu0 0.0
        %3975 = vmatprep.subr.mxu0 0.0
        %3976 = vmatpush1.msra.mxu0 0.0
        %3977 = vmatprep.subr.mxu0 0.0
        %3978 = vmatpush1.msra.mxu0 0.0
        %3979 = vmatprep.subr.mxu0 0.0
        %3980 = vmatpush1.msra.mxu0 0.0
        %3981 = vmatprep.subr.mxu0 0.0
        %3982 = vmatpush1.msra.mxu0 0.0
        %3983 = vmatprep.subr.mxu0 0.0
        %3984 = vmatpush1.msra.mxu0 0.0
        %3985 = vmatprep.subr.mxu0 0.0
        %3986 = vmatpush1.msra.mxu0 0.0
        %3987 = vmatprep.mubr.f32.mxu0 0.0
        %3988 = vmatmul.mubr.f32.gmra.mrb[0].mxu0 %v2559
        %v3989 = vpop.f32.mrb[0].mxu0
        %v3990 = vadd.f32 0.0, %v3989
        %v3991 = vpop.f32.mrb[0].mxu0
        %3992 = vmatprep.mubr.f32.mxu0 0.0
        %3993 = vmatmul.mubr.f32.gmra.mrb[0].mxu0 %v2562
        %v3994 = vpop.f32.mrb[0].mxu0
        %v3995 = vadd.f32 0.0, %v3994
        %v3996 = vpop.f32.mrb[0].mxu0
        %3997 = vmatprep.mubr.f32.mxu0 0.0
        %3998 = vmatmul.mubr.f32.gmra.mrb[0].mxu0 %v2565
        %v3999 = vpop.f32.mrb[0].mxu0
        %v4000 = vadd.f32 0.0, %v3999
        %v4001 = vpop.f32.mrb[0].mxu0
        %4002 = vmatprep.mubr.f32.mxu0 0.0
        %4003 = vmatmul.mubr.f32.gmra.mrb[0].mxu0 %v2568
        %v4004 = vpop.f32.mrb[0].mxu0
        %v4005 = vadd.f32 0.0, %v4004
        %v4006 = vpop.f32.mrb[0].mxu0
        %4007 = vmatprep.mubr.f32.mxu0 0.0
        %4008 = vmatmul.mubr.f32.gmra.mrb[0].mxu0 %v2571
        %v4009 = vpop.f32.mrb[0].mxu0
        %v4010 = vadd.f32 0.0, %v4009
        %v4011 = vpop.f32.mrb[0].mxu0
        %4012 = vdwg.mxu0
        %v4013 = vmul.f32 %v2640, 0.01
        %v4014 = vmul.f32 %v2645, 0.01
        %v4015 = vmul.f32 %v2650, 0.01
        %v4016 = vmul.f32 %v2655, 0.01
        %v4017 = vmul.f32 %v2660, 0.01
        %v4018 = vmul.f32 %v2730, 0.01
        %v4019 = vmul.f32 %v2735, 0.01
        %v4020 = vmul.f32 %v2740, 0.01
        %v4021 = vmul.f32 %v2745, 0.01
        %v4022 = vmul.f32 %v2750, 0.01
        %v4023 = vmul.f32 %v2820, 0.01
        %v4024 = vmul.f32 %v2825, 0.01
        %v4025 = vmul.f32 %v2830, 0.01
        %v4026 = vmul.f32 %v2835, 0.01
        %v4027 = vmul.f32 %v2840, 0.01
        %v4028 = vmul.f32 %v2910, 0.01
        %v4029 = vmul.f32 %v2915, 0.01
        %v4030 = vmul.f32 %v2920, 0.01
        %v4031 = vmul.f32 %v2925, 0.01
        %v4032 = vmul.f32 %v2930, 0.01
        %v4033 = vmul.f32 %v3000, 0.01
        %v4034 = vmul.f32 %v3005, 0.01
        %v4035 = vmul.f32 %v3010, 0.01
        %v4036 = vmul.f32 %v3015, 0.01
        %v4037 = vmul.f32 %v3020, 0.01
        %v4038 = vmul.f32 %v3090, 0.01
        %v4039 = vmul.f32 %v3095, 0.01
        %v4040 = vmul.f32 %v3100, 0.01
        %v4041 = vmul.f32 %v3105, 0.01
        %v4042 = vmul.f32 %v3110, 0.01
        %v4043 = vmul.f32 %v3180, 0.01
        %v4044 = vmul.f32 %v3185, 0.01
        %v4045 = vmul.f32 %v3190, 0.01
        %v4046 = vmul.f32 %v3195, 0.01
        %v4047 = vmul.f32 %v3200, 0.01
        %v4048 = vmul.f32 %v3270, 0.01
        %v4049 = vmul.f32 %v3275, 0.01
        %v4050 = vmul.f32 %v3280, 0.01
        %v4051 = vmul.f32 %v3285, 0.01
        %v4052 = vmul.f32 %v3290, 0.01
        %v4053 = vmul.f32 %v3360, 0.01
        %v4054 = vmul.f32 %v3365, 0.01
        %v4055 = vmul.f32 %v3370, 0.01
        %v4056 = vmul.f32 %v3375, 0.01
        %v4057 = vmul.f32 %v3380, 0.01
        %v4058 = vmul.f32 %v3450, 0.01
        %v4059 = vmul.f32 %v3455, 0.01
        %v4060 = vmul.f32 %v3460, 0.01
        %v4061 = vmul.f32 %v3465, 0.01
        %v4062 = vmul.f32 %v3470, 0.01
        %v4063 = vmul.f32 %v3540, 0.01
        %v4064 = vmul.f32 %v3545, 0.01
        %v4065 = vmul.f32 %v3550, 0.01
        %v4066 = vmul.f32 %v3555, 0.01
        %v4067 = vmul.f32 %v3560, 0.01
        %v4068 = vmul.f32 %v3630, 0.01
        %v4069 = vmul.f32 %v3635, 0.01
        %v4070 = vmul.f32 %v3640, 0.01
        %v4071 = vmul.f32 %v3645, 0.01
        %v4072 = vmul.f32 %v3650, 0.01
        %v4073 = vmul.f32 %v3720, 0.01
        %v4074 = vmul.f32 %v3725, 0.01
        %v4075 = vmul.f32 %v3730, 0.01
        %v4076 = vmul.f32 %v3735, 0.01
        %v4077 = vmul.f32 %v3740, 0.01
        %v4078 = vmul.f32 %v3810, 0.01
        %v4079 = vmul.f32 %v3815, 0.01
        %v4080 = vmul.f32 %v3820, 0.01
        %v4081 = vmul.f32 %v3825, 0.01
        %v4082 = vmul.f32 %v3830, 0.01
        %v4083 = vmul.f32 %v3900, 0.01
        %v4084 = vmul.f32 %v3905, 0.01
        %v4085 = vmul.f32 %v3910, 0.01
        %v4086 = vmul.f32 %v3915, 0.01
        %v4087 = vmul.f32 %v3920, 0.01
        %v4088 = vmul.f32 %v3990, 0.01
        %v4089 = vmul.f32 %v3995, 0.01
        %v4090 = vmul.f32 %v4000, 0.01
        %v4091 = vmul.f32 %v4005, 0.01
        %v4092 = vmul.f32 %v4010, 0.01
        %v4093 = vmax.f32 %v2640, %v4013
        %v4094 = vmax.f32 %v2645, %v4014
        %v4095 = vmax.f32 %v2650, %v4015
        %v4096 = vmax.f32 %v2655, %v4016
        %v4097 = vmax.f32 %v2660, %v4017
        %v4098 = vmax.f32 %v2730, %v4018
        %v4099 = vmax.f32 %v2735, %v4019
        %v4100 = vmax.f32 %v2740, %v4020
        %v4101 = vmax.f32 %v2745, %v4021
        %v4102 = vmax.f32 %v2750, %v4022
        %v4103 = vmax.f32 %v2820, %v4023
        %v4104 = vmax.f32 %v2825, %v4024
        %v4105 = vmax.f32 %v2830, %v4025
        %v4106 = vmax.f32 %v2835, %v4026
        %v4107 = vmax.f32 %v2840, %v4027
        %v4108 = vmax.f32 %v2910, %v4028
        %v4109 = vmax.f32 %v2915, %v4029
        %v4110 = vmax.f32 %v2920, %v4030
        %v4111 = vmax.f32 %v2925, %v4031
        %v4112 = vmax.f32 %v2930, %v4032
        %v4113 = vmax.f32 %v3000, %v4033
        %v4114 = vmax.f32 %v3005, %v4034
        %v4115 = vmax.f32 %v3010, %v4035
        %v4116 = vmax.f32 %v3015, %v4036
        %v4117 = vmax.f32 %v3020, %v4037
        %v4118 = vmax.f32 %v3090, %v4038
        %v4119 = vmax.f32 %v3095, %v4039
        %v4120 = vmax.f32 %v3100, %v4040
        %v4121 = vmax.f32 %v3105, %v4041
        %v4122 = vmax.f32 %v3110, %v4042
        %v4123 = vmax.f32 %v3180, %v4043
        %v4124 = vmax.f32 %v3185, %v4044
        %v4125 = vmax.f32 %v3190, %v4045
        %v4126 = vmax.f32 %v3195, %v4046
        %v4127 = vmax.f32 %v3200, %v4047
        %v4128 = vmax.f32 %v3270, %v4048
        %v4129 = vmax.f32 %v3275, %v4049
        %v4130 = vmax.f32 %v3280, %v4050
        %v4131 = vmax.f32 %v3285, %v4051
        %v4132 = vmax.f32 %v3290, %v4052
        %v4133 = vmax.f32 %v3360, %v4053
        %v4134 = vmax.f32 %v3365, %v4054
        %v4135 = vmax.f32 %v3370, %v4055
        %v4136 = vmax.f32 %v3375, %v4056
        %v4137 = vmax.f32 %v3380, %v4057
        %v4138 = vmax.f32 %v3450, %v4058
        %v4139 = vmax.f32 %v3455, %v4059
        %v4140 = vmax.f32 %v3460, %v4060
        %v4141 = vmax.f32 %v3465, %v4061
        %v4142 = vmax.f32 %v3470, %v4062
        %v4143 = vmax.f32 %v3540, %v4063
        %v4144 = vmax.f32 %v3545, %v4064
        %v4145 = vmax.f32 %v3550, %v4065
        %v4146 = vmax.f32 %v3555, %v4066
        %v4147 = vmax.f32 %v3560, %v4067
        %v4148 = vmax.f32 %v3630, %v4068
        %v4149 = vmax.f32 %v3635, %v4069
        %v4150 = vmax.f32 %v3640, %v4070
        %v4151 = vmax.f32 %v3645, %v4071
        %v4152 = vmax.f32 %v3650, %v4072
        %v4153 = vmax.f32 %v3720, %v4073
        %v4154 = vmax.f32 %v3725, %v4074
        %v4155 = vmax.f32 %v3730, %v4075
        %v4156 = vmax.f32 %v3735, %v4076
        %v4157 = vmax.f32 %v3740, %v4077
        %v4158 = vmax.f32 %v3810, %v4078
        %v4159 = vmax.f32 %v3815, %v4079
        %v4160 = vmax.f32 %v3820, %v4080
        %v4161 = vmax.f32 %v3825, %v4081
        %v4162 = vmax.f32 %v3830, %v4082
        %v4163 = vmax.f32 %v3900, %v4083
        %v4164 = vmax.f32 %v3905, %v4084
        %v4165 = vmax.f32 %v3910, %v4085
        %v4166 = vmax.f32 %v3915, %v4086
        %v4167 = vmax.f32 %v3920, %v4087
        %v4168 = vmax.f32 %v3990, %v4088
        %v4169 = vmax.f32 %v3995, %v4089
        %v4170 = vmax.f32 %v4000, %v4090
        %v4171 = vmax.f32 %v4005, %v4091
        %v4172 = vmax.f32 %v4010, %v4092
        %s4173 = scalar_lea.vmem %s3, 80
        %v4174 = vld [vmem:[%s4173] sm:$0xff]
        %v4175 = vld [vmem:[%s4173 + $0x8] sm:$0xff]
        %v4176 = vld [vmem:[%s4173 + $0x10] sm:$0xff]
        %v4177 = vld [vmem:[%s4173 + $0x18] sm:$0xff]
        %v4178 = vld [vmem:[%s4173 + $0x20] sm:$0xff]
        %v4180 = vsel %vm936, %v4174, 0
        %v4183 = vsel %vm936, %v4175, 0
        %v4186 = vsel %vm936, %v4176, 0
        %v4189 = vsel %vm936, %v4177, 0
        %v4192 = vsel %vm936, %v4178, 0
        %4194 = vmatprep.subr.mxu0 0.0
        %4195 = vmatpush1.msra.mxu0 %v4093
        %4196 = vmatprep.subr.mxu0 0.0
        %4197 = vmatpush1.msra.mxu0 %v4094
        %4198 = vmatprep.subr.mxu0 0.0
        %4199 = vmatpush1.msra.mxu0 %v4095
        %4200 = vmatprep.subr.mxu0 0.0
        %4201 = vmatpush1.msra.mxu0 %v4096
        %4202 = vmatprep.subr.mxu0 0.0
        %4203 = vmatpush1.msra.mxu0 %v4097
        %4204 = vmatprep.subr.mxu0 0.0
        %4205 = vmatpush1.msra.mxu0 0.0
        %4206 = vmatprep.subr.mxu0 0.0
        %4207 = vmatpush1.msra.mxu0 0.0
        %4208 = vmatprep.subr.mxu0 0.0
        %4209 = vmatpush1.msra.mxu0 0.0
        %4210 = vmatprep.subr.mxu0 0.0
        %4211 = vmatpush1.msra.mxu0 0.0
        %4212 = vmatprep.subr.mxu0 0.0
        %4213 = vmatpush1.msra.mxu0 0.0
        %4214 = vmatprep.subr.mxu0 0.0
        %4215 = vmatpush1.msra.mxu0 0.0
        %4216 = vmatprep.subr.mxu0 0.0
        %4217 = vmatpush1.msra.mxu0 0.0
        %4218 = vmatprep.subr.mxu0 0.0
        %4219 = vmatpush1.msra.mxu0 0.0
        %4220 = vmatprep.subr.mxu0 0.0
        %4221 = vmatpush1.msra.mxu0 0.0
        %4222 = vmatprep.subr.mxu0 0.0
        %4223 = vmatpush1.msra.mxu0 0.0
        %4224 = vmatprep.subr.mxu0 0.0
        %4225 = vmatpush1.msra.mxu0 0.0
        %4226 = vmatprep.subr.mxu0 0.0
        %4227 = vmatpush1.msra.mxu0 0.0
        %4228 = vmatprep.subr.mxu0 0.0
        %4229 = vmatpush1.msra.mxu0 0.0
        %4230 = vmatprep.subr.mxu0 0.0
        %4231 = vmatpush1.msra.mxu0 0.0
        %4232 = vmatprep.subr.mxu0 0.0
        %4233 = vmatpush1.msra.mxu0 0.0
        %4234 = vmatprep.subr.mxu0 0.0
        %4235 = vmatpush1.msra.mxu0 0.0
        %4236 = vmatprep.subr.mxu0 0.0
        %4237 = vmatpush1.msra.mxu0 0.0
        %4238 = vmatprep.subr.mxu0 0.0
        %4239 = vmatpush1.msra.mxu0 0.0
        %4240 = vmatprep.subr.mxu0 0.0
        %4241 = vmatpush1.msra.mxu0 0.0
        %4242 = vmatprep.subr.mxu0 0.0
        %4243 = vmatpush1.msra.mxu0 0.0
        %4244 = vmatprep.subr.mxu0 0.0
        %4245 = vmatpush1.msra.mxu0 0.0
        %4246 = vmatprep.subr.mxu0 0.0
        %4247 = vmatpush1.msra.mxu0 0.0
        %4248 = vmatprep.subr.mxu0 0.0
        %4249 = vmatpush1.msra.mxu0 0.0
        %4250 = vmatprep.subr.mxu0 0.0
        %4251 = vmatpush1.msra.mxu0 0.0
        %4252 = vmatprep.subr.mxu0 0.0
        %4253 = vmatpush1.msra.mxu0 0.0
        %4254 = vmatprep.subr.mxu0 0.0
        %4255 = vmatpush1.msra.mxu0 0.0
        %4256 = vmatprep.subr.mxu0 0.0
        %4257 = vmatpush1.msra.mxu0 0.0
        %4258 = vmatprep.mubr.f32.mxu0 0.0
        %4259 = vmatmul.mubr.f32.gmra.mrb[0].mxu0 %v4180
        %v4260 = vpop.f32.mrb[0].mxu0
        %v4261 = vadd.f32 0.0, %v4260
        %v4262 = vpop.f32.mrb[0].mxu0
        %4263 = vmatprep.mubr.f32.mxu0 0.0
        %4264 = vmatmul.mubr.f32.gmra.mrb[0].mxu0 %v4183
        %v4265 = vpop.f32.mrb[0].mxu0
        %v4266 = vadd.f32 0.0, %v4265
        %v4267 = vpop.f32.mrb[0].mxu0
        %4268 = vmatprep.mubr.f32.mxu0 0.0
        %4269 = vmatmul.mubr.f32.gmra.mrb[0].mxu0 %v4186
        %v4270 = vpop.f32.mrb[0].mxu0
        %v4271 = vadd.f32 0.0, %v4270
        %v4272 = vpop.f32.mrb[0].mxu0
        %4273 = vmatprep.mubr.f32.mxu0 0.0
        %4274 = vmatmul.mubr.f32.gmra.mrb[0].mxu0 %v4189
        %v4275 = vpop.f32.mrb[0].mxu0
        %v4276 = vadd.f32 0.0, %v4275
        %v4277 = vpop.f32.mrb[0].mxu0
        %4278 = vmatprep.mubr.f32.mxu0 0.0
        %4279 = vmatmul.mubr.f32.gmra.mrb[0].mxu0 %v4192
        %v4280 = vpop.f32.mrb[0].mxu0
        %v4281 = vadd.f32 0.0, %v4280
        %v4282 = vpop.f32.mrb[0].mxu0
        %4283 = vdwg.mxu0
        %4284 = vmatprep.subr.mxu0 0.0
        %4285 = vmatpush1.msra.mxu0 %v4098
        %4286 = vmatprep.subr.mxu0 0.0
        %4287 = vmatpush1.msra.mxu0 %v4099
        %4288 = vmatprep.subr.mxu0 0.0
        %4289 = vmatpush1.msra.mxu0 %v4100
        %4290 = vmatprep.subr.mxu0 0.0
        %4291 = vmatpush1.msra.mxu0 %v4101
        %4292 = vmatprep.subr.mxu0 0.0
        %4293 = vmatpush1.msra.mxu0 %v4102
        %4294 = vmatprep.subr.mxu0 0.0
        %4295 = vmatpush1.msra.mxu0 0.0
        %4296 = vmatprep.subr.mxu0 0.0
        %4297 = vmatpush1.msra.mxu0 0.0
        %4298 = vmatprep.subr.mxu0 0.0
        %4299 = vmatpush1.msra.mxu0 0.0
        %4300 = vmatprep.subr.mxu0 0.0
        %4301 = vmatpush1.msra.mxu0 0.0
        %4302 = vmatprep.subr.mxu0 0.0
        %4303 = vmatpush1.msra.mxu0 0.0
        %4304 = vmatprep.subr.mxu0 0.0
        %4305 = vmatpush1.msra.mxu0 0.0
        %4306 = vmatprep.subr.mxu0 0.0
        %4307 = vmatpush1.msra.mxu0 0.0
        %4308 = vmatprep.subr.mxu0 0.0
        %4309 = vmatpush1.msra.mxu0 0.0
        %4310 = vmatprep.subr.mxu0 0.0
        %4311 = vmatpush1.msra.mxu0 0.0
        %4312 = vmatprep.subr.mxu0 0.0
        %4313 = vmatpush1.msra.mxu0 0.0
        %4314 = vmatprep.subr.mxu0 0.0
        %4315 = vmatpush1.msra.mxu0 0.0
        %4316 = vmatprep.subr.mxu0 0.0
        %4317 = vmatpush1.msra.mxu0 0.0
        %4318 = vmatprep.subr.mxu0 0.0
        %4319 = vmatpush1.msra.mxu0 0.0
        %4320 = vmatprep.subr.mxu0 0.0
        %4321 = vmatpush1.msra.mxu0 0.0
        %4322 = vmatprep.subr.mxu0 0.0
        %4323 = vmatpush1.msra.mxu0 0.0
        %4324 = vmatprep.subr.mxu0 0.0
        %4325 = vmatpush1.msra.mxu0 0.0
        %4326 = vmatprep.subr.mxu0 0.0
        %4327 = vmatpush1.msra.mxu0 0.0
        %4328 = vmatprep.subr.mxu0 0.0
        %4329 = vmatpush1.msra.mxu0 0.0
        %4330 = vmatprep.subr.mxu0 0.0
        %4331 = vmatpush1.msra.mxu0 0.0
        %4332 = vmatprep.subr.mxu0 0.0
        %4333 = vmatpush1.msra.mxu0 0.0
        %4334 = vmatprep.subr.mxu0 0.0
        %4335 = vmatpush1.msra.mxu0 0.0
        %4336 = vmatprep.subr.mxu0 0.0
        %4337 = vmatpush1.msra.mxu0 0.0
        %4338 = vmatprep.subr.mxu0 0.0
        %4339 = vmatpush1.msra.mxu0 0.0
        %4340 = vmatprep.subr.mxu0 0.0
        %4341 = vmatpush1.msra.mxu0 0.0
        %4342 = vmatprep.subr.mxu0 0.0
        %4343 = vmatpush1.msra.mxu0 0.0
        %4344 = vmatprep.subr.mxu0 0.0
        %4345 = vmatpush1.msra.mxu0 0.0
        %4346 = vmatprep.subr.mxu0 0.0
        %4347 = vmatpush1.msra.mxu0 0.0
        %4348 = vmatprep.mubr.f32.mxu0 0.0
        %4349 = vmatmul.mubr.f32.gmra.mrb[0].mxu0 %v4180
        %v4350 = vpop.f32.mrb[0].mxu0
        %v4351 = vadd.f32 0.0, %v4350
        %v4352 = vpop.f32.mrb[0].mxu0
        %4353 = vmatprep.mubr.f32.mxu0 0.0
        %4354 = vmatmul.mubr.f32.gmra.mrb[0].mxu0 %v4183
        %v4355 = vpop.f32.mrb[0].mxu0
        %v4356 = vadd.f32 0.0, %v4355
        %v4357 = vpop.f32.mrb[0].mxu0
        %4358 = vmatprep.mubr.f32.mxu0 0.0
        %4359 = vmatmul.mubr.f32.gmra.mrb[0].mxu0 %v4186
        %v4360 = vpop.f32.mrb[0].mxu0
        %v4361 = vadd.f32 0.0, %v4360
        %v4362 = vpop.f32.mrb[0].mxu0
        %4363 = vmatprep.mubr.f32.mxu0 0.0
        %4364 = vmatmul.mubr.f32.gmra.mrb[0].mxu0 %v4189
        %v4365 = vpop.f32.mrb[0].mxu0
        %v4366 = vadd.f32 0.0, %v4365
        %v4367 = vpop.f32.mrb[0].mxu0
        %4368 = vmatprep.mubr.f32.mxu0 0.0
        %4369 = vmatmul.mubr.f32.gmra.mrb[0].mxu0 %v4192
        %v4370 = vpop.f32.mrb[0].mxu0
        %v4371 = vadd.f32 0.0, %v4370
        %v4372 = vpop.f32.mrb[0].mxu0
        %4373 = vdwg.mxu0
        %4374 = vmatprep.subr.mxu0 0.0
        %4375 = vmatpush1.msra.mxu0 %v4103
        %4376 = vmatprep.subr.mxu0 0.0
        %4377 = vmatpush1.msra.mxu0 %v4104
        %4378 = vmatprep.subr.mxu0 0.0
        %4379 = vmatpush1.msra.mxu0 %v4105
        %4380 = vmatprep.subr.mxu0 0.0
        %4381 = vmatpush1.msra.mxu0 %v4106
        %4382 = vmatprep.subr.mxu0 0.0
        %4383 = vmatpush1.msra.mxu0 %v4107
        %4384 = vmatprep.subr.mxu0 0.0
        %4385 = vmatpush1.msra.mxu0 0.0
        %4386 = vmatprep.subr.mxu0 0.0
        %4387 = vmatpush1.msra.mxu0 0.0
        %4388 = vmatprep.subr.mxu0 0.0
        %4389 = vmatpush1.msra.mxu0 0.0
        %4390 = vmatprep.subr.mxu0 0.0
        %4391 = vmatpush1.msra.mxu0 0.0
        %4392 = vmatprep.subr.mxu0 0.0
        %4393 = vmatpush1.msra.mxu0 0.0
        %4394 = vmatprep.subr.mxu0 0.0
        %4395 = vmatpush1.msra.mxu0 0.0
        %4396 = vmatprep.subr.mxu0 0.0
        %4397 = vmatpush1.msra.mxu0 0.0
        %4398 = vmatprep.subr.mxu0 0.0
        %4399 = vmatpush1.msra.mxu0 0.0
        %4400 = vmatprep.subr.mxu0 0.0
        %4401 = vmatpush1.msra.mxu0 0.0
        %4402 = vmatprep.subr.mxu0 0.0
        %4403 = vmatpush1.msra.mxu0 0.0
        %4404 = vmatprep.subr.mxu0 0.0
        %4405 = vmatpush1.msra.mxu0 0.0
        %4406 = vmatprep.subr.mxu0 0.0
        %4407 = vmatpush1.msra.mxu0 0.0
        %4408 = vmatprep.subr.mxu0 0.0
        %4409 = vmatpush1.msra.mxu0 0.0
        %4410 = vmatprep.subr.mxu0 0.0
        %4411 = vmatpush1.msra.mxu0 0.0
        %4412 = vmatprep.subr.mxu0 0.0
        %4413 = vmatpush1.msra.mxu0 0.0
        %4414 = vmatprep.subr.mxu0 0.0
        %4415 = vmatpush1.msra.mxu0 0.0
        %4416 = vmatprep.subr.mxu0 0.0
        %4417 = vmatpush1.msra.mxu0 0.0
        %4418 = vmatprep.subr.mxu0 0.0
        %4419 = vmatpush1.msra.mxu0 0.0
        %4420 = vmatprep.subr.mxu0 0.0
        %4421 = vmatpush1.msra.mxu0 0.0
        %4422 = vmatprep.subr.mxu0 0.0
        %4423 = vmatpush1.msra.mxu0 0.0
        %4424 = vmatprep.subr.mxu0 0.0
        %4425 = vmatpush1.msra.mxu0 0.0
        %4426 = vmatprep.subr.mxu0 0.0
        %4427 = vmatpush1.msra.mxu0 0.0
        %4428 = vmatprep.subr.mxu0 0.0
        %4429 = vmatpush1.msra.mxu0 0.0
        %4430 = vmatprep.subr.mxu0 0.0
        %4431 = vmatpush1.msra.mxu0 0.0
        %4432 = vmatprep.subr.mxu0 0.0
        %4433 = vmatpush1.msra.mxu0 0.0
        %4434 = vmatprep.subr.mxu0 0.0
        %4435 = vmatpush1.msra.mxu0 0.0
        %4436 = vmatprep.subr.mxu0 0.0
        %4437 = vmatpush1.msra.mxu0 0.0
        %4438 = vmatprep.mubr.f32.mxu0 0.0
        %4439 = vmatmul.mubr.f32.gmra.mrb[0].mxu0 %v4180
        %v4440 = vpop.f32.mrb[0].mxu0
        %v4441 = vadd.f32 0.0, %v4440
        %v4442 = vpop.f32.mrb[0].mxu0
        %4443 = vmatprep.mubr.f32.mxu0 0.0
        %4444 = vmatmul.mubr.f32.gmra.mrb[0].mxu0 %v4183
        %v4445 = vpop.f32.mrb[0].mxu0
        %v4446 = vadd.f32 0.0, %v4445
        %v4447 = vpop.f32.mrb[0].mxu0
        %4448 = vmatprep.mubr.f32.mxu0 0.0
        %4449 = vmatmul.mubr.f32.gmra.mrb[0].mxu0 %v4186
        %v4450 = vpop.f32.mrb[0].mxu0
        %v4451 = vadd.f32 0.0, %v4450
        %v4452 = vpop.f32.mrb[0].mxu0
        %4453 = vmatprep.mubr.f32.mxu0 0.0
        %4454 = vmatmul.mubr.f32.gmra.mrb[0].mxu0 %v4189
        %v4455 = vpop.f32.mrb[0].mxu0
        %v4456 = vadd.f32 0.0, %v4455
        %v4457 = vpop.f32.mrb[0].mxu0
        %4458 = vmatprep.mubr.f32.mxu0 0.0
        %4459 = vmatmul.mubr.f32.gmra.mrb[0].mxu0 %v4192
        %v4460 = vpop.f32.mrb[0].mxu0
        %v4461 = vadd.f32 0.0, %v4460
        %v4462 = vpop.f32.mrb[0].mxu0
        %4463 = vdwg.mxu0
        %4464 = vmatprep.subr.mxu0 0.0
        %4465 = vmatpush1.msra.mxu0 %v4108
        %4466 = vmatprep.subr.mxu0 0.0
        %4467 = vmatpush1.msra.mxu0 %v4109
        %4468 = vmatprep.subr.mxu0 0.0
        %4469 = vmatpush1.msra.mxu0 %v4110
        %4470 = vmatprep.subr.mxu0 0.0
        %4471 = vmatpush1.msra.mxu0 %v4111
        %4472 = vmatprep.subr.mxu0 0.0
        %4473 = vmatpush1.msra.mxu0 %v4112
        %4474 = vmatprep.subr.mxu0 0.0
        %4475 = vmatpush1.msra.mxu0 0.0
        %4476 = vmatprep.subr.mxu0 0.0
        %4477 = vmatpush1.msra.mxu0 0.0
        %4478 = vmatprep.subr.mxu0 0.0
        %4479 = vmatpush1.msra.mxu0 0.0
        %4480 = vmatprep.subr.mxu0 0.0
        %4481 = vmatpush1.msra.mxu0 0.0
        %4482 = vmatprep.subr.mxu0 0.0
        %4483 = vmatpush1.msra.mxu0 0.0
        %4484 = vmatprep.subr.mxu0 0.0
        %4485 = vmatpush1.msra.mxu0 0.0
        %4486 = vmatprep.subr.mxu0 0.0
        %4487 = vmatpush1.msra.mxu0 0.0
        %4488 = vmatprep.subr.mxu0 0.0
        %4489 = vmatpush1.msra.mxu0 0.0
        %4490 = vmatprep.subr.mxu0 0.0
        %4491 = vmatpush1.msra.mxu0 0.0
        %4492 = vmatprep.subr.mxu0 0.0
        %4493 = vmatpush1.msra.mxu0 0.0
        %4494 = vmatprep.subr.mxu0 0.0
        %4495 = vmatpush1.msra.mxu0 0.0
        %4496 = vmatprep.subr.mxu0 0.0
        %4497 = vmatpush1.msra.mxu0 0.0
        %4498 = vmatprep.subr.mxu0 0.0
        %4499 = vmatpush1.msra.mxu0 0.0
        %4500 = vmatprep.subr.mxu0 0.0
        %4501 = vmatpush1.msra.mxu0 0.0
        %4502 = vmatprep.subr.mxu0 0.0
        %4503 = vmatpush1.msra.mxu0 0.0
        %4504 = vmatprep.subr.mxu0 0.0
        %4505 = vmatpush1.msra.mxu0 0.0
        %4506 = vmatprep.subr.mxu0 0.0
        %4507 = vmatpush1.msra.mxu0 0.0
        %4508 = vmatprep.subr.mxu0 0.0
        %4509 = vmatpush1.msra.mxu0 0.0
        %4510 = vmatprep.subr.mxu0 0.0
        %4511 = vmatpush1.msra.mxu0 0.0
        %4512 = vmatprep.subr.mxu0 0.0
        %4513 = vmatpush1.msra.mxu0 0.0
        %4514 = vmatprep.subr.mxu0 0.0
        %4515 = vmatpush1.msra.mxu0 0.0
        %4516 = vmatprep.subr.mxu0 0.0
        %4517 = vmatpush1.msra.mxu0 0.0
        %4518 = vmatprep.subr.mxu0 0.0
        %4519 = vmatpush1.msra.mxu0 0.0
        %4520 = vmatprep.subr.mxu0 0.0
        %4521 = vmatpush1.msra.mxu0 0.0
        %4522 = vmatprep.subr.mxu0 0.0
        %4523 = vmatpush1.msra.mxu0 0.0
        %4524 = vmatprep.subr.mxu0 0.0
        %4525 = vmatpush1.msra.mxu0 0.0
        %4526 = vmatprep.subr.mxu0 0.0
        %4527 = vmatpush1.msra.mxu0 0.0
        %4528 = vmatprep.mubr.f32.mxu0 0.0
        %4529 = vmatmul.mubr.f32.gmra.mrb[0].mxu0 %v4180
        %v4530 = vpop.f32.mrb[0].mxu0
        %v4531 = vadd.f32 0.0, %v4530
        %v4532 = vpop.f32.mrb[0].mxu0
        %4533 = vmatprep.mubr.f32.mxu0 0.0
        %4534 = vmatmul.mubr.f32.gmra.mrb[0].mxu0 %v4183
        %v4535 = vpop.f32.mrb[0].mxu0
        %v4536 = vadd.f32 0.0, %v4535
        %v4537 = vpop.f32.mrb[0].mxu0
        %4538 = vmatprep.mubr.f32.mxu0 0.0
        %4539 = vmatmul.mubr.f32.gmra.mrb[0].mxu0 %v4186
        %v4540 = vpop.f32.mrb[0].mxu0
        %v4541 = vadd.f32 0.0, %v4540
        %v4542 = vpop.f32.mrb[0].mxu0
        %4543 = vmatprep.mubr.f32.mxu0 0.0
        %4544 = vmatmul.mubr.f32.gmra.mrb[0].mxu0 %v4189
        %v4545 = vpop.f32.mrb[0].mxu0
        %v4546 = vadd.f32 0.0, %v4545
        %v4547 = vpop.f32.mrb[0].mxu0
        %4548 = vmatprep.mubr.f32.mxu0 0.0
        %4549 = vmatmul.mubr.f32.gmra.mrb[0].mxu0 %v4192
        %v4550 = vpop.f32.mrb[0].mxu0
        %v4551 = vadd.f32 0.0, %v4550
        %v4552 = vpop.f32.mrb[0].mxu0
        %4553 = vdwg.mxu0
        %4554 = vmatprep.subr.mxu0 0.0
        %4555 = vmatpush1.msra.mxu0 %v4113
        %4556 = vmatprep.subr.mxu0 0.0
        %4557 = vmatpush1.msra.mxu0 %v4114
        %4558 = vmatprep.subr.mxu0 0.0
        %4559 = vmatpush1.msra.mxu0 %v4115
        %4560 = vmatprep.subr.mxu0 0.0
        %4561 = vmatpush1.msra.mxu0 %v4116
        %4562 = vmatprep.subr.mxu0 0.0
        %4563 = vmatpush1.msra.mxu0 %v4117
        %4564 = vmatprep.subr.mxu0 0.0
        %4565 = vmatpush1.msra.mxu0 0.0
        %4566 = vmatprep.subr.mxu0 0.0
        %4567 = vmatpush1.msra.mxu0 0.0
        %4568 = vmatprep.subr.mxu0 0.0
        %4569 = vmatpush1.msra.mxu0 0.0
        %4570 = vmatprep.subr.mxu0 0.0
        %4571 = vmatpush1.msra.mxu0 0.0
        %4572 = vmatprep.subr.mxu0 0.0
        %4573 = vmatpush1.msra.mxu0 0.0
        %4574 = vmatprep.subr.mxu0 0.0
        %4575 = vmatpush1.msra.mxu0 0.0
        %4576 = vmatprep.subr.mxu0 0.0
        %4577 = vmatpush1.msra.mxu0 0.0
        %4578 = vmatprep.subr.mxu0 0.0
        %4579 = vmatpush1.msra.mxu0 0.0
        %4580 = vmatprep.subr.mxu0 0.0
        %4581 = vmatpush1.msra.mxu0 0.0
        %4582 = vmatprep.subr.mxu0 0.0
        %4583 = vmatpush1.msra.mxu0 0.0
        %4584 = vmatprep.subr.mxu0 0.0
        %4585 = vmatpush1.msra.mxu0 0.0
        %4586 = vmatprep.subr.mxu0 0.0
        %4587 = vmatpush1.msra.mxu0 0.0
        %4588 = vmatprep.subr.mxu0 0.0
        %4589 = vmatpush1.msra.mxu0 0.0
        %4590 = vmatprep.subr.mxu0 0.0
        %4591 = vmatpush1.msra.mxu0 0.0
        %4592 = vmatprep.subr.mxu0 0.0
        %4593 = vmatpush1.msra.mxu0 0.0
        %4594 = vmatprep.subr.mxu0 0.0
        %4595 = vmatpush1.msra.mxu0 0.0
        %4596 = vmatprep.subr.mxu0 0.0
        %4597 = vmatpush1.msra.mxu0 0.0
        %4598 = vmatprep.subr.mxu0 0.0
        %4599 = vmatpush1.msra.mxu0 0.0
        %4600 = vmatprep.subr.mxu0 0.0
        %4601 = vmatpush1.msra.mxu0 0.0
        %4602 = vmatprep.subr.mxu0 0.0
        %4603 = vmatpush1.msra.mxu0 0.0
        %4604 = vmatprep.subr.mxu0 0.0
        %4605 = vmatpush1.msra.mxu0 0.0
        %4606 = vmatprep.subr.mxu0 0.0
        %4607 = vmatpush1.msra.mxu0 0.0
        %4608 = vmatprep.subr.mxu0 0.0
        %4609 = vmatpush1.msra.mxu0 0.0
        %4610 = vmatprep.subr.mxu0 0.0
        %4611 = vmatpush1.msra.mxu0 0.0
        %4612 = vmatprep.subr.mxu0 0.0
        %4613 = vmatpush1.msra.mxu0 0.0
        %4614 = vmatprep.subr.mxu0 0.0
        %4615 = vmatpush1.msra.mxu0 0.0
        %4616 = vmatprep.subr.mxu0 0.0
        %4617 = vmatpush1.msra.mxu0 0.0
        %4618 = vmatprep.mubr.f32.mxu0 0.0
        %4619 = vmatmul.mubr.f32.gmra.mrb[0].mxu0 %v4180
        %v4620 = vpop.f32.mrb[0].mxu0
        %v4621 = vadd.f32 0.0, %v4620
        %v4622 = vpop.f32.mrb[0].mxu0
        %4623 = vmatprep.mubr.f32.mxu0 0.0
        %4624 = vmatmul.mubr.f32.gmra.mrb[0].mxu0 %v4183
        %v4625 = vpop.f32.mrb[0].mxu0
        %v4626 = vadd.f32 0.0, %v4625
        %v4627 = vpop.f32.mrb[0].mxu0
        %4628 = vmatprep.mubr.f32.mxu0 0.0
        %4629 = vmatmul.mubr.f32.gmra.mrb[0].mxu0 %v4186
        %v4630 = vpop.f32.mrb[0].mxu0
        %v4631 = vadd.f32 0.0, %v4630
        %v4632 = vpop.f32.mrb[0].mxu0
        %4633 = vmatprep.mubr.f32.mxu0 0.0
        %4634 = vmatmul.mubr.f32.gmra.mrb[0].mxu0 %v4189
        %v4635 = vpop.f32.mrb[0].mxu0
        %v4636 = vadd.f32 0.0, %v4635
        %v4637 = vpop.f32.mrb[0].mxu0
        %4638 = vmatprep.mubr.f32.mxu0 0.0
        %4639 = vmatmul.mubr.f32.gmra.mrb[0].mxu0 %v4192
        %v4640 = vpop.f32.mrb[0].mxu0
        %v4641 = vadd.f32 0.0, %v4640
        %v4642 = vpop.f32.mrb[0].mxu0
        %4643 = vdwg.mxu0
        %4644 = vmatprep.subr.mxu0 0.0
        %4645 = vmatpush1.msra.mxu0 %v4118
        %4646 = vmatprep.subr.mxu0 0.0
        %4647 = vmatpush1.msra.mxu0 %v4119
        %4648 = vmatprep.subr.mxu0 0.0
        %4649 = vmatpush1.msra.mxu0 %v4120
        %4650 = vmatprep.subr.mxu0 0.0
        %4651 = vmatpush1.msra.mxu0 %v4121
        %4652 = vmatprep.subr.mxu0 0.0
        %4653 = vmatpush1.msra.mxu0 %v4122
        %4654 = vmatprep.subr.mxu0 0.0
        %4655 = vmatpush1.msra.mxu0 0.0
        %4656 = vmatprep.subr.mxu0 0.0
        %4657 = vmatpush1.msra.mxu0 0.0
        %4658 = vmatprep.subr.mxu0 0.0
        %4659 = vmatpush1.msra.mxu0 0.0
        %4660 = vmatprep.subr.mxu0 0.0
        %4661 = vmatpush1.msra.mxu0 0.0
        %4662 = vmatprep.subr.mxu0 0.0
        %4663 = vmatpush1.msra.mxu0 0.0
        %4664 = vmatprep.subr.mxu0 0.0
        %4665 = vmatpush1.msra.mxu0 0.0
        %4666 = vmatprep.subr.mxu0 0.0
        %4667 = vmatpush1.msra.mxu0 0.0
        %4668 = vmatprep.subr.mxu0 0.0
        %4669 = vmatpush1.msra.mxu0 0.0
        %4670 = vmatprep.subr.mxu0 0.0
        %4671 = vmatpush1.msra.mxu0 0.0
        %4672 = vmatprep.subr.mxu0 0.0
        %4673 = vmatpush1.msra.mxu0 0.0
        %4674 = vmatprep.subr.mxu0 0.0
        %4675 = vmatpush1.msra.mxu0 0.0
        %4676 = vmatprep.subr.mxu0 0.0
        %4677 = vmatpush1.msra.mxu0 0.0
        %4678 = vmatprep.subr.mxu0 0.0
        %4679 = vmatpush1.msra.mxu0 0.0
        %4680 = vmatprep.subr.mxu0 0.0
        %4681 = vmatpush1.msra.mxu0 0.0
        %4682 = vmatprep.subr.mxu0 0.0
        %4683 = vmatpush1.msra.mxu0 0.0
        %4684 = vmatprep.subr.mxu0 0.0
        %4685 = vmatpush1.msra.mxu0 0.0
        %4686 = vmatprep.subr.mxu0 0.0
        %4687 = vmatpush1.msra.mxu0 0.0
        %4688 = vmatprep.subr.mxu0 0.0
        %4689 = vmatpush1.msra.mxu0 0.0
        %4690 = vmatprep.subr.mxu0 0.0
        %4691 = vmatpush1.msra.mxu0 0.0
        %4692 = vmatprep.subr.mxu0 0.0
        %4693 = vmatpush1.msra.mxu0 0.0
        %4694 = vmatprep.subr.mxu0 0.0
        %4695 = vmatpush1.msra.mxu0 0.0
        %4696 = vmatprep.subr.mxu0 0.0
        %4697 = vmatpush1.msra.mxu0 0.0
        %4698 = vmatprep.subr.mxu0 0.0
        %4699 = vmatpush1.msra.mxu0 0.0
        %4700 = vmatprep.subr.mxu0 0.0
        %4701 = vmatpush1.msra.mxu0 0.0
        %4702 = vmatprep.subr.mxu0 0.0
        %4703 = vmatpush1.msra.mxu0 0.0
        %4704 = vmatprep.subr.mxu0 0.0
        %4705 = vmatpush1.msra.mxu0 0.0
        %4706 = vmatprep.subr.mxu0 0.0
        %4707 = vmatpush1.msra.mxu0 0.0
        %4708 = vmatprep.mubr.f32.mxu0 0.0
        %4709 = vmatmul.mubr.f32.gmra.mrb[0].mxu0 %v4180
        %v4710 = vpop.f32.mrb[0].mxu0
        %v4711 = vadd.f32 0.0, %v4710
        %v4712 = vpop.f32.mrb[0].mxu0
        %4713 = vmatprep.mubr.f32.mxu0 0.0
        %4714 = vmatmul.mubr.f32.gmra.mrb[0].mxu0 %v4183
        %v4715 = vpop.f32.mrb[0].mxu0
        %v4716 = vadd.f32 0.0, %v4715
        %v4717 = vpop.f32.mrb[0].mxu0
        %4718 = vmatprep.mubr.f32.mxu0 0.0
        %4719 = vmatmul.mubr.f32.gmra.mrb[0].mxu0 %v4186
        %v4720 = vpop.f32.mrb[0].mxu0
        %v4721 = vadd.f32 0.0, %v4720
        %v4722 = vpop.f32.mrb[0].mxu0
        %4723 = vmatprep.mubr.f32.mxu0 0.0
        %4724 = vmatmul.mubr.f32.gmra.mrb[0].mxu0 %v4189
        %v4725 = vpop.f32.mrb[0].mxu0
        %v4726 = vadd.f32 0.0, %v4725
        %v4727 = vpop.f32.mrb[0].mxu0
        %4728 = vmatprep.mubr.f32.mxu0 0.0
        %4729 = vmatmul.mubr.f32.gmra.mrb[0].mxu0 %v4192
        %v4730 = vpop.f32.mrb[0].mxu0
        %v4731 = vadd.f32 0.0, %v4730
        %v4732 = vpop.f32.mrb[0].mxu0
        %4733 = vdwg.mxu0
        %4734 = vmatprep.subr.mxu0 0.0
        %4735 = vmatpush1.msra.mxu0 %v4123
        %4736 = vmatprep.subr.mxu0 0.0
        %4737 = vmatpush1.msra.mxu0 %v4124
        %4738 = vmatprep.subr.mxu0 0.0
        %4739 = vmatpush1.msra.mxu0 %v4125
        %4740 = vmatprep.subr.mxu0 0.0
        %4741 = vmatpush1.msra.mxu0 %v4126
        %4742 = vmatprep.subr.mxu0 0.0
        %4743 = vmatpush1.msra.mxu0 %v4127
        %4744 = vmatprep.subr.mxu0 0.0
        %4745 = vmatpush1.msra.mxu0 0.0
        %4746 = vmatprep.subr.mxu0 0.0
        %4747 = vmatpush1.msra.mxu0 0.0
        %4748 = vmatprep.subr.mxu0 0.0
        %4749 = vmatpush1.msra.mxu0 0.0
        %4750 = vmatprep.subr.mxu0 0.0
        %4751 = vmatpush1.msra.mxu0 0.0
        %4752 = vmatprep.subr.mxu0 0.0
        %4753 = vmatpush1.msra.mxu0 0.0
        %4754 = vmatprep.subr.mxu0 0.0
        %4755 = vmatpush1.msra.mxu0 0.0
        %4756 = vmatprep.subr.mxu0 0.0
        %4757 = vmatpush1.msra.mxu0 0.0
        %4758 = vmatprep.subr.mxu0 0.0
        %4759 = vmatpush1.msra.mxu0 0.0
        %4760 = vmatprep.subr.mxu0 0.0
        %4761 = vmatpush1.msra.mxu0 0.0
        %4762 = vmatprep.subr.mxu0 0.0
        %4763 = vmatpush1.msra.mxu0 0.0
        %4764 = vmatprep.subr.mxu0 0.0
        %4765 = vmatpush1.msra.mxu0 0.0
        %4766 = vmatprep.subr.mxu0 0.0
        %4767 = vmatpush1.msra.mxu0 0.0
        %4768 = vmatprep.subr.mxu0 0.0
        %4769 = vmatpush1.msra.mxu0 0.0
        %4770 = vmatprep.subr.mxu0 0.0
        %4771 = vmatpush1.msra.mxu0 0.0
        %4772 = vmatprep.subr.mxu0 0.0
        %4773 = vmatpush1.msra.mxu0 0.0
        %4774 = vmatprep.subr.mxu0 0.0
        %4775 = vmatpush1.msra.mxu0 0.0
        %4776 = vmatprep.subr.mxu0 0.0
        %4777 = vmatpush1.msra.mxu0 0.0
        %4778 = vmatprep.subr.mxu0 0.0
        %4779 = vmatpush1.msra.mxu0 0.0
        %4780 = vmatprep.subr.mxu0 0.0
        %4781 = vmatpush1.msra.mxu0 0.0
        %4782 = vmatprep.subr.mxu0 0.0
        %4783 = vmatpush1.msra.mxu0 0.0
        %4784 = vmatprep.subr.mxu0 0.0
        %4785 = vmatpush1.msra.mxu0 0.0
        %4786 = vmatprep.subr.mxu0 0.0
        %4787 = vmatpush1.msra.mxu0 0.0
        %4788 = vmatprep.subr.mxu0 0.0
        %4789 = vmatpush1.msra.mxu0 0.0
        %4790 = vmatprep.subr.mxu0 0.0
        %4791 = vmatpush1.msra.mxu0 0.0
        %4792 = vmatprep.subr.mxu0 0.0
        %4793 = vmatpush1.msra.mxu0 0.0
        %4794 = vmatprep.subr.mxu0 0.0
        %4795 = vmatpush1.msra.mxu0 0.0
        %4796 = vmatprep.subr.mxu0 0.0
        %4797 = vmatpush1.msra.mxu0 0.0
        %4798 = vmatprep.mubr.f32.mxu0 0.0
        %4799 = vmatmul.mubr.f32.gmra.mrb[0].mxu0 %v4180
        %v4800 = vpop.f32.mrb[0].mxu0
        %v4801 = vadd.f32 0.0, %v4800
        %v4802 = vpop.f32.mrb[0].mxu0
        %4803 = vmatprep.mubr.f32.mxu0 0.0
        %4804 = vmatmul.mubr.f32.gmra.mrb[0].mxu0 %v4183
        %v4805 = vpop.f32.mrb[0].mxu0
        %v4806 = vadd.f32 0.0, %v4805
        %v4807 = vpop.f32.mrb[0].mxu0
        %4808 = vmatprep.mubr.f32.mxu0 0.0
        %4809 = vmatmul.mubr.f32.gmra.mrb[0].mxu0 %v4186
        %v4810 = vpop.f32.mrb[0].mxu0
        %v4811 = vadd.f32 0.0, %v4810
        %v4812 = vpop.f32.mrb[0].mxu0
        %4813 = vmatprep.mubr.f32.mxu0 0.0
        %4814 = vmatmul.mubr.f32.gmra.mrb[0].mxu0 %v4189
        %v4815 = vpop.f32.mrb[0].mxu0
        %v4816 = vadd.f32 0.0, %v4815
        %v4817 = vpop.f32.mrb[0].mxu0
        %4818 = vmatprep.mubr.f32.mxu0 0.0
        %4819 = vmatmul.mubr.f32.gmra.mrb[0].mxu0 %v4192
        %v4820 = vpop.f32.mrb[0].mxu0
        %v4821 = vadd.f32 0.0, %v4820
        %v4822 = vpop.f32.mrb[0].mxu0
        %4823 = vdwg.mxu0
        %4824 = vmatprep.subr.mxu0 0.0
        %4825 = vmatpush1.msra.mxu0 %v4128
        %4826 = vmatprep.subr.mxu0 0.0
        %4827 = vmatpush1.msra.mxu0 %v4129
        %4828 = vmatprep.subr.mxu0 0.0
        %4829 = vmatpush1.msra.mxu0 %v4130
        %4830 = vmatprep.subr.mxu0 0.0
        %4831 = vmatpush1.msra.mxu0 %v4131
        %4832 = vmatprep.subr.mxu0 0.0
        %4833 = vmatpush1.msra.mxu0 %v4132
        %4834 = vmatprep.subr.mxu0 0.0
        %4835 = vmatpush1.msra.mxu0 0.0
        %4836 = vmatprep.subr.mxu0 0.0
        %4837 = vmatpush1.msra.mxu0 0.0
        %4838 = vmatprep.subr.mxu0 0.0
        %4839 = vmatpush1.msra.mxu0 0.0
        %4840 = vmatprep.subr.mxu0 0.0
        %4841 = vmatpush1.msra.mxu0 0.0
        %4842 = vmatprep.subr.mxu0 0.0
        %4843 = vmatpush1.msra.mxu0 0.0
        %4844 = vmatprep.subr.mxu0 0.0
        %4845 = vmatpush1.msra.mxu0 0.0
        %4846 = vmatprep.subr.mxu0 0.0
        %4847 = vmatpush1.msra.mxu0 0.0
        %4848 = vmatprep.subr.mxu0 0.0
        %4849 = vmatpush1.msra.mxu0 0.0
        %4850 = vmatprep.subr.mxu0 0.0
        %4851 = vmatpush1.msra.mxu0 0.0
        %4852 = vmatprep.subr.mxu0 0.0
        %4853 = vmatpush1.msra.mxu0 0.0
        %4854 = vmatprep.subr.mxu0 0.0
        %4855 = vmatpush1.msra.mxu0 0.0
        %4856 = vmatprep.subr.mxu0 0.0
        %4857 = vmatpush1.msra.mxu0 0.0
        %4858 = vmatprep.subr.mxu0 0.0
        %4859 = vmatpush1.msra.mxu0 0.0
        %4860 = vmatprep.subr.mxu0 0.0
        %4861 = vmatpush1.msra.mxu0 0.0
        %4862 = vmatprep.subr.mxu0 0.0
        %4863 = vmatpush1.msra.mxu0 0.0
        %4864 = vmatprep.subr.mxu0 0.0
        %4865 = vmatpush1.msra.mxu0 0.0
        %4866 = vmatprep.subr.mxu0 0.0
        %4867 = vmatpush1.msra.mxu0 0.0
        %4868 = vmatprep.subr.mxu0 0.0
        %4869 = vmatpush1.msra.mxu0 0.0
        %4870 = vmatprep.subr.mxu0 0.0
        %4871 = vmatpush1.msra.mxu0 0.0
        %4872 = vmatprep.subr.mxu0 0.0
        %4873 = vmatpush1.msra.mxu0 0.0
        %4874 = vmatprep.subr.mxu0 0.0
        %4875 = vmatpush1.msra.mxu0 0.0
        %4876 = vmatprep.subr.mxu0 0.0
        %4877 = vmatpush1.msra.mxu0 0.0
        %4878 = vmatprep.subr.mxu0 0.0
        %4879 = vmatpush1.msra.mxu0 0.0
        %4880 = vmatprep.subr.mxu0 0.0
        %4881 = vmatpush1.msra.mxu0 0.0
        %4882 = vmatprep.subr.mxu0 0.0
        %4883 = vmatpush1.msra.mxu0 0.0
        %4884 = vmatprep.subr.mxu0 0.0
        %4885 = vmatpush1.msra.mxu0 0.0
        %4886 = vmatprep.subr.mxu0 0.0
        %4887 = vmatpush1.msra.mxu0 0.0
        %4888 = vmatprep.mubr.f32.mxu0 0.0
        %4889 = vmatmul.mubr.f32.gmra.mrb[0].mxu0 %v4180
        %v4890 = vpop.f32.mrb[0].mxu0
        %v4891 = vadd.f32 0.0, %v4890
        %v4892 = vpop.f32.mrb[0].mxu0
        %4893 = vmatprep.mubr.f32.mxu0 0.0
        %4894 = vmatmul.mubr.f32.gmra.mrb[0].mxu0 %v4183
        %v4895 = vpop.f32.mrb[0].mxu0
        %v4896 = vadd.f32 0.0, %v4895
        %v4897 = vpop.f32.mrb[0].mxu0
        %4898 = vmatprep.mubr.f32.mxu0 0.0
        %4899 = vmatmul.mubr.f32.gmra.mrb[0].mxu0 %v4186
        %v4900 = vpop.f32.mrb[0].mxu0
        %v4901 = vadd.f32 0.0, %v4900
        %v4902 = vpop.f32.mrb[0].mxu0
        %4903 = vmatprep.mubr.f32.mxu0 0.0
        %4904 = vmatmul.mubr.f32.gmra.mrb[0].mxu0 %v4189
        %v4905 = vpop.f32.mrb[0].mxu0
        %v4906 = vadd.f32 0.0, %v4905
        %v4907 = vpop.f32.mrb[0].mxu0
        %4908 = vmatprep.mubr.f32.mxu0 0.0
        %4909 = vmatmul.mubr.f32.gmra.mrb[0].mxu0 %v4192
        %v4910 = vpop.f32.mrb[0].mxu0
        %v4911 = vadd.f32 0.0, %v4910
        %v4912 = vpop.f32.mrb[0].mxu0
        %4913 = vdwg.mxu0
        %4914 = vmatprep.subr.mxu0 0.0
        %4915 = vmatpush1.msra.mxu0 %v4133
        %4916 = vmatprep.subr.mxu0 0.0
        %4917 = vmatpush1.msra.mxu0 %v4134
        %4918 = vmatprep.subr.mxu0 0.0
        %4919 = vmatpush1.msra.mxu0 %v4135
        %4920 = vmatprep.subr.mxu0 0.0
        %4921 = vmatpush1.msra.mxu0 %v4136
        %4922 = vmatprep.subr.mxu0 0.0
        %4923 = vmatpush1.msra.mxu0 %v4137
        %4924 = vmatprep.subr.mxu0 0.0
        %4925 = vmatpush1.msra.mxu0 0.0
        %4926 = vmatprep.subr.mxu0 0.0
        %4927 = vmatpush1.msra.mxu0 0.0
        %4928 = vmatprep.subr.mxu0 0.0
        %4929 = vmatpush1.msra.mxu0 0.0
        %4930 = vmatprep.subr.mxu0 0.0
        %4931 = vmatpush1.msra.mxu0 0.0
        %4932 = vmatprep.subr.mxu0 0.0
        %4933 = vmatpush1.msra.mxu0 0.0
        %4934 = vmatprep.subr.mxu0 0.0
        %4935 = vmatpush1.msra.mxu0 0.0
        %4936 = vmatprep.subr.mxu0 0.0
        %4937 = vmatpush1.msra.mxu0 0.0
        %4938 = vmatprep.subr.mxu0 0.0
        %4939 = vmatpush1.msra.mxu0 0.0
        %4940 = vmatprep.subr.mxu0 0.0
        %4941 = vmatpush1.msra.mxu0 0.0
        %4942 = vmatprep.subr.mxu0 0.0
        %4943 = vmatpush1.msra.mxu0 0.0
        %4944 = vmatprep.subr.mxu0 0.0
        %4945 = vmatpush1.msra.mxu0 0.0
        %4946 = vmatprep.subr.mxu0 0.0
        %4947 = vmatpush1.msra.mxu0 0.0
        %4948 = vmatprep.subr.mxu0 0.0
        %4949 = vmatpush1.msra.mxu0 0.0
        %4950 = vmatprep.subr.mxu0 0.0
        %4951 = vmatpush1.msra.mxu0 0.0
        %4952 = vmatprep.subr.mxu0 0.0
        %4953 = vmatpush1.msra.mxu0 0.0
        %4954 = vmatprep.subr.mxu0 0.0
        %4955 = vmatpush1.msra.mxu0 0.0
        %4956 = vmatprep.subr.mxu0 0.0
        %4957 = vmatpush1.msra.mxu0 0.0
        %4958 = vmatprep.subr.mxu0 0.0
        %4959 = vmatpush1.msra.mxu0 0.0
        %4960 = vmatprep.subr.mxu0 0.0
        %4961 = vmatpush1.msra.mxu0 0.0
        %4962 = vmatprep.subr.mxu0 0.0
        %4963 = vmatpush1.msra.mxu0 0.0
        %4964 = vmatprep.subr.mxu0 0.0
        %4965 = vmatpush1.msra.mxu0 0.0
        %4966 = vmatprep.subr.mxu0 0.0
        %4967 = vmatpush1.msra.mxu0 0.0
        %4968 = vmatprep.subr.mxu0 0.0
        %4969 = vmatpush1.msra.mxu0 0.0
        %4970 = vmatprep.subr.mxu0 0.0
        %4971 = vmatpush1.msra.mxu0 0.0
        %4972 = vmatprep.subr.mxu0 0.0
        %4973 = vmatpush1.msra.mxu0 0.0
        %4974 = vmatprep.subr.mxu0 0.0
        %4975 = vmatpush1.msra.mxu0 0.0
        %4976 = vmatprep.subr.mxu0 0.0
        %4977 = vmatpush1.msra.mxu0 0.0
        %4978 = vmatprep.mubr.f32.mxu0 0.0
        %4979 = vmatmul.mubr.f32.gmra.mrb[0].mxu0 %v4180
        %v4980 = vpop.f32.mrb[0].mxu0
        %v4981 = vadd.f32 0.0, %v4980
        %v4982 = vpop.f32.mrb[0].mxu0
        %4983 = vmatprep.mubr.f32.mxu0 0.0
        %4984 = vmatmul.mubr.f32.gmra.mrb[0].mxu0 %v4183
        %v4985 = vpop.f32.mrb[0].mxu0
        %v4986 = vadd.f32 0.0, %v4985
        %v4987 = vpop.f32.mrb[0].mxu0
        %4988 = vmatprep.mubr.f32.mxu0 0.0
        %4989 = vmatmul.mubr.f32.gmra.mrb[0].mxu0 %v4186
        %v4990 = vpop.f32.mrb[0].mxu0
        %v4991 = vadd.f32 0.0, %v4990
        %v4992 = vpop.f32.mrb[0].mxu0
        %4993 = vmatprep.mubr.f32.mxu0 0.0
        %4994 = vmatmul.mubr.f32.gmra.mrb[0].mxu0 %v4189
        %v4995 = vpop.f32.mrb[0].mxu0
        %v4996 = vadd.f32 0.0, %v4995
        %v4997 = vpop.f32.mrb[0].mxu0
        %4998 = vmatprep.mubr.f32.mxu0 0.0
        %4999 = vmatmul.mubr.f32.gmra.mrb[0].mxu0 %v4192
        %v5000 = vpop.f32.mrb[0].mxu0
        %v5001 = vadd.f32 0.0, %v5000
        %v5002 = vpop.f32.mrb[0].mxu0
        %5003 = vdwg.mxu0
        %5004 = vmatprep.subr.mxu0 0.0
        %5005 = vmatpush1.msra.mxu0 %v4138
        %5006 = vmatprep.subr.mxu0 0.0
        %5007 = vmatpush1.msra.mxu0 %v4139
        %5008 = vmatprep.subr.mxu0 0.0
        %5009 = vmatpush1.msra.mxu0 %v4140
        %5010 = vmatprep.subr.mxu0 0.0
        %5011 = vmatpush1.msra.mxu0 %v4141
        %5012 = vmatprep.subr.mxu0 0.0
        %5013 = vmatpush1.msra.mxu0 %v4142
        %5014 = vmatprep.subr.mxu0 0.0
        %5015 = vmatpush1.msra.mxu0 0.0
        %5016 = vmatprep.subr.mxu0 0.0
        %5017 = vmatpush1.msra.mxu0 0.0
        %5018 = vmatprep.subr.mxu0 0.0
        %5019 = vmatpush1.msra.mxu0 0.0
        %5020 = vmatprep.subr.mxu0 0.0
        %5021 = vmatpush1.msra.mxu0 0.0
        %5022 = vmatprep.subr.mxu0 0.0
        %5023 = vmatpush1.msra.mxu0 0.0
        %5024 = vmatprep.subr.mxu0 0.0
        %5025 = vmatpush1.msra.mxu0 0.0
        %5026 = vmatprep.subr.mxu0 0.0
        %5027 = vmatpush1.msra.mxu0 0.0
        %5028 = vmatprep.subr.mxu0 0.0
        %5029 = vmatpush1.msra.mxu0 0.0
        %5030 = vmatprep.subr.mxu0 0.0
        %5031 = vmatpush1.msra.mxu0 0.0
        %5032 = vmatprep.subr.mxu0 0.0
        %5033 = vmatpush1.msra.mxu0 0.0
        %5034 = vmatprep.subr.mxu0 0.0
        %5035 = vmatpush1.msra.mxu0 0.0
        %5036 = vmatprep.subr.mxu0 0.0
        %5037 = vmatpush1.msra.mxu0 0.0
        %5038 = vmatprep.subr.mxu0 0.0
        %5039 = vmatpush1.msra.mxu0 0.0
        %5040 = vmatprep.subr.mxu0 0.0
        %5041 = vmatpush1.msra.mxu0 0.0
        %5042 = vmatprep.subr.mxu0 0.0
        %5043 = vmatpush1.msra.mxu0 0.0
        %5044 = vmatprep.subr.mxu0 0.0
        %5045 = vmatpush1.msra.mxu0 0.0
        %5046 = vmatprep.subr.mxu0 0.0
        %5047 = vmatpush1.msra.mxu0 0.0
        %5048 = vmatprep.subr.mxu0 0.0
        %5049 = vmatpush1.msra.mxu0 0.0
        %5050 = vmatprep.subr.mxu0 0.0
        %5051 = vmatpush1.msra.mxu0 0.0
        %5052 = vmatprep.subr.mxu0 0.0
        %5053 = vmatpush1.msra.mxu0 0.0
        %5054 = vmatprep.subr.mxu0 0.0
        %5055 = vmatpush1.msra.mxu0 0.0
        %5056 = vmatprep.subr.mxu0 0.0
        %5057 = vmatpush1.msra.mxu0 0.0
        %5058 = vmatprep.subr.mxu0 0.0
        %5059 = vmatpush1.msra.mxu0 0.0
        %5060 = vmatprep.subr.mxu0 0.0
        %5061 = vmatpush1.msra.mxu0 0.0
        %5062 = vmatprep.subr.mxu0 0.0
        %5063 = vmatpush1.msra.mxu0 0.0
        %5064 = vmatprep.subr.mxu0 0.0
        %5065 = vmatpush1.msra.mxu0 0.0
        %5066 = vmatprep.subr.mxu0 0.0
        %5067 = vmatpush1.msra.mxu0 0.0
        %5068 = vmatprep.mubr.f32.mxu0 0.0
        %5069 = vmatmul.mubr.f32.gmra.mrb[0].mxu0 %v4180
        %v5070 = vpop.f32.mrb[0].mxu0
        %v5071 = vadd.f32 0.0, %v5070
        %v5072 = vpop.f32.mrb[0].mxu0
        %5073 = vmatprep.mubr.f32.mxu0 0.0
        %5074 = vmatmul.mubr.f32.gmra.mrb[0].mxu0 %v4183
        %v5075 = vpop.f32.mrb[0].mxu0
        %v5076 = vadd.f32 0.0, %v5075
        %v5077 = vpop.f32.mrb[0].mxu0
        %5078 = vmatprep.mubr.f32.mxu0 0.0
        %5079 = vmatmul.mubr.f32.gmra.mrb[0].mxu0 %v4186
        %v5080 = vpop.f32.mrb[0].mxu0
        %v5081 = vadd.f32 0.0, %v5080
        %v5082 = vpop.f32.mrb[0].mxu0
        %5083 = vmatprep.mubr.f32.mxu0 0.0
        %5084 = vmatmul.mubr.f32.gmra.mrb[0].mxu0 %v4189
        %v5085 = vpop.f32.mrb[0].mxu0
        %v5086 = vadd.f32 0.0, %v5085
        %v5087 = vpop.f32.mrb[0].mxu0
        %5088 = vmatprep.mubr.f32.mxu0 0.0
        %5089 = vmatmul.mubr.f32.gmra.mrb[0].mxu0 %v4192
        %v5090 = vpop.f32.mrb[0].mxu0
        %v5091 = vadd.f32 0.0, %v5090
        %v5092 = vpop.f32.mrb[0].mxu0
        %5093 = vdwg.mxu0
        %5094 = vmatprep.subr.mxu0 0.0
        %5095 = vmatpush1.msra.mxu0 %v4143
        %5096 = vmatprep.subr.mxu0 0.0
        %5097 = vmatpush1.msra.mxu0 %v4144
        %5098 = vmatprep.subr.mxu0 0.0
        %5099 = vmatpush1.msra.mxu0 %v4145
        %5100 = vmatprep.subr.mxu0 0.0
        %5101 = vmatpush1.msra.mxu0 %v4146
        %5102 = vmatprep.subr.mxu0 0.0
        %5103 = vmatpush1.msra.mxu0 %v4147
        %5104 = vmatprep.subr.mxu0 0.0
        %5105 = vmatpush1.msra.mxu0 0.0
        %5106 = vmatprep.subr.mxu0 0.0
        %5107 = vmatpush1.msra.mxu0 0.0
        %5108 = vmatprep.subr.mxu0 0.0
        %5109 = vmatpush1.msra.mxu0 0.0
        %5110 = vmatprep.subr.mxu0 0.0
        %5111 = vmatpush1.msra.mxu0 0.0
        %5112 = vmatprep.subr.mxu0 0.0
        %5113 = vmatpush1.msra.mxu0 0.0
        %5114 = vmatprep.subr.mxu0 0.0
        %5115 = vmatpush1.msra.mxu0 0.0
        %5116 = vmatprep.subr.mxu0 0.0
        %5117 = vmatpush1.msra.mxu0 0.0
        %5118 = vmatprep.subr.mxu0 0.0
        %5119 = vmatpush1.msra.mxu0 0.0
        %5120 = vmatprep.subr.mxu0 0.0
        %5121 = vmatpush1.msra.mxu0 0.0
        %5122 = vmatprep.subr.mxu0 0.0
        %5123 = vmatpush1.msra.mxu0 0.0
        %5124 = vmatprep.subr.mxu0 0.0
        %5125 = vmatpush1.msra.mxu0 0.0
        %5126 = vmatprep.subr.mxu0 0.0
        %5127 = vmatpush1.msra.mxu0 0.0
        %5128 = vmatprep.subr.mxu0 0.0
        %5129 = vmatpush1.msra.mxu0 0.0
        %5130 = vmatprep.subr.mxu0 0.0
        %5131 = vmatpush1.msra.mxu0 0.0
        %5132 = vmatprep.subr.mxu0 0.0
        %5133 = vmatpush1.msra.mxu0 0.0
        %5134 = vmatprep.subr.mxu0 0.0
        %5135 = vmatpush1.msra.mxu0 0.0
        %5136 = vmatprep.subr.mxu0 0.0
        %5137 = vmatpush1.msra.mxu0 0.0
        %5138 = vmatprep.subr.mxu0 0.0
        %5139 = vmatpush1.msra.mxu0 0.0
        %5140 = vmatprep.subr.mxu0 0.0
        %5141 = vmatpush1.msra.mxu0 0.0
        %5142 = vmatprep.subr.mxu0 0.0
        %5143 = vmatpush1.msra.mxu0 0.0
        %5144 = vmatprep.subr.mxu0 0.0
        %5145 = vmatpush1.msra.mxu0 0.0
        %5146 = vmatprep.subr.mxu0 0.0
        %5147 = vmatpush1.msra.mxu0 0.0
        %5148 = vmatprep.subr.mxu0 0.0
        %5149 = vmatpush1.msra.mxu0 0.0
        %5150 = vmatprep.subr.mxu0 0.0
        %5151 = vmatpush1.msra.mxu0 0.0
        %5152 = vmatprep.subr.mxu0 0.0
        %5153 = vmatpush1.msra.mxu0 0.0
        %5154 = vmatprep.subr.mxu0 0.0
        %5155 = vmatpush1.msra.mxu0 0.0
        %5156 = vmatprep.subr.mxu0 0.0
        %5157 = vmatpush1.msra.mxu0 0.0
        %5158 = vmatprep.mubr.f32.mxu0 0.0
        %5159 = vmatmul.mubr.f32.gmra.mrb[0].mxu0 %v4180
        %v5160 = vpop.f32.mrb[0].mxu0
        %v5161 = vadd.f32 0.0, %v5160
        %v5162 = vpop.f32.mrb[0].mxu0
        %5163 = vmatprep.mubr.f32.mxu0 0.0
        %5164 = vmatmul.mubr.f32.gmra.mrb[0].mxu0 %v4183
        %v5165 = vpop.f32.mrb[0].mxu0
        %v5166 = vadd.f32 0.0, %v5165
        %v5167 = vpop.f32.mrb[0].mxu0
        %5168 = vmatprep.mubr.f32.mxu0 0.0
        %5169 = vmatmul.mubr.f32.gmra.mrb[0].mxu0 %v4186
        %v5170 = vpop.f32.mrb[0].mxu0
        %v5171 = vadd.f32 0.0, %v5170
        %v5172 = vpop.f32.mrb[0].mxu0
        %5173 = vmatprep.mubr.f32.mxu0 0.0
        %5174 = vmatmul.mubr.f32.gmra.mrb[0].mxu0 %v4189
        %v5175 = vpop.f32.mrb[0].mxu0
        %v5176 = vadd.f32 0.0, %v5175
        %v5177 = vpop.f32.mrb[0].mxu0
        %5178 = vmatprep.mubr.f32.mxu0 0.0
        %5179 = vmatmul.mubr.f32.gmra.mrb[0].mxu0 %v4192
        %v5180 = vpop.f32.mrb[0].mxu0
        %v5181 = vadd.f32 0.0, %v5180
        %v5182 = vpop.f32.mrb[0].mxu0
        %5183 = vdwg.mxu0
        %5184 = vmatprep.subr.mxu0 0.0
        %5185 = vmatpush1.msra.mxu0 %v4148
        %5186 = vmatprep.subr.mxu0 0.0
        %5187 = vmatpush1.msra.mxu0 %v4149
        %5188 = vmatprep.subr.mxu0 0.0
        %5189 = vmatpush1.msra.mxu0 %v4150
        %5190 = vmatprep.subr.mxu0 0.0
        %5191 = vmatpush1.msra.mxu0 %v4151
        %5192 = vmatprep.subr.mxu0 0.0
        %5193 = vmatpush1.msra.mxu0 %v4152
        %5194 = vmatprep.subr.mxu0 0.0
        %5195 = vmatpush1.msra.mxu0 0.0
        %5196 = vmatprep.subr.mxu0 0.0
        %5197 = vmatpush1.msra.mxu0 0.0
        %5198 = vmatprep.subr.mxu0 0.0
        %5199 = vmatpush1.msra.mxu0 0.0
        %5200 = vmatprep.subr.mxu0 0.0
        %5201 = vmatpush1.msra.mxu0 0.0
        %5202 = vmatprep.subr.mxu0 0.0
        %5203 = vmatpush1.msra.mxu0 0.0
        %5204 = vmatprep.subr.mxu0 0.0
        %5205 = vmatpush1.msra.mxu0 0.0
        %5206 = vmatprep.subr.mxu0 0.0
        %5207 = vmatpush1.msra.mxu0 0.0
        %5208 = vmatprep.subr.mxu0 0.0
        %5209 = vmatpush1.msra.mxu0 0.0
        %5210 = vmatprep.subr.mxu0 0.0
        %5211 = vmatpush1.msra.mxu0 0.0
        %5212 = vmatprep.subr.mxu0 0.0
        %5213 = vmatpush1.msra.mxu0 0.0
        %5214 = vmatprep.subr.mxu0 0.0
        %5215 = vmatpush1.msra.mxu0 0.0
        %5216 = vmatprep.subr.mxu0 0.0
        %5217 = vmatpush1.msra.mxu0 0.0
        %5218 = vmatprep.subr.mxu0 0.0
        %5219 = vmatpush1.msra.mxu0 0.0
        %5220 = vmatprep.subr.mxu0 0.0
        %5221 = vmatpush1.msra.mxu0 0.0
        %5222 = vmatprep.subr.mxu0 0.0
        %5223 = vmatpush1.msra.mxu0 0.0
        %5224 = vmatprep.subr.mxu0 0.0
        %5225 = vmatpush1.msra.mxu0 0.0
        %5226 = vmatprep.subr.mxu0 0.0
        %5227 = vmatpush1.msra.mxu0 0.0
        %5228 = vmatprep.subr.mxu0 0.0
        %5229 = vmatpush1.msra.mxu0 0.0
        %5230 = vmatprep.subr.mxu0 0.0
        %5231 = vmatpush1.msra.mxu0 0.0
        %5232 = vmatprep.subr.mxu0 0.0
        %5233 = vmatpush1.msra.mxu0 0.0
        %5234 = vmatprep.subr.mxu0 0.0
        %5235 = vmatpush1.msra.mxu0 0.0
        %5236 = vmatprep.subr.mxu0 0.0
        %5237 = vmatpush1.msra.mxu0 0.0
        %5238 = vmatprep.subr.mxu0 0.0
        %5239 = vmatpush1.msra.mxu0 0.0
        %5240 = vmatprep.subr.mxu0 0.0
        %5241 = vmatpush1.msra.mxu0 0.0
        %5242 = vmatprep.subr.mxu0 0.0
        %5243 = vmatpush1.msra.mxu0 0.0
        %5244 = vmatprep.subr.mxu0 0.0
        %5245 = vmatpush1.msra.mxu0 0.0
        %5246 = vmatprep.subr.mxu0 0.0
        %5247 = vmatpush1.msra.mxu0 0.0
        %5248 = vmatprep.mubr.f32.mxu0 0.0
        %5249 = vmatmul.mubr.f32.gmra.mrb[0].mxu0 %v4180
        %v5250 = vpop.f32.mrb[0].mxu0
        %v5251 = vadd.f32 0.0, %v5250
        %v5252 = vpop.f32.mrb[0].mxu0
        %5253 = vmatprep.mubr.f32.mxu0 0.0
        %5254 = vmatmul.mubr.f32.gmra.mrb[0].mxu0 %v4183
        %v5255 = vpop.f32.mrb[0].mxu0
        %v5256 = vadd.f32 0.0, %v5255
        %v5257 = vpop.f32.mrb[0].mxu0
        %5258 = vmatprep.mubr.f32.mxu0 0.0
        %5259 = vmatmul.mubr.f32.gmra.mrb[0].mxu0 %v4186
        %v5260 = vpop.f32.mrb[0].mxu0
        %v5261 = vadd.f32 0.0, %v5260
        %v5262 = vpop.f32.mrb[0].mxu0
        %5263 = vmatprep.mubr.f32.mxu0 0.0
        %5264 = vmatmul.mubr.f32.gmra.mrb[0].mxu0 %v4189
        %v5265 = vpop.f32.mrb[0].mxu0
        %v5266 = vadd.f32 0.0, %v5265
        %v5267 = vpop.f32.mrb[0].mxu0
        %5268 = vmatprep.mubr.f32.mxu0 0.0
        %5269 = vmatmul.mubr.f32.gmra.mrb[0].mxu0 %v4192
        %v5270 = vpop.f32.mrb[0].mxu0
        %v5271 = vadd.f32 0.0, %v5270
        %v5272 = vpop.f32.mrb[0].mxu0
        %5273 = vdwg.mxu0
        %5274 = vmatprep.subr.mxu0 0.0
        %5275 = vmatpush1.msra.mxu0 %v4153
        %5276 = vmatprep.subr.mxu0 0.0
        %5277 = vmatpush1.msra.mxu0 %v4154
        %5278 = vmatprep.subr.mxu0 0.0
        %5279 = vmatpush1.msra.mxu0 %v4155
        %5280 = vmatprep.subr.mxu0 0.0
        %5281 = vmatpush1.msra.mxu0 %v4156
        %5282 = vmatprep.subr.mxu0 0.0
        %5283 = vmatpush1.msra.mxu0 %v4157
        %5284 = vmatprep.subr.mxu0 0.0
        %5285 = vmatpush1.msra.mxu0 0.0
        %5286 = vmatprep.subr.mxu0 0.0
        %5287 = vmatpush1.msra.mxu0 0.0
        %5288 = vmatprep.subr.mxu0 0.0
        %5289 = vmatpush1.msra.mxu0 0.0
        %5290 = vmatprep.subr.mxu0 0.0
        %5291 = vmatpush1.msra.mxu0 0.0
        %5292 = vmatprep.subr.mxu0 0.0
        %5293 = vmatpush1.msra.mxu0 0.0
        %5294 = vmatprep.subr.mxu0 0.0
        %5295 = vmatpush1.msra.mxu0 0.0
        %5296 = vmatprep.subr.mxu0 0.0
        %5297 = vmatpush1.msra.mxu0 0.0
        %5298 = vmatprep.subr.mxu0 0.0
        %5299 = vmatpush1.msra.mxu0 0.0
        %5300 = vmatprep.subr.mxu0 0.0
        %5301 = vmatpush1.msra.mxu0 0.0
        %5302 = vmatprep.subr.mxu0 0.0
        %5303 = vmatpush1.msra.mxu0 0.0
        %5304 = vmatprep.subr.mxu0 0.0
        %5305 = vmatpush1.msra.mxu0 0.0
        %5306 = vmatprep.subr.mxu0 0.0
        %5307 = vmatpush1.msra.mxu0 0.0
        %5308 = vmatprep.subr.mxu0 0.0
        %5309 = vmatpush1.msra.mxu0 0.0
        %5310 = vmatprep.subr.mxu0 0.0
        %5311 = vmatpush1.msra.mxu0 0.0
        %5312 = vmatprep.subr.mxu0 0.0
        %5313 = vmatpush1.msra.mxu0 0.0
        %5314 = vmatprep.subr.mxu0 0.0
        %5315 = vmatpush1.msra.mxu0 0.0
        %5316 = vmatprep.subr.mxu0 0.0
        %5317 = vmatpush1.msra.mxu0 0.0
        %5318 = vmatprep.subr.mxu0 0.0
        %5319 = vmatpush1.msra.mxu0 0.0
        %5320 = vmatprep.subr.mxu0 0.0
        %5321 = vmatpush1.msra.mxu0 0.0
        %5322 = vmatprep.subr.mxu0 0.0
        %5323 = vmatpush1.msra.mxu0 0.0
        %5324 = vmatprep.subr.mxu0 0.0
        %5325 = vmatpush1.msra.mxu0 0.0
        %5326 = vmatprep.subr.mxu0 0.0
        %5327 = vmatpush1.msra.mxu0 0.0
        %5328 = vmatprep.subr.mxu0 0.0
        %5329 = vmatpush1.msra.mxu0 0.0
        %5330 = vmatprep.subr.mxu0 0.0
        %5331 = vmatpush1.msra.mxu0 0.0
        %5332 = vmatprep.subr.mxu0 0.0
        %5333 = vmatpush1.msra.mxu0 0.0
        %5334 = vmatprep.subr.mxu0 0.0
        %5335 = vmatpush1.msra.mxu0 0.0
        %5336 = vmatprep.subr.mxu0 0.0
        %5337 = vmatpush1.msra.mxu0 0.0
        %5338 = vmatprep.mubr.f32.mxu0 0.0
        %5339 = vmatmul.mubr.f32.gmra.mrb[0].mxu0 %v4180
        %v5340 = vpop.f32.mrb[0].mxu0
        %v5341 = vadd.f32 0.0, %v5340
        %v5342 = vpop.f32.mrb[0].mxu0
        %5343 = vmatprep.mubr.f32.mxu0 0.0
        %5344 = vmatmul.mubr.f32.gmra.mrb[0].mxu0 %v4183
        %v5345 = vpop.f32.mrb[0].mxu0
        %v5346 = vadd.f32 0.0, %v5345
        %v5347 = vpop.f32.mrb[0].mxu0
        %5348 = vmatprep.mubr.f32.mxu0 0.0
        %5349 = vmatmul.mubr.f32.gmra.mrb[0].mxu0 %v4186
        %v5350 = vpop.f32.mrb[0].mxu0
        %v5351 = vadd.f32 0.0, %v5350
        %v5352 = vpop.f32.mrb[0].mxu0
        %5353 = vmatprep.mubr.f32.mxu0 0.0
        %5354 = vmatmul.mubr.f32.gmra.mrb[0].mxu0 %v4189
        %v5355 = vpop.f32.mrb[0].mxu0
        %v5356 = vadd.f32 0.0, %v5355
        %v5357 = vpop.f32.mrb[0].mxu0
        %5358 = vmatprep.mubr.f32.mxu0 0.0
        %5359 = vmatmul.mubr.f32.gmra.mrb[0].mxu0 %v4192
        %v5360 = vpop.f32.mrb[0].mxu0
        %v5361 = vadd.f32 0.0, %v5360
        %v5362 = vpop.f32.mrb[0].mxu0
        %5363 = vdwg.mxu0
        %5364 = vmatprep.subr.mxu0 0.0
        %5365 = vmatpush1.msra.mxu0 %v4158
        %5366 = vmatprep.subr.mxu0 0.0
        %5367 = vmatpush1.msra.mxu0 %v4159
        %5368 = vmatprep.subr.mxu0 0.0
        %5369 = vmatpush1.msra.mxu0 %v4160
        %5370 = vmatprep.subr.mxu0 0.0
        %5371 = vmatpush1.msra.mxu0 %v4161
        %5372 = vmatprep.subr.mxu0 0.0
        %5373 = vmatpush1.msra.mxu0 %v4162
        %5374 = vmatprep.subr.mxu0 0.0
        %5375 = vmatpush1.msra.mxu0 0.0
        %5376 = vmatprep.subr.mxu0 0.0
        %5377 = vmatpush1.msra.mxu0 0.0
        %5378 = vmatprep.subr.mxu0 0.0
        %5379 = vmatpush1.msra.mxu0 0.0
        %5380 = vmatprep.subr.mxu0 0.0
        %5381 = vmatpush1.msra.mxu0 0.0
        %5382 = vmatprep.subr.mxu0 0.0
        %5383 = vmatpush1.msra.mxu0 0.0
        %5384 = vmatprep.subr.mxu0 0.0
        %5385 = vmatpush1.msra.mxu0 0.0
        %5386 = vmatprep.subr.mxu0 0.0
        %5387 = vmatpush1.msra.mxu0 0.0
        %5388 = vmatprep.subr.mxu0 0.0
        %5389 = vmatpush1.msra.mxu0 0.0
        %5390 = vmatprep.subr.mxu0 0.0
        %5391 = vmatpush1.msra.mxu0 0.0
        %5392 = vmatprep.subr.mxu0 0.0
        %5393 = vmatpush1.msra.mxu0 0.0
        %5394 = vmatprep.subr.mxu0 0.0
        %5395 = vmatpush1.msra.mxu0 0.0
        %5396 = vmatprep.subr.mxu0 0.0
        %5397 = vmatpush1.msra.mxu0 0.0
        %5398 = vmatprep.subr.mxu0 0.0
        %5399 = vmatpush1.msra.mxu0 0.0
        %5400 = vmatprep.subr.mxu0 0.0
        %5401 = vmatpush1.msra.mxu0 0.0
        %5402 = vmatprep.subr.mxu0 0.0
        %5403 = vmatpush1.msra.mxu0 0.0
        %5404 = vmatprep.subr.mxu0 0.0
        %5405 = vmatpush1.msra.mxu0 0.0
        %5406 = vmatprep.subr.mxu0 0.0
        %5407 = vmatpush1.msra.mxu0 0.0
        %5408 = vmatprep.subr.mxu0 0.0
        %5409 = vmatpush1.msra.mxu0 0.0
        %5410 = vmatprep.subr.mxu0 0.0
        %5411 = vmatpush1.msra.mxu0 0.0
        %5412 = vmatprep.subr.mxu0 0.0
        %5413 = vmatpush1.msra.mxu0 0.0
        %5414 = vmatprep.subr.mxu0 0.0
        %5415 = vmatpush1.msra.mxu0 0.0
        %5416 = vmatprep.subr.mxu0 0.0
        %5417 = vmatpush1.msra.mxu0 0.0
        %5418 = vmatprep.subr.mxu0 0.0
        %5419 = vmatpush1.msra.mxu0 0.0
        %5420 = vmatprep.subr.mxu0 0.0
        %5421 = vmatpush1.msra.mxu0 0.0
        %5422 = vmatprep.subr.mxu0 0.0
        %5423 = vmatpush1.msra.mxu0 0.0
        %5424 = vmatprep.subr.mxu0 0.0
        %5425 = vmatpush1.msra.mxu0 0.0
        %5426 = vmatprep.subr.mxu0 0.0
        %5427 = vmatpush1.msra.mxu0 0.0
        %5428 = vmatprep.mubr.f32.mxu0 0.0
        %5429 = vmatmul.mubr.f32.gmra.mrb[0].mxu0 %v4180
        %v5430 = vpop.f32.mrb[0].mxu0
        %v5431 = vadd.f32 0.0, %v5430
        %v5432 = vpop.f32.mrb[0].mxu0
        %5433 = vmatprep.mubr.f32.mxu0 0.0
        %5434 = vmatmul.mubr.f32.gmra.mrb[0].mxu0 %v4183
        %v5435 = vpop.f32.mrb[0].mxu0
        %v5436 = vadd.f32 0.0, %v5435
        %v5437 = vpop.f32.mrb[0].mxu0
        %5438 = vmatprep.mubr.f32.mxu0 0.0
        %5439 = vmatmul.mubr.f32.gmra.mrb[0].mxu0 %v4186
        %v5440 = vpop.f32.mrb[0].mxu0
        %v5441 = vadd.f32 0.0, %v5440
        %v5442 = vpop.f32.mrb[0].mxu0
        %5443 = vmatprep.mubr.f32.mxu0 0.0
        %5444 = vmatmul.mubr.f32.gmra.mrb[0].mxu0 %v4189
        %v5445 = vpop.f32.mrb[0].mxu0
        %v5446 = vadd.f32 0.0, %v5445
        %v5447 = vpop.f32.mrb[0].mxu0
        %5448 = vmatprep.mubr.f32.mxu0 0.0
        %5449 = vmatmul.mubr.f32.gmra.mrb[0].mxu0 %v4192
        %v5450 = vpop.f32.mrb[0].mxu0
        %v5451 = vadd.f32 0.0, %v5450
        %v5452 = vpop.f32.mrb[0].mxu0
        %5453 = vdwg.mxu0
        %5454 = vmatprep.subr.mxu0 0.0
        %5455 = vmatpush1.msra.mxu0 %v4163
        %5456 = vmatprep.subr.mxu0 0.0
        %5457 = vmatpush1.msra.mxu0 %v4164
        %5458 = vmatprep.subr.mxu0 0.0
        %5459 = vmatpush1.msra.mxu0 %v4165
        %5460 = vmatprep.subr.mxu0 0.0
        %5461 = vmatpush1.msra.mxu0 %v4166
        %5462 = vmatprep.subr.mxu0 0.0
        %5463 = vmatpush1.msra.mxu0 %v4167
        %5464 = vmatprep.subr.mxu0 0.0
        %5465 = vmatpush1.msra.mxu0 0.0
        %5466 = vmatprep.subr.mxu0 0.0
        %5467 = vmatpush1.msra.mxu0 0.0
        %5468 = vmatprep.subr.mxu0 0.0
        %5469 = vmatpush1.msra.mxu0 0.0
        %5470 = vmatprep.subr.mxu0 0.0
        %5471 = vmatpush1.msra.mxu0 0.0
        %5472 = vmatprep.subr.mxu0 0.0
        %5473 = vmatpush1.msra.mxu0 0.0
        %5474 = vmatprep.subr.mxu0 0.0
        %5475 = vmatpush1.msra.mxu0 0.0
        %5476 = vmatprep.subr.mxu0 0.0
        %5477 = vmatpush1.msra.mxu0 0.0
        %5478 = vmatprep.subr.mxu0 0.0
        %5479 = vmatpush1.msra.mxu0 0.0
        %5480 = vmatprep.subr.mxu0 0.0
        %5481 = vmatpush1.msra.mxu0 0.0
        %5482 = vmatprep.subr.mxu0 0.0
        %5483 = vmatpush1.msra.mxu0 0.0
        %5484 = vmatprep.subr.mxu0 0.0
        %5485 = vmatpush1.msra.mxu0 0.0
        %5486 = vmatprep.subr.mxu0 0.0
        %5487 = vmatpush1.msra.mxu0 0.0
        %5488 = vmatprep.subr.mxu0 0.0
        %5489 = vmatpush1.msra.mxu0 0.0
        %5490 = vmatprep.subr.mxu0 0.0
        %5491 = vmatpush1.msra.mxu0 0.0
        %5492 = vmatprep.subr.mxu0 0.0
        %5493 = vmatpush1.msra.mxu0 0.0
        %5494 = vmatprep.subr.mxu0 0.0
        %5495 = vmatpush1.msra.mxu0 0.0
        %5496 = vmatprep.subr.mxu0 0.0
        %5497 = vmatpush1.msra.mxu0 0.0
        %5498 = vmatprep.subr.mxu0 0.0
        %5499 = vmatpush1.msra.mxu0 0.0
        %5500 = vmatprep.subr.mxu0 0.0
        %5501 = vmatpush1.msra.mxu0 0.0
        %5502 = vmatprep.subr.mxu0 0.0
        %5503 = vmatpush1.msra.mxu0 0.0
        %5504 = vmatprep.subr.mxu0 0.0
        %5505 = vmatpush1.msra.mxu0 0.0
        %5506 = vmatprep.subr.mxu0 0.0
        %5507 = vmatpush1.msra.mxu0 0.0
        %5508 = vmatprep.subr.mxu0 0.0
        %5509 = vmatpush1.msra.mxu0 0.0
        %5510 = vmatprep.subr.mxu0 0.0
        %5511 = vmatpush1.msra.mxu0 0.0
        %5512 = vmatprep.subr.mxu0 0.0
        %5513 = vmatpush1.msra.mxu0 0.0
        %5514 = vmatprep.subr.mxu0 0.0
        %5515 = vmatpush1.msra.mxu0 0.0
        %5516 = vmatprep.subr.mxu0 0.0
        %5517 = vmatpush1.msra.mxu0 0.0
        %5518 = vmatprep.mubr.f32.mxu0 0.0
        %5519 = vmatmul.mubr.f32.gmra.mrb[0].mxu0 %v4180
        %v5520 = vpop.f32.mrb[0].mxu0
        %v5521 = vadd.f32 0.0, %v5520
        %v5522 = vpop.f32.mrb[0].mxu0
        %5523 = vmatprep.mubr.f32.mxu0 0.0
        %5524 = vmatmul.mubr.f32.gmra.mrb[0].mxu0 %v4183
        %v5525 = vpop.f32.mrb[0].mxu0
        %v5526 = vadd.f32 0.0, %v5525
        %v5527 = vpop.f32.mrb[0].mxu0
        %5528 = vmatprep.mubr.f32.mxu0 0.0
        %5529 = vmatmul.mubr.f32.gmra.mrb[0].mxu0 %v4186
        %v5530 = vpop.f32.mrb[0].mxu0
        %v5531 = vadd.f32 0.0, %v5530
        %v5532 = vpop.f32.mrb[0].mxu0
        %5533 = vmatprep.mubr.f32.mxu0 0.0
        %5534 = vmatmul.mubr.f32.gmra.mrb[0].mxu0 %v4189
        %v5535 = vpop.f32.mrb[0].mxu0
        %v5536 = vadd.f32 0.0, %v5535
        %v5537 = vpop.f32.mrb[0].mxu0
        %5538 = vmatprep.mubr.f32.mxu0 0.0
        %5539 = vmatmul.mubr.f32.gmra.mrb[0].mxu0 %v4192
        %v5540 = vpop.f32.mrb[0].mxu0
        %v5541 = vadd.f32 0.0, %v5540
        %v5542 = vpop.f32.mrb[0].mxu0
        %5543 = vdwg.mxu0
        %5544 = vmatprep.subr.mxu0 0.0
        %5545 = vmatpush1.msra.mxu0 %v4168
        %5546 = vmatprep.subr.mxu0 0.0
        %5547 = vmatpush1.msra.mxu0 %v4169
        %5548 = vmatprep.subr.mxu0 0.0
        %5549 = vmatpush1.msra.mxu0 %v4170
        %5550 = vmatprep.subr.mxu0 0.0
        %5551 = vmatpush1.msra.mxu0 %v4171
        %5552 = vmatprep.subr.mxu0 0.0
        %5553 = vmatpush1.msra.mxu0 %v4172
        %5554 = vmatprep.subr.mxu0 0.0
        %5555 = vmatpush1.msra.mxu0 0.0
        %5556 = vmatprep.subr.mxu0 0.0
        %5557 = vmatpush1.msra.mxu0 0.0
        %5558 = vmatprep.subr.mxu0 0.0
        %5559 = vmatpush1.msra.mxu0 0.0
        %5560 = vmatprep.subr.mxu0 0.0
        %5561 = vmatpush1.msra.mxu0 0.0
        %5562 = vmatprep.subr.mxu0 0.0
        %5563 = vmatpush1.msra.mxu0 0.0
        %5564 = vmatprep.subr.mxu0 0.0
        %5565 = vmatpush1.msra.mxu0 0.0
        %5566 = vmatprep.subr.mxu0 0.0
        %5567 = vmatpush1.msra.mxu0 0.0
        %5568 = vmatprep.subr.mxu0 0.0
        %5569 = vmatpush1.msra.mxu0 0.0
        %5570 = vmatprep.subr.mxu0 0.0
        %5571 = vmatpush1.msra.mxu0 0.0
        %5572 = vmatprep.subr.mxu0 0.0
        %5573 = vmatpush1.msra.mxu0 0.0
        %5574 = vmatprep.subr.mxu0 0.0
        %5575 = vmatpush1.msra.mxu0 0.0
        %5576 = vmatprep.subr.mxu0 0.0
        %5577 = vmatpush1.msra.mxu0 0.0
        %5578 = vmatprep.subr.mxu0 0.0
        %5579 = vmatpush1.msra.mxu0 0.0
        %5580 = vmatprep.subr.mxu0 0.0
        %5581 = vmatpush1.msra.mxu0 0.0
        %5582 = vmatprep.subr.mxu0 0.0
        %5583 = vmatpush1.msra.mxu0 0.0
        %5584 = vmatprep.subr.mxu0 0.0
        %5585 = vmatpush1.msra.mxu0 0.0
        %5586 = vmatprep.subr.mxu0 0.0
        %5587 = vmatpush1.msra.mxu0 0.0
        %5588 = vmatprep.subr.mxu0 0.0
        %5589 = vmatpush1.msra.mxu0 0.0
        %5590 = vmatprep.subr.mxu0 0.0
        %5591 = vmatpush1.msra.mxu0 0.0
        %5592 = vmatprep.subr.mxu0 0.0
        %5593 = vmatpush1.msra.mxu0 0.0
        %5594 = vmatprep.subr.mxu0 0.0
        %5595 = vmatpush1.msra.mxu0 0.0
        %5596 = vmatprep.subr.mxu0 0.0
        %5597 = vmatpush1.msra.mxu0 0.0
        %5598 = vmatprep.subr.mxu0 0.0
        %5599 = vmatpush1.msra.mxu0 0.0
        %5600 = vmatprep.subr.mxu0 0.0
        %5601 = vmatpush1.msra.mxu0 0.0
        %5602 = vmatprep.subr.mxu0 0.0
        %5603 = vmatpush1.msra.mxu0 0.0
        %5604 = vmatprep.subr.mxu0 0.0
        %5605 = vmatpush1.msra.mxu0 0.0
        %5606 = vmatprep.subr.mxu0 0.0
        %5607 = vmatpush1.msra.mxu0 0.0
        %5608 = vmatprep.mubr.f32.mxu0 0.0
        %5609 = vmatmul.mubr.f32.gmra.mrb[0].mxu0 %v4180
        %v5610 = vpop.f32.mrb[0].mxu0
        %v5611 = vadd.f32 0.0, %v5610
        %v5612 = vpop.f32.mrb[0].mxu0
        %5613 = vmatprep.mubr.f32.mxu0 0.0
        %5614 = vmatmul.mubr.f32.gmra.mrb[0].mxu0 %v4183
        %v5615 = vpop.f32.mrb[0].mxu0
        %v5616 = vadd.f32 0.0, %v5615
        %v5617 = vpop.f32.mrb[0].mxu0
        %5618 = vmatprep.mubr.f32.mxu0 0.0
        %5619 = vmatmul.mubr.f32.gmra.mrb[0].mxu0 %v4186
        %v5620 = vpop.f32.mrb[0].mxu0
        %v5621 = vadd.f32 0.0, %v5620
        %v5622 = vpop.f32.mrb[0].mxu0
        %5623 = vmatprep.mubr.f32.mxu0 0.0
        %5624 = vmatmul.mubr.f32.gmra.mrb[0].mxu0 %v4189
        %v5625 = vpop.f32.mrb[0].mxu0
        %v5626 = vadd.f32 0.0, %v5625
        %v5627 = vpop.f32.mrb[0].mxu0
        %5628 = vmatprep.mubr.f32.mxu0 0.0
        %5629 = vmatmul.mubr.f32.gmra.mrb[0].mxu0 %v4192
        %v5630 = vpop.f32.mrb[0].mxu0
        %v5631 = vadd.f32 0.0, %v5630
        %v5632 = vpop.f32.mrb[0].mxu0
        %5633 = vdwg.mxu0
        %v5634 = vmul.f32 %v4261, 0.01
        %v5635 = vmul.f32 %v4266, 0.01
        %v5636 = vmul.f32 %v4271, 0.01
        %v5637 = vmul.f32 %v4276, 0.01
        %v5638 = vmul.f32 %v4281, 0.01
        %v5639 = vmul.f32 %v4351, 0.01
        %v5640 = vmul.f32 %v4356, 0.01
        %v5641 = vmul.f32 %v4361, 0.01
        %v5642 = vmul.f32 %v4366, 0.01
        %v5643 = vmul.f32 %v4371, 0.01
        %v5644 = vmul.f32 %v4441, 0.01
        %v5645 = vmul.f32 %v4446, 0.01
        %v5646 = vmul.f32 %v4451, 0.01
        %v5647 = vmul.f32 %v4456, 0.01
        %v5648 = vmul.f32 %v4461, 0.01
        %v5649 = vmul.f32 %v4531, 0.01
        %v5650 = vmul.f32 %v4536, 0.01
        %v5651 = vmul.f32 %v4541, 0.01
        %v5652 = vmul.f32 %v4546, 0.01
        %v5653 = vmul.f32 %v4551, 0.01
        %v5654 = vmul.f32 %v4621, 0.01
        %v5655 = vmul.f32 %v4626, 0.01
        %v5656 = vmul.f32 %v4631, 0.01
        %v5657 = vmul.f32 %v4636, 0.01
        %v5658 = vmul.f32 %v4641, 0.01
        %v5659 = vmul.f32 %v4711, 0.01
        %v5660 = vmul.f32 %v4716, 0.01
        %v5661 = vmul.f32 %v4721, 0.01
        %v5662 = vmul.f32 %v4726, 0.01
        %v5663 = vmul.f32 %v4731, 0.01
        %v5664 = vmul.f32 %v4801, 0.01
        %v5665 = vmul.f32 %v4806, 0.01
        %v5666 = vmul.f32 %v4811, 0.01
        %v5667 = vmul.f32 %v4816, 0.01
        %v5668 = vmul.f32 %v4821, 0.01
        %v5669 = vmul.f32 %v4891, 0.01
        %v5670 = vmul.f32 %v4896, 0.01
        %v5671 = vmul.f32 %v4901, 0.01
        %v5672 = vmul.f32 %v4906, 0.01
        %v5673 = vmul.f32 %v4911, 0.01
        %v5674 = vmul.f32 %v4981, 0.01
        %v5675 = vmul.f32 %v4986, 0.01
        %v5676 = vmul.f32 %v4991, 0.01
        %v5677 = vmul.f32 %v4996, 0.01
        %v5678 = vmul.f32 %v5001, 0.01
        %v5679 = vmul.f32 %v5071, 0.01
        %v5680 = vmul.f32 %v5076, 0.01
        %v5681 = vmul.f32 %v5081, 0.01
        %v5682 = vmul.f32 %v5086, 0.01
        %v5683 = vmul.f32 %v5091, 0.01
        %v5684 = vmul.f32 %v5161, 0.01
        %v5685 = vmul.f32 %v5166, 0.01
        %v5686 = vmul.f32 %v5171, 0.01
        %v5687 = vmul.f32 %v5176, 0.01
        %v5688 = vmul.f32 %v5181, 0.01
        %v5689 = vmul.f32 %v5251, 0.01
        %v5690 = vmul.f32 %v5256, 0.01
        %v5691 = vmul.f32 %v5261, 0.01
        %v5692 = vmul.f32 %v5266, 0.01
        %v5693 = vmul.f32 %v5271, 0.01
        %v5694 = vmul.f32 %v5341, 0.01
        %v5695 = vmul.f32 %v5346, 0.01
        %v5696 = vmul.f32 %v5351, 0.01
        %v5697 = vmul.f32 %v5356, 0.01
        %v5698 = vmul.f32 %v5361, 0.01
        %v5699 = vmul.f32 %v5431, 0.01
        %v5700 = vmul.f32 %v5436, 0.01
        %v5701 = vmul.f32 %v5441, 0.01
        %v5702 = vmul.f32 %v5446, 0.01
        %v5703 = vmul.f32 %v5451, 0.01
        %v5704 = vmul.f32 %v5521, 0.01
        %v5705 = vmul.f32 %v5526, 0.01
        %v5706 = vmul.f32 %v5531, 0.01
        %v5707 = vmul.f32 %v5536, 0.01
        %v5708 = vmul.f32 %v5541, 0.01
        %v5709 = vmul.f32 %v5611, 0.01
        %v5710 = vmul.f32 %v5616, 0.01
        %v5711 = vmul.f32 %v5621, 0.01
        %v5712 = vmul.f32 %v5626, 0.01
        %v5713 = vmul.f32 %v5631, 0.01
        %v5714 = vmax.f32 %v4261, %v5634
        %v5715 = vmax.f32 %v4266, %v5635
        %v5716 = vmax.f32 %v4271, %v5636
        %v5717 = vmax.f32 %v4276, %v5637
        %v5718 = vmax.f32 %v4281, %v5638
        %v5719 = vmax.f32 %v4351, %v5639
        %v5720 = vmax.f32 %v4356, %v5640
        %v5721 = vmax.f32 %v4361, %v5641
        %v5722 = vmax.f32 %v4366, %v5642
        %v5723 = vmax.f32 %v4371, %v5643
        %v5724 = vmax.f32 %v4441, %v5644
        %v5725 = vmax.f32 %v4446, %v5645
        %v5726 = vmax.f32 %v4451, %v5646
        %v5727 = vmax.f32 %v4456, %v5647
        %v5728 = vmax.f32 %v4461, %v5648
        %v5729 = vmax.f32 %v4531, %v5649
        %v5730 = vmax.f32 %v4536, %v5650
        %v5731 = vmax.f32 %v4541, %v5651
        %v5732 = vmax.f32 %v4546, %v5652
        %v5733 = vmax.f32 %v4551, %v5653
        %v5734 = vmax.f32 %v4621, %v5654
        %v5735 = vmax.f32 %v4626, %v5655
        %v5736 = vmax.f32 %v4631, %v5656
        %v5737 = vmax.f32 %v4636, %v5657
        %v5738 = vmax.f32 %v4641, %v5658
        %v5739 = vmax.f32 %v4711, %v5659
        %v5740 = vmax.f32 %v4716, %v5660
        %v5741 = vmax.f32 %v4721, %v5661
        %v5742 = vmax.f32 %v4726, %v5662
        %v5743 = vmax.f32 %v4731, %v5663
        %v5744 = vmax.f32 %v4801, %v5664
        %v5745 = vmax.f32 %v4806, %v5665
        %v5746 = vmax.f32 %v4811, %v5666
        %v5747 = vmax.f32 %v4816, %v5667
        %v5748 = vmax.f32 %v4821, %v5668
        %v5749 = vmax.f32 %v4891, %v5669
        %v5750 = vmax.f32 %v4896, %v5670
        %v5751 = vmax.f32 %v4901, %v5671
        %v5752 = vmax.f32 %v4906, %v5672
        %v5753 = vmax.f32 %v4911, %v5673
        %v5754 = vmax.f32 %v4981, %v5674
        %v5755 = vmax.f32 %v4986, %v5675
        %v5756 = vmax.f32 %v4991, %v5676
        %v5757 = vmax.f32 %v4996, %v5677
        %v5758 = vmax.f32 %v5001, %v5678
        %v5759 = vmax.f32 %v5071, %v5679
        %v5760 = vmax.f32 %v5076, %v5680
        %v5761 = vmax.f32 %v5081, %v5681
        %v5762 = vmax.f32 %v5086, %v5682
        %v5763 = vmax.f32 %v5091, %v5683
        %v5764 = vmax.f32 %v5161, %v5684
        %v5765 = vmax.f32 %v5166, %v5685
        %v5766 = vmax.f32 %v5171, %v5686
        %v5767 = vmax.f32 %v5176, %v5687
        %v5768 = vmax.f32 %v5181, %v5688
        %v5769 = vmax.f32 %v5251, %v5689
        %v5770 = vmax.f32 %v5256, %v5690
        %v5771 = vmax.f32 %v5261, %v5691
        %v5772 = vmax.f32 %v5266, %v5692
        %v5773 = vmax.f32 %v5271, %v5693
        %v5774 = vmax.f32 %v5341, %v5694
        %v5775 = vmax.f32 %v5346, %v5695
        %v5776 = vmax.f32 %v5351, %v5696
        %v5777 = vmax.f32 %v5356, %v5697
        %v5778 = vmax.f32 %v5361, %v5698
        %v5779 = vmax.f32 %v5431, %v5699
        %v5780 = vmax.f32 %v5436, %v5700
        %v5781 = vmax.f32 %v5441, %v5701
        %v5782 = vmax.f32 %v5446, %v5702
        %v5783 = vmax.f32 %v5451, %v5703
        %v5784 = vmax.f32 %v5521, %v5704
        %v5785 = vmax.f32 %v5526, %v5705
        %v5786 = vmax.f32 %v5531, %v5706
        %v5787 = vmax.f32 %v5536, %v5707
        %v5788 = vmax.f32 %v5541, %v5708
        %v5789 = vmax.f32 %v5611, %v5709
        %v5790 = vmax.f32 %v5616, %v5710
        %v5791 = vmax.f32 %v5621, %v5711
        %v5792 = vmax.f32 %v5626, %v5712
        %v5793 = vmax.f32 %v5631, %v5713
        %s5794 = scalar_lea.vmem %s3, 120
        %v5795 = vld [vmem:[%s5794] sm:$0xff]
        %v5796 = vld [vmem:[%s5794 + $0x8] sm:$0xff]
        %v5797 = vld [vmem:[%s5794 + $0x10] sm:$0xff]
        %v5798 = vld [vmem:[%s5794 + $0x18] sm:$0xff]
        %v5799 = vld [vmem:[%s5794 + $0x20] sm:$0xff]
        %v5801 = vsel %vm936, %v5795, 0
        %v5804 = vsel %vm936, %v5796, 0
        %v5807 = vsel %vm936, %v5797, 0
        %v5810 = vsel %vm936, %v5798, 0
        %v5813 = vsel %vm936, %v5799, 0
        %5815 = vmatprep.subr.mxu0 0.0
        %5816 = vmatpush1.msra.mxu0 %v5714
        %5817 = vmatprep.subr.mxu0 0.0
        %5818 = vmatpush1.msra.mxu0 %v5715
        %5819 = vmatprep.subr.mxu0 0.0
        %5820 = vmatpush1.msra.mxu0 %v5716
        %5821 = vmatprep.subr.mxu0 0.0
        %5822 = vmatpush1.msra.mxu0 %v5717
        %5823 = vmatprep.subr.mxu0 0.0
        %5824 = vmatpush1.msra.mxu0 %v5718
        %5825 = vmatprep.subr.mxu0 0.0
        %5826 = vmatpush1.msra.mxu0 0.0
        %5827 = vmatprep.subr.mxu0 0.0
        %5828 = vmatpush1.msra.mxu0 0.0
        %5829 = vmatprep.subr.mxu0 0.0
        %5830 = vmatpush1.msra.mxu0 0.0
        %5831 = vmatprep.subr.mxu0 0.0
        %5832 = vmatpush1.msra.mxu0 0.0
        %5833 = vmatprep.subr.mxu0 0.0
        %5834 = vmatpush1.msra.mxu0 0.0
        %5835 = vmatprep.subr.mxu0 0.0
        %5836 = vmatpush1.msra.mxu0 0.0
        %5837 = vmatprep.subr.mxu0 0.0
        %5838 = vmatpush1.msra.mxu0 0.0
        %5839 = vmatprep.subr.mxu0 0.0
        %5840 = vmatpush1.msra.mxu0 0.0
        %5841 = vmatprep.subr.mxu0 0.0
        %5842 = vmatpush1.msra.mxu0 0.0
        %5843 = vmatprep.subr.mxu0 0.0
        %5844 = vmatpush1.msra.mxu0 0.0
        %5845 = vmatprep.subr.mxu0 0.0
        %5846 = vmatpush1.msra.mxu0 0.0
        %5847 = vmatprep.subr.mxu0 0.0
        %5848 = vmatpush1.msra.mxu0 0.0
        %5849 = vmatprep.subr.mxu0 0.0
        %5850 = vmatpush1.msra.mxu0 0.0
        %5851 = vmatprep.subr.mxu0 0.0
        %5852 = vmatpush1.msra.mxu0 0.0
        %5853 = vmatprep.subr.mxu0 0.0
        %5854 = vmatpush1.msra.mxu0 0.0
        %5855 = vmatprep.subr.mxu0 0.0
        %5856 = vmatpush1.msra.mxu0 0.0
        %5857 = vmatprep.subr.mxu0 0.0
        %5858 = vmatpush1.msra.mxu0 0.0
        %5859 = vmatprep.subr.mxu0 0.0
        %5860 = vmatpush1.msra.mxu0 0.0
        %5861 = vmatprep.subr.mxu0 0.0
        %5862 = vmatpush1.msra.mxu0 0.0
        %5863 = vmatprep.subr.mxu0 0.0
        %5864 = vmatpush1.msra.mxu0 0.0
        %5865 = vmatprep.subr.mxu0 0.0
        %5866 = vmatpush1.msra.mxu0 0.0
        %5867 = vmatprep.subr.mxu0 0.0
        %5868 = vmatpush1.msra.mxu0 0.0
        %5869 = vmatprep.subr.mxu0 0.0
        %5870 = vmatpush1.msra.mxu0 0.0
        %5871 = vmatprep.subr.mxu0 0.0
        %5872 = vmatpush1.msra.mxu0 0.0
        %5873 = vmatprep.subr.mxu0 0.0
        %5874 = vmatpush1.msra.mxu0 0.0
        %5875 = vmatprep.subr.mxu0 0.0
        %5876 = vmatpush1.msra.mxu0 0.0
        %5877 = vmatprep.subr.mxu0 0.0
        %5878 = vmatpush1.msra.mxu0 0.0
        %5879 = vmatprep.mubr.f32.mxu0 0.0
        %5880 = vmatmul.mubr.f32.gmra.mrb[0].mxu0 %v5801
        %v5881 = vpop.f32.mrb[0].mxu0
        %v5882 = vadd.f32 0.0, %v5881
        %v5883 = vpop.f32.mrb[0].mxu0
        %5884 = vmatprep.mubr.f32.mxu0 0.0
        %5885 = vmatmul.mubr.f32.gmra.mrb[0].mxu0 %v5804
        %v5886 = vpop.f32.mrb[0].mxu0
        %v5887 = vadd.f32 0.0, %v5886
        %v5888 = vpop.f32.mrb[0].mxu0
        %5889 = vmatprep.mubr.f32.mxu0 0.0
        %5890 = vmatmul.mubr.f32.gmra.mrb[0].mxu0 %v5807
        %v5891 = vpop.f32.mrb[0].mxu0
        %v5892 = vadd.f32 0.0, %v5891
        %v5893 = vpop.f32.mrb[0].mxu0
        %5894 = vmatprep.mubr.f32.mxu0 0.0
        %5895 = vmatmul.mubr.f32.gmra.mrb[0].mxu0 %v5810
        %v5896 = vpop.f32.mrb[0].mxu0
        %v5897 = vadd.f32 0.0, %v5896
        %v5898 = vpop.f32.mrb[0].mxu0
        %5899 = vmatprep.mubr.f32.mxu0 0.0
        %5900 = vmatmul.mubr.f32.gmra.mrb[0].mxu0 %v5813
        %v5901 = vpop.f32.mrb[0].mxu0
        %v5902 = vadd.f32 0.0, %v5901
        %v5903 = vpop.f32.mrb[0].mxu0
        %5904 = vdwg.mxu0
        %5905 = vmatprep.subr.mxu0 0.0
        %5906 = vmatpush1.msra.mxu0 %v5719
        %5907 = vmatprep.subr.mxu0 0.0
        %5908 = vmatpush1.msra.mxu0 %v5720
        %5909 = vmatprep.subr.mxu0 0.0
        %5910 = vmatpush1.msra.mxu0 %v5721
        %5911 = vmatprep.subr.mxu0 0.0
        %5912 = vmatpush1.msra.mxu0 %v5722
        %5913 = vmatprep.subr.mxu0 0.0
        %5914 = vmatpush1.msra.mxu0 %v5723
        %5915 = vmatprep.subr.mxu0 0.0
        %5916 = vmatpush1.msra.mxu0 0.0
        %5917 = vmatprep.subr.mxu0 0.0
        %5918 = vmatpush1.msra.mxu0 0.0
        %5919 = vmatprep.subr.mxu0 0.0
        %5920 = vmatpush1.msra.mxu0 0.0
        %5921 = vmatprep.subr.mxu0 0.0
        %5922 = vmatpush1.msra.mxu0 0.0
        %5923 = vmatprep.subr.mxu0 0.0
        %5924 = vmatpush1.msra.mxu0 0.0
        %5925 = vmatprep.subr.mxu0 0.0
        %5926 = vmatpush1.msra.mxu0 0.0
        %5927 = vmatprep.subr.mxu0 0.0
        %5928 = vmatpush1.msra.mxu0 0.0
        %5929 = vmatprep.subr.mxu0 0.0
        %5930 = vmatpush1.msra.mxu0 0.0
        %5931 = vmatprep.subr.mxu0 0.0
        %5932 = vmatpush1.msra.mxu0 0.0
        %5933 = vmatprep.subr.mxu0 0.0
        %5934 = vmatpush1.msra.mxu0 0.0
        %5935 = vmatprep.subr.mxu0 0.0
        %5936 = vmatpush1.msra.mxu0 0.0
        %5937 = vmatprep.subr.mxu0 0.0
        %5938 = vmatpush1.msra.mxu0 0.0
        %5939 = vmatprep.subr.mxu0 0.0
        %5940 = vmatpush1.msra.mxu0 0.0
        %5941 = vmatprep.subr.mxu0 0.0
        %5942 = vmatpush1.msra.mxu0 0.0
        %5943 = vmatprep.subr.mxu0 0.0
        %5944 = vmatpush1.msra.mxu0 0.0
        %5945 = vmatprep.subr.mxu0 0.0
        %5946 = vmatpush1.msra.mxu0 0.0
        %5947 = vmatprep.subr.mxu0 0.0
        %5948 = vmatpush1.msra.mxu0 0.0
        %5949 = vmatprep.subr.mxu0 0.0
        %5950 = vmatpush1.msra.mxu0 0.0
        %5951 = vmatprep.subr.mxu0 0.0
        %5952 = vmatpush1.msra.mxu0 0.0
        %5953 = vmatprep.subr.mxu0 0.0
        %5954 = vmatpush1.msra.mxu0 0.0
        %5955 = vmatprep.subr.mxu0 0.0
        %5956 = vmatpush1.msra.mxu0 0.0
        %5957 = vmatprep.subr.mxu0 0.0
        %5958 = vmatpush1.msra.mxu0 0.0
        %5959 = vmatprep.subr.mxu0 0.0
        %5960 = vmatpush1.msra.mxu0 0.0
        %5961 = vmatprep.subr.mxu0 0.0
        %5962 = vmatpush1.msra.mxu0 0.0
        %5963 = vmatprep.subr.mxu0 0.0
        %5964 = vmatpush1.msra.mxu0 0.0
        %5965 = vmatprep.subr.mxu0 0.0
        %5966 = vmatpush1.msra.mxu0 0.0
        %5967 = vmatprep.subr.mxu0 0.0
        %5968 = vmatpush1.msra.mxu0 0.0
        %5969 = vmatprep.mubr.f32.mxu0 0.0
        %5970 = vmatmul.mubr.f32.gmra.mrb[0].mxu0 %v5801
        %v5971 = vpop.f32.mrb[0].mxu0
        %v5972 = vadd.f32 0.0, %v5971
        %v5973 = vpop.f32.mrb[0].mxu0
        %5974 = vmatprep.mubr.f32.mxu0 0.0
        %5975 = vmatmul.mubr.f32.gmra.mrb[0].mxu0 %v5804
        %v5976 = vpop.f32.mrb[0].mxu0
        %v5977 = vadd.f32 0.0, %v5976
        %v5978 = vpop.f32.mrb[0].mxu0
        %5979 = vmatprep.mubr.f32.mxu0 0.0
        %5980 = vmatmul.mubr.f32.gmra.mrb[0].mxu0 %v5807
        %v5981 = vpop.f32.mrb[0].mxu0
        %v5982 = vadd.f32 0.0, %v5981
        %v5983 = vpop.f32.mrb[0].mxu0
        %5984 = vmatprep.mubr.f32.mxu0 0.0
        %5985 = vmatmul.mubr.f32.gmra.mrb[0].mxu0 %v5810
        %v5986 = vpop.f32.mrb[0].mxu0
        %v5987 = vadd.f32 0.0, %v5986
        %v5988 = vpop.f32.mrb[0].mxu0
        %5989 = vmatprep.mubr.f32.mxu0 0.0
        %5990 = vmatmul.mubr.f32.gmra.mrb[0].mxu0 %v5813
        %v5991 = vpop.f32.mrb[0].mxu0
        %v5992 = vadd.f32 0.0, %v5991
        %v5993 = vpop.f32.mrb[0].mxu0
        %5994 = vdwg.mxu0
        %5995 = vmatprep.subr.mxu0 0.0
        %5996 = vmatpush1.msra.mxu0 %v5724
        %5997 = vmatprep.subr.mxu0 0.0
        %5998 = vmatpush1.msra.mxu0 %v5725
        %5999 = vmatprep.subr.mxu0 0.0
        %6000 = vmatpush1.msra.mxu0 %v5726
        %6001 = vmatprep.subr.mxu0 0.0
        %6002 = vmatpush1.msra.mxu0 %v5727
        %6003 = vmatprep.subr.mxu0 0.0
        %6004 = vmatpush1.msra.mxu0 %v5728
        %6005 = vmatprep.subr.mxu0 0.0
        %6006 = vmatpush1.msra.mxu0 0.0
        %6007 = vmatprep.subr.mxu0 0.0
        %6008 = vmatpush1.msra.mxu0 0.0
        %6009 = vmatprep.subr.mxu0 0.0
        %6010 = vmatpush1.msra.mxu0 0.0
        %6011 = vmatprep.subr.mxu0 0.0
        %6012 = vmatpush1.msra.mxu0 0.0
        %6013 = vmatprep.subr.mxu0 0.0
        %6014 = vmatpush1.msra.mxu0 0.0
        %6015 = vmatprep.subr.mxu0 0.0
        %6016 = vmatpush1.msra.mxu0 0.0
        %6017 = vmatprep.subr.mxu0 0.0
        %6018 = vmatpush1.msra.mxu0 0.0
        %6019 = vmatprep.subr.mxu0 0.0
        %6020 = vmatpush1.msra.mxu0 0.0
        %6021 = vmatprep.subr.mxu0 0.0
        %6022 = vmatpush1.msra.mxu0 0.0
        %6023 = vmatprep.subr.mxu0 0.0
        %6024 = vmatpush1.msra.mxu0 0.0
        %6025 = vmatprep.subr.mxu0 0.0
        %6026 = vmatpush1.msra.mxu0 0.0
        %6027 = vmatprep.subr.mxu0 0.0
        %6028 = vmatpush1.msra.mxu0 0.0
        %6029 = vmatprep.subr.mxu0 0.0
        %6030 = vmatpush1.msra.mxu0 0.0
        %6031 = vmatprep.subr.mxu0 0.0
        %6032 = vmatpush1.msra.mxu0 0.0
        %6033 = vmatprep.subr.mxu0 0.0
        %6034 = vmatpush1.msra.mxu0 0.0
        %6035 = vmatprep.subr.mxu0 0.0
        %6036 = vmatpush1.msra.mxu0 0.0
        %6037 = vmatprep.subr.mxu0 0.0
        %6038 = vmatpush1.msra.mxu0 0.0
        %6039 = vmatprep.subr.mxu0 0.0
        %6040 = vmatpush1.msra.mxu0 0.0
        %6041 = vmatprep.subr.mxu0 0.0
        %6042 = vmatpush1.msra.mxu0 0.0
        %6043 = vmatprep.subr.mxu0 0.0
        %6044 = vmatpush1.msra.mxu0 0.0
        %6045 = vmatprep.subr.mxu0 0.0
        %6046 = vmatpush1.msra.mxu0 0.0
        %6047 = vmatprep.subr.mxu0 0.0
        %6048 = vmatpush1.msra.mxu0 0.0
        %6049 = vmatprep.subr.mxu0 0.0
        %6050 = vmatpush1.msra.mxu0 0.0
        %6051 = vmatprep.subr.mxu0 0.0
        %6052 = vmatpush1.msra.mxu0 0.0
        %6053 = vmatprep.subr.mxu0 0.0
        %6054 = vmatpush1.msra.mxu0 0.0
        %6055 = vmatprep.subr.mxu0 0.0
        %6056 = vmatpush1.msra.mxu0 0.0
        %6057 = vmatprep.subr.mxu0 0.0
        %6058 = vmatpush1.msra.mxu0 0.0
        %6059 = vmatprep.mubr.f32.mxu0 0.0
        %6060 = vmatmul.mubr.f32.gmra.mrb[0].mxu0 %v5801
        %v6061 = vpop.f32.mrb[0].mxu0
        %v6062 = vadd.f32 0.0, %v6061
        %v6063 = vpop.f32.mrb[0].mxu0
        %6064 = vmatprep.mubr.f32.mxu0 0.0
        %6065 = vmatmul.mubr.f32.gmra.mrb[0].mxu0 %v5804
        %v6066 = vpop.f32.mrb[0].mxu0
        %v6067 = vadd.f32 0.0, %v6066
        %v6068 = vpop.f32.mrb[0].mxu0
        %6069 = vmatprep.mubr.f32.mxu0 0.0
        %6070 = vmatmul.mubr.f32.gmra.mrb[0].mxu0 %v5807
        %v6071 = vpop.f32.mrb[0].mxu0
        %v6072 = vadd.f32 0.0, %v6071
        %v6073 = vpop.f32.mrb[0].mxu0
        %6074 = vmatprep.mubr.f32.mxu0 0.0
        %6075 = vmatmul.mubr.f32.gmra.mrb[0].mxu0 %v5810
        %v6076 = vpop.f32.mrb[0].mxu0
        %v6077 = vadd.f32 0.0, %v6076
        %v6078 = vpop.f32.mrb[0].mxu0
        %6079 = vmatprep.mubr.f32.mxu0 0.0
        %6080 = vmatmul.mubr.f32.gmra.mrb[0].mxu0 %v5813
        %v6081 = vpop.f32.mrb[0].mxu0
        %v6082 = vadd.f32 0.0, %v6081
        %v6083 = vpop.f32.mrb[0].mxu0
        %6084 = vdwg.mxu0
        %6085 = vmatprep.subr.mxu0 0.0
        %6086 = vmatpush1.msra.mxu0 %v5729
        %6087 = vmatprep.subr.mxu0 0.0
        %6088 = vmatpush1.msra.mxu0 %v5730
        %6089 = vmatprep.subr.mxu0 0.0
        %6090 = vmatpush1.msra.mxu0 %v5731
        %6091 = vmatprep.subr.mxu0 0.0
        %6092 = vmatpush1.msra.mxu0 %v5732
        %6093 = vmatprep.subr.mxu0 0.0
        %6094 = vmatpush1.msra.mxu0 %v5733
        %6095 = vmatprep.subr.mxu0 0.0
        %6096 = vmatpush1.msra.mxu0 0.0
        %6097 = vmatprep.subr.mxu0 0.0
        %6098 = vmatpush1.msra.mxu0 0.0
        %6099 = vmatprep.subr.mxu0 0.0
        %6100 = vmatpush1.msra.mxu0 0.0
        %6101 = vmatprep.subr.mxu0 0.0
        %6102 = vmatpush1.msra.mxu0 0.0
        %6103 = vmatprep.subr.mxu0 0.0
        %6104 = vmatpush1.msra.mxu0 0.0
        %6105 = vmatprep.subr.mxu0 0.0
        %6106 = vmatpush1.msra.mxu0 0.0
        %6107 = vmatprep.subr.mxu0 0.0
        %6108 = vmatpush1.msra.mxu0 0.0
        %6109 = vmatprep.subr.mxu0 0.0
        %6110 = vmatpush1.msra.mxu0 0.0
        %6111 = vmatprep.subr.mxu0 0.0
        %6112 = vmatpush1.msra.mxu0 0.0
        %6113 = vmatprep.subr.mxu0 0.0
        %6114 = vmatpush1.msra.mxu0 0.0
        %6115 = vmatprep.subr.mxu0 0.0
        %6116 = vmatpush1.msra.mxu0 0.0
        %6117 = vmatprep.subr.mxu0 0.0
        %6118 = vmatpush1.msra.mxu0 0.0
        %6119 = vmatprep.subr.mxu0 0.0
        %6120 = vmatpush1.msra.mxu0 0.0
        %6121 = vmatprep.subr.mxu0 0.0
        %6122 = vmatpush1.msra.mxu0 0.0
        %6123 = vmatprep.subr.mxu0 0.0
        %6124 = vmatpush1.msra.mxu0 0.0
        %6125 = vmatprep.subr.mxu0 0.0
        %6126 = vmatpush1.msra.mxu0 0.0
        %6127 = vmatprep.subr.mxu0 0.0
        %6128 = vmatpush1.msra.mxu0 0.0
        %6129 = vmatprep.subr.mxu0 0.0
        %6130 = vmatpush1.msra.mxu0 0.0
        %6131 = vmatprep.subr.mxu0 0.0
        %6132 = vmatpush1.msra.mxu0 0.0
        %6133 = vmatprep.subr.mxu0 0.0
        %6134 = vmatpush1.msra.mxu0 0.0
        %6135 = vmatprep.subr.mxu0 0.0
        %6136 = vmatpush1.msra.mxu0 0.0
        %6137 = vmatprep.subr.mxu0 0.0
        %6138 = vmatpush1.msra.mxu0 0.0
        %6139 = vmatprep.subr.mxu0 0.0
        %6140 = vmatpush1.msra.mxu0 0.0
        %6141 = vmatprep.subr.mxu0 0.0
        %6142 = vmatpush1.msra.mxu0 0.0
        %6143 = vmatprep.subr.mxu0 0.0
        %6144 = vmatpush1.msra.mxu0 0.0
        %6145 = vmatprep.subr.mxu0 0.0
        %6146 = vmatpush1.msra.mxu0 0.0
        %6147 = vmatprep.subr.mxu0 0.0
        %6148 = vmatpush1.msra.mxu0 0.0
        %6149 = vmatprep.mubr.f32.mxu0 0.0
        %6150 = vmatmul.mubr.f32.gmra.mrb[0].mxu0 %v5801
        %v6151 = vpop.f32.mrb[0].mxu0
        %v6152 = vadd.f32 0.0, %v6151
        %v6153 = vpop.f32.mrb[0].mxu0
        %6154 = vmatprep.mubr.f32.mxu0 0.0
        %6155 = vmatmul.mubr.f32.gmra.mrb[0].mxu0 %v5804
        %v6156 = vpop.f32.mrb[0].mxu0
        %v6157 = vadd.f32 0.0, %v6156
        %v6158 = vpop.f32.mrb[0].mxu0
        %6159 = vmatprep.mubr.f32.mxu0 0.0
        %6160 = vmatmul.mubr.f32.gmra.mrb[0].mxu0 %v5807
        %v6161 = vpop.f32.mrb[0].mxu0
        %v6162 = vadd.f32 0.0, %v6161
        %v6163 = vpop.f32.mrb[0].mxu0
        %6164 = vmatprep.mubr.f32.mxu0 0.0
        %6165 = vmatmul.mubr.f32.gmra.mrb[0].mxu0 %v5810
        %v6166 = vpop.f32.mrb[0].mxu0
        %v6167 = vadd.f32 0.0, %v6166
        %v6168 = vpop.f32.mrb[0].mxu0
        %6169 = vmatprep.mubr.f32.mxu0 0.0
        %6170 = vmatmul.mubr.f32.gmra.mrb[0].mxu0 %v5813
        %v6171 = vpop.f32.mrb[0].mxu0
        %v6172 = vadd.f32 0.0, %v6171
        %v6173 = vpop.f32.mrb[0].mxu0
        %6174 = vdwg.mxu0
        %6175 = vmatprep.subr.mxu0 0.0
        %6176 = vmatpush1.msra.mxu0 %v5734
        %6177 = vmatprep.subr.mxu0 0.0
        %6178 = vmatpush1.msra.mxu0 %v5735
        %6179 = vmatprep.subr.mxu0 0.0
        %6180 = vmatpush1.msra.mxu0 %v5736
        %6181 = vmatprep.subr.mxu0 0.0
        %6182 = vmatpush1.msra.mxu0 %v5737
        %6183 = vmatprep.subr.mxu0 0.0
        %6184 = vmatpush1.msra.mxu0 %v5738
        %6185 = vmatprep.subr.mxu0 0.0
        %6186 = vmatpush1.msra.mxu0 0.0
        %6187 = vmatprep.subr.mxu0 0.0
        %6188 = vmatpush1.msra.mxu0 0.0
        %6189 = vmatprep.subr.mxu0 0.0
        %6190 = vmatpush1.msra.mxu0 0.0
        %6191 = vmatprep.subr.mxu0 0.0
        %6192 = vmatpush1.msra.mxu0 0.0
        %6193 = vmatprep.subr.mxu0 0.0
        %6194 = vmatpush1.msra.mxu0 0.0
        %6195 = vmatprep.subr.mxu0 0.0
        %6196 = vmatpush1.msra.mxu0 0.0
        %6197 = vmatprep.subr.mxu0 0.0
        %6198 = vmatpush1.msra.mxu0 0.0
        %6199 = vmatprep.subr.mxu0 0.0
        %6200 = vmatpush1.msra.mxu0 0.0
        %6201 = vmatprep.subr.mxu0 0.0
        %6202 = vmatpush1.msra.mxu0 0.0
        %6203 = vmatprep.subr.mxu0 0.0
        %6204 = vmatpush1.msra.mxu0 0.0
        %6205 = vmatprep.subr.mxu0 0.0
        %6206 = vmatpush1.msra.mxu0 0.0
        %6207 = vmatprep.subr.mxu0 0.0
        %6208 = vmatpush1.msra.mxu0 0.0
        %6209 = vmatprep.subr.mxu0 0.0
        %6210 = vmatpush1.msra.mxu0 0.0
        %6211 = vmatprep.subr.mxu0 0.0
        %6212 = vmatpush1.msra.mxu0 0.0
        %6213 = vmatprep.subr.mxu0 0.0
        %6214 = vmatpush1.msra.mxu0 0.0
        %6215 = vmatprep.subr.mxu0 0.0
        %6216 = vmatpush1.msra.mxu0 0.0
        %6217 = vmatprep.subr.mxu0 0.0
        %6218 = vmatpush1.msra.mxu0 0.0
        %6219 = vmatprep.subr.mxu0 0.0
        %6220 = vmatpush1.msra.mxu0 0.0
        %6221 = vmatprep.subr.mxu0 0.0
        %6222 = vmatpush1.msra.mxu0 0.0
        %6223 = vmatprep.subr.mxu0 0.0
        %6224 = vmatpush1.msra.mxu0 0.0
        %6225 = vmatprep.subr.mxu0 0.0
        %6226 = vmatpush1.msra.mxu0 0.0
        %6227 = vmatprep.subr.mxu0 0.0
        %6228 = vmatpush1.msra.mxu0 0.0
        %6229 = vmatprep.subr.mxu0 0.0
        %6230 = vmatpush1.msra.mxu0 0.0
        %6231 = vmatprep.subr.mxu0 0.0
        %6232 = vmatpush1.msra.mxu0 0.0
        %6233 = vmatprep.subr.mxu0 0.0
        %6234 = vmatpush1.msra.mxu0 0.0
        %6235 = vmatprep.subr.mxu0 0.0
        %6236 = vmatpush1.msra.mxu0 0.0
        %6237 = vmatprep.subr.mxu0 0.0
        %6238 = vmatpush1.msra.mxu0 0.0
        %6239 = vmatprep.mubr.f32.mxu0 0.0
        %6240 = vmatmul.mubr.f32.gmra.mrb[0].mxu0 %v5801
        %v6241 = vpop.f32.mrb[0].mxu0
        %v6242 = vadd.f32 0.0, %v6241
        %v6243 = vpop.f32.mrb[0].mxu0
        %6244 = vmatprep.mubr.f32.mxu0 0.0
        %6245 = vmatmul.mubr.f32.gmra.mrb[0].mxu0 %v5804
        %v6246 = vpop.f32.mrb[0].mxu0
        %v6247 = vadd.f32 0.0, %v6246
        %v6248 = vpop.f32.mrb[0].mxu0
        %6249 = vmatprep.mubr.f32.mxu0 0.0
        %6250 = vmatmul.mubr.f32.gmra.mrb[0].mxu0 %v5807
        %v6251 = vpop.f32.mrb[0].mxu0
        %v6252 = vadd.f32 0.0, %v6251
        %v6253 = vpop.f32.mrb[0].mxu0
        %6254 = vmatprep.mubr.f32.mxu0 0.0
        %6255 = vmatmul.mubr.f32.gmra.mrb[0].mxu0 %v5810
        %v6256 = vpop.f32.mrb[0].mxu0
        %v6257 = vadd.f32 0.0, %v6256
        %v6258 = vpop.f32.mrb[0].mxu0
        %6259 = vmatprep.mubr.f32.mxu0 0.0
        %6260 = vmatmul.mubr.f32.gmra.mrb[0].mxu0 %v5813
        %v6261 = vpop.f32.mrb[0].mxu0
        %v6262 = vadd.f32 0.0, %v6261
        %v6263 = vpop.f32.mrb[0].mxu0
        %6264 = vdwg.mxu0
        %6265 = vmatprep.subr.mxu0 0.0
        %6266 = vmatpush1.msra.mxu0 %v5739
        %6267 = vmatprep.subr.mxu0 0.0
        %6268 = vmatpush1.msra.mxu0 %v5740
        %6269 = vmatprep.subr.mxu0 0.0
        %6270 = vmatpush1.msra.mxu0 %v5741
        %6271 = vmatprep.subr.mxu0 0.0
        %6272 = vmatpush1.msra.mxu0 %v5742
        %6273 = vmatprep.subr.mxu0 0.0
        %6274 = vmatpush1.msra.mxu0 %v5743
        %6275 = vmatprep.subr.mxu0 0.0
        %6276 = vmatpush1.msra.mxu0 0.0
        %6277 = vmatprep.subr.mxu0 0.0
        %6278 = vmatpush1.msra.mxu0 0.0
        %6279 = vmatprep.subr.mxu0 0.0
        %6280 = vmatpush1.msra.mxu0 0.0
        %6281 = vmatprep.subr.mxu0 0.0
        %6282 = vmatpush1.msra.mxu0 0.0
        %6283 = vmatprep.subr.mxu0 0.0
        %6284 = vmatpush1.msra.mxu0 0.0
        %6285 = vmatprep.subr.mxu0 0.0
        %6286 = vmatpush1.msra.mxu0 0.0
        %6287 = vmatprep.subr.mxu0 0.0
        %6288 = vmatpush1.msra.mxu0 0.0
        %6289 = vmatprep.subr.mxu0 0.0
        %6290 = vmatpush1.msra.mxu0 0.0
        %6291 = vmatprep.subr.mxu0 0.0
        %6292 = vmatpush1.msra.mxu0 0.0
        %6293 = vmatprep.subr.mxu0 0.0
        %6294 = vmatpush1.msra.mxu0 0.0
        %6295 = vmatprep.subr.mxu0 0.0
        %6296 = vmatpush1.msra.mxu0 0.0
        %6297 = vmatprep.subr.mxu0 0.0
        %6298 = vmatpush1.msra.mxu0 0.0
        %6299 = vmatprep.subr.mxu0 0.0
        %6300 = vmatpush1.msra.mxu0 0.0
        %6301 = vmatprep.subr.mxu0 0.0
        %6302 = vmatpush1.msra.mxu0 0.0
        %6303 = vmatprep.subr.mxu0 0.0
        %6304 = vmatpush1.msra.mxu0 0.0
        %6305 = vmatprep.subr.mxu0 0.0
        %6306 = vmatpush1.msra.mxu0 0.0
        %6307 = vmatprep.subr.mxu0 0.0
        %6308 = vmatpush1.msra.mxu0 0.0
        %6309 = vmatprep.subr.mxu0 0.0
        %6310 = vmatpush1.msra.mxu0 0.0
        %6311 = vmatprep.subr.mxu0 0.0
        %6312 = vmatpush1.msra.mxu0 0.0
        %6313 = vmatprep.subr.mxu0 0.0
        %6314 = vmatpush1.msra.mxu0 0.0
        %6315 = vmatprep.subr.mxu0 0.0
        %6316 = vmatpush1.msra.mxu0 0.0
        %6317 = vmatprep.subr.mxu0 0.0
        %6318 = vmatpush1.msra.mxu0 0.0
        %6319 = vmatprep.subr.mxu0 0.0
        %6320 = vmatpush1.msra.mxu0 0.0
        %6321 = vmatprep.subr.mxu0 0.0
        %6322 = vmatpush1.msra.mxu0 0.0
        %6323 = vmatprep.subr.mxu0 0.0
        %6324 = vmatpush1.msra.mxu0 0.0
        %6325 = vmatprep.subr.mxu0 0.0
        %6326 = vmatpush1.msra.mxu0 0.0
        %6327 = vmatprep.subr.mxu0 0.0
        %6328 = vmatpush1.msra.mxu0 0.0
        %6329 = vmatprep.mubr.f32.mxu0 0.0
        %6330 = vmatmul.mubr.f32.gmra.mrb[0].mxu0 %v5801
        %v6331 = vpop.f32.mrb[0].mxu0
        %v6332 = vadd.f32 0.0, %v6331
        %v6333 = vpop.f32.mrb[0].mxu0
        %6334 = vmatprep.mubr.f32.mxu0 0.0
        %6335 = vmatmul.mubr.f32.gmra.mrb[0].mxu0 %v5804
        %v6336 = vpop.f32.mrb[0].mxu0
        %v6337 = vadd.f32 0.0, %v6336
        %v6338 = vpop.f32.mrb[0].mxu0
        %6339 = vmatprep.mubr.f32.mxu0 0.0
        %6340 = vmatmul.mubr.f32.gmra.mrb[0].mxu0 %v5807
        %v6341 = vpop.f32.mrb[0].mxu0
        %v6342 = vadd.f32 0.0, %v6341
        %v6343 = vpop.f32.mrb[0].mxu0
        %6344 = vmatprep.mubr.f32.mxu0 0.0
        %6345 = vmatmul.mubr.f32.gmra.mrb[0].mxu0 %v5810
        %v6346 = vpop.f32.mrb[0].mxu0
        %v6347 = vadd.f32 0.0, %v6346
        %v6348 = vpop.f32.mrb[0].mxu0
        %6349 = vmatprep.mubr.f32.mxu0 0.0
        %6350 = vmatmul.mubr.f32.gmra.mrb[0].mxu0 %v5813
        %v6351 = vpop.f32.mrb[0].mxu0
        %v6352 = vadd.f32 0.0, %v6351
        %v6353 = vpop.f32.mrb[0].mxu0
        %6354 = vdwg.mxu0
        %6355 = vmatprep.subr.mxu0 0.0
        %6356 = vmatpush1.msra.mxu0 %v5744
        %6357 = vmatprep.subr.mxu0 0.0
        %6358 = vmatpush1.msra.mxu0 %v5745
        %6359 = vmatprep.subr.mxu0 0.0
        %6360 = vmatpush1.msra.mxu0 %v5746
        %6361 = vmatprep.subr.mxu0 0.0
        %6362 = vmatpush1.msra.mxu0 %v5747
        %6363 = vmatprep.subr.mxu0 0.0
        %6364 = vmatpush1.msra.mxu0 %v5748
        %6365 = vmatprep.subr.mxu0 0.0
        %6366 = vmatpush1.msra.mxu0 0.0
        %6367 = vmatprep.subr.mxu0 0.0
        %6368 = vmatpush1.msra.mxu0 0.0
        %6369 = vmatprep.subr.mxu0 0.0
        %6370 = vmatpush1.msra.mxu0 0.0
        %6371 = vmatprep.subr.mxu0 0.0
        %6372 = vmatpush1.msra.mxu0 0.0
        %6373 = vmatprep.subr.mxu0 0.0
        %6374 = vmatpush1.msra.mxu0 0.0
        %6375 = vmatprep.subr.mxu0 0.0
        %6376 = vmatpush1.msra.mxu0 0.0
        %6377 = vmatprep.subr.mxu0 0.0
        %6378 = vmatpush1.msra.mxu0 0.0
        %6379 = vmatprep.subr.mxu0 0.0
        %6380 = vmatpush1.msra.mxu0 0.0
        %6381 = vmatprep.subr.mxu0 0.0
        %6382 = vmatpush1.msra.mxu0 0.0
        %6383 = vmatprep.subr.mxu0 0.0
        %6384 = vmatpush1.msra.mxu0 0.0
        %6385 = vmatprep.subr.mxu0 0.0
        %6386 = vmatpush1.msra.mxu0 0.0
        %6387 = vmatprep.subr.mxu0 0.0
        %6388 = vmatpush1.msra.mxu0 0.0
        %6389 = vmatprep.subr.mxu0 0.0
        %6390 = vmatpush1.msra.mxu0 0.0
        %6391 = vmatprep.subr.mxu0 0.0
        %6392 = vmatpush1.msra.mxu0 0.0
        %6393 = vmatprep.subr.mxu0 0.0
        %6394 = vmatpush1.msra.mxu0 0.0
        %6395 = vmatprep.subr.mxu0 0.0
        %6396 = vmatpush1.msra.mxu0 0.0
        %6397 = vmatprep.subr.mxu0 0.0
        %6398 = vmatpush1.msra.mxu0 0.0
        %6399 = vmatprep.subr.mxu0 0.0
        %6400 = vmatpush1.msra.mxu0 0.0
        %6401 = vmatprep.subr.mxu0 0.0
        %6402 = vmatpush1.msra.mxu0 0.0
        %6403 = vmatprep.subr.mxu0 0.0
        %6404 = vmatpush1.msra.mxu0 0.0
        %6405 = vmatprep.subr.mxu0 0.0
        %6406 = vmatpush1.msra.mxu0 0.0
        %6407 = vmatprep.subr.mxu0 0.0
        %6408 = vmatpush1.msra.mxu0 0.0
        %6409 = vmatprep.subr.mxu0 0.0
        %6410 = vmatpush1.msra.mxu0 0.0
        %6411 = vmatprep.subr.mxu0 0.0
        %6412 = vmatpush1.msra.mxu0 0.0
        %6413 = vmatprep.subr.mxu0 0.0
        %6414 = vmatpush1.msra.mxu0 0.0
        %6415 = vmatprep.subr.mxu0 0.0
        %6416 = vmatpush1.msra.mxu0 0.0
        %6417 = vmatprep.subr.mxu0 0.0
        %6418 = vmatpush1.msra.mxu0 0.0
        %6419 = vmatprep.mubr.f32.mxu0 0.0
        %6420 = vmatmul.mubr.f32.gmra.mrb[0].mxu0 %v5801
        %v6421 = vpop.f32.mrb[0].mxu0
        %v6422 = vadd.f32 0.0, %v6421
        %v6423 = vpop.f32.mrb[0].mxu0
        %6424 = vmatprep.mubr.f32.mxu0 0.0
        %6425 = vmatmul.mubr.f32.gmra.mrb[0].mxu0 %v5804
        %v6426 = vpop.f32.mrb[0].mxu0
        %v6427 = vadd.f32 0.0, %v6426
        %v6428 = vpop.f32.mrb[0].mxu0
        %6429 = vmatprep.mubr.f32.mxu0 0.0
        %6430 = vmatmul.mubr.f32.gmra.mrb[0].mxu0 %v5807
        %v6431 = vpop.f32.mrb[0].mxu0
        %v6432 = vadd.f32 0.0, %v6431
        %v6433 = vpop.f32.mrb[0].mxu0
        %6434 = vmatprep.mubr.f32.mxu0 0.0
        %6435 = vmatmul.mubr.f32.gmra.mrb[0].mxu0 %v5810
        %v6436 = vpop.f32.mrb[0].mxu0
        %v6437 = vadd.f32 0.0, %v6436
        %v6438 = vpop.f32.mrb[0].mxu0
        %6439 = vmatprep.mubr.f32.mxu0 0.0
        %6440 = vmatmul.mubr.f32.gmra.mrb[0].mxu0 %v5813
        %v6441 = vpop.f32.mrb[0].mxu0
        %v6442 = vadd.f32 0.0, %v6441
        %v6443 = vpop.f32.mrb[0].mxu0
        %6444 = vdwg.mxu0
        %6445 = vmatprep.subr.mxu0 0.0
        %6446 = vmatpush1.msra.mxu0 %v5749
        %6447 = vmatprep.subr.mxu0 0.0
        %6448 = vmatpush1.msra.mxu0 %v5750
        %6449 = vmatprep.subr.mxu0 0.0
        %6450 = vmatpush1.msra.mxu0 %v5751
        %6451 = vmatprep.subr.mxu0 0.0
        %6452 = vmatpush1.msra.mxu0 %v5752
        %6453 = vmatprep.subr.mxu0 0.0
        %6454 = vmatpush1.msra.mxu0 %v5753
        %6455 = vmatprep.subr.mxu0 0.0
        %6456 = vmatpush1.msra.mxu0 0.0
        %6457 = vmatprep.subr.mxu0 0.0
        %6458 = vmatpush1.msra.mxu0 0.0
        %6459 = vmatprep.subr.mxu0 0.0
        %6460 = vmatpush1.msra.mxu0 0.0
        %6461 = vmatprep.subr.mxu0 0.0
        %6462 = vmatpush1.msra.mxu0 0.0
        %6463 = vmatprep.subr.mxu0 0.0
        %6464 = vmatpush1.msra.mxu0 0.0
        %6465 = vmatprep.subr.mxu0 0.0
        %6466 = vmatpush1.msra.mxu0 0.0
        %6467 = vmatprep.subr.mxu0 0.0
        %6468 = vmatpush1.msra.mxu0 0.0
        %6469 = vmatprep.subr.mxu0 0.0
        %6470 = vmatpush1.msra.mxu0 0.0
        %6471 = vmatprep.subr.mxu0 0.0
        %6472 = vmatpush1.msra.mxu0 0.0
        %6473 = vmatprep.subr.mxu0 0.0
        %6474 = vmatpush1.msra.mxu0 0.0
        %6475 = vmatprep.subr.mxu0 0.0
        %6476 = vmatpush1.msra.mxu0 0.0
        %6477 = vmatprep.subr.mxu0 0.0
        %6478 = vmatpush1.msra.mxu0 0.0
        %6479 = vmatprep.subr.mxu0 0.0
        %6480 = vmatpush1.msra.mxu0 0.0
        %6481 = vmatprep.subr.mxu0 0.0
        %6482 = vmatpush1.msra.mxu0 0.0
        %6483 = vmatprep.subr.mxu0 0.0
        %6484 = vmatpush1.msra.mxu0 0.0
        %6485 = vmatprep.subr.mxu0 0.0
        %6486 = vmatpush1.msra.mxu0 0.0
        %6487 = vmatprep.subr.mxu0 0.0
        %6488 = vmatpush1.msra.mxu0 0.0
        %6489 = vmatprep.subr.mxu0 0.0
        %6490 = vmatpush1.msra.mxu0 0.0
        %6491 = vmatprep.subr.mxu0 0.0
        %6492 = vmatpush1.msra.mxu0 0.0
        %6493 = vmatprep.subr.mxu0 0.0
        %6494 = vmatpush1.msra.mxu0 0.0
        %6495 = vmatprep.subr.mxu0 0.0
        %6496 = vmatpush1.msra.mxu0 0.0
        %6497 = vmatprep.subr.mxu0 0.0
        %6498 = vmatpush1.msra.mxu0 0.0
        %6499 = vmatprep.subr.mxu0 0.0
        %6500 = vmatpush1.msra.mxu0 0.0
        %6501 = vmatprep.subr.mxu0 0.0
        %6502 = vmatpush1.msra.mxu0 0.0
        %6503 = vmatprep.subr.mxu0 0.0
        %6504 = vmatpush1.msra.mxu0 0.0
        %6505 = vmatprep.subr.mxu0 0.0
        %6506 = vmatpush1.msra.mxu0 0.0
        %6507 = vmatprep.subr.mxu0 0.0
        %6508 = vmatpush1.msra.mxu0 0.0
        %6509 = vmatprep.mubr.f32.mxu0 0.0
        %6510 = vmatmul.mubr.f32.gmra.mrb[0].mxu0 %v5801
        %v6511 = vpop.f32.mrb[0].mxu0
        %v6512 = vadd.f32 0.0, %v6511
        %v6513 = vpop.f32.mrb[0].mxu0
        %6514 = vmatprep.mubr.f32.mxu0 0.0
        %6515 = vmatmul.mubr.f32.gmra.mrb[0].mxu0 %v5804
        %v6516 = vpop.f32.mrb[0].mxu0
        %v6517 = vadd.f32 0.0, %v6516
        %v6518 = vpop.f32.mrb[0].mxu0
        %6519 = vmatprep.mubr.f32.mxu0 0.0
        %6520 = vmatmul.mubr.f32.gmra.mrb[0].mxu0 %v5807
        %v6521 = vpop.f32.mrb[0].mxu0
        %v6522 = vadd.f32 0.0, %v6521
        %v6523 = vpop.f32.mrb[0].mxu0
        %6524 = vmatprep.mubr.f32.mxu0 0.0
        %6525 = vmatmul.mubr.f32.gmra.mrb[0].mxu0 %v5810
        %v6526 = vpop.f32.mrb[0].mxu0
        %v6527 = vadd.f32 0.0, %v6526
        %v6528 = vpop.f32.mrb[0].mxu0
        %6529 = vmatprep.mubr.f32.mxu0 0.0
        %6530 = vmatmul.mubr.f32.gmra.mrb[0].mxu0 %v5813
        %v6531 = vpop.f32.mrb[0].mxu0
        %v6532 = vadd.f32 0.0, %v6531
        %v6533 = vpop.f32.mrb[0].mxu0
        %6534 = vdwg.mxu0
        %6535 = vmatprep.subr.mxu0 0.0
        %6536 = vmatpush1.msra.mxu0 %v5754
        %6537 = vmatprep.subr.mxu0 0.0
        %6538 = vmatpush1.msra.mxu0 %v5755
        %6539 = vmatprep.subr.mxu0 0.0
        %6540 = vmatpush1.msra.mxu0 %v5756
        %6541 = vmatprep.subr.mxu0 0.0
        %6542 = vmatpush1.msra.mxu0 %v5757
        %6543 = vmatprep.subr.mxu0 0.0
        %6544 = vmatpush1.msra.mxu0 %v5758
        %6545 = vmatprep.subr.mxu0 0.0
        %6546 = vmatpush1.msra.mxu0 0.0
        %6547 = vmatprep.subr.mxu0 0.0
        %6548 = vmatpush1.msra.mxu0 0.0
        %6549 = vmatprep.subr.mxu0 0.0
        %6550 = vmatpush1.msra.mxu0 0.0
        %6551 = vmatprep.subr.mxu0 0.0
        %6552 = vmatpush1.msra.mxu0 0.0
        %6553 = vmatprep.subr.mxu0 0.0
        %6554 = vmatpush1.msra.mxu0 0.0
        %6555 = vmatprep.subr.mxu0 0.0
        %6556 = vmatpush1.msra.mxu0 0.0
        %6557 = vmatprep.subr.mxu0 0.0
        %6558 = vmatpush1.msra.mxu0 0.0
        %6559 = vmatprep.subr.mxu0 0.0
        %6560 = vmatpush1.msra.mxu0 0.0
        %6561 = vmatprep.subr.mxu0 0.0
        %6562 = vmatpush1.msra.mxu0 0.0
        %6563 = vmatprep.subr.mxu0 0.0
        %6564 = vmatpush1.msra.mxu0 0.0
        %6565 = vmatprep.subr.mxu0 0.0
        %6566 = vmatpush1.msra.mxu0 0.0
        %6567 = vmatprep.subr.mxu0 0.0
        %6568 = vmatpush1.msra.mxu0 0.0
        %6569 = vmatprep.subr.mxu0 0.0
        %6570 = vmatpush1.msra.mxu0 0.0
        %6571 = vmatprep.subr.mxu0 0.0
        %6572 = vmatpush1.msra.mxu0 0.0
        %6573 = vmatprep.subr.mxu0 0.0
        %6574 = vmatpush1.msra.mxu0 0.0
        %6575 = vmatprep.subr.mxu0 0.0
        %6576 = vmatpush1.msra.mxu0 0.0
        %6577 = vmatprep.subr.mxu0 0.0
        %6578 = vmatpush1.msra.mxu0 0.0
        %6579 = vmatprep.subr.mxu0 0.0
        %6580 = vmatpush1.msra.mxu0 0.0
        %6581 = vmatprep.subr.mxu0 0.0
        %6582 = vmatpush1.msra.mxu0 0.0
        %6583 = vmatprep.subr.mxu0 0.0
        %6584 = vmatpush1.msra.mxu0 0.0
        %6585 = vmatprep.subr.mxu0 0.0
        %6586 = vmatpush1.msra.mxu0 0.0
        %6587 = vmatprep.subr.mxu0 0.0
        %6588 = vmatpush1.msra.mxu0 0.0
        %6589 = vmatprep.subr.mxu0 0.0
        %6590 = vmatpush1.msra.mxu0 0.0
        %6591 = vmatprep.subr.mxu0 0.0
        %6592 = vmatpush1.msra.mxu0 0.0
        %6593 = vmatprep.subr.mxu0 0.0
        %6594 = vmatpush1.msra.mxu0 0.0
        %6595 = vmatprep.subr.mxu0 0.0
        %6596 = vmatpush1.msra.mxu0 0.0
        %6597 = vmatprep.subr.mxu0 0.0
        %6598 = vmatpush1.msra.mxu0 0.0
        %6599 = vmatprep.mubr.f32.mxu0 0.0
        %6600 = vmatmul.mubr.f32.gmra.mrb[0].mxu0 %v5801
        %v6601 = vpop.f32.mrb[0].mxu0
        %v6602 = vadd.f32 0.0, %v6601
        %v6603 = vpop.f32.mrb[0].mxu0
        %6604 = vmatprep.mubr.f32.mxu0 0.0
        %6605 = vmatmul.mubr.f32.gmra.mrb[0].mxu0 %v5804
        %v6606 = vpop.f32.mrb[0].mxu0
        %v6607 = vadd.f32 0.0, %v6606
        %v6608 = vpop.f32.mrb[0].mxu0
        %6609 = vmatprep.mubr.f32.mxu0 0.0
        %6610 = vmatmul.mubr.f32.gmra.mrb[0].mxu0 %v5807
        %v6611 = vpop.f32.mrb[0].mxu0
        %v6612 = vadd.f32 0.0, %v6611
        %v6613 = vpop.f32.mrb[0].mxu0
        %6614 = vmatprep.mubr.f32.mxu0 0.0
        %6615 = vmatmul.mubr.f32.gmra.mrb[0].mxu0 %v5810
        %v6616 = vpop.f32.mrb[0].mxu0
        %v6617 = vadd.f32 0.0, %v6616
        %v6618 = vpop.f32.mrb[0].mxu0
        %6619 = vmatprep.mubr.f32.mxu0 0.0
        %6620 = vmatmul.mubr.f32.gmra.mrb[0].mxu0 %v5813
        %v6621 = vpop.f32.mrb[0].mxu0
        %v6622 = vadd.f32 0.0, %v6621
        %v6623 = vpop.f32.mrb[0].mxu0
        %6624 = vdwg.mxu0
        %6625 = vmatprep.subr.mxu0 0.0
        %6626 = vmatpush1.msra.mxu0 %v5759
        %6627 = vmatprep.subr.mxu0 0.0
        %6628 = vmatpush1.msra.mxu0 %v5760
        %6629 = vmatprep.subr.mxu0 0.0
        %6630 = vmatpush1.msra.mxu0 %v5761
        %6631 = vmatprep.subr.mxu0 0.0
        %6632 = vmatpush1.msra.mxu0 %v5762
        %6633 = vmatprep.subr.mxu0 0.0
        %6634 = vmatpush1.msra.mxu0 %v5763
        %6635 = vmatprep.subr.mxu0 0.0
        %6636 = vmatpush1.msra.mxu0 0.0
        %6637 = vmatprep.subr.mxu0 0.0
        %6638 = vmatpush1.msra.mxu0 0.0
        %6639 = vmatprep.subr.mxu0 0.0
        %6640 = vmatpush1.msra.mxu0 0.0
        %6641 = vmatprep.subr.mxu0 0.0
        %6642 = vmatpush1.msra.mxu0 0.0
        %6643 = vmatprep.subr.mxu0 0.0
        %6644 = vmatpush1.msra.mxu0 0.0
        %6645 = vmatprep.subr.mxu0 0.0
        %6646 = vmatpush1.msra.mxu0 0.0
        %6647 = vmatprep.subr.mxu0 0.0
        %6648 = vmatpush1.msra.mxu0 0.0
        %6649 = vmatprep.subr.mxu0 0.0
        %6650 = vmatpush1.msra.mxu0 0.0
        %6651 = vmatprep.subr.mxu0 0.0
        %6652 = vmatpush1.msra.mxu0 0.0
        %6653 = vmatprep.subr.mxu0 0.0
        %6654 = vmatpush1.msra.mxu0 0.0
        %6655 = vmatprep.subr.mxu0 0.0
        %6656 = vmatpush1.msra.mxu0 0.0
        %6657 = vmatprep.subr.mxu0 0.0
        %6658 = vmatpush1.msra.mxu0 0.0
        %6659 = vmatprep.subr.mxu0 0.0
        %6660 = vmatpush1.msra.mxu0 0.0
        %6661 = vmatprep.subr.mxu0 0.0
        %6662 = vmatpush1.msra.mxu0 0.0
        %6663 = vmatprep.subr.mxu0 0.0
        %6664 = vmatpush1.msra.mxu0 0.0
        %6665 = vmatprep.subr.mxu0 0.0
        %6666 = vmatpush1.msra.mxu0 0.0
        %6667 = vmatprep.subr.mxu0 0.0
        %6668 = vmatpush1.msra.mxu0 0.0
        %6669 = vmatprep.subr.mxu0 0.0
        %6670 = vmatpush1.msra.mxu0 0.0
        %6671 = vmatprep.subr.mxu0 0.0
        %6672 = vmatpush1.msra.mxu0 0.0
        %6673 = vmatprep.subr.mxu0 0.0
        %6674 = vmatpush1.msra.mxu0 0.0
        %6675 = vmatprep.subr.mxu0 0.0
        %6676 = vmatpush1.msra.mxu0 0.0
        %6677 = vmatprep.subr.mxu0 0.0
        %6678 = vmatpush1.msra.mxu0 0.0
        %6679 = vmatprep.subr.mxu0 0.0
        %6680 = vmatpush1.msra.mxu0 0.0
        %6681 = vmatprep.subr.mxu0 0.0
        %6682 = vmatpush1.msra.mxu0 0.0
        %6683 = vmatprep.subr.mxu0 0.0
        %6684 = vmatpush1.msra.mxu0 0.0
        %6685 = vmatprep.subr.mxu0 0.0
        %6686 = vmatpush1.msra.mxu0 0.0
        %6687 = vmatprep.subr.mxu0 0.0
        %6688 = vmatpush1.msra.mxu0 0.0
        %6689 = vmatprep.mubr.f32.mxu0 0.0
        %6690 = vmatmul.mubr.f32.gmra.mrb[0].mxu0 %v5801
        %v6691 = vpop.f32.mrb[0].mxu0
        %v6692 = vadd.f32 0.0, %v6691
        %v6693 = vpop.f32.mrb[0].mxu0
        %6694 = vmatprep.mubr.f32.mxu0 0.0
        %6695 = vmatmul.mubr.f32.gmra.mrb[0].mxu0 %v5804
        %v6696 = vpop.f32.mrb[0].mxu0
        %v6697 = vadd.f32 0.0, %v6696
        %v6698 = vpop.f32.mrb[0].mxu0
        %6699 = vmatprep.mubr.f32.mxu0 0.0
        %6700 = vmatmul.mubr.f32.gmra.mrb[0].mxu0 %v5807
        %v6701 = vpop.f32.mrb[0].mxu0
        %v6702 = vadd.f32 0.0, %v6701
        %v6703 = vpop.f32.mrb[0].mxu0
        %6704 = vmatprep.mubr.f32.mxu0 0.0
        %6705 = vmatmul.mubr.f32.gmra.mrb[0].mxu0 %v5810
        %v6706 = vpop.f32.mrb[0].mxu0
        %v6707 = vadd.f32 0.0, %v6706
        %v6708 = vpop.f32.mrb[0].mxu0
        %6709 = vmatprep.mubr.f32.mxu0 0.0
        %6710 = vmatmul.mubr.f32.gmra.mrb[0].mxu0 %v5813
        %v6711 = vpop.f32.mrb[0].mxu0
        %v6712 = vadd.f32 0.0, %v6711
        %v6713 = vpop.f32.mrb[0].mxu0
        %6714 = vdwg.mxu0
        %6715 = vmatprep.subr.mxu0 0.0
        %6716 = vmatpush1.msra.mxu0 %v5764
        %6717 = vmatprep.subr.mxu0 0.0
        %6718 = vmatpush1.msra.mxu0 %v5765
        %6719 = vmatprep.subr.mxu0 0.0
        %6720 = vmatpush1.msra.mxu0 %v5766
        %6721 = vmatprep.subr.mxu0 0.0
        %6722 = vmatpush1.msra.mxu0 %v5767
        %6723 = vmatprep.subr.mxu0 0.0
        %6724 = vmatpush1.msra.mxu0 %v5768
        %6725 = vmatprep.subr.mxu0 0.0
        %6726 = vmatpush1.msra.mxu0 0.0
        %6727 = vmatprep.subr.mxu0 0.0
        %6728 = vmatpush1.msra.mxu0 0.0
        %6729 = vmatprep.subr.mxu0 0.0
        %6730 = vmatpush1.msra.mxu0 0.0
        %6731 = vmatprep.subr.mxu0 0.0
        %6732 = vmatpush1.msra.mxu0 0.0
        %6733 = vmatprep.subr.mxu0 0.0
        %6734 = vmatpush1.msra.mxu0 0.0
        %6735 = vmatprep.subr.mxu0 0.0
        %6736 = vmatpush1.msra.mxu0 0.0
        %6737 = vmatprep.subr.mxu0 0.0
        %6738 = vmatpush1.msra.mxu0 0.0
        %6739 = vmatprep.subr.mxu0 0.0
        %6740 = vmatpush1.msra.mxu0 0.0
        %6741 = vmatprep.subr.mxu0 0.0
        %6742 = vmatpush1.msra.mxu0 0.0
        %6743 = vmatprep.subr.mxu0 0.0
        %6744 = vmatpush1.msra.mxu0 0.0
        %6745 = vmatprep.subr.mxu0 0.0
        %6746 = vmatpush1.msra.mxu0 0.0
        %6747 = vmatprep.subr.mxu0 0.0
        %6748 = vmatpush1.msra.mxu0 0.0
        %6749 = vmatprep.subr.mxu0 0.0
        %6750 = vmatpush1.msra.mxu0 0.0
        %6751 = vmatprep.subr.mxu0 0.0
        %6752 = vmatpush1.msra.mxu0 0.0
        %6753 = vmatprep.subr.mxu0 0.0
        %6754 = vmatpush1.msra.mxu0 0.0
        %6755 = vmatprep.subr.mxu0 0.0
        %6756 = vmatpush1.msra.mxu0 0.0
        %6757 = vmatprep.subr.mxu0 0.0
        %6758 = vmatpush1.msra.mxu0 0.0
        %6759 = vmatprep.subr.mxu0 0.0
        %6760 = vmatpush1.msra.mxu0 0.0
        %6761 = vmatprep.subr.mxu0 0.0
        %6762 = vmatpush1.msra.mxu0 0.0
        %6763 = vmatprep.subr.mxu0 0.0
        %6764 = vmatpush1.msra.mxu0 0.0
        %6765 = vmatprep.subr.mxu0 0.0
        %6766 = vmatpush1.msra.mxu0 0.0
        %6767 = vmatprep.subr.mxu0 0.0
        %6768 = vmatpush1.msra.mxu0 0.0
        %6769 = vmatprep.subr.mxu0 0.0
        %6770 = vmatpush1.msra.mxu0 0.0
        %6771 = vmatprep.subr.mxu0 0.0
        %6772 = vmatpush1.msra.mxu0 0.0
        %6773 = vmatprep.subr.mxu0 0.0
        %6774 = vmatpush1.msra.mxu0 0.0
        %6775 = vmatprep.subr.mxu0 0.0
        %6776 = vmatpush1.msra.mxu0 0.0
        %6777 = vmatprep.subr.mxu0 0.0
        %6778 = vmatpush1.msra.mxu0 0.0
        %6779 = vmatprep.mubr.f32.mxu0 0.0
        %6780 = vmatmul.mubr.f32.gmra.mrb[0].mxu0 %v5801
        %v6781 = vpop.f32.mrb[0].mxu0
        %v6782 = vadd.f32 0.0, %v6781
        %v6783 = vpop.f32.mrb[0].mxu0
        %6784 = vmatprep.mubr.f32.mxu0 0.0
        %6785 = vmatmul.mubr.f32.gmra.mrb[0].mxu0 %v5804
        %v6786 = vpop.f32.mrb[0].mxu0
        %v6787 = vadd.f32 0.0, %v6786
        %v6788 = vpop.f32.mrb[0].mxu0
        %6789 = vmatprep.mubr.f32.mxu0 0.0
        %6790 = vmatmul.mubr.f32.gmra.mrb[0].mxu0 %v5807
        %v6791 = vpop.f32.mrb[0].mxu0
        %v6792 = vadd.f32 0.0, %v6791
        %v6793 = vpop.f32.mrb[0].mxu0
        %6794 = vmatprep.mubr.f32.mxu0 0.0
        %6795 = vmatmul.mubr.f32.gmra.mrb[0].mxu0 %v5810
        %v6796 = vpop.f32.mrb[0].mxu0
        %v6797 = vadd.f32 0.0, %v6796
        %v6798 = vpop.f32.mrb[0].mxu0
        %6799 = vmatprep.mubr.f32.mxu0 0.0
        %6800 = vmatmul.mubr.f32.gmra.mrb[0].mxu0 %v5813
        %v6801 = vpop.f32.mrb[0].mxu0
        %v6802 = vadd.f32 0.0, %v6801
        %v6803 = vpop.f32.mrb[0].mxu0
        %6804 = vdwg.mxu0
        %6805 = vmatprep.subr.mxu0 0.0
        %6806 = vmatpush1.msra.mxu0 %v5769
        %6807 = vmatprep.subr.mxu0 0.0
        %6808 = vmatpush1.msra.mxu0 %v5770
        %6809 = vmatprep.subr.mxu0 0.0
        %6810 = vmatpush1.msra.mxu0 %v5771
        %6811 = vmatprep.subr.mxu0 0.0
        %6812 = vmatpush1.msra.mxu0 %v5772
        %6813 = vmatprep.subr.mxu0 0.0
        %6814 = vmatpush1.msra.mxu0 %v5773
        %6815 = vmatprep.subr.mxu0 0.0
        %6816 = vmatpush1.msra.mxu0 0.0
        %6817 = vmatprep.subr.mxu0 0.0
        %6818 = vmatpush1.msra.mxu0 0.0
        %6819 = vmatprep.subr.mxu0 0.0
        %6820 = vmatpush1.msra.mxu0 0.0
        %6821 = vmatprep.subr.mxu0 0.0
        %6822 = vmatpush1.msra.mxu0 0.0
        %6823 = vmatprep.subr.mxu0 0.0
        %6824 = vmatpush1.msra.mxu0 0.0
        %6825 = vmatprep.subr.mxu0 0.0
        %6826 = vmatpush1.msra.mxu0 0.0
        %6827 = vmatprep.subr.mxu0 0.0
        %6828 = vmatpush1.msra.mxu0 0.0
        %6829 = vmatprep.subr.mxu0 0.0
        %6830 = vmatpush1.msra.mxu0 0.0
        %6831 = vmatprep.subr.mxu0 0.0
        %6832 = vmatpush1.msra.mxu0 0.0
        %6833 = vmatprep.subr.mxu0 0.0
        %6834 = vmatpush1.msra.mxu0 0.0
        %6835 = vmatprep.subr.mxu0 0.0
        %6836 = vmatpush1.msra.mxu0 0.0
        %6837 = vmatprep.subr.mxu0 0.0
        %6838 = vmatpush1.msra.mxu0 0.0
        %6839 = vmatprep.subr.mxu0 0.0
        %6840 = vmatpush1.msra.mxu0 0.0
        %6841 = vmatprep.subr.mxu0 0.0
        %6842 = vmatpush1.msra.mxu0 0.0
        %6843 = vmatprep.subr.mxu0 0.0
        %6844 = vmatpush1.msra.mxu0 0.0
        %6845 = vmatprep.subr.mxu0 0.0
        %6846 = vmatpush1.msra.mxu0 0.0
        %6847 = vmatprep.subr.mxu0 0.0
        %6848 = vmatpush1.msra.mxu0 0.0
        %6849 = vmatprep.subr.mxu0 0.0
        %6850 = vmatpush1.msra.mxu0 0.0
        %6851 = vmatprep.subr.mxu0 0.0
        %6852 = vmatpush1.msra.mxu0 0.0
        %6853 = vmatprep.subr.mxu0 0.0
        %6854 = vmatpush1.msra.mxu0 0.0
        %6855 = vmatprep.subr.mxu0 0.0
        %6856 = vmatpush1.msra.mxu0 0.0
        %6857 = vmatprep.subr.mxu0 0.0
        %6858 = vmatpush1.msra.mxu0 0.0
        %6859 = vmatprep.subr.mxu0 0.0
        %6860 = vmatpush1.msra.mxu0 0.0
        %6861 = vmatprep.subr.mxu0 0.0
        %6862 = vmatpush1.msra.mxu0 0.0
        %6863 = vmatprep.subr.mxu0 0.0
        %6864 = vmatpush1.msra.mxu0 0.0
        %6865 = vmatprep.subr.mxu0 0.0
        %6866 = vmatpush1.msra.mxu0 0.0
        %6867 = vmatprep.subr.mxu0 0.0
        %6868 = vmatpush1.msra.mxu0 0.0
        %6869 = vmatprep.mubr.f32.mxu0 0.0
        %6870 = vmatmul.mubr.f32.gmra.mrb[0].mxu0 %v5801
        %v6871 = vpop.f32.mrb[0].mxu0
        %v6872 = vadd.f32 0.0, %v6871
        %v6873 = vpop.f32.mrb[0].mxu0
        %6874 = vmatprep.mubr.f32.mxu0 0.0
        %6875 = vmatmul.mubr.f32.gmra.mrb[0].mxu0 %v5804
        %v6876 = vpop.f32.mrb[0].mxu0
        %v6877 = vadd.f32 0.0, %v6876
        %v6878 = vpop.f32.mrb[0].mxu0
        %6879 = vmatprep.mubr.f32.mxu0 0.0
        %6880 = vmatmul.mubr.f32.gmra.mrb[0].mxu0 %v5807
        %v6881 = vpop.f32.mrb[0].mxu0
        %v6882 = vadd.f32 0.0, %v6881
        %v6883 = vpop.f32.mrb[0].mxu0
        %6884 = vmatprep.mubr.f32.mxu0 0.0
        %6885 = vmatmul.mubr.f32.gmra.mrb[0].mxu0 %v5810
        %v6886 = vpop.f32.mrb[0].mxu0
        %v6887 = vadd.f32 0.0, %v6886
        %v6888 = vpop.f32.mrb[0].mxu0
        %6889 = vmatprep.mubr.f32.mxu0 0.0
        %6890 = vmatmul.mubr.f32.gmra.mrb[0].mxu0 %v5813
        %v6891 = vpop.f32.mrb[0].mxu0
        %v6892 = vadd.f32 0.0, %v6891
        %v6893 = vpop.f32.mrb[0].mxu0
        %6894 = vdwg.mxu0
        %6895 = vmatprep.subr.mxu0 0.0
        %6896 = vmatpush1.msra.mxu0 %v5774
        %6897 = vmatprep.subr.mxu0 0.0
        %6898 = vmatpush1.msra.mxu0 %v5775
        %6899 = vmatprep.subr.mxu0 0.0
        %6900 = vmatpush1.msra.mxu0 %v5776
        %6901 = vmatprep.subr.mxu0 0.0
        %6902 = vmatpush1.msra.mxu0 %v5777
        %6903 = vmatprep.subr.mxu0 0.0
        %6904 = vmatpush1.msra.mxu0 %v5778
        %6905 = vmatprep.subr.mxu0 0.0
        %6906 = vmatpush1.msra.mxu0 0.0
        %6907 = vmatprep.subr.mxu0 0.0
        %6908 = vmatpush1.msra.mxu0 0.0
        %6909 = vmatprep.subr.mxu0 0.0
        %6910 = vmatpush1.msra.mxu0 0.0
        %6911 = vmatprep.subr.mxu0 0.0
        %6912 = vmatpush1.msra.mxu0 0.0
        %6913 = vmatprep.subr.mxu0 0.0
        %6914 = vmatpush1.msra.mxu0 0.0
        %6915 = vmatprep.subr.mxu0 0.0
        %6916 = vmatpush1.msra.mxu0 0.0
        %6917 = vmatprep.subr.mxu0 0.0
        %6918 = vmatpush1.msra.mxu0 0.0
        %6919 = vmatprep.subr.mxu0 0.0
        %6920 = vmatpush1.msra.mxu0 0.0
        %6921 = vmatprep.subr.mxu0 0.0
        %6922 = vmatpush1.msra.mxu0 0.0
        %6923 = vmatprep.subr.mxu0 0.0
        %6924 = vmatpush1.msra.mxu0 0.0
        %6925 = vmatprep.subr.mxu0 0.0
        %6926 = vmatpush1.msra.mxu0 0.0
        %6927 = vmatprep.subr.mxu0 0.0
        %6928 = vmatpush1.msra.mxu0 0.0
        %6929 = vmatprep.subr.mxu0 0.0
        %6930 = vmatpush1.msra.mxu0 0.0
        %6931 = vmatprep.subr.mxu0 0.0
        %6932 = vmatpush1.msra.mxu0 0.0
        %6933 = vmatprep.subr.mxu0 0.0
        %6934 = vmatpush1.msra.mxu0 0.0
        %6935 = vmatprep.subr.mxu0 0.0
        %6936 = vmatpush1.msra.mxu0 0.0
        %6937 = vmatprep.subr.mxu0 0.0
        %6938 = vmatpush1.msra.mxu0 0.0
        %6939 = vmatprep.subr.mxu0 0.0
        %6940 = vmatpush1.msra.mxu0 0.0
        %6941 = vmatprep.subr.mxu0 0.0
        %6942 = vmatpush1.msra.mxu0 0.0
        %6943 = vmatprep.subr.mxu0 0.0
        %6944 = vmatpush1.msra.mxu0 0.0
        %6945 = vmatprep.subr.mxu0 0.0
        %6946 = vmatpush1.msra.mxu0 0.0
        %6947 = vmatprep.subr.mxu0 0.0
        %6948 = vmatpush1.msra.mxu0 0.0
        %6949 = vmatprep.subr.mxu0 0.0
        %6950 = vmatpush1.msra.mxu0 0.0
        %6951 = vmatprep.subr.mxu0 0.0
        %6952 = vmatpush1.msra.mxu0 0.0
        %6953 = vmatprep.subr.mxu0 0.0
        %6954 = vmatpush1.msra.mxu0 0.0
        %6955 = vmatprep.subr.mxu0 0.0
        %6956 = vmatpush1.msra.mxu0 0.0
        %6957 = vmatprep.subr.mxu0 0.0
        %6958 = vmatpush1.msra.mxu0 0.0
        %6959 = vmatprep.mubr.f32.mxu0 0.0
        %6960 = vmatmul.mubr.f32.gmra.mrb[0].mxu0 %v5801
        %v6961 = vpop.f32.mrb[0].mxu0
        %v6962 = vadd.f32 0.0, %v6961
        %v6963 = vpop.f32.mrb[0].mxu0
        %6964 = vmatprep.mubr.f32.mxu0 0.0
        %6965 = vmatmul.mubr.f32.gmra.mrb[0].mxu0 %v5804
        %v6966 = vpop.f32.mrb[0].mxu0
        %v6967 = vadd.f32 0.0, %v6966
        %v6968 = vpop.f32.mrb[0].mxu0
        %6969 = vmatprep.mubr.f32.mxu0 0.0
        %6970 = vmatmul.mubr.f32.gmra.mrb[0].mxu0 %v5807
        %v6971 = vpop.f32.mrb[0].mxu0
        %v6972 = vadd.f32 0.0, %v6971
        %v6973 = vpop.f32.mrb[0].mxu0
        %6974 = vmatprep.mubr.f32.mxu0 0.0
        %6975 = vmatmul.mubr.f32.gmra.mrb[0].mxu0 %v5810
        %v6976 = vpop.f32.mrb[0].mxu0
        %v6977 = vadd.f32 0.0, %v6976
        %v6978 = vpop.f32.mrb[0].mxu0
        %6979 = vmatprep.mubr.f32.mxu0 0.0
        %6980 = vmatmul.mubr.f32.gmra.mrb[0].mxu0 %v5813
        %v6981 = vpop.f32.mrb[0].mxu0
        %v6982 = vadd.f32 0.0, %v6981
        %v6983 = vpop.f32.mrb[0].mxu0
        %6984 = vdwg.mxu0
        %6985 = vmatprep.subr.mxu0 0.0
        %6986 = vmatpush1.msra.mxu0 %v5779
        %6987 = vmatprep.subr.mxu0 0.0
        %6988 = vmatpush1.msra.mxu0 %v5780
        %6989 = vmatprep.subr.mxu0 0.0
        %6990 = vmatpush1.msra.mxu0 %v5781
        %6991 = vmatprep.subr.mxu0 0.0
        %6992 = vmatpush1.msra.mxu0 %v5782
        %6993 = vmatprep.subr.mxu0 0.0
        %6994 = vmatpush1.msra.mxu0 %v5783
        %6995 = vmatprep.subr.mxu0 0.0
        %6996 = vmatpush1.msra.mxu0 0.0
        %6997 = vmatprep.subr.mxu0 0.0
        %6998 = vmatpush1.msra.mxu0 0.0
        %6999 = vmatprep.subr.mxu0 0.0
        %7000 = vmatpush1.msra.mxu0 0.0
        %7001 = vmatprep.subr.mxu0 0.0
        %7002 = vmatpush1.msra.mxu0 0.0
        %7003 = vmatprep.subr.mxu0 0.0
        %7004 = vmatpush1.msra.mxu0 0.0
        %7005 = vmatprep.subr.mxu0 0.0
        %7006 = vmatpush1.msra.mxu0 0.0
        %7007 = vmatprep.subr.mxu0 0.0
        %7008 = vmatpush1.msra.mxu0 0.0
        %7009 = vmatprep.subr.mxu0 0.0
        %7010 = vmatpush1.msra.mxu0 0.0
        %7011 = vmatprep.subr.mxu0 0.0
        %7012 = vmatpush1.msra.mxu0 0.0
        %7013 = vmatprep.subr.mxu0 0.0
        %7014 = vmatpush1.msra.mxu0 0.0
        %7015 = vmatprep.subr.mxu0 0.0
        %7016 = vmatpush1.msra.mxu0 0.0
        %7017 = vmatprep.subr.mxu0 0.0
        %7018 = vmatpush1.msra.mxu0 0.0
        %7019 = vmatprep.subr.mxu0 0.0
        %7020 = vmatpush1.msra.mxu0 0.0
        %7021 = vmatprep.subr.mxu0 0.0
        %7022 = vmatpush1.msra.mxu0 0.0
        %7023 = vmatprep.subr.mxu0 0.0
        %7024 = vmatpush1.msra.mxu0 0.0
        %7025 = vmatprep.subr.mxu0 0.0
        %7026 = vmatpush1.msra.mxu0 0.0
        %7027 = vmatprep.subr.mxu0 0.0
        %7028 = vmatpush1.msra.mxu0 0.0
        %7029 = vmatprep.subr.mxu0 0.0
        %7030 = vmatpush1.msra.mxu0 0.0
        %7031 = vmatprep.subr.mxu0 0.0
        %7032 = vmatpush1.msra.mxu0 0.0
        %7033 = vmatprep.subr.mxu0 0.0
        %7034 = vmatpush1.msra.mxu0 0.0
        %7035 = vmatprep.subr.mxu0 0.0
        %7036 = vmatpush1.msra.mxu0 0.0
        %7037 = vmatprep.subr.mxu0 0.0
        %7038 = vmatpush1.msra.mxu0 0.0
        %7039 = vmatprep.subr.mxu0 0.0
        %7040 = vmatpush1.msra.mxu0 0.0
        %7041 = vmatprep.subr.mxu0 0.0
        %7042 = vmatpush1.msra.mxu0 0.0
        %7043 = vmatprep.subr.mxu0 0.0
        %7044 = vmatpush1.msra.mxu0 0.0
        %7045 = vmatprep.subr.mxu0 0.0
        %7046 = vmatpush1.msra.mxu0 0.0
        %7047 = vmatprep.subr.mxu0 0.0
        %7048 = vmatpush1.msra.mxu0 0.0
        %7049 = vmatprep.mubr.f32.mxu0 0.0
        %7050 = vmatmul.mubr.f32.gmra.mrb[0].mxu0 %v5801
        %v7051 = vpop.f32.mrb[0].mxu0
        %v7052 = vadd.f32 0.0, %v7051
        %v7053 = vpop.f32.mrb[0].mxu0
        %7054 = vmatprep.mubr.f32.mxu0 0.0
        %7055 = vmatmul.mubr.f32.gmra.mrb[0].mxu0 %v5804
        %v7056 = vpop.f32.mrb[0].mxu0
        %v7057 = vadd.f32 0.0, %v7056
        %v7058 = vpop.f32.mrb[0].mxu0
        %7059 = vmatprep.mubr.f32.mxu0 0.0
        %7060 = vmatmul.mubr.f32.gmra.mrb[0].mxu0 %v5807
        %v7061 = vpop.f32.mrb[0].mxu0
        %v7062 = vadd.f32 0.0, %v7061
        %v7063 = vpop.f32.mrb[0].mxu0
        %7064 = vmatprep.mubr.f32.mxu0 0.0
        %7065 = vmatmul.mubr.f32.gmra.mrb[0].mxu0 %v5810
        %v7066 = vpop.f32.mrb[0].mxu0
        %v7067 = vadd.f32 0.0, %v7066
        %v7068 = vpop.f32.mrb[0].mxu0
        %7069 = vmatprep.mubr.f32.mxu0 0.0
        %7070 = vmatmul.mubr.f32.gmra.mrb[0].mxu0 %v5813
        %v7071 = vpop.f32.mrb[0].mxu0
        %v7072 = vadd.f32 0.0, %v7071
        %v7073 = vpop.f32.mrb[0].mxu0
        %7074 = vdwg.mxu0
        %7075 = vmatprep.subr.mxu0 0.0
        %7076 = vmatpush1.msra.mxu0 %v5784
        %7077 = vmatprep.subr.mxu0 0.0
        %7078 = vmatpush1.msra.mxu0 %v5785
        %7079 = vmatprep.subr.mxu0 0.0
        %7080 = vmatpush1.msra.mxu0 %v5786
        %7081 = vmatprep.subr.mxu0 0.0
        %7082 = vmatpush1.msra.mxu0 %v5787
        %7083 = vmatprep.subr.mxu0 0.0
        %7084 = vmatpush1.msra.mxu0 %v5788
        %7085 = vmatprep.subr.mxu0 0.0
        %7086 = vmatpush1.msra.mxu0 0.0
        %7087 = vmatprep.subr.mxu0 0.0
        %7088 = vmatpush1.msra.mxu0 0.0
        %7089 = vmatprep.subr.mxu0 0.0
        %7090 = vmatpush1.msra.mxu0 0.0
        %7091 = vmatprep.subr.mxu0 0.0
        %7092 = vmatpush1.msra.mxu0 0.0
        %7093 = vmatprep.subr.mxu0 0.0
        %7094 = vmatpush1.msra.mxu0 0.0
        %7095 = vmatprep.subr.mxu0 0.0
        %7096 = vmatpush1.msra.mxu0 0.0
        %7097 = vmatprep.subr.mxu0 0.0
        %7098 = vmatpush1.msra.mxu0 0.0
        %7099 = vmatprep.subr.mxu0 0.0
        %7100 = vmatpush1.msra.mxu0 0.0
        %7101 = vmatprep.subr.mxu0 0.0
        %7102 = vmatpush1.msra.mxu0 0.0
        %7103 = vmatprep.subr.mxu0 0.0
        %7104 = vmatpush1.msra.mxu0 0.0
        %7105 = vmatprep.subr.mxu0 0.0
        %7106 = vmatpush1.msra.mxu0 0.0
        %7107 = vmatprep.subr.mxu0 0.0
        %7108 = vmatpush1.msra.mxu0 0.0
        %7109 = vmatprep.subr.mxu0 0.0
        %7110 = vmatpush1.msra.mxu0 0.0
        %7111 = vmatprep.subr.mxu0 0.0
        %7112 = vmatpush1.msra.mxu0 0.0
        %7113 = vmatprep.subr.mxu0 0.0
        %7114 = vmatpush1.msra.mxu0 0.0
        %7115 = vmatprep.subr.mxu0 0.0
        %7116 = vmatpush1.msra.mxu0 0.0
        %7117 = vmatprep.subr.mxu0 0.0
        %7118 = vmatpush1.msra.mxu0 0.0
        %7119 = vmatprep.subr.mxu0 0.0
        %7120 = vmatpush1.msra.mxu0 0.0
        %7121 = vmatprep.subr.mxu0 0.0
        %7122 = vmatpush1.msra.mxu0 0.0
        %7123 = vmatprep.subr.mxu0 0.0
        %7124 = vmatpush1.msra.mxu0 0.0
        %7125 = vmatprep.subr.mxu0 0.0
        %7126 = vmatpush1.msra.mxu0 0.0
        %7127 = vmatprep.subr.mxu0 0.0
        %7128 = vmatpush1.msra.mxu0 0.0
        %7129 = vmatprep.subr.mxu0 0.0
        %7130 = vmatpush1.msra.mxu0 0.0
        %7131 = vmatprep.subr.mxu0 0.0
        %7132 = vmatpush1.msra.mxu0 0.0
        %7133 = vmatprep.subr.mxu0 0.0
        %7134 = vmatpush1.msra.mxu0 0.0
        %7135 = vmatprep.subr.mxu0 0.0
        %7136 = vmatpush1.msra.mxu0 0.0
        %7137 = vmatprep.subr.mxu0 0.0
        %7138 = vmatpush1.msra.mxu0 0.0
        %7139 = vmatprep.mubr.f32.mxu0 0.0
        %7140 = vmatmul.mubr.f32.gmra.mrb[0].mxu0 %v5801
        %v7141 = vpop.f32.mrb[0].mxu0
        %v7142 = vadd.f32 0.0, %v7141
        %v7143 = vpop.f32.mrb[0].mxu0
        %7144 = vmatprep.mubr.f32.mxu0 0.0
        %7145 = vmatmul.mubr.f32.gmra.mrb[0].mxu0 %v5804
        %v7146 = vpop.f32.mrb[0].mxu0
        %v7147 = vadd.f32 0.0, %v7146
        %v7148 = vpop.f32.mrb[0].mxu0
        %7149 = vmatprep.mubr.f32.mxu0 0.0
        %7150 = vmatmul.mubr.f32.gmra.mrb[0].mxu0 %v5807
        %v7151 = vpop.f32.mrb[0].mxu0
        %v7152 = vadd.f32 0.0, %v7151
        %v7153 = vpop.f32.mrb[0].mxu0
        %7154 = vmatprep.mubr.f32.mxu0 0.0
        %7155 = vmatmul.mubr.f32.gmra.mrb[0].mxu0 %v5810
        %v7156 = vpop.f32.mrb[0].mxu0
        %v7157 = vadd.f32 0.0, %v7156
        %v7158 = vpop.f32.mrb[0].mxu0
        %7159 = vmatprep.mubr.f32.mxu0 0.0
        %7160 = vmatmul.mubr.f32.gmra.mrb[0].mxu0 %v5813
        %v7161 = vpop.f32.mrb[0].mxu0
        %v7162 = vadd.f32 0.0, %v7161
        %v7163 = vpop.f32.mrb[0].mxu0
        %7164 = vdwg.mxu0
        %7165 = vmatprep.subr.mxu0 0.0
        %7166 = vmatpush1.msra.mxu0 %v5789
        %7167 = vmatprep.subr.mxu0 0.0
        %7168 = vmatpush1.msra.mxu0 %v5790
        %7169 = vmatprep.subr.mxu0 0.0
        %7170 = vmatpush1.msra.mxu0 %v5791
        %7171 = vmatprep.subr.mxu0 0.0
        %7172 = vmatpush1.msra.mxu0 %v5792
        %7173 = vmatprep.subr.mxu0 0.0
        %7174 = vmatpush1.msra.mxu0 %v5793
        %7175 = vmatprep.subr.mxu0 0.0
        %7176 = vmatpush1.msra.mxu0 0.0
        %7177 = vmatprep.subr.mxu0 0.0
        %7178 = vmatpush1.msra.mxu0 0.0
        %7179 = vmatprep.subr.mxu0 0.0
        %7180 = vmatpush1.msra.mxu0 0.0
        %7181 = vmatprep.subr.mxu0 0.0
        %7182 = vmatpush1.msra.mxu0 0.0
        %7183 = vmatprep.subr.mxu0 0.0
        %7184 = vmatpush1.msra.mxu0 0.0
        %7185 = vmatprep.subr.mxu0 0.0
        %7186 = vmatpush1.msra.mxu0 0.0
        %7187 = vmatprep.subr.mxu0 0.0
        %7188 = vmatpush1.msra.mxu0 0.0
        %7189 = vmatprep.subr.mxu0 0.0
        %7190 = vmatpush1.msra.mxu0 0.0
        %7191 = vmatprep.subr.mxu0 0.0
        %7192 = vmatpush1.msra.mxu0 0.0
        %7193 = vmatprep.subr.mxu0 0.0
        %7194 = vmatpush1.msra.mxu0 0.0
        %7195 = vmatprep.subr.mxu0 0.0
        %7196 = vmatpush1.msra.mxu0 0.0
        %7197 = vmatprep.subr.mxu0 0.0
        %7198 = vmatpush1.msra.mxu0 0.0
        %7199 = vmatprep.subr.mxu0 0.0
        %7200 = vmatpush1.msra.mxu0 0.0
        %7201 = vmatprep.subr.mxu0 0.0
        %7202 = vmatpush1.msra.mxu0 0.0
        %7203 = vmatprep.subr.mxu0 0.0
        %7204 = vmatpush1.msra.mxu0 0.0
        %7205 = vmatprep.subr.mxu0 0.0
        %7206 = vmatpush1.msra.mxu0 0.0
        %7207 = vmatprep.subr.mxu0 0.0
        %7208 = vmatpush1.msra.mxu0 0.0
        %7209 = vmatprep.subr.mxu0 0.0
        %7210 = vmatpush1.msra.mxu0 0.0
        %7211 = vmatprep.subr.mxu0 0.0
        %7212 = vmatpush1.msra.mxu0 0.0
        %7213 = vmatprep.subr.mxu0 0.0
        %7214 = vmatpush1.msra.mxu0 0.0
        %7215 = vmatprep.subr.mxu0 0.0
        %7216 = vmatpush1.msra.mxu0 0.0
        %7217 = vmatprep.subr.mxu0 0.0
        %7218 = vmatpush1.msra.mxu0 0.0
        %7219 = vmatprep.subr.mxu0 0.0
        %7220 = vmatpush1.msra.mxu0 0.0
        %7221 = vmatprep.subr.mxu0 0.0
        %7222 = vmatpush1.msra.mxu0 0.0
        %7223 = vmatprep.subr.mxu0 0.0
        %7224 = vmatpush1.msra.mxu0 0.0
        %7225 = vmatprep.subr.mxu0 0.0
        %7226 = vmatpush1.msra.mxu0 0.0
        %7227 = vmatprep.subr.mxu0 0.0
        %7228 = vmatpush1.msra.mxu0 0.0
        %7229 = vmatprep.mubr.f32.mxu0 0.0
        %7230 = vmatmul.mubr.f32.gmra.mrb[0].mxu0 %v5801
        %v7231 = vpop.f32.mrb[0].mxu0
        %v7232 = vadd.f32 0.0, %v7231
        %v7233 = vpop.f32.mrb[0].mxu0
        %7234 = vmatprep.mubr.f32.mxu0 0.0
        %7235 = vmatmul.mubr.f32.gmra.mrb[0].mxu0 %v5804
        %v7236 = vpop.f32.mrb[0].mxu0
        %v7237 = vadd.f32 0.0, %v7236
        %v7238 = vpop.f32.mrb[0].mxu0
        %7239 = vmatprep.mubr.f32.mxu0 0.0
        %7240 = vmatmul.mubr.f32.gmra.mrb[0].mxu0 %v5807
        %v7241 = vpop.f32.mrb[0].mxu0
        %v7242 = vadd.f32 0.0, %v7241
        %v7243 = vpop.f32.mrb[0].mxu0
        %7244 = vmatprep.mubr.f32.mxu0 0.0
        %7245 = vmatmul.mubr.f32.gmra.mrb[0].mxu0 %v5810
        %v7246 = vpop.f32.mrb[0].mxu0
        %v7247 = vadd.f32 0.0, %v7246
        %v7248 = vpop.f32.mrb[0].mxu0
        %7249 = vmatprep.mubr.f32.mxu0 0.0
        %7250 = vmatmul.mubr.f32.gmra.mrb[0].mxu0 %v5813
        %v7251 = vpop.f32.mrb[0].mxu0
        %v7252 = vadd.f32 0.0, %v7251
        %v7253 = vpop.f32.mrb[0].mxu0
        %7254 = vdwg.mxu0
        %v7255 = vmul.f32 %v5882, 0.01
        %v7256 = vmul.f32 %v5887, 0.01
        %v7257 = vmul.f32 %v5892, 0.01
        %v7258 = vmul.f32 %v5897, 0.01
        %v7259 = vmul.f32 %v5902, 0.01
        %v7260 = vmul.f32 %v5972, 0.01
        %v7261 = vmul.f32 %v5977, 0.01
        %v7262 = vmul.f32 %v5982, 0.01
        %v7263 = vmul.f32 %v5987, 0.01
        %v7264 = vmul.f32 %v5992, 0.01
        %v7265 = vmul.f32 %v6062, 0.01
        %v7266 = vmul.f32 %v6067, 0.01
        %v7267 = vmul.f32 %v6072, 0.01
        %v7268 = vmul.f32 %v6077, 0.01
        %v7269 = vmul.f32 %v6082, 0.01
        %v7270 = vmul.f32 %v6152, 0.01
        %v7271 = vmul.f32 %v6157, 0.01
        %v7272 = vmul.f32 %v6162, 0.01
        %v7273 = vmul.f32 %v6167, 0.01
        %v7274 = vmul.f32 %v6172, 0.01
        %v7275 = vmul.f32 %v6242, 0.01
        %v7276 = vmul.f32 %v6247, 0.01
        %v7277 = vmul.f32 %v6252, 0.01
        %v7278 = vmul.f32 %v6257, 0.01
        %v7279 = vmul.f32 %v6262, 0.01
        %v7280 = vmul.f32 %v6332, 0.01
        %v7281 = vmul.f32 %v6337, 0.01
        %v7282 = vmul.f32 %v6342, 0.01
        %v7283 = vmul.f32 %v6347, 0.01
        %v7284 = vmul.f32 %v6352, 0.01
        %v7285 = vmul.f32 %v6422, 0.01
        %v7286 = vmul.f32 %v6427, 0.01
        %v7287 = vmul.f32 %v6432, 0.01
        %v7288 = vmul.f32 %v6437, 0.01
        %v7289 = vmul.f32 %v6442, 0.01
        %v7290 = vmul.f32 %v6512, 0.01
        %v7291 = vmul.f32 %v6517, 0.01
        %v7292 = vmul.f32 %v6522, 0.01
        %v7293 = vmul.f32 %v6527, 0.01
        %v7294 = vmul.f32 %v6532, 0.01
        %v7295 = vmul.f32 %v6602, 0.01
        %v7296 = vmul.f32 %v6607, 0.01
        %v7297 = vmul.f32 %v6612, 0.01
        %v7298 = vmul.f32 %v6617, 0.01
        %v7299 = vmul.f32 %v6622, 0.01
        %v7300 = vmul.f32 %v6692, 0.01
        %v7301 = vmul.f32 %v6697, 0.01
        %v7302 = vmul.f32 %v6702, 0.01
        %v7303 = vmul.f32 %v6707, 0.01
        %v7304 = vmul.f32 %v6712, 0.01
        %v7305 = vmul.f32 %v6782, 0.01
        %v7306 = vmul.f32 %v6787, 0.01
        %v7307 = vmul.f32 %v6792, 0.01
        %v7308 = vmul.f32 %v6797, 0.01
        %v7309 = vmul.f32 %v6802, 0.01
        %v7310 = vmul.f32 %v6872, 0.01
        %v7311 = vmul.f32 %v6877, 0.01
        %v7312 = vmul.f32 %v6882, 0.01
        %v7313 = vmul.f32 %v6887, 0.01
        %v7314 = vmul.f32 %v6892, 0.01
        %v7315 = vmul.f32 %v6962, 0.01
        %v7316 = vmul.f32 %v6967, 0.01
        %v7317 = vmul.f32 %v6972, 0.01
        %v7318 = vmul.f32 %v6977, 0.01
        %v7319 = vmul.f32 %v6982, 0.01
        %v7320 = vmul.f32 %v7052, 0.01
        %v7321 = vmul.f32 %v7057, 0.01
        %v7322 = vmul.f32 %v7062, 0.01
        %v7323 = vmul.f32 %v7067, 0.01
        %v7324 = vmul.f32 %v7072, 0.01
        %v7325 = vmul.f32 %v7142, 0.01
        %v7326 = vmul.f32 %v7147, 0.01
        %v7327 = vmul.f32 %v7152, 0.01
        %v7328 = vmul.f32 %v7157, 0.01
        %v7329 = vmul.f32 %v7162, 0.01
        %v7330 = vmul.f32 %v7232, 0.01
        %v7331 = vmul.f32 %v7237, 0.01
        %v7332 = vmul.f32 %v7242, 0.01
        %v7333 = vmul.f32 %v7247, 0.01
        %v7334 = vmul.f32 %v7252, 0.01
        %v7335 = vmax.f32 %v5882, %v7255
        %v7336 = vmax.f32 %v5887, %v7256
        %v7337 = vmax.f32 %v5892, %v7257
        %v7338 = vmax.f32 %v5897, %v7258
        %v7339 = vmax.f32 %v5902, %v7259
        %v7340 = vmax.f32 %v5972, %v7260
        %v7341 = vmax.f32 %v5977, %v7261
        %v7342 = vmax.f32 %v5982, %v7262
        %v7343 = vmax.f32 %v5987, %v7263
        %v7344 = vmax.f32 %v5992, %v7264
        %v7345 = vmax.f32 %v6062, %v7265
        %v7346 = vmax.f32 %v6067, %v7266
        %v7347 = vmax.f32 %v6072, %v7267
        %v7348 = vmax.f32 %v6077, %v7268
        %v7349 = vmax.f32 %v6082, %v7269
        %v7350 = vmax.f32 %v6152, %v7270
        %v7351 = vmax.f32 %v6157, %v7271
        %v7352 = vmax.f32 %v6162, %v7272
        %v7353 = vmax.f32 %v6167, %v7273
        %v7354 = vmax.f32 %v6172, %v7274
        %v7355 = vmax.f32 %v6242, %v7275
        %v7356 = vmax.f32 %v6247, %v7276
        %v7357 = vmax.f32 %v6252, %v7277
        %v7358 = vmax.f32 %v6257, %v7278
        %v7359 = vmax.f32 %v6262, %v7279
        %v7360 = vmax.f32 %v6332, %v7280
        %v7361 = vmax.f32 %v6337, %v7281
        %v7362 = vmax.f32 %v6342, %v7282
        %v7363 = vmax.f32 %v6347, %v7283
        %v7364 = vmax.f32 %v6352, %v7284
        %v7365 = vmax.f32 %v6422, %v7285
        %v7366 = vmax.f32 %v6427, %v7286
        %v7367 = vmax.f32 %v6432, %v7287
        %v7368 = vmax.f32 %v6437, %v7288
        %v7369 = vmax.f32 %v6442, %v7289
        %v7370 = vmax.f32 %v6512, %v7290
        %v7371 = vmax.f32 %v6517, %v7291
        %v7372 = vmax.f32 %v6522, %v7292
        %v7373 = vmax.f32 %v6527, %v7293
        %v7374 = vmax.f32 %v6532, %v7294
        %v7375 = vmax.f32 %v6602, %v7295
        %v7376 = vmax.f32 %v6607, %v7296
        %v7377 = vmax.f32 %v6612, %v7297
        %v7378 = vmax.f32 %v6617, %v7298
        %v7379 = vmax.f32 %v6622, %v7299
        %v7380 = vmax.f32 %v6692, %v7300
        %v7381 = vmax.f32 %v6697, %v7301
        %v7382 = vmax.f32 %v6702, %v7302
        %v7383 = vmax.f32 %v6707, %v7303
        %v7384 = vmax.f32 %v6712, %v7304
        %v7385 = vmax.f32 %v6782, %v7305
        %v7386 = vmax.f32 %v6787, %v7306
        %v7387 = vmax.f32 %v6792, %v7307
        %v7388 = vmax.f32 %v6797, %v7308
        %v7389 = vmax.f32 %v6802, %v7309
        %v7390 = vmax.f32 %v6872, %v7310
        %v7391 = vmax.f32 %v6877, %v7311
        %v7392 = vmax.f32 %v6882, %v7312
        %v7393 = vmax.f32 %v6887, %v7313
        %v7394 = vmax.f32 %v6892, %v7314
        %v7395 = vmax.f32 %v6962, %v7315
        %v7396 = vmax.f32 %v6967, %v7316
        %v7397 = vmax.f32 %v6972, %v7317
        %v7398 = vmax.f32 %v6977, %v7318
        %v7399 = vmax.f32 %v6982, %v7319
        %v7400 = vmax.f32 %v7052, %v7320
        %v7401 = vmax.f32 %v7057, %v7321
        %v7402 = vmax.f32 %v7062, %v7322
        %v7403 = vmax.f32 %v7067, %v7323
        %v7404 = vmax.f32 %v7072, %v7324
        %v7405 = vmax.f32 %v7142, %v7325
        %v7406 = vmax.f32 %v7147, %v7326
        %v7407 = vmax.f32 %v7152, %v7327
        %v7408 = vmax.f32 %v7157, %v7328
        %v7409 = vmax.f32 %v7162, %v7329
        %v7410 = vmax.f32 %v7232, %v7330
        %v7411 = vmax.f32 %v7237, %v7331
        %v7412 = vmax.f32 %v7242, %v7332
        %v7413 = vmax.f32 %v7247, %v7333
        %v7414 = vmax.f32 %v7252, %v7334
        %s7415 = scalar_lea.vmem %s3, 160
        %v7416 = vld [vmem:[%s7415] sm:$0xff]
        %v7418 = vsel %vm936, %v7416, 0
        %7420 = vmatprep.subr.mxu0 0.0
        %7421 = vmatpush1.msra.mxu0 %v7335
        %7422 = vmatprep.subr.mxu0 0.0
        %7423 = vmatpush1.msra.mxu0 %v7336
        %7424 = vmatprep.subr.mxu0 0.0
        %7425 = vmatpush1.msra.mxu0 %v7337
        %7426 = vmatprep.subr.mxu0 0.0
        %7427 = vmatpush1.msra.mxu0 %v7338
        %7428 = vmatprep.subr.mxu0 0.0
        %7429 = vmatpush1.msra.mxu0 %v7339
        %7430 = vmatprep.subr.mxu0 0.0
        %7431 = vmatpush1.msra.mxu0 0.0
        %7432 = vmatprep.subr.mxu0 0.0
        %7433 = vmatpush1.msra.mxu0 0.0
        %7434 = vmatprep.subr.mxu0 0.0
        %7435 = vmatpush1.msra.mxu0 0.0
        %7436 = vmatprep.subr.mxu0 0.0
        %7437 = vmatpush1.msra.mxu0 0.0
        %7438 = vmatprep.subr.mxu0 0.0
        %7439 = vmatpush1.msra.mxu0 0.0
        %7440 = vmatprep.subr.mxu0 0.0
        %7441 = vmatpush1.msra.mxu0 0.0
        %7442 = vmatprep.subr.mxu0 0.0
        %7443 = vmatpush1.msra.mxu0 0.0
        %7444 = vmatprep.subr.mxu0 0.0
        %7445 = vmatpush1.msra.mxu0 0.0
        %7446 = vmatprep.subr.mxu0 0.0
        %7447 = vmatpush1.msra.mxu0 0.0
        %7448 = vmatprep.subr.mxu0 0.0
        %7449 = vmatpush1.msra.mxu0 0.0
        %7450 = vmatprep.subr.mxu0 0.0
        %7451 = vmatpush1.msra.mxu0 0.0
        %7452 = vmatprep.subr.mxu0 0.0
        %7453 = vmatpush1.msra.mxu0 0.0
        %7454 = vmatprep.subr.mxu0 0.0
        %7455 = vmatpush1.msra.mxu0 0.0
        %7456 = vmatprep.subr.mxu0 0.0
        %7457 = vmatpush1.msra.mxu0 0.0
        %7458 = vmatprep.subr.mxu0 0.0
        %7459 = vmatpush1.msra.mxu0 0.0
        %7460 = vmatprep.subr.mxu0 0.0
        %7461 = vmatpush1.msra.mxu0 0.0
        %7462 = vmatprep.subr.mxu0 0.0
        %7463 = vmatpush1.msra.mxu0 0.0
        %7464 = vmatprep.subr.mxu0 0.0
        %7465 = vmatpush1.msra.mxu0 0.0
        %7466 = vmatprep.subr.mxu0 0.0
        %7467 = vmatpush1.msra.mxu0 0.0
        %7468 = vmatprep.subr.mxu0 0.0
        %7469 = vmatpush1.msra.mxu0 0.0
        %7470 = vmatprep.subr.mxu0 0.0
        %7471 = vmatpush1.msra.mxu0 0.0
        %7472 = vmatprep.subr.mxu0 0.0
        %7473 = vmatpush1.msra.mxu0 0.0
        %7474 = vmatprep.subr.mxu0 0.0
        %7475 = vmatpush1.msra.mxu0 0.0
        %7476 = vmatprep.subr.mxu0 0.0
        %7477 = vmatpush1.msra.mxu0 0.0
        %7478 = vmatprep.subr.mxu0 0.0
        %7479 = vmatpush1.msra.mxu0 0.0
        %7480 = vmatprep.subr.mxu0 0.0
        %7481 = vmatpush1.msra.mxu0 0.0
        %7482 = vmatprep.subr.mxu0 0.0
        %7483 = vmatpush1.msra.mxu0 0.0
        %7484 = vmatprep.mubr.f32.mxu0 0.0
        %7485 = vmatmul.mubr.f32.gmra.mrb[0].mxu0 %v7418
        %v7486 = vpop.f32.mrb[0].mxu0
        %v7487 = vadd.f32 0.0, %v7486
        %v7488 = vpop.f32.mrb[0].mxu0
        %7489 = vdwg.mxu0
        %7490 = vmatprep.subr.mxu0 0.0
        %7491 = vmatpush1.msra.mxu0 %v7340
        %7492 = vmatprep.subr.mxu0 0.0
        %7493 = vmatpush1.msra.mxu0 %v7341
        %7494 = vmatprep.subr.mxu0 0.0
        %7495 = vmatpush1.msra.mxu0 %v7342
        %7496 = vmatprep.subr.mxu0 0.0
        %7497 = vmatpush1.msra.mxu0 %v7343
        %7498 = vmatprep.subr.mxu0 0.0
        %7499 = vmatpush1.msra.mxu0 %v7344
        %7500 = vmatprep.subr.mxu0 0.0
        %7501 = vmatpush1.msra.mxu0 0.0
        %7502 = vmatprep.subr.mxu0 0.0
        %7503 = vmatpush1.msra.mxu0 0.0
        %7504 = vmatprep.subr.mxu0 0.0
        %7505 = vmatpush1.msra.mxu0 0.0
        %7506 = vmatprep.subr.mxu0 0.0
        %7507 = vmatpush1.msra.mxu0 0.0
        %7508 = vmatprep.subr.mxu0 0.0
        %7509 = vmatpush1.msra.mxu0 0.0
        %7510 = vmatprep.subr.mxu0 0.0
        %7511 = vmatpush1.msra.mxu0 0.0
        %7512 = vmatprep.subr.mxu0 0.0
        %7513 = vmatpush1.msra.mxu0 0.0
        %7514 = vmatprep.subr.mxu0 0.0
        %7515 = vmatpush1.msra.mxu0 0.0
        %7516 = vmatprep.subr.mxu0 0.0
        %7517 = vmatpush1.msra.mxu0 0.0
        %7518 = vmatprep.subr.mxu0 0.0
        %7519 = vmatpush1.msra.mxu0 0.0
        %7520 = vmatprep.subr.mxu0 0.0
        %7521 = vmatpush1.msra.mxu0 0.0
        %7522 = vmatprep.subr.mxu0 0.0
        %7523 = vmatpush1.msra.mxu0 0.0
        %7524 = vmatprep.subr.mxu0 0.0
        %7525 = vmatpush1.msra.mxu0 0.0
        %7526 = vmatprep.subr.mxu0 0.0
        %7527 = vmatpush1.msra.mxu0 0.0
        %7528 = vmatprep.subr.mxu0 0.0
        %7529 = vmatpush1.msra.mxu0 0.0
        %7530 = vmatprep.subr.mxu0 0.0
        %7531 = vmatpush1.msra.mxu0 0.0
        %7532 = vmatprep.subr.mxu0 0.0
        %7533 = vmatpush1.msra.mxu0 0.0
        %7534 = vmatprep.subr.mxu0 0.0
        %7535 = vmatpush1.msra.mxu0 0.0
        %7536 = vmatprep.subr.mxu0 0.0
        %7537 = vmatpush1.msra.mxu0 0.0
        %7538 = vmatprep.subr.mxu0 0.0
        %7539 = vmatpush1.msra.mxu0 0.0
        %7540 = vmatprep.subr.mxu0 0.0
        %7541 = vmatpush1.msra.mxu0 0.0
        %7542 = vmatprep.subr.mxu0 0.0
        %7543 = vmatpush1.msra.mxu0 0.0
        %7544 = vmatprep.subr.mxu0 0.0
        %7545 = vmatpush1.msra.mxu0 0.0
        %7546 = vmatprep.subr.mxu0 0.0
        %7547 = vmatpush1.msra.mxu0 0.0
        %7548 = vmatprep.subr.mxu0 0.0
        %7549 = vmatpush1.msra.mxu0 0.0
        %7550 = vmatprep.subr.mxu0 0.0
        %7551 = vmatpush1.msra.mxu0 0.0
        %7552 = vmatprep.subr.mxu0 0.0
        %7553 = vmatpush1.msra.mxu0 0.0
        %7554 = vmatprep.mubr.f32.mxu0 0.0
        %7555 = vmatmul.mubr.f32.gmra.mrb[0].mxu0 %v7418
        %v7556 = vpop.f32.mrb[0].mxu0
        %v7557 = vadd.f32 0.0, %v7556
        %v7558 = vpop.f32.mrb[0].mxu0
        %7559 = vdwg.mxu0
        %7560 = vmatprep.subr.mxu0 0.0
        %7561 = vmatpush1.msra.mxu0 %v7345
        %7562 = vmatprep.subr.mxu0 0.0
        %7563 = vmatpush1.msra.mxu0 %v7346
        %7564 = vmatprep.subr.mxu0 0.0
        %7565 = vmatpush1.msra.mxu0 %v7347
        %7566 = vmatprep.subr.mxu0 0.0
        %7567 = vmatpush1.msra.mxu0 %v7348
        %7568 = vmatprep.subr.mxu0 0.0
        %7569 = vmatpush1.msra.mxu0 %v7349
        %7570 = vmatprep.subr.mxu0 0.0
        %7571 = vmatpush1.msra.mxu0 0.0
        %7572 = vmatprep.subr.mxu0 0.0
        %7573 = vmatpush1.msra.mxu0 0.0
        %7574 = vmatprep.subr.mxu0 0.0
        %7575 = vmatpush1.msra.mxu0 0.0
        %7576 = vmatprep.subr.mxu0 0.0
        %7577 = vmatpush1.msra.mxu0 0.0
        %7578 = vmatprep.subr.mxu0 0.0
        %7579 = vmatpush1.msra.mxu0 0.0
        %7580 = vmatprep.subr.mxu0 0.0
        %7581 = vmatpush1.msra.mxu0 0.0
        %7582 = vmatprep.subr.mxu0 0.0
        %7583 = vmatpush1.msra.mxu0 0.0
        %7584 = vmatprep.subr.mxu0 0.0
        %7585 = vmatpush1.msra.mxu0 0.0
        %7586 = vmatprep.subr.mxu0 0.0
        %7587 = vmatpush1.msra.mxu0 0.0
        %7588 = vmatprep.subr.mxu0 0.0
        %7589 = vmatpush1.msra.mxu0 0.0
        %7590 = vmatprep.subr.mxu0 0.0
        %7591 = vmatpush1.msra.mxu0 0.0
        %7592 = vmatprep.subr.mxu0 0.0
        %7593 = vmatpush1.msra.mxu0 0.0
        %7594 = vmatprep.subr.mxu0 0.0
        %7595 = vmatpush1.msra.mxu0 0.0
        %7596 = vmatprep.subr.mxu0 0.0
        %7597 = vmatpush1.msra.mxu0 0.0
        %7598 = vmatprep.subr.mxu0 0.0
        %7599 = vmatpush1.msra.mxu0 0.0
        %7600 = vmatprep.subr.mxu0 0.0
        %7601 = vmatpush1.msra.mxu0 0.0
        %7602 = vmatprep.subr.mxu0 0.0
        %7603 = vmatpush1.msra.mxu0 0.0
        %7604 = vmatprep.subr.mxu0 0.0
        %7605 = vmatpush1.msra.mxu0 0.0
        %7606 = vmatprep.subr.mxu0 0.0
        %7607 = vmatpush1.msra.mxu0 0.0
        %7608 = vmatprep.subr.mxu0 0.0
        %7609 = vmatpush1.msra.mxu0 0.0
        %7610 = vmatprep.subr.mxu0 0.0
        %7611 = vmatpush1.msra.mxu0 0.0
        %7612 = vmatprep.subr.mxu0 0.0
        %7613 = vmatpush1.msra.mxu0 0.0
        %7614 = vmatprep.subr.mxu0 0.0
        %7615 = vmatpush1.msra.mxu0 0.0
        %7616 = vmatprep.subr.mxu0 0.0
        %7617 = vmatpush1.msra.mxu0 0.0
        %7618 = vmatprep.subr.mxu0 0.0
        %7619 = vmatpush1.msra.mxu0 0.0
        %7620 = vmatprep.subr.mxu0 0.0
        %7621 = vmatpush1.msra.mxu0 0.0
        %7622 = vmatprep.subr.mxu0 0.0
        %7623 = vmatpush1.msra.mxu0 0.0
        %7624 = vmatprep.mubr.f32.mxu0 0.0
        %7625 = vmatmul.mubr.f32.gmra.mrb[0].mxu0 %v7418
        %v7626 = vpop.f32.mrb[0].mxu0
        %v7627 = vadd.f32 0.0, %v7626
        %v7628 = vpop.f32.mrb[0].mxu0
        %7629 = vdwg.mxu0
        %7630 = vmatprep.subr.mxu0 0.0
        %7631 = vmatpush1.msra.mxu0 %v7350
        %7632 = vmatprep.subr.mxu0 0.0
        %7633 = vmatpush1.msra.mxu0 %v7351
        %7634 = vmatprep.subr.mxu0 0.0
        %7635 = vmatpush1.msra.mxu0 %v7352
        %7636 = vmatprep.subr.mxu0 0.0
        %7637 = vmatpush1.msra.mxu0 %v7353
        %7638 = vmatprep.subr.mxu0 0.0
        %7639 = vmatpush1.msra.mxu0 %v7354
        %7640 = vmatprep.subr.mxu0 0.0
        %7641 = vmatpush1.msra.mxu0 0.0
        %7642 = vmatprep.subr.mxu0 0.0
        %7643 = vmatpush1.msra.mxu0 0.0
        %7644 = vmatprep.subr.mxu0 0.0
        %7645 = vmatpush1.msra.mxu0 0.0
        %7646 = vmatprep.subr.mxu0 0.0
        %7647 = vmatpush1.msra.mxu0 0.0
        %7648 = vmatprep.subr.mxu0 0.0
        %7649 = vmatpush1.msra.mxu0 0.0
        %7650 = vmatprep.subr.mxu0 0.0
        %7651 = vmatpush1.msra.mxu0 0.0
        %7652 = vmatprep.subr.mxu0 0.0
        %7653 = vmatpush1.msra.mxu0 0.0
        %7654 = vmatprep.subr.mxu0 0.0
        %7655 = vmatpush1.msra.mxu0 0.0
        %7656 = vmatprep.subr.mxu0 0.0
        %7657 = vmatpush1.msra.mxu0 0.0
        %7658 = vmatprep.subr.mxu0 0.0
        %7659 = vmatpush1.msra.mxu0 0.0
        %7660 = vmatprep.subr.mxu0 0.0
        %7661 = vmatpush1.msra.mxu0 0.0
        %7662 = vmatprep.subr.mxu0 0.0
        %7663 = vmatpush1.msra.mxu0 0.0
        %7664 = vmatprep.subr.mxu0 0.0
        %7665 = vmatpush1.msra.mxu0 0.0
        %7666 = vmatprep.subr.mxu0 0.0
        %7667 = vmatpush1.msra.mxu0 0.0
        %7668 = vmatprep.subr.mxu0 0.0
        %7669 = vmatpush1.msra.mxu0 0.0
        %7670 = vmatprep.subr.mxu0 0.0
        %7671 = vmatpush1.msra.mxu0 0.0
        %7672 = vmatprep.subr.mxu0 0.0
        %7673 = vmatpush1.msra.mxu0 0.0
        %7674 = vmatprep.subr.mxu0 0.0
        %7675 = vmatpush1.msra.mxu0 0.0
        %7676 = vmatprep.subr.mxu0 0.0
        %7677 = vmatpush1.msra.mxu0 0.0
        %7678 = vmatprep.subr.mxu0 0.0
        %7679 = vmatpush1.msra.mxu0 0.0
        %7680 = vmatprep.subr.mxu0 0.0
        %7681 = vmatpush1.msra.mxu0 0.0
        %7682 = vmatprep.subr.mxu0 0.0
        %7683 = vmatpush1.msra.mxu0 0.0
        %7684 = vmatprep.subr.mxu0 0.0
        %7685 = vmatpush1.msra.mxu0 0.0
        %7686 = vmatprep.subr.mxu0 0.0
        %7687 = vmatpush1.msra.mxu0 0.0
        %7688 = vmatprep.subr.mxu0 0.0
        %7689 = vmatpush1.msra.mxu0 0.0
        %7690 = vmatprep.subr.mxu0 0.0
        %7691 = vmatpush1.msra.mxu0 0.0
        %7692 = vmatprep.subr.mxu0 0.0
        %7693 = vmatpush1.msra.mxu0 0.0
        %7694 = vmatprep.mubr.f32.mxu0 0.0
        %7695 = vmatmul.mubr.f32.gmra.mrb[0].mxu0 %v7418
        %v7696 = vpop.f32.mrb[0].mxu0
        %v7697 = vadd.f32 0.0, %v7696
        %v7698 = vpop.f32.mrb[0].mxu0
        %7699 = vdwg.mxu0
        %7700 = vmatprep.subr.mxu0 0.0
        %7701 = vmatpush1.msra.mxu0 %v7355
        %7702 = vmatprep.subr.mxu0 0.0
        %7703 = vmatpush1.msra.mxu0 %v7356
        %7704 = vmatprep.subr.mxu0 0.0
        %7705 = vmatpush1.msra.mxu0 %v7357
        %7706 = vmatprep.subr.mxu0 0.0
        %7707 = vmatpush1.msra.mxu0 %v7358
        %7708 = vmatprep.subr.mxu0 0.0
        %7709 = vmatpush1.msra.mxu0 %v7359
        %7710 = vmatprep.subr.mxu0 0.0
        %7711 = vmatpush1.msra.mxu0 0.0
        %7712 = vmatprep.subr.mxu0 0.0
        %7713 = vmatpush1.msra.mxu0 0.0
        %7714 = vmatprep.subr.mxu0 0.0
        %7715 = vmatpush1.msra.mxu0 0.0
        %7716 = vmatprep.subr.mxu0 0.0
        %7717 = vmatpush1.msra.mxu0 0.0
        %7718 = vmatprep.subr.mxu0 0.0
        %7719 = vmatpush1.msra.mxu0 0.0
        %7720 = vmatprep.subr.mxu0 0.0
        %7721 = vmatpush1.msra.mxu0 0.0
        %7722 = vmatprep.subr.mxu0 0.0
        %7723 = vmatpush1.msra.mxu0 0.0
        %7724 = vmatprep.subr.mxu0 0.0
        %7725 = vmatpush1.msra.mxu0 0.0
        %7726 = vmatprep.subr.mxu0 0.0
        %7727 = vmatpush1.msra.mxu0 0.0
        %7728 = vmatprep.subr.mxu0 0.0
        %7729 = vmatpush1.msra.mxu0 0.0
        %7730 = vmatprep.subr.mxu0 0.0
        %7731 = vmatpush1.msra.mxu0 0.0
        %7732 = vmatprep.subr.mxu0 0.0
        %7733 = vmatpush1.msra.mxu0 0.0
        %7734 = vmatprep.subr.mxu0 0.0
        %7735 = vmatpush1.msra.mxu0 0.0
        %7736 = vmatprep.subr.mxu0 0.0
        %7737 = vmatpush1.msra.mxu0 0.0
        %7738 = vmatprep.subr.mxu0 0.0
        %7739 = vmatpush1.msra.mxu0 0.0
        %7740 = vmatprep.subr.mxu0 0.0
        %7741 = vmatpush1.msra.mxu0 0.0
        %7742 = vmatprep.subr.mxu0 0.0
        %7743 = vmatpush1.msra.mxu0 0.0
        %7744 = vmatprep.subr.mxu0 0.0
        %7745 = vmatpush1.msra.mxu0 0.0
        %7746 = vmatprep.subr.mxu0 0.0
        %7747 = vmatpush1.msra.mxu0 0.0
        %7748 = vmatprep.subr.mxu0 0.0
        %7749 = vmatpush1.msra.mxu0 0.0
        %7750 = vmatprep.subr.mxu0 0.0
        %7751 = vmatpush1.msra.mxu0 0.0
        %7752 = vmatprep.subr.mxu0 0.0
        %7753 = vmatpush1.msra.mxu0 0.0
        %7754 = vmatprep.subr.mxu0 0.0
        %7755 = vmatpush1.msra.mxu0 0.0
        %7756 = vmatprep.subr.mxu0 0.0
        %7757 = vmatpush1.msra.mxu0 0.0
        %7758 = vmatprep.subr.mxu0 0.0
        %7759 = vmatpush1.msra.mxu0 0.0
        %7760 = vmatprep.subr.mxu0 0.0
        %7761 = vmatpush1.msra.mxu0 0.0
        %7762 = vmatprep.subr.mxu0 0.0
        %7763 = vmatpush1.msra.mxu0 0.0
        %7764 = vmatprep.mubr.f32.mxu0 0.0
        %7765 = vmatmul.mubr.f32.gmra.mrb[0].mxu0 %v7418
        %v7766 = vpop.f32.mrb[0].mxu0
        %v7767 = vadd.f32 0.0, %v7766
        %v7768 = vpop.f32.mrb[0].mxu0
        %7769 = vdwg.mxu0
        %7770 = vmatprep.subr.mxu0 0.0
        %7771 = vmatpush1.msra.mxu0 %v7360
        %7772 = vmatprep.subr.mxu0 0.0
        %7773 = vmatpush1.msra.mxu0 %v7361
        %7774 = vmatprep.subr.mxu0 0.0
        %7775 = vmatpush1.msra.mxu0 %v7362
        %7776 = vmatprep.subr.mxu0 0.0
        %7777 = vmatpush1.msra.mxu0 %v7363
        %7778 = vmatprep.subr.mxu0 0.0
        %7779 = vmatpush1.msra.mxu0 %v7364
        %7780 = vmatprep.subr.mxu0 0.0
        %7781 = vmatpush1.msra.mxu0 0.0
        %7782 = vmatprep.subr.mxu0 0.0
        %7783 = vmatpush1.msra.mxu0 0.0
        %7784 = vmatprep.subr.mxu0 0.0
        %7785 = vmatpush1.msra.mxu0 0.0
        %7786 = vmatprep.subr.mxu0 0.0
        %7787 = vmatpush1.msra.mxu0 0.0
        %7788 = vmatprep.subr.mxu0 0.0
        %7789 = vmatpush1.msra.mxu0 0.0
        %7790 = vmatprep.subr.mxu0 0.0
        %7791 = vmatpush1.msra.mxu0 0.0
        %7792 = vmatprep.subr.mxu0 0.0
        %7793 = vmatpush1.msra.mxu0 0.0
        %7794 = vmatprep.subr.mxu0 0.0
        %7795 = vmatpush1.msra.mxu0 0.0
        %7796 = vmatprep.subr.mxu0 0.0
        %7797 = vmatpush1.msra.mxu0 0.0
        %7798 = vmatprep.subr.mxu0 0.0
        %7799 = vmatpush1.msra.mxu0 0.0
        %7800 = vmatprep.subr.mxu0 0.0
        %7801 = vmatpush1.msra.mxu0 0.0
        %7802 = vmatprep.subr.mxu0 0.0
        %7803 = vmatpush1.msra.mxu0 0.0
        %7804 = vmatprep.subr.mxu0 0.0
        %7805 = vmatpush1.msra.mxu0 0.0
        %7806 = vmatprep.subr.mxu0 0.0
        %7807 = vmatpush1.msra.mxu0 0.0
        %7808 = vmatprep.subr.mxu0 0.0
        %7809 = vmatpush1.msra.mxu0 0.0
        %7810 = vmatprep.subr.mxu0 0.0
        %7811 = vmatpush1.msra.mxu0 0.0
        %7812 = vmatprep.subr.mxu0 0.0
        %7813 = vmatpush1.msra.mxu0 0.0
        %7814 = vmatprep.subr.mxu0 0.0
        %7815 = vmatpush1.msra.mxu0 0.0
        %7816 = vmatprep.subr.mxu0 0.0
        %7817 = vmatpush1.msra.mxu0 0.0
        %7818 = vmatprep.subr.mxu0 0.0
        %7819 = vmatpush1.msra.mxu0 0.0
        %7820 = vmatprep.subr.mxu0 0.0
        %7821 = vmatpush1.msra.mxu0 0.0
        %7822 = vmatprep.subr.mxu0 0.0
        %7823 = vmatpush1.msra.mxu0 0.0
        %7824 = vmatprep.subr.mxu0 0.0
        %7825 = vmatpush1.msra.mxu0 0.0
        %7826 = vmatprep.subr.mxu0 0.0
        %7827 = vmatpush1.msra.mxu0 0.0
        %7828 = vmatprep.subr.mxu0 0.0
        %7829 = vmatpush1.msra.mxu0 0.0
        %7830 = vmatprep.subr.mxu0 0.0
        %7831 = vmatpush1.msra.mxu0 0.0
        %7832 = vmatprep.subr.mxu0 0.0
        %7833 = vmatpush1.msra.mxu0 0.0
        %7834 = vmatprep.mubr.f32.mxu0 0.0
        %7835 = vmatmul.mubr.f32.gmra.mrb[0].mxu0 %v7418
        %v7836 = vpop.f32.mrb[0].mxu0
        %v7837 = vadd.f32 0.0, %v7836
        %v7838 = vpop.f32.mrb[0].mxu0
        %7839 = vdwg.mxu0
        %7840 = vmatprep.subr.mxu0 0.0
        %7841 = vmatpush1.msra.mxu0 %v7365
        %7842 = vmatprep.subr.mxu0 0.0
        %7843 = vmatpush1.msra.mxu0 %v7366
        %7844 = vmatprep.subr.mxu0 0.0
        %7845 = vmatpush1.msra.mxu0 %v7367
        %7846 = vmatprep.subr.mxu0 0.0
        %7847 = vmatpush1.msra.mxu0 %v7368
        %7848 = vmatprep.subr.mxu0 0.0
        %7849 = vmatpush1.msra.mxu0 %v7369
        %7850 = vmatprep.subr.mxu0 0.0
        %7851 = vmatpush1.msra.mxu0 0.0
        %7852 = vmatprep.subr.mxu0 0.0
        %7853 = vmatpush1.msra.mxu0 0.0
        %7854 = vmatprep.subr.mxu0 0.0
        %7855 = vmatpush1.msra.mxu0 0.0
        %7856 = vmatprep.subr.mxu0 0.0
        %7857 = vmatpush1.msra.mxu0 0.0
        %7858 = vmatprep.subr.mxu0 0.0
        %7859 = vmatpush1.msra.mxu0 0.0
        %7860 = vmatprep.subr.mxu0 0.0
        %7861 = vmatpush1.msra.mxu0 0.0
        %7862 = vmatprep.subr.mxu0 0.0
        %7863 = vmatpush1.msra.mxu0 0.0
        %7864 = vmatprep.subr.mxu0 0.0
        %7865 = vmatpush1.msra.mxu0 0.0
        %7866 = vmatprep.subr.mxu0 0.0
        %7867 = vmatpush1.msra.mxu0 0.0
        %7868 = vmatprep.subr.mxu0 0.0
        %7869 = vmatpush1.msra.mxu0 0.0
        %7870 = vmatprep.subr.mxu0 0.0
        %7871 = vmatpush1.msra.mxu0 0.0
        %7872 = vmatprep.subr.mxu0 0.0
        %7873 = vmatpush1.msra.mxu0 0.0
        %7874 = vmatprep.subr.mxu0 0.0
        %7875 = vmatpush1.msra.mxu0 0.0
        %7876 = vmatprep.subr.mxu0 0.0
        %7877 = vmatpush1.msra.mxu0 0.0
        %7878 = vmatprep.subr.mxu0 0.0
        %7879 = vmatpush1.msra.mxu0 0.0
        %7880 = vmatprep.subr.mxu0 0.0
        %7881 = vmatpush1.msra.mxu0 0.0
        %7882 = vmatprep.subr.mxu0 0.0
        %7883 = vmatpush1.msra.mxu0 0.0
        %7884 = vmatprep.subr.mxu0 0.0
        %7885 = vmatpush1.msra.mxu0 0.0
        %7886 = vmatprep.subr.mxu0 0.0
        %7887 = vmatpush1.msra.mxu0 0.0
        %7888 = vmatprep.subr.mxu0 0.0
        %7889 = vmatpush1.msra.mxu0 0.0
        %7890 = vmatprep.subr.mxu0 0.0
        %7891 = vmatpush1.msra.mxu0 0.0
        %7892 = vmatprep.subr.mxu0 0.0
        %7893 = vmatpush1.msra.mxu0 0.0
        %7894 = vmatprep.subr.mxu0 0.0
        %7895 = vmatpush1.msra.mxu0 0.0
        %7896 = vmatprep.subr.mxu0 0.0
        %7897 = vmatpush1.msra.mxu0 0.0
        %7898 = vmatprep.subr.mxu0 0.0
        %7899 = vmatpush1.msra.mxu0 0.0
        %7900 = vmatprep.subr.mxu0 0.0
        %7901 = vmatpush1.msra.mxu0 0.0
        %7902 = vmatprep.subr.mxu0 0.0
        %7903 = vmatpush1.msra.mxu0 0.0
        %7904 = vmatprep.mubr.f32.mxu0 0.0
        %7905 = vmatmul.mubr.f32.gmra.mrb[0].mxu0 %v7418
        %v7906 = vpop.f32.mrb[0].mxu0
        %v7907 = vadd.f32 0.0, %v7906
        %v7908 = vpop.f32.mrb[0].mxu0
        %7909 = vdwg.mxu0
        %7910 = vmatprep.subr.mxu0 0.0
        %7911 = vmatpush1.msra.mxu0 %v7370
        %7912 = vmatprep.subr.mxu0 0.0
        %7913 = vmatpush1.msra.mxu0 %v7371
        %7914 = vmatprep.subr.mxu0 0.0
        %7915 = vmatpush1.msra.mxu0 %v7372
        %7916 = vmatprep.subr.mxu0 0.0
        %7917 = vmatpush1.msra.mxu0 %v7373
        %7918 = vmatprep.subr.mxu0 0.0
        %7919 = vmatpush1.msra.mxu0 %v7374
        %7920 = vmatprep.subr.mxu0 0.0
        %7921 = vmatpush1.msra.mxu0 0.0
        %7922 = vmatprep.subr.mxu0 0.0
        %7923 = vmatpush1.msra.mxu0 0.0
        %7924 = vmatprep.subr.mxu0 0.0
        %7925 = vmatpush1.msra.mxu0 0.0
        %7926 = vmatprep.subr.mxu0 0.0
        %7927 = vmatpush1.msra.mxu0 0.0
        %7928 = vmatprep.subr.mxu0 0.0
        %7929 = vmatpush1.msra.mxu0 0.0
        %7930 = vmatprep.subr.mxu0 0.0
        %7931 = vmatpush1.msra.mxu0 0.0
        %7932 = vmatprep.subr.mxu0 0.0
        %7933 = vmatpush1.msra.mxu0 0.0
        %7934 = vmatprep.subr.mxu0 0.0
        %7935 = vmatpush1.msra.mxu0 0.0
        %7936 = vmatprep.subr.mxu0 0.0
        %7937 = vmatpush1.msra.mxu0 0.0
        %7938 = vmatprep.subr.mxu0 0.0
        %7939 = vmatpush1.msra.mxu0 0.0
        %7940 = vmatprep.subr.mxu0 0.0
        %7941 = vmatpush1.msra.mxu0 0.0
        %7942 = vmatprep.subr.mxu0 0.0
        %7943 = vmatpush1.msra.mxu0 0.0
        %7944 = vmatprep.subr.mxu0 0.0
        %7945 = vmatpush1.msra.mxu0 0.0
        %7946 = vmatprep.subr.mxu0 0.0
        %7947 = vmatpush1.msra.mxu0 0.0
        %7948 = vmatprep.subr.mxu0 0.0
        %7949 = vmatpush1.msra.mxu0 0.0
        %7950 = vmatprep.subr.mxu0 0.0
        %7951 = vmatpush1.msra.mxu0 0.0
        %7952 = vmatprep.subr.mxu0 0.0
        %7953 = vmatpush1.msra.mxu0 0.0
        %7954 = vmatprep.subr.mxu0 0.0
        %7955 = vmatpush1.msra.mxu0 0.0
        %7956 = vmatprep.subr.mxu0 0.0
        %7957 = vmatpush1.msra.mxu0 0.0
        %7958 = vmatprep.subr.mxu0 0.0
        %7959 = vmatpush1.msra.mxu0 0.0
        %7960 = vmatprep.subr.mxu0 0.0
        %7961 = vmatpush1.msra.mxu0 0.0
        %7962 = vmatprep.subr.mxu0 0.0
        %7963 = vmatpush1.msra.mxu0 0.0
        %7964 = vmatprep.subr.mxu0 0.0
        %7965 = vmatpush1.msra.mxu0 0.0
        %7966 = vmatprep.subr.mxu0 0.0
        %7967 = vmatpush1.msra.mxu0 0.0
        %7968 = vmatprep.subr.mxu0 0.0
        %7969 = vmatpush1.msra.mxu0 0.0
        %7970 = vmatprep.subr.mxu0 0.0
        %7971 = vmatpush1.msra.mxu0 0.0
        %7972 = vmatprep.subr.mxu0 0.0
        %7973 = vmatpush1.msra.mxu0 0.0
        %7974 = vmatprep.mubr.f32.mxu0 0.0
        %7975 = vmatmul.mubr.f32.gmra.mrb[0].mxu0 %v7418
        %v7976 = vpop.f32.mrb[0].mxu0
        %v7977 = vadd.f32 0.0, %v7976
        %v7978 = vpop.f32.mrb[0].mxu0
        %7979 = vdwg.mxu0
        %7980 = vmatprep.subr.mxu0 0.0
        %7981 = vmatpush1.msra.mxu0 %v7375
        %7982 = vmatprep.subr.mxu0 0.0
        %7983 = vmatpush1.msra.mxu0 %v7376
        %7984 = vmatprep.subr.mxu0 0.0
        %7985 = vmatpush1.msra.mxu0 %v7377
        %7986 = vmatprep.subr.mxu0 0.0
        %7987 = vmatpush1.msra.mxu0 %v7378
        %7988 = vmatprep.subr.mxu0 0.0
        %7989 = vmatpush1.msra.mxu0 %v7379
        %7990 = vmatprep.subr.mxu0 0.0
        %7991 = vmatpush1.msra.mxu0 0.0
        %7992 = vmatprep.subr.mxu0 0.0
        %7993 = vmatpush1.msra.mxu0 0.0
        %7994 = vmatprep.subr.mxu0 0.0
        %7995 = vmatpush1.msra.mxu0 0.0
        %7996 = vmatprep.subr.mxu0 0.0
        %7997 = vmatpush1.msra.mxu0 0.0
        %7998 = vmatprep.subr.mxu0 0.0
        %7999 = vmatpush1.msra.mxu0 0.0
        %8000 = vmatprep.subr.mxu0 0.0
        %8001 = vmatpush1.msra.mxu0 0.0
        %8002 = vmatprep.subr.mxu0 0.0
        %8003 = vmatpush1.msra.mxu0 0.0
        %8004 = vmatprep.subr.mxu0 0.0
        %8005 = vmatpush1.msra.mxu0 0.0
        %8006 = vmatprep.subr.mxu0 0.0
        %8007 = vmatpush1.msra.mxu0 0.0
        %8008 = vmatprep.subr.mxu0 0.0
        %8009 = vmatpush1.msra.mxu0 0.0
        %8010 = vmatprep.subr.mxu0 0.0
        %8011 = vmatpush1.msra.mxu0 0.0
        %8012 = vmatprep.subr.mxu0 0.0
        %8013 = vmatpush1.msra.mxu0 0.0
        %8014 = vmatprep.subr.mxu0 0.0
        %8015 = vmatpush1.msra.mxu0 0.0
        %8016 = vmatprep.subr.mxu0 0.0
        %8017 = vmatpush1.msra.mxu0 0.0
        %8018 = vmatprep.subr.mxu0 0.0
        %8019 = vmatpush1.msra.mxu0 0.0
        %8020 = vmatprep.subr.mxu0 0.0
        %8021 = vmatpush1.msra.mxu0 0.0
        %8022 = vmatprep.subr.mxu0 0.0
        %8023 = vmatpush1.msra.mxu0 0.0
        %8024 = vmatprep.subr.mxu0 0.0
        %8025 = vmatpush1.msra.mxu0 0.0
        %8026 = vmatprep.subr.mxu0 0.0
        %8027 = vmatpush1.msra.mxu0 0.0
        %8028 = vmatprep.subr.mxu0 0.0
        %8029 = vmatpush1.msra.mxu0 0.0
        %8030 = vmatprep.subr.mxu0 0.0
        %8031 = vmatpush1.msra.mxu0 0.0
        %8032 = vmatprep.subr.mxu0 0.0
        %8033 = vmatpush1.msra.mxu0 0.0
        %8034 = vmatprep.subr.mxu0 0.0
        %8035 = vmatpush1.msra.mxu0 0.0
        %8036 = vmatprep.subr.mxu0 0.0
        %8037 = vmatpush1.msra.mxu0 0.0
        %8038 = vmatprep.subr.mxu0 0.0
        %8039 = vmatpush1.msra.mxu0 0.0
        %8040 = vmatprep.subr.mxu0 0.0
        %8041 = vmatpush1.msra.mxu0 0.0
        %8042 = vmatprep.subr.mxu0 0.0
        %8043 = vmatpush1.msra.mxu0 0.0
        %8044 = vmatprep.mubr.f32.mxu0 0.0
        %8045 = vmatmul.mubr.f32.gmra.mrb[0].mxu0 %v7418
        %v8046 = vpop.f32.mrb[0].mxu0
        %v8047 = vadd.f32 0.0, %v8046
        %v8048 = vpop.f32.mrb[0].mxu0
        %8049 = vdwg.mxu0
        %8050 = vmatprep.subr.mxu0 0.0
        %8051 = vmatpush1.msra.mxu0 %v7380
        %8052 = vmatprep.subr.mxu0 0.0
        %8053 = vmatpush1.msra.mxu0 %v7381
        %8054 = vmatprep.subr.mxu0 0.0
        %8055 = vmatpush1.msra.mxu0 %v7382
        %8056 = vmatprep.subr.mxu0 0.0
        %8057 = vmatpush1.msra.mxu0 %v7383
        %8058 = vmatprep.subr.mxu0 0.0
        %8059 = vmatpush1.msra.mxu0 %v7384
        %8060 = vmatprep.subr.mxu0 0.0
        %8061 = vmatpush1.msra.mxu0 0.0
        %8062 = vmatprep.subr.mxu0 0.0
        %8063 = vmatpush1.msra.mxu0 0.0
        %8064 = vmatprep.subr.mxu0 0.0
        %8065 = vmatpush1.msra.mxu0 0.0
        %8066 = vmatprep.subr.mxu0 0.0
        %8067 = vmatpush1.msra.mxu0 0.0
        %8068 = vmatprep.subr.mxu0 0.0
        %8069 = vmatpush1.msra.mxu0 0.0
        %8070 = vmatprep.subr.mxu0 0.0
        %8071 = vmatpush1.msra.mxu0 0.0
        %8072 = vmatprep.subr.mxu0 0.0
        %8073 = vmatpush1.msra.mxu0 0.0
        %8074 = vmatprep.subr.mxu0 0.0
        %8075 = vmatpush1.msra.mxu0 0.0
        %8076 = vmatprep.subr.mxu0 0.0
        %8077 = vmatpush1.msra.mxu0 0.0
        %8078 = vmatprep.subr.mxu0 0.0
        %8079 = vmatpush1.msra.mxu0 0.0
        %8080 = vmatprep.subr.mxu0 0.0
        %8081 = vmatpush1.msra.mxu0 0.0
        %8082 = vmatprep.subr.mxu0 0.0
        %8083 = vmatpush1.msra.mxu0 0.0
        %8084 = vmatprep.subr.mxu0 0.0
        %8085 = vmatpush1.msra.mxu0 0.0
        %8086 = vmatprep.subr.mxu0 0.0
        %8087 = vmatpush1.msra.mxu0 0.0
        %8088 = vmatprep.subr.mxu0 0.0
        %8089 = vmatpush1.msra.mxu0 0.0
        %8090 = vmatprep.subr.mxu0 0.0
        %8091 = vmatpush1.msra.mxu0 0.0
        %8092 = vmatprep.subr.mxu0 0.0
        %8093 = vmatpush1.msra.mxu0 0.0
        %8094 = vmatprep.subr.mxu0 0.0
        %8095 = vmatpush1.msra.mxu0 0.0
        %8096 = vmatprep.subr.mxu0 0.0
        %8097 = vmatpush1.msra.mxu0 0.0
        %8098 = vmatprep.subr.mxu0 0.0
        %8099 = vmatpush1.msra.mxu0 0.0
        %8100 = vmatprep.subr.mxu0 0.0
        %8101 = vmatpush1.msra.mxu0 0.0
        %8102 = vmatprep.subr.mxu0 0.0
        %8103 = vmatpush1.msra.mxu0 0.0
        %8104 = vmatprep.subr.mxu0 0.0
        %8105 = vmatpush1.msra.mxu0 0.0
        %8106 = vmatprep.subr.mxu0 0.0
        %8107 = vmatpush1.msra.mxu0 0.0
        %8108 = vmatprep.subr.mxu0 0.0
        %8109 = vmatpush1.msra.mxu0 0.0
        %8110 = vmatprep.subr.mxu0 0.0
        %8111 = vmatpush1.msra.mxu0 0.0
        %8112 = vmatprep.subr.mxu0 0.0
        %8113 = vmatpush1.msra.mxu0 0.0
        %8114 = vmatprep.mubr.f32.mxu0 0.0
        %8115 = vmatmul.mubr.f32.gmra.mrb[0].mxu0 %v7418
        %v8116 = vpop.f32.mrb[0].mxu0
        %v8117 = vadd.f32 0.0, %v8116
        %v8118 = vpop.f32.mrb[0].mxu0
        %8119 = vdwg.mxu0
        %8120 = vmatprep.subr.mxu0 0.0
        %8121 = vmatpush1.msra.mxu0 %v7385
        %8122 = vmatprep.subr.mxu0 0.0
        %8123 = vmatpush1.msra.mxu0 %v7386
        %8124 = vmatprep.subr.mxu0 0.0
        %8125 = vmatpush1.msra.mxu0 %v7387
        %8126 = vmatprep.subr.mxu0 0.0
        %8127 = vmatpush1.msra.mxu0 %v7388
        %8128 = vmatprep.subr.mxu0 0.0
        %8129 = vmatpush1.msra.mxu0 %v7389
        %8130 = vmatprep.subr.mxu0 0.0
        %8131 = vmatpush1.msra.mxu0 0.0
        %8132 = vmatprep.subr.mxu0 0.0
        %8133 = vmatpush1.msra.mxu0 0.0
        %8134 = vmatprep.subr.mxu0 0.0
        %8135 = vmatpush1.msra.mxu0 0.0
        %8136 = vmatprep.subr.mxu0 0.0
        %8137 = vmatpush1.msra.mxu0 0.0
        %8138 = vmatprep.subr.mxu0 0.0
        %8139 = vmatpush1.msra.mxu0 0.0
        %8140 = vmatprep.subr.mxu0 0.0
        %8141 = vmatpush1.msra.mxu0 0.0
        %8142 = vmatprep.subr.mxu0 0.0
        %8143 = vmatpush1.msra.mxu0 0.0
        %8144 = vmatprep.subr.mxu0 0.0
        %8145 = vmatpush1.msra.mxu0 0.0
        %8146 = vmatprep.subr.mxu0 0.0
        %8147 = vmatpush1.msra.mxu0 0.0
        %8148 = vmatprep.subr.mxu0 0.0
        %8149 = vmatpush1.msra.mxu0 0.0
        %8150 = vmatprep.subr.mxu0 0.0
        %8151 = vmatpush1.msra.mxu0 0.0
        %8152 = vmatprep.subr.mxu0 0.0
        %8153 = vmatpush1.msra.mxu0 0.0
        %8154 = vmatprep.subr.mxu0 0.0
        %8155 = vmatpush1.msra.mxu0 0.0
        %8156 = vmatprep.subr.mxu0 0.0
        %8157 = vmatpush1.msra.mxu0 0.0
        %8158 = vmatprep.subr.mxu0 0.0
        %8159 = vmatpush1.msra.mxu0 0.0
        %8160 = vmatprep.subr.mxu0 0.0
        %8161 = vmatpush1.msra.mxu0 0.0
        %8162 = vmatprep.subr.mxu0 0.0
        %8163 = vmatpush1.msra.mxu0 0.0
        %8164 = vmatprep.subr.mxu0 0.0
        %8165 = vmatpush1.msra.mxu0 0.0
        %8166 = vmatprep.subr.mxu0 0.0
        %8167 = vmatpush1.msra.mxu0 0.0
        %8168 = vmatprep.subr.mxu0 0.0
        %8169 = vmatpush1.msra.mxu0 0.0
        %8170 = vmatprep.subr.mxu0 0.0
        %8171 = vmatpush1.msra.mxu0 0.0
        %8172 = vmatprep.subr.mxu0 0.0
        %8173 = vmatpush1.msra.mxu0 0.0
        %8174 = vmatprep.subr.mxu0 0.0
        %8175 = vmatpush1.msra.mxu0 0.0
        %8176 = vmatprep.subr.mxu0 0.0
        %8177 = vmatpush1.msra.mxu0 0.0
        %8178 = vmatprep.subr.mxu0 0.0
        %8179 = vmatpush1.msra.mxu0 0.0
        %8180 = vmatprep.subr.mxu0 0.0
        %8181 = vmatpush1.msra.mxu0 0.0
        %8182 = vmatprep.subr.mxu0 0.0
        %8183 = vmatpush1.msra.mxu0 0.0
        %8184 = vmatprep.mubr.f32.mxu0 0.0
        %8185 = vmatmul.mubr.f32.gmra.mrb[0].mxu0 %v7418
        %v8186 = vpop.f32.mrb[0].mxu0
        %v8187 = vadd.f32 0.0, %v8186
        %v8188 = vpop.f32.mrb[0].mxu0
        %8189 = vdwg.mxu0
        %8190 = vmatprep.subr.mxu0 0.0
        %8191 = vmatpush1.msra.mxu0 %v7390
        %8192 = vmatprep.subr.mxu0 0.0
        %8193 = vmatpush1.msra.mxu0 %v7391
        %8194 = vmatprep.subr.mxu0 0.0
        %8195 = vmatpush1.msra.mxu0 %v7392
        %8196 = vmatprep.subr.mxu0 0.0
        %8197 = vmatpush1.msra.mxu0 %v7393
        %8198 = vmatprep.subr.mxu0 0.0
        %8199 = vmatpush1.msra.mxu0 %v7394
        %8200 = vmatprep.subr.mxu0 0.0
        %8201 = vmatpush1.msra.mxu0 0.0
        %8202 = vmatprep.subr.mxu0 0.0
        %8203 = vmatpush1.msra.mxu0 0.0
        %8204 = vmatprep.subr.mxu0 0.0
        %8205 = vmatpush1.msra.mxu0 0.0
        %8206 = vmatprep.subr.mxu0 0.0
        %8207 = vmatpush1.msra.mxu0 0.0
        %8208 = vmatprep.subr.mxu0 0.0
        %8209 = vmatpush1.msra.mxu0 0.0
        %8210 = vmatprep.subr.mxu0 0.0
        %8211 = vmatpush1.msra.mxu0 0.0
        %8212 = vmatprep.subr.mxu0 0.0
        %8213 = vmatpush1.msra.mxu0 0.0
        %8214 = vmatprep.subr.mxu0 0.0
        %8215 = vmatpush1.msra.mxu0 0.0
        %8216 = vmatprep.subr.mxu0 0.0
        %8217 = vmatpush1.msra.mxu0 0.0
        %8218 = vmatprep.subr.mxu0 0.0
        %8219 = vmatpush1.msra.mxu0 0.0
        %8220 = vmatprep.subr.mxu0 0.0
        %8221 = vmatpush1.msra.mxu0 0.0
        %8222 = vmatprep.subr.mxu0 0.0
        %8223 = vmatpush1.msra.mxu0 0.0
        %8224 = vmatprep.subr.mxu0 0.0
        %8225 = vmatpush1.msra.mxu0 0.0
        %8226 = vmatprep.subr.mxu0 0.0
        %8227 = vmatpush1.msra.mxu0 0.0
        %8228 = vmatprep.subr.mxu0 0.0
        %8229 = vmatpush1.msra.mxu0 0.0
        %8230 = vmatprep.subr.mxu0 0.0
        %8231 = vmatpush1.msra.mxu0 0.0
        %8232 = vmatprep.subr.mxu0 0.0
        %8233 = vmatpush1.msra.mxu0 0.0
        %8234 = vmatprep.subr.mxu0 0.0
        %8235 = vmatpush1.msra.mxu0 0.0
        %8236 = vmatprep.subr.mxu0 0.0
        %8237 = vmatpush1.msra.mxu0 0.0
        %8238 = vmatprep.subr.mxu0 0.0
        %8239 = vmatpush1.msra.mxu0 0.0
        %8240 = vmatprep.subr.mxu0 0.0
        %8241 = vmatpush1.msra.mxu0 0.0
        %8242 = vmatprep.subr.mxu0 0.0
        %8243 = vmatpush1.msra.mxu0 0.0
        %8244 = vmatprep.subr.mxu0 0.0
        %8245 = vmatpush1.msra.mxu0 0.0
        %8246 = vmatprep.subr.mxu0 0.0
        %8247 = vmatpush1.msra.mxu0 0.0
        %8248 = vmatprep.subr.mxu0 0.0
        %8249 = vmatpush1.msra.mxu0 0.0
        %8250 = vmatprep.subr.mxu0 0.0
        %8251 = vmatpush1.msra.mxu0 0.0
        %8252 = vmatprep.subr.mxu0 0.0
        %8253 = vmatpush1.msra.mxu0 0.0
        %8254 = vmatprep.mubr.f32.mxu0 0.0
        %8255 = vmatmul.mubr.f32.gmra.mrb[0].mxu0 %v7418
        %v8256 = vpop.f32.mrb[0].mxu0
        %v8257 = vadd.f32 0.0, %v8256
        %v8258 = vpop.f32.mrb[0].mxu0
        %8259 = vdwg.mxu0
        %8260 = vmatprep.subr.mxu0 0.0
        %8261 = vmatpush1.msra.mxu0 %v7395
        %8262 = vmatprep.subr.mxu0 0.0
        %8263 = vmatpush1.msra.mxu0 %v7396
        %8264 = vmatprep.subr.mxu0 0.0
        %8265 = vmatpush1.msra.mxu0 %v7397
        %8266 = vmatprep.subr.mxu0 0.0
        %8267 = vmatpush1.msra.mxu0 %v7398
        %8268 = vmatprep.subr.mxu0 0.0
        %8269 = vmatpush1.msra.mxu0 %v7399
        %8270 = vmatprep.subr.mxu0 0.0
        %8271 = vmatpush1.msra.mxu0 0.0
        %8272 = vmatprep.subr.mxu0 0.0
        %8273 = vmatpush1.msra.mxu0 0.0
        %8274 = vmatprep.subr.mxu0 0.0
        %8275 = vmatpush1.msra.mxu0 0.0
        %8276 = vmatprep.subr.mxu0 0.0
        %8277 = vmatpush1.msra.mxu0 0.0
        %8278 = vmatprep.subr.mxu0 0.0
        %8279 = vmatpush1.msra.mxu0 0.0
        %8280 = vmatprep.subr.mxu0 0.0
        %8281 = vmatpush1.msra.mxu0 0.0
        %8282 = vmatprep.subr.mxu0 0.0
        %8283 = vmatpush1.msra.mxu0 0.0
        %8284 = vmatprep.subr.mxu0 0.0
        %8285 = vmatpush1.msra.mxu0 0.0
        %8286 = vmatprep.subr.mxu0 0.0
        %8287 = vmatpush1.msra.mxu0 0.0
        %8288 = vmatprep.subr.mxu0 0.0
        %8289 = vmatpush1.msra.mxu0 0.0
        %8290 = vmatprep.subr.mxu0 0.0
        %8291 = vmatpush1.msra.mxu0 0.0
        %8292 = vmatprep.subr.mxu0 0.0
        %8293 = vmatpush1.msra.mxu0 0.0
        %8294 = vmatprep.subr.mxu0 0.0
        %8295 = vmatpush1.msra.mxu0 0.0
        %8296 = vmatprep.subr.mxu0 0.0
        %8297 = vmatpush1.msra.mxu0 0.0
        %8298 = vmatprep.subr.mxu0 0.0
        %8299 = vmatpush1.msra.mxu0 0.0
        %8300 = vmatprep.subr.mxu0 0.0
        %8301 = vmatpush1.msra.mxu0 0.0
        %8302 = vmatprep.subr.mxu0 0.0
        %8303 = vmatpush1.msra.mxu0 0.0
        %8304 = vmatprep.subr.mxu0 0.0
        %8305 = vmatpush1.msra.mxu0 0.0
        %8306 = vmatprep.subr.mxu0 0.0
        %8307 = vmatpush1.msra.mxu0 0.0
        %8308 = vmatprep.subr.mxu0 0.0
        %8309 = vmatpush1.msra.mxu0 0.0
        %8310 = vmatprep.subr.mxu0 0.0
        %8311 = vmatpush1.msra.mxu0 0.0
        %8312 = vmatprep.subr.mxu0 0.0
        %8313 = vmatpush1.msra.mxu0 0.0
        %8314 = vmatprep.subr.mxu0 0.0
        %8315 = vmatpush1.msra.mxu0 0.0
        %8316 = vmatprep.subr.mxu0 0.0
        %8317 = vmatpush1.msra.mxu0 0.0
        %8318 = vmatprep.subr.mxu0 0.0
        %8319 = vmatpush1.msra.mxu0 0.0
        %8320 = vmatprep.subr.mxu0 0.0
        %8321 = vmatpush1.msra.mxu0 0.0
        %8322 = vmatprep.subr.mxu0 0.0
        %8323 = vmatpush1.msra.mxu0 0.0
        %8324 = vmatprep.mubr.f32.mxu0 0.0
        %8325 = vmatmul.mubr.f32.gmra.mrb[0].mxu0 %v7418
        %v8326 = vpop.f32.mrb[0].mxu0
        %v8327 = vadd.f32 0.0, %v8326
        %v8328 = vpop.f32.mrb[0].mxu0
        %8329 = vdwg.mxu0
        %8330 = vmatprep.subr.mxu0 0.0
        %8331 = vmatpush1.msra.mxu0 %v7400
        %8332 = vmatprep.subr.mxu0 0.0
        %8333 = vmatpush1.msra.mxu0 %v7401
        %8334 = vmatprep.subr.mxu0 0.0
        %8335 = vmatpush1.msra.mxu0 %v7402
        %8336 = vmatprep.subr.mxu0 0.0
        %8337 = vmatpush1.msra.mxu0 %v7403
        %8338 = vmatprep.subr.mxu0 0.0
        %8339 = vmatpush1.msra.mxu0 %v7404
        %8340 = vmatprep.subr.mxu0 0.0
        %8341 = vmatpush1.msra.mxu0 0.0
        %8342 = vmatprep.subr.mxu0 0.0
        %8343 = vmatpush1.msra.mxu0 0.0
        %8344 = vmatprep.subr.mxu0 0.0
        %8345 = vmatpush1.msra.mxu0 0.0
        %8346 = vmatprep.subr.mxu0 0.0
        %8347 = vmatpush1.msra.mxu0 0.0
        %8348 = vmatprep.subr.mxu0 0.0
        %8349 = vmatpush1.msra.mxu0 0.0
        %8350 = vmatprep.subr.mxu0 0.0
        %8351 = vmatpush1.msra.mxu0 0.0
        %8352 = vmatprep.subr.mxu0 0.0
        %8353 = vmatpush1.msra.mxu0 0.0
        %8354 = vmatprep.subr.mxu0 0.0
        %8355 = vmatpush1.msra.mxu0 0.0
        %8356 = vmatprep.subr.mxu0 0.0
        %8357 = vmatpush1.msra.mxu0 0.0
        %8358 = vmatprep.subr.mxu0 0.0
        %8359 = vmatpush1.msra.mxu0 0.0
        %8360 = vmatprep.subr.mxu0 0.0
        %8361 = vmatpush1.msra.mxu0 0.0
        %8362 = vmatprep.subr.mxu0 0.0
        %8363 = vmatpush1.msra.mxu0 0.0
        %8364 = vmatprep.subr.mxu0 0.0
        %8365 = vmatpush1.msra.mxu0 0.0
        %8366 = vmatprep.subr.mxu0 0.0
        %8367 = vmatpush1.msra.mxu0 0.0
        %8368 = vmatprep.subr.mxu0 0.0
        %8369 = vmatpush1.msra.mxu0 0.0
        %8370 = vmatprep.subr.mxu0 0.0
        %8371 = vmatpush1.msra.mxu0 0.0
        %8372 = vmatprep.subr.mxu0 0.0
        %8373 = vmatpush1.msra.mxu0 0.0
        %8374 = vmatprep.subr.mxu0 0.0
        %8375 = vmatpush1.msra.mxu0 0.0
        %8376 = vmatprep.subr.mxu0 0.0
        %8377 = vmatpush1.msra.mxu0 0.0
        %8378 = vmatprep.subr.mxu0 0.0
        %8379 = vmatpush1.msra.mxu0 0.0
        %8380 = vmatprep.subr.mxu0 0.0
        %8381 = vmatpush1.msra.mxu0 0.0
        %8382 = vmatprep.subr.mxu0 0.0
        %8383 = vmatpush1.msra.mxu0 0.0
        %8384 = vmatprep.subr.mxu0 0.0
        %8385 = vmatpush1.msra.mxu0 0.0
        %8386 = vmatprep.subr.mxu0 0.0
        %8387 = vmatpush1.msra.mxu0 0.0
        %8388 = vmatprep.subr.mxu0 0.0
        %8389 = vmatpush1.msra.mxu0 0.0
        %8390 = vmatprep.subr.mxu0 0.0
        %8391 = vmatpush1.msra.mxu0 0.0
        %8392 = vmatprep.subr.mxu0 0.0
        %8393 = vmatpush1.msra.mxu0 0.0
        %8394 = vmatprep.mubr.f32.mxu0 0.0
        %8395 = vmatmul.mubr.f32.gmra.mrb[0].mxu0 %v7418
        %v8396 = vpop.f32.mrb[0].mxu0
        %v8397 = vadd.f32 0.0, %v8396
        %v8398 = vpop.f32.mrb[0].mxu0
        %8399 = vdwg.mxu0
        %8400 = vmatprep.subr.mxu0 0.0
        %8401 = vmatpush1.msra.mxu0 %v7405
        %8402 = vmatprep.subr.mxu0 0.0
        %8403 = vmatpush1.msra.mxu0 %v7406
        %8404 = vmatprep.subr.mxu0 0.0
        %8405 = vmatpush1.msra.mxu0 %v7407
        %8406 = vmatprep.subr.mxu0 0.0
        %8407 = vmatpush1.msra.mxu0 %v7408
        %8408 = vmatprep.subr.mxu0 0.0
        %8409 = vmatpush1.msra.mxu0 %v7409
        %8410 = vmatprep.subr.mxu0 0.0
        %8411 = vmatpush1.msra.mxu0 0.0
        %8412 = vmatprep.subr.mxu0 0.0
        %8413 = vmatpush1.msra.mxu0 0.0
        %8414 = vmatprep.subr.mxu0 0.0
        %8415 = vmatpush1.msra.mxu0 0.0
        %8416 = vmatprep.subr.mxu0 0.0
        %8417 = vmatpush1.msra.mxu0 0.0
        %8418 = vmatprep.subr.mxu0 0.0
        %8419 = vmatpush1.msra.mxu0 0.0
        %8420 = vmatprep.subr.mxu0 0.0
        %8421 = vmatpush1.msra.mxu0 0.0
        %8422 = vmatprep.subr.mxu0 0.0
        %8423 = vmatpush1.msra.mxu0 0.0
        %8424 = vmatprep.subr.mxu0 0.0
        %8425 = vmatpush1.msra.mxu0 0.0
        %8426 = vmatprep.subr.mxu0 0.0
        %8427 = vmatpush1.msra.mxu0 0.0
        %8428 = vmatprep.subr.mxu0 0.0
        %8429 = vmatpush1.msra.mxu0 0.0
        %8430 = vmatprep.subr.mxu0 0.0
        %8431 = vmatpush1.msra.mxu0 0.0
        %8432 = vmatprep.subr.mxu0 0.0
        %8433 = vmatpush1.msra.mxu0 0.0
        %8434 = vmatprep.subr.mxu0 0.0
        %8435 = vmatpush1.msra.mxu0 0.0
        %8436 = vmatprep.subr.mxu0 0.0
        %8437 = vmatpush1.msra.mxu0 0.0
        %8438 = vmatprep.subr.mxu0 0.0
        %8439 = vmatpush1.msra.mxu0 0.0
        %8440 = vmatprep.subr.mxu0 0.0
        %8441 = vmatpush1.msra.mxu0 0.0
        %8442 = vmatprep.subr.mxu0 0.0
        %8443 = vmatpush1.msra.mxu0 0.0
        %8444 = vmatprep.subr.mxu0 0.0
        %8445 = vmatpush1.msra.mxu0 0.0
        %8446 = vmatprep.subr.mxu0 0.0
        %8447 = vmatpush1.msra.mxu0 0.0
        %8448 = vmatprep.subr.mxu0 0.0
        %8449 = vmatpush1.msra.mxu0 0.0
        %8450 = vmatprep.subr.mxu0 0.0
        %8451 = vmatpush1.msra.mxu0 0.0
        %8452 = vmatprep.subr.mxu0 0.0
        %8453 = vmatpush1.msra.mxu0 0.0
        %8454 = vmatprep.subr.mxu0 0.0
        %8455 = vmatpush1.msra.mxu0 0.0
        %8456 = vmatprep.subr.mxu0 0.0
        %8457 = vmatpush1.msra.mxu0 0.0
        %8458 = vmatprep.subr.mxu0 0.0
        %8459 = vmatpush1.msra.mxu0 0.0
        %8460 = vmatprep.subr.mxu0 0.0
        %8461 = vmatpush1.msra.mxu0 0.0
        %8462 = vmatprep.subr.mxu0 0.0
        %8463 = vmatpush1.msra.mxu0 0.0
        %8464 = vmatprep.mubr.f32.mxu0 0.0
        %8465 = vmatmul.mubr.f32.gmra.mrb[0].mxu0 %v7418
        %v8466 = vpop.f32.mrb[0].mxu0
        %v8467 = vadd.f32 0.0, %v8466
        %v8468 = vpop.f32.mrb[0].mxu0
        %8469 = vdwg.mxu0
        %8470 = vmatprep.subr.mxu0 0.0
        %8471 = vmatpush1.msra.mxu0 %v7410
        %8472 = vmatprep.subr.mxu0 0.0
        %8473 = vmatpush1.msra.mxu0 %v7411
        %8474 = vmatprep.subr.mxu0 0.0
        %8475 = vmatpush1.msra.mxu0 %v7412
        %8476 = vmatprep.subr.mxu0 0.0
        %8477 = vmatpush1.msra.mxu0 %v7413
        %8478 = vmatprep.subr.mxu0 0.0
        %8479 = vmatpush1.msra.mxu0 %v7414
        %8480 = vmatprep.subr.mxu0 0.0
        %8481 = vmatpush1.msra.mxu0 0.0
        %8482 = vmatprep.subr.mxu0 0.0
        %8483 = vmatpush1.msra.mxu0 0.0
        %8484 = vmatprep.subr.mxu0 0.0
        %8485 = vmatpush1.msra.mxu0 0.0
        %8486 = vmatprep.subr.mxu0 0.0
        %8487 = vmatpush1.msra.mxu0 0.0
        %8488 = vmatprep.subr.mxu0 0.0
        %8489 = vmatpush1.msra.mxu0 0.0
        %8490 = vmatprep.subr.mxu0 0.0
        %8491 = vmatpush1.msra.mxu0 0.0
        %8492 = vmatprep.subr.mxu0 0.0
        %8493 = vmatpush1.msra.mxu0 0.0
        %8494 = vmatprep.subr.mxu0 0.0
        %8495 = vmatpush1.msra.mxu0 0.0
        %8496 = vmatprep.subr.mxu0 0.0
        %8497 = vmatpush1.msra.mxu0 0.0
        %8498 = vmatprep.subr.mxu0 0.0
        %8499 = vmatpush1.msra.mxu0 0.0
        %8500 = vmatprep.subr.mxu0 0.0
        %8501 = vmatpush1.msra.mxu0 0.0
        %8502 = vmatprep.subr.mxu0 0.0
        %8503 = vmatpush1.msra.mxu0 0.0
        %8504 = vmatprep.subr.mxu0 0.0
        %8505 = vmatpush1.msra.mxu0 0.0
        %8506 = vmatprep.subr.mxu0 0.0
        %8507 = vmatpush1.msra.mxu0 0.0
        %8508 = vmatprep.subr.mxu0 0.0
        %8509 = vmatpush1.msra.mxu0 0.0
        %8510 = vmatprep.subr.mxu0 0.0
        %8511 = vmatpush1.msra.mxu0 0.0
        %8512 = vmatprep.subr.mxu0 0.0
        %8513 = vmatpush1.msra.mxu0 0.0
        %8514 = vmatprep.subr.mxu0 0.0
        %8515 = vmatpush1.msra.mxu0 0.0
        %8516 = vmatprep.subr.mxu0 0.0
        %8517 = vmatpush1.msra.mxu0 0.0
        %8518 = vmatprep.subr.mxu0 0.0
        %8519 = vmatpush1.msra.mxu0 0.0
        %8520 = vmatprep.subr.mxu0 0.0
        %8521 = vmatpush1.msra.mxu0 0.0
        %8522 = vmatprep.subr.mxu0 0.0
        %8523 = vmatpush1.msra.mxu0 0.0
        %8524 = vmatprep.subr.mxu0 0.0
        %8525 = vmatpush1.msra.mxu0 0.0
        %8526 = vmatprep.subr.mxu0 0.0
        %8527 = vmatpush1.msra.mxu0 0.0
        %8528 = vmatprep.subr.mxu0 0.0
        %8529 = vmatpush1.msra.mxu0 0.0
        %8530 = vmatprep.subr.mxu0 0.0
        %8531 = vmatpush1.msra.mxu0 0.0
        %8532 = vmatprep.subr.mxu0 0.0
        %8533 = vmatpush1.msra.mxu0 0.0
        %8534 = vmatprep.mubr.f32.mxu0 0.0
        %8535 = vmatmul.mubr.f32.gmra.mrb[0].mxu0 %v7418
        %v8536 = vpop.f32.mrb[0].mxu0
        %v8537 = vadd.f32 0.0, %v8536
        %v8538 = vpop.f32.mrb[0].mxu0
        %8539 = vdwg.mxu0
        %v8540 = vld [vmem:[%s283] sm:$0xff]
        %v8541 = vld [vmem:[%s283 + $0x8] sm:$0xff]
        %v8542 = vmul.f32 %v8540, 1e+08
        %v8543 = vmul.f32 %v8541, 1e+08
        %v8546 = vrot.slane %v8542, 1
        %v8547 = vrot.slane %v8542, 2
        %v8548 = vrot.slane %v8542, 3
        %v8549 = vrot.slane %v8542, 4
        %v8550 = vrot.slane %v8542, 5
        %v8551 = vrot.slane %v8542, 6
        %v8552 = vrot.slane %v8542, 7
        %v8553 = vrot.slane %v8543, 1
        %v8554 = vrot.slane %v8543, 2
        %v8555 = vrot.slane %v8543, 3
        %v8556 = vrot.slane %v8543, 4
        %v8557 = vrot.slane %v8543, 5
        %v8558 = vrot.slane %v8543, 6
        %v8559 = vrot.slane %v8543, 7
        %v8576 = vsub.f32 %v7487, %v8542
        %v8577 = vsub.f32 %v7557, %v8546
        %v8578 = vsub.f32 %v7627, %v8547
        %v8579 = vsub.f32 %v7697, %v8548
        %v8580 = vsub.f32 %v7767, %v8549
        %v8581 = vsub.f32 %v7837, %v8550
        %v8582 = vsub.f32 %v7907, %v8551
        %v8583 = vsub.f32 %v7977, %v8552
        %v8584 = vsub.f32 %v8047, %v8543
        %v8585 = vsub.f32 %v8117, %v8553
        %v8586 = vsub.f32 %v8187, %v8554
        %v8587 = vsub.f32 %v8257, %v8555
        %v8588 = vsub.f32 %v8327, %v8556
        %v8589 = vsub.f32 %v8397, %v8557
        %v8590 = vsub.f32 %v8467, %v8558
        %v8591 = vsub.f32 %v8537, %v8559
        %v8608 = vrot.slane %v8577, 7
        %vm8609 = vcmask 1041409
        %v8610 = vsel %vm8609, %v8608, %v8576
        %v8611 = vrot.slane %v8578, 6
        %vm8612 = vcmask 1042434
        %v8613 = vsel %vm8612, %v8611, %v8610
        %v8614 = vrot.slane %v8579, 5
        %vm8615 = vcmask 1043459
        %v8616 = vsel %vm8615, %v8614, %v8613
        %v8617 = vrot.slane %v8580, 4
        %vm8618 = vcmask 1044484
        %v8619 = vsel %vm8618, %v8617, %v8616
        %v8620 = vrot.slane %v8581, 3
        %vm8621 = vcmask 1045509
        %v8622 = vsel %vm8621, %v8620, %v8619
        %v8623 = vrot.slane %v8582, 2
        %vm8624 = vcmask 1046534
        %v8625 = vsel %vm8624, %v8623, %v8622
        %v8626 = vrot.slane %v8583, 1
        %vm8627 = vcmask 1047559
        %v8628 = vsel %vm8627, %v8626, %v8625
        %v8629 = vrot.slane %v8585, 7
        %v8630 = vsel %vm8609, %v8629, %v8584
        %v8631 = vrot.slane %v8586, 6
        %v8632 = vsel %vm8612, %v8631, %v8630
        %v8633 = vrot.slane %v8587, 5
        %v8634 = vsel %vm8615, %v8633, %v8632
        %v8635 = vrot.slane %v8588, 4
        %v8636 = vsel %vm8618, %v8635, %v8634
        %v8637 = vrot.slane %v8589, 3
        %v8638 = vsel %vm8621, %v8637, %v8636
        %v8639 = vrot.slane %v8590, 2
        %v8640 = vsel %vm8624, %v8639, %v8638
        %v8641 = vrot.slane %v8591, 1
        %v8642 = vsel %vm8627, %v8641, %v8640
        %8645 = vmax.xlane.f32.xlu0 %v8628
        %v8646 = vpop.xlane.xlu0 %8645
        %8647 = vmax.xlane.f32.xlu0 %v8642
        %v8648 = vpop.xlane.xlu0 %8647
        %v8651 = vrot.slane %v8646, 1
        %v8652 = vrot.slane %v8646, 2
        %v8653 = vrot.slane %v8646, 3
        %v8654 = vrot.slane %v8646, 4
        %v8655 = vrot.slane %v8646, 5
        %v8656 = vrot.slane %v8646, 6
        %v8657 = vrot.slane %v8646, 7
        %v8658 = vrot.slane %v8648, 1
        %v8659 = vrot.slane %v8648, 2
        %v8660 = vrot.slane %v8648, 3
        %v8661 = vrot.slane %v8648, 4
        %v8662 = vrot.slane %v8648, 5
        %v8663 = vrot.slane %v8648, 6
        %v8664 = vrot.slane %v8648, 7
        %v8681 = vsub.f32 %v8576, %v8646
        %v8682 = vsub.f32 %v8577, %v8651
        %v8683 = vsub.f32 %v8578, %v8652
        %v8684 = vsub.f32 %v8579, %v8653
        %v8685 = vsub.f32 %v8580, %v8654
        %v8686 = vsub.f32 %v8581, %v8655
        %v8687 = vsub.f32 %v8582, %v8656
        %v8688 = vsub.f32 %v8583, %v8657
        %v8689 = vsub.f32 %v8584, %v8648
        %v8690 = vsub.f32 %v8585, %v8658
        %v8691 = vsub.f32 %v8586, %v8659
        %v8692 = vsub.f32 %v8587, %v8660
        %v8693 = vsub.f32 %v8588, %v8661
        %v8694 = vsub.f32 %v8589, %v8662
        %v8695 = vsub.f32 %v8590, %v8663
        %v8696 = vsub.f32 %v8591, %v8664
        %v8697 = vmul.f32 %v8681, 1.442695
        %v8698 = vpow.pop %v8697
        %v8699 = vmul.f32 %v8682, 1.442695
        %v8700 = vpow.pop %v8699
        %v8701 = vmul.f32 %v8683, 1.442695
        %v8702 = vpow.pop %v8701
        %v8703 = vmul.f32 %v8684, 1.442695
        %v8704 = vpow.pop %v8703
        %v8705 = vmul.f32 %v8685, 1.442695
        %v8706 = vpow.pop %v8705
        %v8707 = vmul.f32 %v8686, 1.442695
        %v8708 = vpow.pop %v8707
        %v8709 = vmul.f32 %v8687, 1.442695
        %v8710 = vpow.pop %v8709
        %v8711 = vmul.f32 %v8688, 1.442695
        %v8712 = vpow.pop %v8711
        %v8713 = vmul.f32 %v8689, 1.442695
        %v8714 = vpow.pop %v8713
        %v8715 = vmul.f32 %v8690, 1.442695
        %v8716 = vpow.pop %v8715
        %v8717 = vmul.f32 %v8691, 1.442695
        %v8718 = vpow.pop %v8717
        %v8719 = vmul.f32 %v8692, 1.442695
        %v8720 = vpow.pop %v8719
        %v8721 = vmul.f32 %v8693, 1.442695
        %v8722 = vpow.pop %v8721
        %v8723 = vmul.f32 %v8694, 1.442695
        %v8724 = vpow.pop %v8723
        %v8725 = vmul.f32 %v8695, 1.442695
        %v8726 = vpow.pop %v8725
        %v8727 = vmul.f32 %v8696, 1.442695
        %v8728 = vpow.pop %v8727
        %v8745 = vrot.slane %v8700, 7
        %v8746 = vsel %vm8609, %v8745, %v8698
        %v8747 = vrot.slane %v8702, 6
        %v8748 = vsel %vm8612, %v8747, %v8746
        %v8749 = vrot.slane %v8704, 5
        %v8750 = vsel %vm8615, %v8749, %v8748
        %v8751 = vrot.slane %v8706, 4
        %v8752 = vsel %vm8618, %v8751, %v8750
        %v8753 = vrot.slane %v8708, 3
        %v8754 = vsel %vm8621, %v8753, %v8752
        %v8755 = vrot.slane %v8710, 2
        %v8756 = vsel %vm8624, %v8755, %v8754
        %v8757 = vrot.slane %v8712, 1
        %v8758 = vsel %vm8627, %v8757, %v8756
        %v8759 = vrot.slane %v8716, 7
        %v8760 = vsel %vm8609, %v8759, %v8714
        %v8761 = vrot.slane %v8718, 6
        %v8762 = vsel %vm8612, %v8761, %v8760
        %v8763 = vrot.slane %v8720, 5
        %v8764 = vsel %vm8615, %v8763, %v8762
        %v8765 = vrot.slane %v8722, 4
        %v8766 = vsel %vm8618, %v8765, %v8764
        %v8767 = vrot.slane %v8724, 3
        %v8768 = vsel %vm8621, %v8767, %v8766
        %v8769 = vrot.slane %v8726, 2
        %v8770 = vsel %vm8624, %v8769, %v8768
        %v8771 = vrot.slane %v8728, 1
        %v8772 = vsel %vm8627, %v8771, %v8770
        %8775 = vadd.xlane.f32.xlu0 %v8758
        %v8776 = vpop.xlane.xlu0 %8775
        %8777 = vadd.xlane.f32.xlu0 %v8772
        %v8778 = vpop.xlane.xlu0 %8777
        %v8779 = vrcp.pop %v8776
        %v8780 = vrcp.pop %v8778
        %v8781 = vmul.f32 %v8776, %v8779
        %v8782 = vmul.f32 %v8778, %v8780
        %v8783 = vsub.f32 2.0, %v8781
        %v8784 = vsub.f32 2.0, %v8782
        %v8785 = vmul.f32 %v8779, %v8783
        %v8786 = vmul.f32 %v8780, %v8784
        %v8789 = vrot.slane %v8785, 1
        %v8790 = vrot.slane %v8785, 2
        %v8791 = vrot.slane %v8785, 3
        %v8792 = vrot.slane %v8785, 4
        %v8793 = vrot.slane %v8785, 5
        %v8794 = vrot.slane %v8785, 6
        %v8795 = vrot.slane %v8785, 7
        %v8796 = vrot.slane %v8786, 1
        %v8797 = vrot.slane %v8786, 2
        %v8798 = vrot.slane %v8786, 3
        %v8799 = vrot.slane %v8786, 4
        %v8800 = vrot.slane %v8786, 5
        %v8801 = vrot.slane %v8786, 6
        %v8802 = vrot.slane %v8786, 7
        %v8819 = vmul.f32 %v8698, %v8785
        %v8820 = vmul.f32 %v8700, %v8789
        %v8821 = vmul.f32 %v8702, %v8790
        %v8822 = vmul.f32 %v8704, %v8791
        %v8823 = vmul.f32 %v8706, %v8792
        %v8824 = vmul.f32 %v8708, %v8793
        %v8825 = vmul.f32 %v8710, %v8794
        %v8826 = vmul.f32 %v8712, %v8795
        %v8827 = vmul.f32 %v8714, %v8786
        %v8828 = vmul.f32 %v8716, %v8796
        %v8829 = vmul.f32 %v8718, %v8797
        %v8830 = vmul.f32 %v8720, %v8798
        %v8831 = vmul.f32 %v8722, %v8799
        %v8832 = vmul.f32 %v8724, %v8800
        %v8833 = vmul.f32 %v8726, %v8801
        %v8834 = vmul.f32 %v8728, %v8802
        %v8851 = vrot.slane %v8820, 7
        %v8852 = vsel %vm8609, %v8851, %v8819
        %v8853 = vrot.slane %v8821, 6
        %v8854 = vsel %vm8612, %v8853, %v8852
        %v8855 = vrot.slane %v8822, 5
        %v8856 = vsel %vm8615, %v8855, %v8854
        %v8857 = vrot.slane %v8823, 4
        %v8858 = vsel %vm8618, %v8857, %v8856
        %v8859 = vrot.slane %v8824, 3
        %v8860 = vsel %vm8621, %v8859, %v8858
        %v8861 = vrot.slane %v8825, 2
        %v8862 = vsel %vm8624, %v8861, %v8860
        %v8863 = vrot.slane %v8826, 1
        %v8864 = vsel %vm8627, %v8863, %v8862
        %v8865 = vrot.slane %v8828, 7
        %v8866 = vsel %vm8609, %v8865, %v8827
        %v8867 = vrot.slane %v8829, 6
        %v8868 = vsel %vm8612, %v8867, %v8866
        %v8869 = vrot.slane %v8830, 5
        %v8870 = vsel %vm8615, %v8869, %v8868
        %v8871 = vrot.slane %v8831, 4
        %v8872 = vsel %vm8618, %v8871, %v8870
        %v8873 = vrot.slane %v8832, 3
        %v8874 = vsel %vm8621, %v8873, %v8872
        %v8875 = vrot.slane %v8833, 2
        %v8876 = vsel %vm8624, %v8875, %v8874
        %v8877 = vrot.slane %v8834, 1
        %v8878 = vsel %vm8627, %v8877, %v8876
        %8881 = vst [vmem:[%s258] sm:$0xff] %v8864
        %8882 = vst [vmem:[%s258 + $0x8] sm:$0xff] %v8878
        %s8883 = sand.u32 %s143, 1
        %s8884 = scalar_lea.sflag [#allocation3], %s8883
        %s8885 = sand.u32 %s143, 1
        %s8886 = smul.addr %s8885, 16
        %s8887 = scalar_lea.vmem [#allocation2], %s8886
        // Predicated region
        $region37: #{tpu_custom_call.1} parent=35 // pred_check
          %p8888 = pneg %p153
        $region38: #{tpu_custom_call.1} parent=35 // pred_check_branch
          %8890 = sbr.rel (%p8888) target = $region40
        $region39: #{tpu_custom_call.1} parent=35 // pred_region
          %s8891 = smul.u32 2, %s23
          %s8893 = ssub.s32 256, 256
          %8894 = vsyncadd %s8884, %s8893
          %s8895 = smul.addr %s22, 2
          %s8896 = sadd.s32 %s8891, %s8895
          %s8897 = smul.addr %s8896, 128
          %s8898 = scalar_lea.hbm %s4, %s8897
          %s8899 = sshll.u32 %s8887, 4
          %s8900 = int_to_ptr.vmem [resolvable:$true] %s8899
          %8905 = dma.vmem_to_hbm [thread:$0]  %s8900, 256, %s8898, %s8884, 128, 128, 8
        $region40: #{tpu_custom_call.1} parent=35 // pred_fallthru
          _
      $region36: #{tpu_custom_call.1} parent=5 // pred_fallthru
        _
      %p8906 = scmp.le.s32.totalorder 2, %s13
      // Predicated region
      $region41: #{tpu_custom_call.1} parent=5 // pred_check
        %p8907 = pneg %p8906
      $region42: #{tpu_custom_call.1} parent=5 // pred_check_branch
        %8909 = sbr.rel (%p8907) target = $region44
      $region43: #{tpu_custom_call.1} parent=5 // pred_region
        %s8910 = ssub.s32 %s13, 2
        // Predicated region
        $region45: #{tpu_custom_call.1} parent=43 // pred_check
          %p8911 = pneg %p159
        $region46: #{tpu_custom_call.1} parent=43 // pred_check_branch
          %8913 = sbr.rel (%p8911) target = $region48
        $region47: #{tpu_custom_call.1} parent=43 // pred_region
          %s8914 = sand.u32 %s144, 1
          %s8915 = scalar_lea.sflag [#allocation3], %s8914
          %s8916 = sand.u32 %s144, 1
          %s8917 = smul.addr %s8916, 16
          %s8918 = scalar_lea.vmem [#allocation2], %s8917
          %8919 = dma.done %s8915, 256
        $region48: #{tpu_custom_call.1} parent=43 // pred_fallthru
          _
      $region44: #{tpu_custom_call.1} parent=5 // pred_fallthru
        _
    $region6: #{tpu_custom_call.1} parent=1 // loop_footer
      %s17 = sadd.s32 1, %s13
    $region7: #{tpu_custom_call.1} parent=1 // loop_footer_branch
      %12 = sbr.rel target = $region3
    $region8: #{tpu_custom_call.1} parent=1 // loop_exit
      _
    %8920 = vsyncpa [#allocation3], 1
    %s8921 = scalar_lea.sflag [#allocation3], 1
    %8922 = vsyncpa %s8921, 1

</llo_original>
